<compile_context>
chip_gen: v7x
topology: tpu7x:2x2x1
jax: 0.10.0
libtpu: 0.0.40
codegen_flags: <defaults>
</compile_context>

<pallas_src>
import jax
import jax.numpy as jnp
from jax.experimental import pallas as pl
from jax.experimental.pallas import tpu as pltpu

_EPS = 1e-5  # nn.InstanceNorm2d default eps


def _resblock_kernel(xpad_ref, w1_ref, b1_ref, w2_ref, b2_ref, o_ref, pad_ref):
    # xpad_ref: (1, H+2, W+2, C)  zero-padded input sample (NHWC)
    # w1_ref/w2_ref: (9, C, C)    3x3 taps, tap-major (kh*3+kw), layout (Cin, Cout)
    # b1_ref/b2_ref: (1, C)
    # o_ref: (1, H, W, C)
    # pad_ref: VMEM scratch (H+2, W+2, C) for the padded intermediate activation
    _, H, W, C = o_ref.shape
    HW = H * W
    OFF_CENTER = (0, 1, 2, 3, 5, 6, 7, 8)  # all 3x3 taps except the centre (t=4)

    def instance_norm(v):
        """InstanceNorm2d(affine=False): per-channel over spatial (axis 0 of (HW,C))."""
        mean = jnp.mean(v, axis=0, keepdims=True)
        cent = v - mean
        var = jnp.mean(cent * cent, axis=0, keepdims=True)
        return cent * jax.lax.rsqrt(var + _EPS)

    # ---- conv1 -> InstanceNorm -> ReLU -------------------------------------
    # Centre tap == the unpadded input sample; keep it for the residual add.
    x_c = xpad_ref[0, 1:H + 1, 1:W + 1, :].reshape(HW, C)
    acc1 = jnp.dot(x_c, w1_ref[4], preferred_element_type=jnp.float32)
    for t in OFF_CENTER:
        dh, dw = divmod(t, 3)
        xs = xpad_ref[0, dh:dh + H, dw:dw + W, :].reshape(HW, C)
        acc1 = acc1 + jnp.dot(xs, w1_ref[t], preferred_element_type=jnp.float32)
    h = jnp.maximum(instance_norm(acc1 + b1_ref[...]), 0.0)  # (HW, C)
    # TODO(synk): Dropout(0.5) for use_dropout=True in *training* mode (identity at inference).

    # ---- zero-pad intermediate in VMEM scratch for conv2 -------------------
    pad_ref[...] = jnp.zeros_like(pad_ref)
    pad_ref[1:H + 1, 1:W + 1, :] = h.reshape(H, W, C)

    # ---- conv2 -> InstanceNorm ---------------------------------------------
    # Centre tap reuses `h` directly (skips re-reading the scratch interior).
    acc2 = jnp.dot(h, w2_ref[4], preferred_element_type=jnp.float32)
    for t in OFF_CENTER:
        dh, dw = divmod(t, 3)
        xs = pad_ref[dh:dh + H, dw:dw + W, :].reshape(HW, C)
        acc2 = acc2 + jnp.dot(xs, w2_ref[t], preferred_element_type=jnp.float32)
    y2 = instance_norm(acc2 + b2_ref[...])

    # ---- residual add -------------------------------------------------------
    o_ref[0] = (x_c + y2).reshape(H, W, C).astype(o_ref.dtype)


def resblock_forward(x_nchw, w1, b1, w2, b2):
    """x_nchw: (N, C, H, W) f32.  w1/w2: (C, C, 3, 3) torch OIHW.  b1/b2: (C,)."""
    n, c, h, w = x_nchw.shape

    # Glue: NCHW -> NHWC (C on lanes) and zero-pad spatial dims by 1 for conv1.
    x_nhwc = jnp.transpose(x_nchw, (0, 2, 3, 1)).astype(jnp.float32)
    xpad = jnp.pad(x_nhwc, ((0, 0), (1, 1), (1, 1), (0, 0)))

    # torch (Cout, Cin, kh, kw) -> (kh*3+kw, Cin, Cout): tap-major matmul weights.
    w1_t = jnp.transpose(w1, (2, 3, 1, 0)).reshape(9, c, c).astype(jnp.float32)
    w2_t = jnp.transpose(w2, (2, 3, 1, 0)).reshape(9, c, c).astype(jnp.float32)
    b1_2d = b1.reshape(1, c).astype(jnp.float32)
    b2_2d = b2.reshape(1, c).astype(jnp.float32)

    out_nhwc = pl.pallas_call(
        _resblock_kernel,
        out_shape=jax.ShapeDtypeStruct((n, h, w, c), x_nchw.dtype),
        grid_spec=pltpu.PrefetchScalarGridSpec(
            num_scalar_prefetch=0,
            grid=(n,),
            in_specs=[
                pl.BlockSpec((1, h + 2, w + 2, c), lambda i: (i, 0, 0, 0)),
                pl.BlockSpec((9, c, c), lambda i: (0, 0, 0)),  # weight1: resident
                pl.BlockSpec((1, c), lambda i: (0, 0)),        # bias1:  resident
                pl.BlockSpec((9, c, c), lambda i: (0, 0, 0)),  # weight2: resident
                pl.BlockSpec((1, c), lambda i: (0, 0)),        # bias2:  resident
            ],
            out_specs=pl.BlockSpec((1, h, w, c), lambda i: (i, 0, 0, 0)),
            scratch_shapes=[pltpu.VMEM((h + 2, w + 2, c), jnp.float32)],
        ),
        compiler_params=pltpu.CompilerParams(
            dimension_semantics=("parallel",),
            vmem_limit_bytes=32 * 1024 * 1024,
        ),
    )(xpad, w1_t, b1_2d, w2_t, b2_2d)

    # Glue: back to PyTorch NCHW layout.
    return jnp.transpose(out_nhwc, (0, 3, 1, 2))


if __name__ == "__main__":
    key = jax.random.PRNGKey(0)
    kx, k1, kb1, k2, kb2 = jax.random.split(key, 5)

    # Small shapes consistent with ResBlock(dim): dim=32 channels, 16x16 maps.
    N, C, H, W = 2, 32, 16, 16
    bound = 1.0 / jnp.sqrt(jnp.float32(C * 9))

    x = jax.random.normal(kx, (N, C, H, W), dtype=jnp.float32)
    w1 = jax.random.uniform(k1, (C, C, 3, 3), minval=-bound, maxval=bound, dtype=jnp.float32)
    b1 = jax.random.uniform(kb1, (C,), minval=-bound, maxval=bound, dtype=jnp.float32)
    w2 = jax.random.uniform(k2, (C, C, 3, 3), minval=-bound, maxval=bound, dtype=jnp.float32)
    b2 = jax.random.uniform(kb2, (C,), minval=-bound, maxval=bound, dtype=jnp.float32)

    # Quantize matmul operands to bf16-representable f32 so the numerical check
    # is tight regardless of how many MXU passes the f32 matmul uses.
    q = lambda a: a.astype(jnp.bfloat16).astype(jnp.float32)
    x, w1, w2 = q(x), q(w1), q(w2)

    out = jax.block_until_ready(resblock_forward(x, w1, b1, w2, b2))

    # Plain-JAX reference (independent path: XLA conv).
    def conv3x3_ref(v, wgt, bb):
        y = jax.lax.conv_general_dilated(
            v, wgt, window_strides=(1, 1), padding=((1, 1), (1, 1)),
            dimension_numbers=("NCHW", "OIHW", "NCHW"))
        return y + bb.reshape(1, -1, 1, 1)

    def inorm_ref(v):
        m = jnp.mean(v, axis=(2, 3), keepdims=True)
        va = jnp.mean((v - m) ** 2, axis=(2, 3), keepdims=True)
        return (v - m) * jax.lax.rsqrt(va + _EPS)

    hh = jnp.maximum(inorm_ref(conv3x3_ref(x, w1, b1)), 0.0)
    ref = x + inorm_ref(conv3x3_ref(hh, w2, b2))

    assert out.shape == (N, C, H, W)
    assert jnp.allclose(out, ref, atol=2e-3, rtol=2e-3), float(jnp.max(jnp.abs(out - ref)))

    print("KERNEL_OK")
</pallas_src>

<mosaic_0001>
module attributes {stable_mosaic.version = 11 : i64} {
  func.func @_resblock_kernel(%arg0: i32, %arg1: memref<1x18x18x32xf32, #tpu.memory_space<vmem>>, %arg2: memref<9x32x32xf32, #tpu.memory_space<vmem>>, %arg3: memref<1x32xf32, #tpu.memory_space<vmem>>, %arg4: memref<9x32x32xf32, #tpu.memory_space<vmem>>, %arg5: memref<1x32xf32, #tpu.memory_space<vmem>>, %arg6: memref<1x16x16x32xf32, #tpu.memory_space<vmem>>, %arg7: memref<18x18x32xf32, #tpu.memory_space<vmem>>) attributes {dimension_semantics = [#tpu.dimension_semantics<parallel>], iteration_bounds = array<i64: 2>, scalar_prefetch = 0 : i64, scratch_operands = 1 : i64, tpu.core_type = #tpu.core_type<tc>, window_params = [{transform_indices = @transform_0, window_bounds = array<i64: 1, 18, 18, 32>}, {pipeline_mode = #tpu.pipeline_mode<synchronous>, transform_indices = @transform_1, window_bounds = array<i64: 9, 32, 32>}, {pipeline_mode = #tpu.pipeline_mode<synchronous>, transform_indices = @transform_2, window_bounds = array<i64: 1, 32>}, {pipeline_mode = #tpu.pipeline_mode<synchronous>, transform_indices = @transform_3, window_bounds = array<i64: 9, 32, 32>}, {pipeline_mode = #tpu.pipeline_mode<synchronous>, transform_indices = @transform_4, window_bounds = array<i64: 1, 32>}, {transform_indices = @transform_5, window_bounds = array<i64: 1, 16, 16, 32>}]} {
    %c0 = arith.constant 0 : index
    %c1 = arith.constant 1 : index
    %c1_0 = arith.constant 1 : index
    %c0_1 = arith.constant 0 : index
    %0 = vector.load %arg1[%c0, %c1, %c1_0, %c0_1] : memref<1x18x18x32xf32, #tpu.memory_space<vmem>>, vector<1x16x16x32xf32>
    %1 = vector.shape_cast %0 : vector<1x16x16x32xf32> to vector<16x16x32xf32>
    %2 = vector.shape_cast %1 : vector<16x16x32xf32> to vector<256x32xf32>
    %c4 = arith.constant 4 : index
    %c0_2 = arith.constant 0 : index
    %c0_3 = arith.constant 0 : index
    %3 = vector.load %arg2[%c4, %c0_2, %c0_3] : memref<9x32x32xf32, #tpu.memory_space<vmem>>, vector<1x32x32xf32>
    %4 = vector.shape_cast %3 : vector<1x32x32xf32> to vector<32x32xf32>
    %cst = arith.constant dense<0.000000e+00> : vector<256x32xf32>
    %5 = tpu.matmul %2, %4, %cst {dimension_numbers = #tpu.dot_dimension_numbers<[1], [0], [0], [1], [0, 0, 1, 1], [], []>} : vector<256x32xf32>, vector<32x32xf32>, vector<256x32xf32> -> vector<256x32xf32>
    %c0_4 = arith.constant 0 : index
    %c0_5 = arith.constant 0 : index
    %c0_6 = arith.constant 0 : index
    %c0_7 = arith.constant 0 : index
    %6 = vector.load %arg1[%c0_4, %c0_5, %c0_6, %c0_7] : memref<1x18x18x32xf32, #tpu.memory_space<vmem>>, vector<1x16x16x32xf32>
    %7 = vector.shape_cast %6 : vector<1x16x16x32xf32> to vector<16x16x32xf32>
    %8 = vector.shape_cast %7 : vector<16x16x32xf32> to vector<256x32xf32>
    %c0_8 = arith.constant 0 : index
    %c0_9 = arith.constant 0 : index
    %c0_10 = arith.constant 0 : index
    %9 = vector.load %arg2[%c0_8, %c0_9, %c0_10] : memref<9x32x32xf32, #tpu.memory_space<vmem>>, vector<1x32x32xf32>
    %10 = vector.shape_cast %9 : vector<1x32x32xf32> to vector<32x32xf32>
    %cst_11 = arith.constant dense<0.000000e+00> : vector<256x32xf32>
    %11 = tpu.matmul %8, %10, %cst_11 {dimension_numbers = #tpu.dot_dimension_numbers<[1], [0], [0], [1], [0, 0, 1, 1], [], []>} : vector<256x32xf32>, vector<32x32xf32>, vector<256x32xf32> -> vector<256x32xf32>
    %12 = arith.addf %5, %11 : vector<256x32xf32>
    %c0_12 = arith.constant 0 : index
    %c0_13 = arith.constant 0 : index
    %c1_14 = arith.constant 1 : index
    %c0_15 = arith.constant 0 : index
    %13 = vector.load %arg1[%c0_12, %c0_13, %c1_14, %c0_15] : memref<1x18x18x32xf32, #tpu.memory_space<vmem>>, vector<1x16x16x32xf32>
    %14 = vector.shape_cast %13 : vector<1x16x16x32xf32> to vector<16x16x32xf32>
    %15 = vector.shape_cast %14 : vector<16x16x32xf32> to vector<256x32xf32>
    %c1_16 = arith.constant 1 : index
    %c0_17 = arith.constant 0 : index
    %c0_18 = arith.constant 0 : index
    %16 = vector.load %arg2[%c1_16, %c0_17, %c0_18] : memref<9x32x32xf32, #tpu.memory_space<vmem>>, vector<1x32x32xf32>
    %17 = vector.shape_cast %16 : vector<1x32x32xf32> to vector<32x32xf32>
    %cst_19 = arith.constant dense<0.000000e+00> : vector<256x32xf32>
    %18 = tpu.matmul %15, %17, %cst_19 {dimension_numbers = #tpu.dot_dimension_numbers<[1], [0], [0], [1], [0, 0, 1, 1], [], []>} : vector<256x32xf32>, vector<32x32xf32>, vector<256x32xf32> -> vector<256x32xf32>
    %19 = arith.addf %12, %18 : vector<256x32xf32>
    %c0_20 = arith.constant 0 : index
    %c0_21 = arith.constant 0 : index
    %c2 = arith.constant 2 : index
    %c0_22 = arith.constant 0 : index
    %20 = vector.load %arg1[%c0_20, %c0_21, %c2, %c0_22] : memref<1x18x18x32xf32, #tpu.memory_space<vmem>>, vector<1x16x16x32xf32>
    %21 = vector.shape_cast %20 : vector<1x16x16x32xf32> to vector<16x16x32xf32>
    %22 = vector.shape_cast %21 : vector<16x16x32xf32> to vector<256x32xf32>
    %c2_23 = arith.constant 2 : index
    %c0_24 = arith.constant 0 : index
    %c0_25 = arith.constant 0 : index
    %23 = vector.load %arg2[%c2_23, %c0_24, %c0_25] : memref<9x32x32xf32, #tpu.memory_space<vmem>>, vector<1x32x32xf32>
    %24 = vector.shape_cast %23 : vector<1x32x32xf32> to vector<32x32xf32>
    %cst_26 = arith.constant dense<0.000000e+00> : vector<256x32xf32>
    %25 = tpu.matmul %22, %24, %cst_26 {dimension_numbers = #tpu.dot_dimension_numbers<[1], [0], [0], [1], [0, 0, 1, 1], [], []>} : vector<256x32xf32>, vector<32x32xf32>, vector<256x32xf32> -> vector<256x32xf32>
    %26 = arith.addf %19, %25 : vector<256x32xf32>
    %c0_27 = arith.constant 0 : index
    %c1_28 = arith.constant 1 : index
    %c0_29 = arith.constant 0 : index
    %c0_30 = arith.constant 0 : index
    %27 = vector.load %arg1[%c0_27, %c1_28, %c0_29, %c0_30] : memref<1x18x18x32xf32, #tpu.memory_space<vmem>>, vector<1x16x16x32xf32>
    %28 = vector.shape_cast %27 : vector<1x16x16x32xf32> to vector<16x16x32xf32>
    %29 = vector.shape_cast %28 : vector<16x16x32xf32> to vector<256x32xf32>
    %c3 = arith.constant 3 : index
    %c0_31 = arith.constant 0 : index
    %c0_32 = arith.constant 0 : index
    %30 = vector.load %arg2[%c3, %c0_31, %c0_32] : memref<9x32x32xf32, #tpu.memory_space<vmem>>, vector<1x32x32xf32>
    %31 = vector.shape_cast %30 : vector<1x32x32xf32> to vector<32x32xf32>
    %cst_33 = arith.constant dense<0.000000e+00> : vector<256x32xf32>
    %32 = tpu.matmul %29, %31, %cst_33 {dimension_numbers = #tpu.dot_dimension_numbers<[1], [0], [0], [1], [0, 0, 1, 1], [], []>} : vector<256x32xf32>, vector<32x32xf32>, vector<256x32xf32> -> vector<256x32xf32>
    %33 = arith.addf %26, %32 : vector<256x32xf32>
    %c0_34 = arith.constant 0 : index
    %c1_35 = arith.constant 1 : index
    %c2_36 = arith.constant 2 : index
    %c0_37 = arith.constant 0 : index
    %34 = vector.load %arg1[%c0_34, %c1_35, %c2_36, %c0_37] : memref<1x18x18x32xf32, #tpu.memory_space<vmem>>, vector<1x16x16x32xf32>
    %35 = vector.shape_cast %34 : vector<1x16x16x32xf32> to vector<16x16x32xf32>
    %36 = vector.shape_cast %35 : vector<16x16x32xf32> to vector<256x32xf32>
    %c5 = arith.constant 5 : index
    %c0_38 = arith.constant 0 : index
    %c0_39 = arith.constant 0 : index
    %37 = vector.load %arg2[%c5, %c0_38, %c0_39] : memref<9x32x32xf32, #tpu.memory_space<vmem>>, vector<1x32x32xf32>
    %38 = vector.shape_cast %37 : vector<1x32x32xf32> to vector<32x32xf32>
    %cst_40 = arith.constant dense<0.000000e+00> : vector<256x32xf32>
    %39 = tpu.matmul %36, %38, %cst_40 {dimension_numbers = #tpu.dot_dimension_numbers<[1], [0], [0], [1], [0, 0, 1, 1], [], []>} : vector<256x32xf32>, vector<32x32xf32>, vector<256x32xf32> -> vector<256x32xf32>
    %40 = arith.addf %33, %39 : vector<256x32xf32>
    %c0_41 = arith.constant 0 : index
    %c2_42 = arith.constant 2 : index
    %c0_43 = arith.constant 0 : index
    %c0_44 = arith.constant 0 : index
    %41 = vector.load %arg1[%c0_41, %c2_42, %c0_43, %c0_44] : memref<1x18x18x32xf32, #tpu.memory_space<vmem>>, vector<1x16x16x32xf32>
    %42 = vector.shape_cast %41 : vector<1x16x16x32xf32> to vector<16x16x32xf32>
    %43 = vector.shape_cast %42 : vector<16x16x32xf32> to vector<256x32xf32>
    %c6 = arith.constant 6 : index
    %c0_45 = arith.constant 0 : index
    %c0_46 = arith.constant 0 : index
    %44 = vector.load %arg2[%c6, %c0_45, %c0_46] : memref<9x32x32xf32, #tpu.memory_space<vmem>>, vector<1x32x32xf32>
    %45 = vector.shape_cast %44 : vector<1x32x32xf32> to vector<32x32xf32>
    %cst_47 = arith.constant dense<0.000000e+00> : vector<256x32xf32>
    %46 = tpu.matmul %43, %45, %cst_47 {dimension_numbers = #tpu.dot_dimension_numbers<[1], [0], [0], [1], [0, 0, 1, 1], [], []>} : vector<256x32xf32>, vector<32x32xf32>, vector<256x32xf32> -> vector<256x32xf32>
    %47 = arith.addf %40, %46 : vector<256x32xf32>
    %c0_48 = arith.constant 0 : index
    %c2_49 = arith.constant 2 : index
    %c1_50 = arith.constant 1 : index
    %c0_51 = arith.constant 0 : index
    %48 = vector.load %arg1[%c0_48, %c2_49, %c1_50, %c0_51] : memref<1x18x18x32xf32, #tpu.memory_space<vmem>>, vector<1x16x16x32xf32>
    %49 = vector.shape_cast %48 : vector<1x16x16x32xf32> to vector<16x16x32xf32>
    %50 = vector.shape_cast %49 : vector<16x16x32xf32> to vector<256x32xf32>
    %c7 = arith.constant 7 : index
    %c0_52 = arith.constant 0 : index
    %c0_53 = arith.constant 0 : index
    %51 = vector.load %arg2[%c7, %c0_52, %c0_53] : memref<9x32x32xf32, #tpu.memory_space<vmem>>, vector<1x32x32xf32>
    %52 = vector.shape_cast %51 : vector<1x32x32xf32> to vector<32x32xf32>
    %cst_54 = arith.constant dense<0.000000e+00> : vector<256x32xf32>
    %53 = tpu.matmul %50, %52, %cst_54 {dimension_numbers = #tpu.dot_dimension_numbers<[1], [0], [0], [1], [0, 0, 1, 1], [], []>} : vector<256x32xf32>, vector<32x32xf32>, vector<256x32xf32> -> vector<256x32xf32>
    %54 = arith.addf %47, %53 : vector<256x32xf32>
    %c0_55 = arith.constant 0 : index
    %c2_56 = arith.constant 2 : index
    %c2_57 = arith.constant 2 : index
    %c0_58 = arith.constant 0 : index
    %55 = vector.load %arg1[%c0_55, %c2_56, %c2_57, %c0_58] : memref<1x18x18x32xf32, #tpu.memory_space<vmem>>, vector<1x16x16x32xf32>
    %56 = vector.shape_cast %55 : vector<1x16x16x32xf32> to vector<16x16x32xf32>
    %57 = vector.shape_cast %56 : vector<16x16x32xf32> to vector<256x32xf32>
    %c8 = arith.constant 8 : index
    %c0_59 = arith.constant 0 : index
    %c0_60 = arith.constant 0 : index
    %58 = vector.load %arg2[%c8, %c0_59, %c0_60] : memref<9x32x32xf32, #tpu.memory_space<vmem>>, vector<1x32x32xf32>
    %59 = vector.shape_cast %58 : vector<1x32x32xf32> to vector<32x32xf32>
    %cst_61 = arith.constant dense<0.000000e+00> : vector<256x32xf32>
    %60 = tpu.matmul %57, %59, %cst_61 {dimension_numbers = #tpu.dot_dimension_numbers<[1], [0], [0], [1], [0, 0, 1, 1], [], []>} : vector<256x32xf32>, vector<32x32xf32>, vector<256x32xf32> -> vector<256x32xf32>
    %61 = arith.addf %54, %60 : vector<256x32xf32>
    %c0_62 = arith.constant 0 : index
    %c0_63 = arith.constant 0 : index
    %62 = vector.load %arg3[%c0_62, %c0_63] : memref<1x32xf32, #tpu.memory_space<vmem>>, vector<1x32xf32>
    %63 = vector.broadcast %62 : vector<1x32xf32> to vector<256x32xf32>
    %64 = arith.addf %61, %63 : vector<256x32xf32>
    %cst_64 = arith.constant dense<0.000000e+00> : vector<32xf32>
    %65 = vector.multi_reduction <add>, %64, %cst_64 [0] : vector<256x32xf32> to vector<32xf32>
    %66 = vector.shape_cast %65 : vector<32xf32> to vector<1x32xf32>
    %cst_65 = arith.constant 2.560000e+02 : f32
    %67 = vector.broadcast %cst_65 : f32 to vector<1x32xf32>
    %68 = arith.divf %66, %67 : vector<1x32xf32>
    %69 = vector.broadcast %68 : vector<1x32xf32> to vector<256x32xf32>
    %70 = arith.subf %64, %69 : vector<256x32xf32>
    %71 = arith.mulf %70, %70 : vector<256x32xf32>
    %cst_66 = arith.constant dense<0.000000e+00> : vector<32xf32>
    %72 = vector.multi_reduction <add>, %71, %cst_66 [0] : vector<256x32xf32> to vector<32xf32>
    %73 = vector.shape_cast %72 : vector<32xf32> to vector<1x32xf32>
    %cst_67 = arith.constant 2.560000e+02 : f32
    %74 = vector.broadcast %cst_67 : f32 to vector<1x32xf32>
    %75 = arith.divf %73, %74 : vector<1x32xf32>
    %cst_68 = arith.constant 9.99999974E-6 : f32
    %76 = vector.broadcast %cst_68 : f32 to vector<1x32xf32>
    %77 = arith.addf %75, %76 : vector<1x32xf32>
    %78 = math.rsqrt %77 : vector<1x32xf32>
    %79 = vector.broadcast %78 : vector<1x32xf32> to vector<256x32xf32>
    %80 = arith.mulf %70, %79 : vector<256x32xf32>
    %cst_69 = arith.constant 0.000000e+00 : f32
    %81 = vector.broadcast %cst_69 : f32 to vector<256x32xf32>
    %82 = arith.maximumf %80, %81 : vector<256x32xf32>
    %cst_70 = arith.constant 0.000000e+00 : f32
    %83 = vector.broadcast %cst_70 : f32 to vector<18x18x32xf32>
    %c0_71 = arith.constant 0 : index
    %c0_72 = arith.constant 0 : index
    %c0_73 = arith.constant 0 : index
    %84 = vector.load %arg7[%c0_71, %c0_72, %c0_73] : memref<18x18x32xf32, #tpu.memory_space<vmem>>, vector<18x18x32xf32>
    tpu.vector_store %arg7[%c0_71, %c0_72, %c0_73], %83 {strides = array<i32>} : memref<18x18x32xf32, #tpu.memory_space<vmem>>, vector<18x18x32xf32>,
    %85 = vector.shape_cast %82 : vector<256x32xf32> to vector<16x16x32xf32>
    %c1_74 = arith.constant 1 : index
    %c1_75 = arith.constant 1 : index
    %c0_76 = arith.constant 0 : index
    %86 = vector.load %arg7[%c1_74, %c1_75, %c0_76] : memref<18x18x32xf32, #tpu.memory_space<vmem>>, vector<16x16x32xf32>
    tpu.vector_store %arg7[%c1_74, %c1_75, %c0_76], %85 {strides = array<i32>} : memref<18x18x32xf32, #tpu.memory_space<vmem>>, vector<16x16x32xf32>,
    %c4_77 = arith.constant 4 : index
    %c0_78 = arith.constant 0 : index
    %c0_79 = arith.constant 0 : index
    %87 = vector.load %arg4[%c4_77, %c0_78, %c0_79] : memref<9x32x32xf32, #tpu.memory_space<vmem>>, vector<1x32x32xf32>
    %88 = vector.shape_cast %87 : vector<1x32x32xf32> to vector<32x32xf32>
    %cst_80 = arith.constant dense<0.000000e+00> : vector<256x32xf32>
    %89 = tpu.matmul %82, %88, %cst_80 {dimension_numbers = #tpu.dot_dimension_numbers<[1], [0], [0], [1], [0, 0, 1, 1], [], []>} : vector<256x32xf32>, vector<32x32xf32>, vector<256x32xf32> -> vector<256x32xf32>
    %c0_81 = arith.constant 0 : index
    %c0_82 = arith.constant 0 : index
    %c0_83 = arith.constant 0 : index
    %90 = vector.load %arg7[%c0_81, %c0_82, %c0_83] : memref<18x18x32xf32, #tpu.memory_space<vmem>>, vector<16x16x32xf32>
    %91 = vector.shape_cast %90 : vector<16x16x32xf32> to vector<256x32xf32>
    %c0_84 = arith.constant 0 : index
    %c0_85 = arith.constant 0 : index
    %c0_86 = arith.constant 0 : index
    %92 = vector.load %arg4[%c0_84, %c0_85, %c0_86] : memref<9x32x32xf32, #tpu.memory_space<vmem>>, vector<1x32x32xf32>
    %93 = vector.shape_cast %92 : vector<1x32x32xf32> to vector<32x32xf32>
    %cst_87 = arith.constant dense<0.000000e+00> : vector<256x32xf32>
    %94 = tpu.matmul %91, %93, %cst_87 {dimension_numbers = #tpu.dot_dimension_numbers<[1], [0], [0], [1], [0, 0, 1, 1], [], []>} : vector<256x32xf32>, vector<32x32xf32>, vector<256x32xf32> -> vector<256x32xf32>
    %95 = arith.addf %89, %94 : vector<256x32xf32>
    %c0_88 = arith.constant 0 : index
    %c1_89 = arith.constant 1 : index
    %c0_90 = arith.constant 0 : index
    %96 = vector.load %arg7[%c0_88, %c1_89, %c0_90] : memref<18x18x32xf32, #tpu.memory_space<vmem>>, vector<16x16x32xf32>
    %97 = vector.shape_cast %96 : vector<16x16x32xf32> to vector<256x32xf32>
    %c1_91 = arith.constant 1 : index
    %c0_92 = arith.constant 0 : index
    %c0_93 = arith.constant 0 : index
    %98 = vector.load %arg4[%c1_91, %c0_92, %c0_93] : memref<9x32x32xf32, #tpu.memory_space<vmem>>, vector<1x32x32xf32>
    %99 = vector.shape_cast %98 : vector<1x32x32xf32> to vector<32x32xf32>
    %cst_94 = arith.constant dense<0.000000e+00> : vector<256x32xf32>
    %100 = tpu.matmul %97, %99, %cst_94 {dimension_numbers = #tpu.dot_dimension_numbers<[1], [0], [0], [1], [0, 0, 1, 1], [], []>} : vector<256x32xf32>, vector<32x32xf32>, vector<256x32xf32> -> vector<256x32xf32>
    %101 = arith.addf %95, %100 : vector<256x32xf32>
    %c0_95 = arith.constant 0 : index
    %c2_96 = arith.constant 2 : index
    %c0_97 = arith.constant 0 : index
    %102 = vector.load %arg7[%c0_95, %c2_96, %c0_97] : memref<18x18x32xf32, #tpu.memory_space<vmem>>, vector<16x16x32xf32>
    %103 = vector.shape_cast %102 : vector<16x16x32xf32> to vector<256x32xf32>
    %c2_98 = arith.constant 2 : index
    %c0_99 = arith.constant 0 : index
    %c0_100 = arith.constant 0 : index
    %104 = vector.load %arg4[%c2_98, %c0_99, %c0_100] : memref<9x32x32xf32, #tpu.memory_space<vmem>>, vector<1x32x32xf32>
    %105 = vector.shape_cast %104 : vector<1x32x32xf32> to vector<32x32xf32>
    %cst_101 = arith.constant dense<0.000000e+00> : vector<256x32xf32>
    %106 = tpu.matmul %103, %105, %cst_101 {dimension_numbers = #tpu.dot_dimension_numbers<[1], [0], [0], [1], [0, 0, 1, 1], [], []>} : vector<256x32xf32>, vector<32x32xf32>, vector<256x32xf32> -> vector<256x32xf32>
    %107 = arith.addf %101, %106 : vector<256x32xf32>
    %c1_102 = arith.constant 1 : index
    %c0_103 = arith.constant 0 : index
    %c0_104 = arith.constant 0 : index
    %108 = vector.load %arg7[%c1_102, %c0_103, %c0_104] : memref<18x18x32xf32, #tpu.memory_space<vmem>>, vector<16x16x32xf32>
    %109 = vector.shape_cast %108 : vector<16x16x32xf32> to vector<256x32xf32>
    %c3_105 = arith.constant 3 : index
    %c0_106 = arith.constant 0 : index
    %c0_107 = arith.constant 0 : index
    %110 = vector.load %arg4[%c3_105, %c0_106, %c0_107] : memref<9x32x32xf32, #tpu.memory_space<vmem>>, vector<1x32x32xf32>
    %111 = vector.shape_cast %110 : vector<1x32x32xf32> to vector<32x32xf32>
    %cst_108 = arith.constant dense<0.000000e+00> : vector<256x32xf32>
    %112 = tpu.matmul %109, %111, %cst_108 {dimension_numbers = #tpu.dot_dimension_numbers<[1], [0], [0], [1], [0, 0, 1, 1], [], []>} : vector<256x32xf32>, vector<32x32xf32>, vector<256x32xf32> -> vector<256x32xf32>
    %113 = arith.addf %107, %112 : vector<256x32xf32>
    %c1_109 = arith.constant 1 : index
    %c2_110 = arith.constant 2 : index
    %c0_111 = arith.constant 0 : index
    %114 = vector.load %arg7[%c1_109, %c2_110, %c0_111] : memref<18x18x32xf32, #tpu.memory_space<vmem>>, vector<16x16x32xf32>
    %115 = vector.shape_cast %114 : vector<16x16x32xf32> to vector<256x32xf32>
    %c5_112 = arith.constant 5 : index
    %c0_113 = arith.constant 0 : index
    %c0_114 = arith.constant 0 : index
    %116 = vector.load %arg4[%c5_112, %c0_113, %c0_114] : memref<9x32x32xf32, #tpu.memory_space<vmem>>, vector<1x32x32xf32>
    %117 = vector.shape_cast %116 : vector<1x32x32xf32> to vector<32x32xf32>
    %cst_115 = arith.constant dense<0.000000e+00> : vector<256x32xf32>
    %118 = tpu.matmul %115, %117, %cst_115 {dimension_numbers = #tpu.dot_dimension_numbers<[1], [0], [0], [1], [0, 0, 1, 1], [], []>} : vector<256x32xf32>, vector<32x32xf32>, vector<256x32xf32> -> vector<256x32xf32>
    %119 = arith.addf %113, %118 : vector<256x32xf32>
    %c2_116 = arith.constant 2 : index
    %c0_117 = arith.constant 0 : index
    %c0_118 = arith.constant 0 : index
    %120 = vector.load %arg7[%c2_116, %c0_117, %c0_118] : memref<18x18x32xf32, #tpu.memory_space<vmem>>, vector<16x16x32xf32>
    %121 = vector.shape_cast %120 : vector<16x16x32xf32> to vector<256x32xf32>
    %c6_119 = arith.constant 6 : index
    %c0_120 = arith.constant 0 : index
    %c0_121 = arith.constant 0 : index
    %122 = vector.load %arg4[%c6_119, %c0_120, %c0_121] : memref<9x32x32xf32, #tpu.memory_space<vmem>>, vector<1x32x32xf32>
    %123 = vector.shape_cast %122 : vector<1x32x32xf32> to vector<32x32xf32>
    %cst_122 = arith.constant dense<0.000000e+00> : vector<256x32xf32>
    %124 = tpu.matmul %121, %123, %cst_122 {dimension_numbers = #tpu.dot_dimension_numbers<[1], [0], [0], [1], [0, 0, 1, 1], [], []>} : vector<256x32xf32>, vector<32x32xf32>, vector<256x32xf32> -> vector<256x32xf32>
    %125 = arith.addf %119, %124 : vector<256x32xf32>
    %c2_123 = arith.constant 2 : index
    %c1_124 = arith.constant 1 : index
    %c0_125 = arith.constant 0 : index
    %126 = vector.load %arg7[%c2_123, %c1_124, %c0_125] : memref<18x18x32xf32, #tpu.memory_space<vmem>>, vector<16x16x32xf32>
    %127 = vector.shape_cast %126 : vector<16x16x32xf32> to vector<256x32xf32>
    %c7_126 = arith.constant 7 : index
    %c0_127 = arith.constant 0 : index
    %c0_128 = arith.constant 0 : index
    %128 = vector.load %arg4[%c7_126, %c0_127, %c0_128] : memref<9x32x32xf32, #tpu.memory_space<vmem>>, vector<1x32x32xf32>
    %129 = vector.shape_cast %128 : vector<1x32x32xf32> to vector<32x32xf32>
    %cst_129 = arith.constant dense<0.000000e+00> : vector<256x32xf32>
    %130 = tpu.matmul %127, %129, %cst_129 {dimension_numbers = #tpu.dot_dimension_numbers<[1], [0], [0], [1], [0, 0, 1, 1], [], []>} : vector<256x32xf32>, vector<32x32xf32>, vector<256x32xf32> -> vector<256x32xf32>
    %131 = arith.addf %125, %130 : vector<256x32xf32>
    %c2_130 = arith.constant 2 : index
    %c2_131 = arith.constant 2 : index
    %c0_132 = arith.constant 0 : index
    %132 = vector.load %arg7[%c2_130, %c2_131, %c0_132] : memref<18x18x32xf32, #tpu.memory_space<vmem>>, vector<16x16x32xf32>
    %133 = vector.shape_cast %132 : vector<16x16x32xf32> to vector<256x32xf32>
    %c8_133 = arith.constant 8 : index
    %c0_134 = arith.constant 0 : index
    %c0_135 = arith.constant 0 : index
    %134 = vector.load %arg4[%c8_133, %c0_134, %c0_135] : memref<9x32x32xf32, #tpu.memory_space<vmem>>, vector<1x32x32xf32>
    %135 = vector.shape_cast %134 : vector<1x32x32xf32> to vector<32x32xf32>
    %cst_136 = arith.constant dense<0.000000e+00> : vector<256x32xf32>
    %136 = tpu.matmul %133, %135, %cst_136 {dimension_numbers = #tpu.dot_dimension_numbers<[1], [0], [0], [1], [0, 0, 1, 1], [], []>} : vector<256x32xf32>, vector<32x32xf32>, vector<256x32xf32> -> vector<256x32xf32>
    %137 = arith.addf %131, %136 : vector<256x32xf32>
    %c0_137 = arith.constant 0 : index
    %c0_138 = arith.constant 0 : index
    %138 = vector.load %arg5[%c0_137, %c0_138] : memref<1x32xf32, #tpu.memory_space<vmem>>, vector<1x32xf32>
    %139 = vector.broadcast %138 : vector<1x32xf32> to vector<256x32xf32>
    %140 = arith.addf %137, %139 : vector<256x32xf32>
    %cst_139 = arith.constant dense<0.000000e+00> : vector<32xf32>
    %141 = vector.multi_reduction <add>, %140, %cst_139 [0] : vector<256x32xf32> to vector<32xf32>
    %142 = vector.shape_cast %141 : vector<32xf32> to vector<1x32xf32>
    %cst_140 = arith.constant 2.560000e+02 : f32
    %143 = vector.broadcast %cst_140 : f32 to vector<1x32xf32>
    %144 = arith.divf %142, %143 : vector<1x32xf32>
    %145 = vector.broadcast %144 : vector<1x32xf32> to vector<256x32xf32>
    %146 = arith.subf %140, %145 : vector<256x32xf32>
    %147 = arith.mulf %146, %146 : vector<256x32xf32>
    %cst_141 = arith.constant dense<0.000000e+00> : vector<32xf32>
    %148 = vector.multi_reduction <add>, %147, %cst_141 [0] : vector<256x32xf32> to vector<32xf32>
    %149 = vector.shape_cast %148 : vector<32xf32> to vector<1x32xf32>
    %cst_142 = arith.constant 2.560000e+02 : f32
    %150 = vector.broadcast %cst_142 : f32 to vector<1x32xf32>
    %151 = arith.divf %149, %150 : vector<1x32xf32>
    %cst_143 = arith.constant 9.99999974E-6 : f32
    %152 = vector.broadcast %cst_143 : f32 to vector<1x32xf32>
    %153 = arith.addf %151, %152 : vector<1x32xf32>
    %154 = math.rsqrt %153 : vector<1x32xf32>
    %155 = vector.broadcast %154 : vector<1x32xf32> to vector<256x32xf32>
    %156 = arith.mulf %146, %155 : vector<256x32xf32>
    %157 = arith.addf %2, %156 : vector<256x32xf32>
    %158 = vector.shape_cast %157 : vector<256x32xf32> to vector<16x16x32xf32>
    %c0_144 = arith.constant 0 : index
    %c0_145 = arith.constant 0 : index
    %c0_146 = arith.constant 0 : index
    %c0_147 = arith.constant 0 : index
    %159 = vector.load %arg6[%c0_144, %c0_145, %c0_146, %c0_147] : memref<1x16x16x32xf32, #tpu.memory_space<vmem>>, vector<1x16x16x32xf32>
    %160 = vector.shape_cast %159 : vector<1x16x16x32xf32> to vector<16x16x32xf32>
    %161 = vector.shape_cast %158 : vector<16x16x32xf32> to vector<1x16x16x32xf32>
    tpu.vector_store %arg6[%c0_144, %c0_145, %c0_146, %c0_147], %161 {strides = array<i32>} : memref<1x16x16x32xf32, #tpu.memory_space<vmem>>, vector<1x16x16x32xf32>,
    return
  }
  func.func @transform_0(%arg0: i32) -> (i32, i32, i32, i32) {
    %c0_i32 = arith.constant 0 : i32
    %c0_i32_0 = arith.constant 0 : i32
    %c0_i32_1 = arith.constant 0 : i32
    %c0_i32_2 = arith.constant 0 : i32
    return %arg0, %c0_i32, %c0_i32_0, %c0_i32_1 : i32, i32, i32, i32
  }
  func.func @transform_1(%arg0: i32) -> (i32, i32, i32) {
    %c0_i32 = arith.constant 0 : i32
    %c0_i32_0 = arith.constant 0 : i32
    %c0_i32_1 = arith.constant 0 : i32
    %c0_i32_2 = arith.constant 0 : i32
    return %c0_i32, %c0_i32_0, %c0_i32_1 : i32, i32, i32
  }
  func.func @transform_2(%arg0: i32) -> (i32, i32) {
    %c0_i32 = arith.constant 0 : i32
    %c0_i32_0 = arith.constant 0 : i32
    %c0_i32_1 = arith.constant 0 : i32
    return %c0_i32, %c0_i32_0 : i32, i32
  }
  func.func @transform_3(%arg0: i32) -> (i32, i32, i32) {
    %c0_i32 = arith.constant 0 : i32
    %c0_i32_0 = arith.constant 0 : i32
    %c0_i32_1 = arith.constant 0 : i32
    %c0_i32_2 = arith.constant 0 : i32
    return %c0_i32, %c0_i32_0, %c0_i32_1 : i32, i32, i32
  }
  func.func @transform_4(%arg0: i32) -> (i32, i32) {
    %c0_i32 = arith.constant 0 : i32
    %c0_i32_0 = arith.constant 0 : i32
    %c0_i32_1 = arith.constant 0 : i32
    return %c0_i32, %c0_i32_0 : i32, i32
  }
  func.func @transform_5(%arg0: i32) -> (i32, i32, i32, i32) {
    %c0_i32 = arith.constant 0 : i32
    %c0_i32_0 = arith.constant 0 : i32
    %c0_i32_1 = arith.constant 0 : i32
    %c0_i32_2 = arith.constant 0 : i32
    return %arg0, %c0_i32, %c0_i32_0, %c0_i32_1 : i32, i32, i32, i32
  }
}

</mosaic_0001>

<llo_original>
// kernel: tpu_custom_call.1
$region0: #{tpu_custom_call.1}
  #allocation0 [shape = 'u32[]', space=smem, size = 0x4, offset = 0x4, fixed_abs, tag = 'smem constant byte address 0x4 - core index']
  #allocation1 [shape = 'u32[144,128]{1,0:T(1,128)}', space=vmem, size = 0x12000, scoped, tag = 'internal scratch']
  #allocation2 [shape = 'f32[18,18,32]{2,1,0:T(8,128)}', space=vmem, size = 0x36000, scoped, tag = 'scratch operand']
  %s0 = inlined_call_operand.vmem [shape: f32[2,18,18,32], index: 0, kind: input, shape index: {}]
  %s1 = inlined_call_operand.vmem [shape: f32[9,32,32], index: 1, kind: input, shape index: {}]
  %s2 = inlined_call_operand.vmem [shape: f32[1,32], index: 2, kind: input, shape index: {}]
  %s3 = inlined_call_operand.vmem [shape: f32[9,32,32], index: 3, kind: input, shape index: {}]
  %s4 = inlined_call_operand.vmem [shape: f32[1,32], index: 4, kind: input, shape index: {}]
  %s5 = inlined_call_operand.hbm [shape: f32[2,16,16,32], index: 5, kind: output, shape index: {}]
  %s6 = sld [smem:[#allocation0]]
  $region53: #{tpu_custom_call.1} parent=0
    _
  %s8 = ssub.s32 1, %s6
  %s9 = scalar_select 0, %s8, %s6
  $region1: #{tpu_custom_call.1} parent=0
    #allocation3 [shape = 'u8[262144]{0}', space=vmem, size = 0x40000, scoped, tag = 'output window, operand 0']
    #allocation4 [shape = 's32[2]{0}', space=sflag, size = 0x8, scoped, tag = 'scoped memory for tpu_custom_call.1']
    %10 = vsyncpa [#allocation4], 0
    %s11 = scalar_lea.sflag [#allocation4], 1
    %12 = vsyncpa %s11, 0
    loop: start=0, step=1, limit=4
    $region2: #{tpu_custom_call.1} parent=1 // loop_pre_header
      _
    $region3: #{tpu_custom_call.1} parent=1 // loop_header
      %s14 = sphi 0, %s18
      %p15 = scmp.ge.s32.totalorder %s14, 4
      %s24 = sphi 0, %s26
      %s27 = sphi 0, %s24
      %s28 = sphi 0, %s27
      %s44 = sphi 0, %s28
      %s48 = sphi 0, %s48
      %s50 = sphi 0, %s48
      %s51 = sphi 0, %s50
      %s65 = sphi 0, %s51
      %s69 = sphi 0, %s69
      %s71 = sphi 0, %s69
      %s72 = sphi 0, %s71
      %s86 = sphi 0, %s72
      %s90 = sphi 0, %s90
      %s92 = sphi 0, %s90
      %s93 = sphi 0, %s92
      %s107 = sphi 0, %s93
      %s111 = sphi 0, %s111
      %s113 = sphi 0, %s111
      %s114 = sphi 0, %s113
      %s128 = sphi 0, %s114
      %s134 = sphi 0, %s136
      %s137 = sphi 0, %s134
      %s138 = sphi 0, %s137
      %s154 = sphi 0, %s138
    $region4: #{tpu_custom_call.1} parent=1 // loop_header_branch
      %17 = sbr.rel (%p15) target = $region8
    $region5: #{tpu_custom_call.1} parent=1 // loop_body
      %s19 = ssub.s32 %s14, 1
      %s20 = ssub.s32 %s14, 2
      %s21 = sadd.s32 %s14, 1
      %s22 = ssub.s32 %s14, %s21
      %p23 = scmp.eq.s32.totalorder %s22, 0
      %s25 = sadd.s32 %s24, 1
      %s26 = scalar_select %p23, %s24, %s25
      %p29 = pneg %p23
      %p30 = scmp.eq.s32.totalorder %s14, 1
      %p31 = por %p29, %p30
      %p32 = scmp.ne.s32.totalorder %s24, %s27
      %p33 = scmp.eq.s32.totalorder %s14, 0
      %p34 = por %p32, %p33
      %p35 = scmp.ne.s32.totalorder %s24, %s27
      %p36 = scmp.eq.s32.totalorder %s19, 1
      %p37 = por %p35, %p36
      %p38 = scmp.ne.s32.totalorder %s27, %s28
      %p39 = scmp.eq.s32.totalorder %s19, 0
      %p40 = por %p38, %p39
      %p41 = scmp.ne.s32.totalorder %s27, %s28
      %p42 = scmp.eq.s32.totalorder %s20, 1
      %p43 = por %p41, %p42
      %p45 = scmp.ne.s32.totalorder %s28, %s44
      %p46 = scmp.eq.s32.totalorder %s20, 0
      %p47 = por %p45, %p46
      %s49 = sadd.s32 %s48, 1
      %p52 = scmp.eq.s32.totalorder %s14, 1
      %p53 = scmp.ne.s32.totalorder %s48, %s50
      %p54 = scmp.eq.s32.totalorder %s14, 0
      %p55 = por %p53, %p54
      %p56 = scmp.ne.s32.totalorder %s48, %s50
      %p57 = scmp.eq.s32.totalorder %s19, 1
      %p58 = por %p56, %p57
      %p59 = scmp.ne.s32.totalorder %s50, %s51
      %p60 = scmp.eq.s32.totalorder %s19, 0
      %p61 = por %p59, %p60
      %p62 = scmp.ne.s32.totalorder %s50, %s51
      %p63 = scmp.eq.s32.totalorder %s20, 1
      %p64 = por %p62, %p63
      %p66 = scmp.ne.s32.totalorder %s51, %s65
      %p67 = scmp.eq.s32.totalorder %s20, 0
      %p68 = por %p66, %p67
      %s70 = sadd.s32 %s69, 1
      %p73 = scmp.eq.s32.totalorder %s14, 1
      %p74 = scmp.ne.s32.totalorder %s69, %s71
      %p75 = scmp.eq.s32.totalorder %s14, 0
      %p76 = por %p74, %p75
      %p77 = scmp.ne.s32.totalorder %s69, %s71
      %p78 = scmp.eq.s32.totalorder %s19, 1
      %p79 = por %p77, %p78
      %p80 = scmp.ne.s32.totalorder %s71, %s72
      %p81 = scmp.eq.s32.totalorder %s19, 0
      %p82 = por %p80, %p81
      %p83 = scmp.ne.s32.totalorder %s71, %s72
      %p84 = scmp.eq.s32.totalorder %s20, 1
      %p85 = por %p83, %p84
      %p87 = scmp.ne.s32.totalorder %s72, %s86
      %p88 = scmp.eq.s32.totalorder %s20, 0
      %p89 = por %p87, %p88
      %s91 = sadd.s32 %s90, 1
      %p94 = scmp.eq.s32.totalorder %s14, 1
      %p95 = scmp.ne.s32.totalorder %s90, %s92
      %p96 = scmp.eq.s32.totalorder %s14, 0
      %p97 = por %p95, %p96
      %p98 = scmp.ne.s32.totalorder %s90, %s92
      %p99 = scmp.eq.s32.totalorder %s19, 1
      %p100 = por %p98, %p99
      %p101 = scmp.ne.s32.totalorder %s92, %s93
      %p102 = scmp.eq.s32.totalorder %s19, 0
      %p103 = por %p101, %p102
      %p104 = scmp.ne.s32.totalorder %s92, %s93
      %p105 = scmp.eq.s32.totalorder %s20, 1
      %p106 = por %p104, %p105
      %p108 = scmp.ne.s32.totalorder %s93, %s107
      %p109 = scmp.eq.s32.totalorder %s20, 0
      %p110 = por %p108, %p109
      %s112 = sadd.s32 %s111, 1
      %p115 = scmp.eq.s32.totalorder %s14, 1
      %p116 = scmp.ne.s32.totalorder %s111, %s113
      %p117 = scmp.eq.s32.totalorder %s14, 0
      %p118 = por %p116, %p117
      %p119 = scmp.ne.s32.totalorder %s111, %s113
      %p120 = scmp.eq.s32.totalorder %s19, 1
      %p121 = por %p119, %p120
      %p122 = scmp.ne.s32.totalorder %s113, %s114
      %p123 = scmp.eq.s32.totalorder %s19, 0
      %p124 = por %p122, %p123
      %p125 = scmp.ne.s32.totalorder %s113, %s114
      %p126 = scmp.eq.s32.totalorder %s20, 1
      %p127 = por %p125, %p126
      %p129 = scmp.ne.s32.totalorder %s114, %s128
      %p130 = scmp.eq.s32.totalorder %s20, 0
      %p131 = por %p129, %p130
      %s132 = ssub.s32 %s14, %s21
      %p133 = scmp.eq.s32.totalorder %s132, 0
      %s135 = sadd.s32 %s134, 1
      %s136 = scalar_select %p133, %s134, %s135
      %p139 = pneg %p133
      %p140 = scmp.eq.s32.totalorder %s14, 1
      %p141 = por %p139, %p140
      %p142 = scmp.ne.s32.totalorder %s134, %s137
      %p143 = scmp.eq.s32.totalorder %s14, 0
      %p144 = por %p142, %p143
      %p145 = scmp.ne.s32.totalorder %s134, %s137
      %p146 = scmp.eq.s32.totalorder %s19, 1
      %p147 = por %p145, %p146
      %p148 = scmp.ne.s32.totalorder %s137, %s138
      %p149 = scmp.eq.s32.totalorder %s19, 0
      %p150 = por %p148, %p149
      %p151 = scmp.ne.s32.totalorder %s137, %s138
      %p152 = scmp.eq.s32.totalorder %s20, 1
      %p153 = por %p151, %p152
      %p155 = scmp.ne.s32.totalorder %s138, %s154
      %p156 = scmp.eq.s32.totalorder %s20, 0
      %p157 = por %p155, %p156
      %p158 = scmp.le.s32.totalorder 1, %s14
      %p159 = scmp.lt.s32.totalorder %s14, 3
      %p160 = pnand %p158, %p159
      %p161 = pneg %p160
      // Predicated region
      $region9: #{tpu_custom_call.1} parent=5 // pred_check
        _
      $region10: #{tpu_custom_call.1} parent=5 // pred_check_branch
        %163 = sbr.rel (%p160) target = $region12
      $region11: #{tpu_custom_call.1} parent=5 // pred_region
        %s164 = ssub.s32 %s14, 1
        // Predicated region
        $region13: #{tpu_custom_call.1} parent=11 // pred_check
          %p165 = pneg %p61
        $region14: #{tpu_custom_call.1} parent=11 // pred_check_branch
          %167 = sbr.rel (%p165) target = $region16
        $region15: #{tpu_custom_call.1} parent=11 // pred_region
          _
        $region16: #{tpu_custom_call.1} parent=11 // pred_fallthru
          _
        // Predicated region
        $region17: #{tpu_custom_call.1} parent=11 // pred_check
          %p168 = pneg %p82
        $region18: #{tpu_custom_call.1} parent=11 // pred_check_branch
          %170 = sbr.rel (%p168) target = $region20
        $region19: #{tpu_custom_call.1} parent=11 // pred_region
          _
        $region20: #{tpu_custom_call.1} parent=11 // pred_fallthru
          _
        // Predicated region
        $region21: #{tpu_custom_call.1} parent=11 // pred_check
          %p171 = pneg %p103
        $region22: #{tpu_custom_call.1} parent=11 // pred_check_branch
          %173 = sbr.rel (%p171) target = $region24
        $region23: #{tpu_custom_call.1} parent=11 // pred_region
          _
        $region24: #{tpu_custom_call.1} parent=11 // pred_fallthru
          _
        // Predicated region
        $region25: #{tpu_custom_call.1} parent=11 // pred_check
          %p174 = pneg %p124
        $region26: #{tpu_custom_call.1} parent=11 // pred_check_branch
          %176 = sbr.rel (%p174) target = $region28
        $region27: #{tpu_custom_call.1} parent=11 // pred_region
          _
        $region28: #{tpu_custom_call.1} parent=11 // pred_fallthru
          _
      $region12: #{tpu_custom_call.1} parent=5 // pred_fallthru
        _
      %p177 = scmp.lt.s32.totalorder %s14, 2
      // Predicated region
      $region29: #{tpu_custom_call.1} parent=5 // pred_check
        %p178 = pneg %p177
      $region30: #{tpu_custom_call.1} parent=5 // pred_check_branch
        %180 = sbr.rel (%p178) target = $region32
      $region31: #{tpu_custom_call.1} parent=5 // pred_region
        // Predicated region
        $region33: #{tpu_custom_call.1} parent=31 // pred_check
          %p181 = pneg %p34
        $region34: #{tpu_custom_call.1} parent=31 // pred_check_branch
          %183 = sbr.rel (%p181) target = $region36
        $region35: #{tpu_custom_call.1} parent=31 // pred_region
          %p184 = scmp.lt.s32.totalorder %s14, 1
          %s185 = scalar_select %p184, %s14, 1
          %s186 = smul.addr %s185, 54
          %s187 = smul.addr %s186, 8
          %s188 = scalar_lea.vmem %s0, %s187
        $region36: #{tpu_custom_call.1} parent=31 // pred_fallthru
          _
      $region32: #{tpu_custom_call.1} parent=5 // pred_fallthru
        _
      %p189 = scmp.le.s32.totalorder 1, %s14
      %p190 = scmp.lt.s32.totalorder %s14, 3
      %p191 = pnand %p189, %p190
      %p192 = pneg %p191
      // Predicated region
      $region37: #{tpu_custom_call.1} parent=5 // pred_check
        _
      $region38: #{tpu_custom_call.1} parent=5 // pred_check_branch
        %194 = sbr.rel (%p191) target = $region40
      $region39: #{tpu_custom_call.1} parent=5 // pred_region
        %s195 = ssub.s32 %s14, 1
        %p196 = scmp.lt.s32.totalorder %s19, 1
        %s197 = scalar_select %p196, %s19, 1
        %s198 = smul.addr %s197, 54
        %s199 = smul.addr %s198, 8
        %s200 = scalar_lea.vmem %s0, %s199
        %p201 = pneg %p40
        %p202 = pneg %p37
        %p203 = pneg %p61
        %p204 = pneg %p58
        %p205 = pneg %p82
        %p206 = pneg %p79
        %p207 = pneg %p103
        %p208 = pneg %p100
        %p209 = pneg %p124
        %p210 = pneg %p121
        %p211 = pneg %p150
        %p212 = pneg %p147
        %s213 = sand.u32 %s137, 1
        %s214 = scalar_lea.sflag [#allocation4], %s213
        %s215 = sand.u32 %s137, 1
        %s216 = smul.addr %s215, 256
        %s217 = scalar_lea.vmem [#allocation3], %s216
        %p218 = scmp.lt.s32.totalorder %s19, 1
        %s219 = scalar_select %p218, %s19, 1
        %s220 = smul.addr %s219, 54
        %s221 = smul.addr %s220, 8
        %s222 = scalar_lea.vmem %s0, %s221
        %s223 = scalar_lea.vmem %s222, 24
        %v224 = vld [vmem:[%s223 + $0x1] sm:$0xff]
        %v225 = vld [vmem:[%s223 + $0x9] sm:$0xff]
        %v226 = vld [vmem:[%s223 + $0x19] sm:$0xff]
        %v227 = vld [vmem:[%s223 + $0x21] sm:$0xff]
        %v228 = vld [vmem:[%s223 + $0x31] sm:$0xff]
        %v229 = vld [vmem:[%s223 + $0x39] sm:$0xff]
        %v230 = vld [vmem:[%s223 + $0x49] sm:$0xff]
        %v231 = vld [vmem:[%s223 + $0x51] sm:$0xff]
        %v232 = vld [vmem:[%s223 + $0x61] sm:$0xff]
        %v233 = vld [vmem:[%s223 + $0x69] sm:$0xff]
        %v234 = vld [vmem:[%s223 + $0x79] sm:$0xff]
        %v235 = vld [vmem:[%s223 + $0x81] sm:$0xff]
        %v236 = vld [vmem:[%s223 + $0x91] sm:$0xff]
        %v237 = vld [vmem:[%s223 + $0x99] sm:$0xff]
        %v238 = vld [vmem:[%s223 + $0xa9] sm:$0xff]
        %v239 = vld [vmem:[%s223 + $0xb1] sm:$0xff]
        %v240 = vld [vmem:[%s223 + $0xc1] sm:$0xff]
        %v241 = vld [vmem:[%s223 + $0xc9] sm:$0xff]
        %v242 = vld [vmem:[%s223 + $0xd9] sm:$0xff]
        %v243 = vld [vmem:[%s223 + $0xe1] sm:$0xff]
        %v244 = vld [vmem:[%s223 + $0xf1] sm:$0xff]
        %v245 = vld [vmem:[%s223 + $0xf9] sm:$0xff]
        %v246 = vld [vmem:[%s223 + $0x109] sm:$0xff]
        %v247 = vld [vmem:[%s223 + $0x111] sm:$0xff]
        %v248 = vld [vmem:[%s223 + $0x121] sm:$0xff]
        %v249 = vld [vmem:[%s223 + $0x129] sm:$0xff]
        %v250 = vld [vmem:[%s223 + $0x139] sm:$0xff]
        %v251 = vld [vmem:[%s223 + $0x141] sm:$0xff]
        %v252 = vld [vmem:[%s223 + $0x151] sm:$0xff]
        %v253 = vld [vmem:[%s223 + $0x159] sm:$0xff]
        %v254 = vld [vmem:[%s223 + $0x169] sm:$0xff]
        %v255 = vld [vmem:[%s223 + $0x171] sm:$0xff]
        %s256 = scalar_lea.vmem %s1, 128
        %v257 = vld [vmem:[%s256] sm:$0xff]
        %v258 = vld [vmem:[%s256 + $0x8] sm:$0xff]
        %v259 = vld [vmem:[%s256 + $0x10] sm:$0xff]
        %v260 = vld [vmem:[%s256 + $0x18] sm:$0xff]
        %v261 = vld [vmem:[%s222] sm:$0xff]
        %v262 = vld [vmem:[%s222 + $0x8] sm:$0xff]
        %v263 = vld [vmem:[%s222 + $0x18] sm:$0xff]
        %v264 = vld [vmem:[%s222 + $0x20] sm:$0xff]
        %v265 = vld [vmem:[%s222 + $0x30] sm:$0xff]
        %v266 = vld [vmem:[%s222 + $0x38] sm:$0xff]
        %v267 = vld [vmem:[%s222 + $0x48] sm:$0xff]
        %v268 = vld [vmem:[%s222 + $0x50] sm:$0xff]
        %v269 = vld [vmem:[%s222 + $0x60] sm:$0xff]
        %v270 = vld [vmem:[%s222 + $0x68] sm:$0xff]
        %v271 = vld [vmem:[%s222 + $0x78] sm:$0xff]
        %v272 = vld [vmem:[%s222 + $0x80] sm:$0xff]
        %v273 = vld [vmem:[%s222 + $0x90] sm:$0xff]
        %v274 = vld [vmem:[%s222 + $0x98] sm:$0xff]
        %v275 = vld [vmem:[%s222 + $0xa8] sm:$0xff]
        %v276 = vld [vmem:[%s222 + $0xb0] sm:$0xff]
        %v277 = vld [vmem:[%s222 + $0xc0] sm:$0xff]
        %v278 = vld [vmem:[%s222 + $0xc8] sm:$0xff]
        %v279 = vld [vmem:[%s222 + $0xd8] sm:$0xff]
        %v280 = vld [vmem:[%s222 + $0xe0] sm:$0xff]
        %v281 = vld [vmem:[%s222 + $0xf0] sm:$0xff]
        %v282 = vld [vmem:[%s222 + $0xf8] sm:$0xff]
        %v283 = vld [vmem:[%s222 + $0x108] sm:$0xff]
        %v284 = vld [vmem:[%s222 + $0x110] sm:$0xff]
        %v285 = vld [vmem:[%s222 + $0x120] sm:$0xff]
        %v286 = vld [vmem:[%s222 + $0x128] sm:$0xff]
        %v287 = vld [vmem:[%s222 + $0x138] sm:$0xff]
        %v288 = vld [vmem:[%s222 + $0x140] sm:$0xff]
        %v289 = vld [vmem:[%s222 + $0x150] sm:$0xff]
        %v290 = vld [vmem:[%s222 + $0x158] sm:$0xff]
        %v291 = vld [vmem:[%s222 + $0x168] sm:$0xff]
        %v292 = vld [vmem:[%s222 + $0x170] sm:$0xff]
        %v293 = vld [vmem:[%s1] sm:$0xff]
        %v294 = vld [vmem:[%s1 + $0x8] sm:$0xff]
        %v295 = vld [vmem:[%s1 + $0x10] sm:$0xff]
        %v296 = vld [vmem:[%s1 + $0x18] sm:$0xff]
        %vm297 = vcmask 261120
        %v299 = vsel %vm297, %v261, 0
        %v302 = vsel %vm297, %v262, 0
        %v305 = vsel %vm297, %v263, 0
        %v308 = vsel %vm297, %v264, 0
        %v311 = vsel %vm297, %v265, 0
        %v314 = vsel %vm297, %v266, 0
        %v317 = vsel %vm297, %v267, 0
        %v320 = vsel %vm297, %v268, 0
        %v323 = vsel %vm297, %v269, 0
        %v326 = vsel %vm297, %v270, 0
        %v329 = vsel %vm297, %v271, 0
        %v332 = vsel %vm297, %v272, 0
        %v335 = vsel %vm297, %v273, 0
        %v338 = vsel %vm297, %v274, 0
        %v341 = vsel %vm297, %v275, 0
        %v344 = vsel %vm297, %v276, 0
        %v347 = vsel %vm297, %v277, 0
        %v350 = vsel %vm297, %v278, 0
        %v353 = vsel %vm297, %v279, 0
        %v356 = vsel %vm297, %v280, 0
        %v359 = vsel %vm297, %v281, 0
        %v362 = vsel %vm297, %v282, 0
        %v365 = vsel %vm297, %v283, 0
        %v368 = vsel %vm297, %v284, 0
        %v371 = vsel %vm297, %v285, 0
        %v374 = vsel %vm297, %v286, 0
        %v377 = vsel %vm297, %v287, 0
        %v380 = vsel %vm297, %v288, 0
        %v383 = vsel %vm297, %v289, 0
        %v386 = vsel %vm297, %v290, 0
        %v389 = vsel %vm297, %v291, 0
        %v392 = vsel %vm297, %v292, 0
        %394 = vmatprep.subr.mxu0 0.0
        %395 = vmatpush1.msra.mxu0 %v293
        %396 = vmatprep.subr.mxu0 0.0
        %397 = vmatpush1.msra.mxu0 %v294
        %398 = vmatprep.subr.mxu0 0.0
        %399 = vmatpush1.msra.mxu0 %v295
        %400 = vmatprep.subr.mxu0 0.0
        %401 = vmatpush1.msra.mxu0 %v296
        %402 = vmatprep.subr.mxu0 0.0
        %403 = vmatpush1.msra.mxu0 0.0
        %404 = vmatprep.subr.mxu0 0.0
        %405 = vmatpush1.msra.mxu0 0.0
        %406 = vmatprep.subr.mxu0 0.0
        %407 = vmatpush1.msra.mxu0 0.0
        %408 = vmatprep.subr.mxu0 0.0
        %409 = vmatpush1.msra.mxu0 0.0
        %410 = vmatprep.subr.mxu0 0.0
        %411 = vmatpush1.msra.mxu0 0.0
        %412 = vmatprep.subr.mxu0 0.0
        %413 = vmatpush1.msra.mxu0 0.0
        %414 = vmatprep.subr.mxu0 0.0
        %415 = vmatpush1.msra.mxu0 0.0
        %416 = vmatprep.subr.mxu0 0.0
        %417 = vmatpush1.msra.mxu0 0.0
        %418 = vmatprep.subr.mxu0 0.0
        %419 = vmatpush1.msra.mxu0 0.0
        %420 = vmatprep.subr.mxu0 0.0
        %421 = vmatpush1.msra.mxu0 0.0
        %422 = vmatprep.subr.mxu0 0.0
        %423 = vmatpush1.msra.mxu0 0.0
        %424 = vmatprep.subr.mxu0 0.0
        %425 = vmatpush1.msra.mxu0 0.0
        %426 = vmatprep.subr.mxu0 0.0
        %427 = vmatpush1.msra.mxu0 0.0
        %428 = vmatprep.subr.mxu0 0.0
        %429 = vmatpush1.msra.mxu0 0.0
        %430 = vmatprep.subr.mxu0 0.0
        %431 = vmatpush1.msra.mxu0 0.0
        %432 = vmatprep.subr.mxu0 0.0
        %433 = vmatpush1.msra.mxu0 0.0
        %434 = vmatprep.subr.mxu0 0.0
        %435 = vmatpush1.msra.mxu0 0.0
        %436 = vmatprep.subr.mxu0 0.0
        %437 = vmatpush1.msra.mxu0 0.0
        %438 = vmatprep.subr.mxu0 0.0
        %439 = vmatpush1.msra.mxu0 0.0
        %440 = vmatprep.subr.mxu0 0.0
        %441 = vmatpush1.msra.mxu0 0.0
        %442 = vmatprep.subr.mxu0 0.0
        %443 = vmatpush1.msra.mxu0 0.0
        %444 = vmatprep.subr.mxu0 0.0
        %445 = vmatpush1.msra.mxu0 0.0
        %446 = vmatprep.subr.mxu0 0.0
        %447 = vmatpush1.msra.mxu0 0.0
        %448 = vmatprep.subr.mxu0 0.0
        %449 = vmatpush1.msra.mxu0 0.0
        %450 = vmatprep.subr.mxu0 0.0
        %451 = vmatpush1.msra.mxu0 0.0
        %452 = vmatprep.subr.mxu0 0.0
        %453 = vmatpush1.msra.mxu0 0.0
        %454 = vmatprep.subr.mxu0 0.0
        %455 = vmatpush1.msra.mxu0 0.0
        %456 = vmatprep.subr.mxu0 0.0
        %457 = vmatpush1.msra.mxu0 0.0
        %458 = vmatprep.mubr.f32.mxu0 0.0
        %459 = vmatmul.mubr.f32.gmra.mrb[0].mxu0 %v299
        %v460 = vpop.f32.mrb[0].mxu0
        %v461 = vadd.f32 0.0, %v460
        %v462 = vpop.f32.mrb[0].mxu0
        %463 = vmatprep.mubr.f32.mxu0 0.0
        %464 = vmatmul.mubr.f32.gmra.mrb[0].mxu0 %v302
        %v465 = vpop.f32.mrb[0].mxu0
        %v466 = vadd.f32 0.0, %v465
        %v467 = vpop.f32.mrb[0].mxu0
        %468 = vmatprep.mubr.f32.mxu0 0.0
        %469 = vmatmul.mubr.f32.gmra.mrb[0].mxu0 %v305
        %v470 = vpop.f32.mrb[0].mxu0
        %v471 = vadd.f32 0.0, %v470
        %v472 = vpop.f32.mrb[0].mxu0
        %473 = vmatprep.mubr.f32.mxu0 0.0
        %474 = vmatmul.mubr.f32.gmra.mrb[0].mxu0 %v308
        %v475 = vpop.f32.mrb[0].mxu0
        %v476 = vadd.f32 0.0, %v475
        %v477 = vpop.f32.mrb[0].mxu0
        %478 = vmatprep.mubr.f32.mxu0 0.0
        %479 = vmatmul.mubr.f32.gmra.mrb[0].mxu0 %v311
        %v480 = vpop.f32.mrb[0].mxu0
        %v481 = vadd.f32 0.0, %v480
        %v482 = vpop.f32.mrb[0].mxu0
        %483 = vmatprep.mubr.f32.mxu0 0.0
        %484 = vmatmul.mubr.f32.gmra.mrb[0].mxu0 %v314
        %v485 = vpop.f32.mrb[0].mxu0
        %v486 = vadd.f32 0.0, %v485
        %v487 = vpop.f32.mrb[0].mxu0
        %488 = vmatprep.mubr.f32.mxu0 0.0
        %489 = vmatmul.mubr.f32.gmra.mrb[0].mxu0 %v317
        %v490 = vpop.f32.mrb[0].mxu0
        %v491 = vadd.f32 0.0, %v490
        %v492 = vpop.f32.mrb[0].mxu0
        %493 = vmatprep.mubr.f32.mxu0 0.0
        %494 = vmatmul.mubr.f32.gmra.mrb[0].mxu0 %v320
        %v495 = vpop.f32.mrb[0].mxu0
        %v496 = vadd.f32 0.0, %v495
        %v497 = vpop.f32.mrb[0].mxu0
        %498 = vmatprep.mubr.f32.mxu0 0.0
        %499 = vmatmul.mubr.f32.gmra.mrb[0].mxu0 %v323
        %v500 = vpop.f32.mrb[0].mxu0
        %v501 = vadd.f32 0.0, %v500
        %v502 = vpop.f32.mrb[0].mxu0
        %503 = vmatprep.mubr.f32.mxu0 0.0
        %504 = vmatmul.mubr.f32.gmra.mrb[0].mxu0 %v326
        %v505 = vpop.f32.mrb[0].mxu0
        %v506 = vadd.f32 0.0, %v505
        %v507 = vpop.f32.mrb[0].mxu0
        %508 = vmatprep.mubr.f32.mxu0 0.0
        %509 = vmatmul.mubr.f32.gmra.mrb[0].mxu0 %v329
        %v510 = vpop.f32.mrb[0].mxu0
        %v511 = vadd.f32 0.0, %v510
        %v512 = vpop.f32.mrb[0].mxu0
        %513 = vmatprep.mubr.f32.mxu0 0.0
        %514 = vmatmul.mubr.f32.gmra.mrb[0].mxu0 %v332
        %v515 = vpop.f32.mrb[0].mxu0
        %v516 = vadd.f32 0.0, %v515
        %v517 = vpop.f32.mrb[0].mxu0
        %518 = vmatprep.mubr.f32.mxu0 0.0
        %519 = vmatmul.mubr.f32.gmra.mrb[0].mxu0 %v335
        %v520 = vpop.f32.mrb[0].mxu0
        %v521 = vadd.f32 0.0, %v520
        %v522 = vpop.f32.mrb[0].mxu0
        %523 = vmatprep.mubr.f32.mxu0 0.0
        %524 = vmatmul.mubr.f32.gmra.mrb[0].mxu0 %v338
        %v525 = vpop.f32.mrb[0].mxu0
        %v526 = vadd.f32 0.0, %v525
        %v527 = vpop.f32.mrb[0].mxu0
        %528 = vmatprep.mubr.f32.mxu0 0.0
        %529 = vmatmul.mubr.f32.gmra.mrb[0].mxu0 %v341
        %v530 = vpop.f32.mrb[0].mxu0
        %v531 = vadd.f32 0.0, %v530
        %v532 = vpop.f32.mrb[0].mxu0
        %533 = vmatprep.mubr.f32.mxu0 0.0
        %534 = vmatmul.mubr.f32.gmra.mrb[0].mxu0 %v344
        %v535 = vpop.f32.mrb[0].mxu0
        %v536 = vadd.f32 0.0, %v535
        %v537 = vpop.f32.mrb[0].mxu0
        %538 = vmatprep.mubr.f32.mxu0 0.0
        %539 = vmatmul.mubr.f32.gmra.mrb[0].mxu0 %v347
        %v540 = vpop.f32.mrb[0].mxu0
        %v541 = vadd.f32 0.0, %v540
        %v542 = vpop.f32.mrb[0].mxu0
        %543 = vmatprep.mubr.f32.mxu0 0.0
        %544 = vmatmul.mubr.f32.gmra.mrb[0].mxu0 %v350
        %v545 = vpop.f32.mrb[0].mxu0
        %v546 = vadd.f32 0.0, %v545
        %v547 = vpop.f32.mrb[0].mxu0
        %548 = vmatprep.mubr.f32.mxu0 0.0
        %549 = vmatmul.mubr.f32.gmra.mrb[0].mxu0 %v353
        %v550 = vpop.f32.mrb[0].mxu0
        %v551 = vadd.f32 0.0, %v550
        %v552 = vpop.f32.mrb[0].mxu0
        %553 = vmatprep.mubr.f32.mxu0 0.0
        %554 = vmatmul.mubr.f32.gmra.mrb[0].mxu0 %v356
        %v555 = vpop.f32.mrb[0].mxu0
        %v556 = vadd.f32 0.0, %v555
        %v557 = vpop.f32.mrb[0].mxu0
        %558 = vmatprep.mubr.f32.mxu0 0.0
        %559 = vmatmul.mubr.f32.gmra.mrb[0].mxu0 %v359
        %v560 = vpop.f32.mrb[0].mxu0
        %v561 = vadd.f32 0.0, %v560
        %v562 = vpop.f32.mrb[0].mxu0
        %563 = vmatprep.mubr.f32.mxu0 0.0
        %564 = vmatmul.mubr.f32.gmra.mrb[0].mxu0 %v362
        %v565 = vpop.f32.mrb[0].mxu0
        %v566 = vadd.f32 0.0, %v565
        %v567 = vpop.f32.mrb[0].mxu0
        %568 = vmatprep.mubr.f32.mxu0 0.0
        %569 = vmatmul.mubr.f32.gmra.mrb[0].mxu0 %v365
        %v570 = vpop.f32.mrb[0].mxu0
        %v571 = vadd.f32 0.0, %v570
        %v572 = vpop.f32.mrb[0].mxu0
        %573 = vmatprep.mubr.f32.mxu0 0.0
        %574 = vmatmul.mubr.f32.gmra.mrb[0].mxu0 %v368
        %v575 = vpop.f32.mrb[0].mxu0
        %v576 = vadd.f32 0.0, %v575
        %v577 = vpop.f32.mrb[0].mxu0
        %578 = vmatprep.mubr.f32.mxu0 0.0
        %579 = vmatmul.mubr.f32.gmra.mrb[0].mxu0 %v371
        %v580 = vpop.f32.mrb[0].mxu0
        %v581 = vadd.f32 0.0, %v580
        %v582 = vpop.f32.mrb[0].mxu0
        %583 = vmatprep.mubr.f32.mxu0 0.0
        %584 = vmatmul.mubr.f32.gmra.mrb[0].mxu0 %v374
        %v585 = vpop.f32.mrb[0].mxu0
        %v586 = vadd.f32 0.0, %v585
        %v587 = vpop.f32.mrb[0].mxu0
        %588 = vmatprep.mubr.f32.mxu0 0.0
        %589 = vmatmul.mubr.f32.gmra.mrb[0].mxu0 %v377
        %v590 = vpop.f32.mrb[0].mxu0
        %v591 = vadd.f32 0.0, %v590
        %v592 = vpop.f32.mrb[0].mxu0
        %593 = vmatprep.mubr.f32.mxu0 0.0
        %594 = vmatmul.mubr.f32.gmra.mrb[0].mxu0 %v380
        %v595 = vpop.f32.mrb[0].mxu0
        %v596 = vadd.f32 0.0, %v595
        %v597 = vpop.f32.mrb[0].mxu0
        %598 = vmatprep.mubr.f32.mxu0 0.0
        %599 = vmatmul.mubr.f32.gmra.mrb[0].mxu0 %v383
        %v600 = vpop.f32.mrb[0].mxu0
        %v601 = vadd.f32 0.0, %v600
        %v602 = vpop.f32.mrb[0].mxu0
        %603 = vmatprep.mubr.f32.mxu0 0.0
        %604 = vmatmul.mubr.f32.gmra.mrb[0].mxu0 %v386
        %v605 = vpop.f32.mrb[0].mxu0
        %v606 = vadd.f32 0.0, %v605
        %v607 = vpop.f32.mrb[0].mxu0
        %608 = vmatprep.mubr.f32.mxu0 0.0
        %609 = vmatmul.mubr.f32.gmra.mrb[0].mxu0 %v389
        %v610 = vpop.f32.mrb[0].mxu0
        %v611 = vadd.f32 0.0, %v610
        %v612 = vpop.f32.mrb[0].mxu0
        %613 = vmatprep.mubr.f32.mxu0 0.0
        %614 = vmatmul.mubr.f32.gmra.mrb[0].mxu0 %v392
        %v615 = vpop.f32.mrb[0].mxu0
        %v616 = vadd.f32 0.0, %v615
        %v617 = vpop.f32.mrb[0].mxu0
        %618 = vdwg.mxu0
        %v620 = vsel %vm297, %v224, 0
        %v623 = vsel %vm297, %v225, 0
        %v626 = vsel %vm297, %v226, 0
        %v629 = vsel %vm297, %v227, 0
        %v632 = vsel %vm297, %v228, 0
        %v635 = vsel %vm297, %v229, 0
        %v638 = vsel %vm297, %v230, 0
        %v641 = vsel %vm297, %v231, 0
        %v644 = vsel %vm297, %v232, 0
        %v647 = vsel %vm297, %v233, 0
        %v650 = vsel %vm297, %v234, 0
        %v653 = vsel %vm297, %v235, 0
        %v656 = vsel %vm297, %v236, 0
        %v659 = vsel %vm297, %v237, 0
        %v662 = vsel %vm297, %v238, 0
        %v665 = vsel %vm297, %v239, 0
        %v668 = vsel %vm297, %v240, 0
        %v671 = vsel %vm297, %v241, 0
        %v674 = vsel %vm297, %v242, 0
        %v677 = vsel %vm297, %v243, 0
        %v680 = vsel %vm297, %v244, 0
        %v683 = vsel %vm297, %v245, 0
        %v686 = vsel %vm297, %v246, 0
        %v689 = vsel %vm297, %v247, 0
        %v692 = vsel %vm297, %v248, 0
        %v695 = vsel %vm297, %v249, 0
        %v698 = vsel %vm297, %v250, 0
        %v701 = vsel %vm297, %v251, 0
        %v704 = vsel %vm297, %v252, 0
        %v707 = vsel %vm297, %v253, 0
        %v710 = vsel %vm297, %v254, 0
        %v713 = vsel %vm297, %v255, 0
        %715 = vmatprep.subr.mxu0 0.0
        %716 = vmatpush1.msra.mxu0 %v257
        %717 = vmatprep.subr.mxu0 0.0
        %718 = vmatpush1.msra.mxu0 %v258
        %719 = vmatprep.subr.mxu0 0.0
        %720 = vmatpush1.msra.mxu0 %v259
        %721 = vmatprep.subr.mxu0 0.0
        %722 = vmatpush1.msra.mxu0 %v260
        %723 = vmatprep.subr.mxu0 0.0
        %724 = vmatpush1.msra.mxu0 0.0
        %725 = vmatprep.subr.mxu0 0.0
        %726 = vmatpush1.msra.mxu0 0.0
        %727 = vmatprep.subr.mxu0 0.0
        %728 = vmatpush1.msra.mxu0 0.0
        %729 = vmatprep.subr.mxu0 0.0
        %730 = vmatpush1.msra.mxu0 0.0
        %731 = vmatprep.subr.mxu0 0.0
        %732 = vmatpush1.msra.mxu0 0.0
        %733 = vmatprep.subr.mxu0 0.0
        %734 = vmatpush1.msra.mxu0 0.0
        %735 = vmatprep.subr.mxu0 0.0
        %736 = vmatpush1.msra.mxu0 0.0
        %737 = vmatprep.subr.mxu0 0.0
        %738 = vmatpush1.msra.mxu0 0.0
        %739 = vmatprep.subr.mxu0 0.0
        %740 = vmatpush1.msra.mxu0 0.0
        %741 = vmatprep.subr.mxu0 0.0
        %742 = vmatpush1.msra.mxu0 0.0
        %743 = vmatprep.subr.mxu0 0.0
        %744 = vmatpush1.msra.mxu0 0.0
        %745 = vmatprep.subr.mxu0 0.0
        %746 = vmatpush1.msra.mxu0 0.0
        %747 = vmatprep.subr.mxu0 0.0
        %748 = vmatpush1.msra.mxu0 0.0
        %749 = vmatprep.subr.mxu0 0.0
        %750 = vmatpush1.msra.mxu0 0.0
        %751 = vmatprep.subr.mxu0 0.0
        %752 = vmatpush1.msra.mxu0 0.0
        %753 = vmatprep.subr.mxu0 0.0
        %754 = vmatpush1.msra.mxu0 0.0
        %755 = vmatprep.subr.mxu0 0.0
        %756 = vmatpush1.msra.mxu0 0.0
        %757 = vmatprep.subr.mxu0 0.0
        %758 = vmatpush1.msra.mxu0 0.0
        %759 = vmatprep.subr.mxu0 0.0
        %760 = vmatpush1.msra.mxu0 0.0
        %761 = vmatprep.subr.mxu0 0.0
        %762 = vmatpush1.msra.mxu0 0.0
        %763 = vmatprep.subr.mxu0 0.0
        %764 = vmatpush1.msra.mxu0 0.0
        %765 = vmatprep.subr.mxu0 0.0
        %766 = vmatpush1.msra.mxu0 0.0
        %767 = vmatprep.subr.mxu0 0.0
        %768 = vmatpush1.msra.mxu0 0.0
        %769 = vmatprep.subr.mxu0 0.0
        %770 = vmatpush1.msra.mxu0 0.0
        %771 = vmatprep.subr.mxu0 0.0
        %772 = vmatpush1.msra.mxu0 0.0
        %773 = vmatprep.subr.mxu0 0.0
        %774 = vmatpush1.msra.mxu0 0.0
        %775 = vmatprep.subr.mxu0 0.0
        %776 = vmatpush1.msra.mxu0 0.0
        %777 = vmatprep.subr.mxu0 0.0
        %778 = vmatpush1.msra.mxu0 0.0
        %779 = vmatprep.mubr.f32.mxu0 0.0
        %780 = vmatmul.mubr.f32.gmra.mrb[0].mxu0 %v620
        %v781 = vpop.f32.mrb[0].mxu0
        %v782 = vadd.f32 %v461, %v781
        %v783 = vpop.f32.mrb[0].mxu0
        %784 = vmatprep.mubr.f32.mxu0 0.0
        %785 = vmatmul.mubr.f32.gmra.mrb[0].mxu0 %v623
        %v786 = vpop.f32.mrb[0].mxu0
        %v787 = vadd.f32 %v466, %v786
        %v788 = vpop.f32.mrb[0].mxu0
        %789 = vmatprep.mubr.f32.mxu0 0.0
        %790 = vmatmul.mubr.f32.gmra.mrb[0].mxu0 %v626
        %v791 = vpop.f32.mrb[0].mxu0
        %v792 = vadd.f32 %v471, %v791
        %v793 = vpop.f32.mrb[0].mxu0
        %794 = vmatprep.mubr.f32.mxu0 0.0
        %795 = vmatmul.mubr.f32.gmra.mrb[0].mxu0 %v629
        %v796 = vpop.f32.mrb[0].mxu0
        %v797 = vadd.f32 %v476, %v796
        %v798 = vpop.f32.mrb[0].mxu0
        %799 = vmatprep.mubr.f32.mxu0 0.0
        %800 = vmatmul.mubr.f32.gmra.mrb[0].mxu0 %v632
        %v801 = vpop.f32.mrb[0].mxu0
        %v802 = vadd.f32 %v481, %v801
        %v803 = vpop.f32.mrb[0].mxu0
        %804 = vmatprep.mubr.f32.mxu0 0.0
        %805 = vmatmul.mubr.f32.gmra.mrb[0].mxu0 %v635
        %v806 = vpop.f32.mrb[0].mxu0
        %v807 = vadd.f32 %v486, %v806
        %v808 = vpop.f32.mrb[0].mxu0
        %809 = vmatprep.mubr.f32.mxu0 0.0
        %810 = vmatmul.mubr.f32.gmra.mrb[0].mxu0 %v638
        %v811 = vpop.f32.mrb[0].mxu0
        %v812 = vadd.f32 %v491, %v811
        %v813 = vpop.f32.mrb[0].mxu0
        %814 = vmatprep.mubr.f32.mxu0 0.0
        %815 = vmatmul.mubr.f32.gmra.mrb[0].mxu0 %v641
        %v816 = vpop.f32.mrb[0].mxu0
        %v817 = vadd.f32 %v496, %v816
        %v818 = vpop.f32.mrb[0].mxu0
        %819 = vmatprep.mubr.f32.mxu0 0.0
        %820 = vmatmul.mubr.f32.gmra.mrb[0].mxu0 %v644
        %v821 = vpop.f32.mrb[0].mxu0
        %v822 = vadd.f32 %v501, %v821
        %v823 = vpop.f32.mrb[0].mxu0
        %824 = vmatprep.mubr.f32.mxu0 0.0
        %825 = vmatmul.mubr.f32.gmra.mrb[0].mxu0 %v647
        %v826 = vpop.f32.mrb[0].mxu0
        %v827 = vadd.f32 %v506, %v826
        %v828 = vpop.f32.mrb[0].mxu0
        %829 = vmatprep.mubr.f32.mxu0 0.0
        %830 = vmatmul.mubr.f32.gmra.mrb[0].mxu0 %v650
        %v831 = vpop.f32.mrb[0].mxu0
        %v832 = vadd.f32 %v511, %v831
        %v833 = vpop.f32.mrb[0].mxu0
        %834 = vmatprep.mubr.f32.mxu0 0.0
        %835 = vmatmul.mubr.f32.gmra.mrb[0].mxu0 %v653
        %v836 = vpop.f32.mrb[0].mxu0
        %v837 = vadd.f32 %v516, %v836
        %v838 = vpop.f32.mrb[0].mxu0
        %839 = vmatprep.mubr.f32.mxu0 0.0
        %840 = vmatmul.mubr.f32.gmra.mrb[0].mxu0 %v656
        %v841 = vpop.f32.mrb[0].mxu0
        %v842 = vadd.f32 %v521, %v841
        %v843 = vpop.f32.mrb[0].mxu0
        %844 = vmatprep.mubr.f32.mxu0 0.0
        %845 = vmatmul.mubr.f32.gmra.mrb[0].mxu0 %v659
        %v846 = vpop.f32.mrb[0].mxu0
        %v847 = vadd.f32 %v526, %v846
        %v848 = vpop.f32.mrb[0].mxu0
        %849 = vmatprep.mubr.f32.mxu0 0.0
        %850 = vmatmul.mubr.f32.gmra.mrb[0].mxu0 %v662
        %v851 = vpop.f32.mrb[0].mxu0
        %v852 = vadd.f32 %v531, %v851
        %v853 = vpop.f32.mrb[0].mxu0
        %854 = vmatprep.mubr.f32.mxu0 0.0
        %855 = vmatmul.mubr.f32.gmra.mrb[0].mxu0 %v665
        %v856 = vpop.f32.mrb[0].mxu0
        %v857 = vadd.f32 %v536, %v856
        %v858 = vpop.f32.mrb[0].mxu0
        %859 = vmatprep.mubr.f32.mxu0 0.0
        %860 = vmatmul.mubr.f32.gmra.mrb[0].mxu0 %v668
        %v861 = vpop.f32.mrb[0].mxu0
        %v862 = vadd.f32 %v541, %v861
        %v863 = vpop.f32.mrb[0].mxu0
        %864 = vmatprep.mubr.f32.mxu0 0.0
        %865 = vmatmul.mubr.f32.gmra.mrb[0].mxu0 %v671
        %v866 = vpop.f32.mrb[0].mxu0
        %v867 = vadd.f32 %v546, %v866
        %v868 = vpop.f32.mrb[0].mxu0
        %869 = vmatprep.mubr.f32.mxu0 0.0
        %870 = vmatmul.mubr.f32.gmra.mrb[0].mxu0 %v674
        %v871 = vpop.f32.mrb[0].mxu0
        %v872 = vadd.f32 %v551, %v871
        %v873 = vpop.f32.mrb[0].mxu0
        %874 = vmatprep.mubr.f32.mxu0 0.0
        %875 = vmatmul.mubr.f32.gmra.mrb[0].mxu0 %v677
        %v876 = vpop.f32.mrb[0].mxu0
        %v877 = vadd.f32 %v556, %v876
        %v878 = vpop.f32.mrb[0].mxu0
        %879 = vmatprep.mubr.f32.mxu0 0.0
        %880 = vmatmul.mubr.f32.gmra.mrb[0].mxu0 %v680
        %v881 = vpop.f32.mrb[0].mxu0
        %v882 = vadd.f32 %v561, %v881
        %v883 = vpop.f32.mrb[0].mxu0
        %884 = vmatprep.mubr.f32.mxu0 0.0
        %885 = vmatmul.mubr.f32.gmra.mrb[0].mxu0 %v683
        %v886 = vpop.f32.mrb[0].mxu0
        %v887 = vadd.f32 %v566, %v886
        %v888 = vpop.f32.mrb[0].mxu0
        %889 = vmatprep.mubr.f32.mxu0 0.0
        %890 = vmatmul.mubr.f32.gmra.mrb[0].mxu0 %v686
        %v891 = vpop.f32.mrb[0].mxu0
        %v892 = vadd.f32 %v571, %v891
        %v893 = vpop.f32.mrb[0].mxu0
        %894 = vmatprep.mubr.f32.mxu0 0.0
        %895 = vmatmul.mubr.f32.gmra.mrb[0].mxu0 %v689
        %v896 = vpop.f32.mrb[0].mxu0
        %v897 = vadd.f32 %v576, %v896
        %v898 = vpop.f32.mrb[0].mxu0
        %899 = vmatprep.mubr.f32.mxu0 0.0
        %900 = vmatmul.mubr.f32.gmra.mrb[0].mxu0 %v692
        %v901 = vpop.f32.mrb[0].mxu0
        %v902 = vadd.f32 %v581, %v901
        %v903 = vpop.f32.mrb[0].mxu0
        %904 = vmatprep.mubr.f32.mxu0 0.0
        %905 = vmatmul.mubr.f32.gmra.mrb[0].mxu0 %v695
        %v906 = vpop.f32.mrb[0].mxu0
        %v907 = vadd.f32 %v586, %v906
        %v908 = vpop.f32.mrb[0].mxu0
        %909 = vmatprep.mubr.f32.mxu0 0.0
        %910 = vmatmul.mubr.f32.gmra.mrb[0].mxu0 %v698
        %v911 = vpop.f32.mrb[0].mxu0
        %v912 = vadd.f32 %v591, %v911
        %v913 = vpop.f32.mrb[0].mxu0
        %914 = vmatprep.mubr.f32.mxu0 0.0
        %915 = vmatmul.mubr.f32.gmra.mrb[0].mxu0 %v701
        %v916 = vpop.f32.mrb[0].mxu0
        %v917 = vadd.f32 %v596, %v916
        %v918 = vpop.f32.mrb[0].mxu0
        %919 = vmatprep.mubr.f32.mxu0 0.0
        %920 = vmatmul.mubr.f32.gmra.mrb[0].mxu0 %v704
        %v921 = vpop.f32.mrb[0].mxu0
        %v922 = vadd.f32 %v601, %v921
        %v923 = vpop.f32.mrb[0].mxu0
        %924 = vmatprep.mubr.f32.mxu0 0.0
        %925 = vmatmul.mubr.f32.gmra.mrb[0].mxu0 %v707
        %v926 = vpop.f32.mrb[0].mxu0
        %v927 = vadd.f32 %v606, %v926
        %v928 = vpop.f32.mrb[0].mxu0
        %929 = vmatprep.mubr.f32.mxu0 0.0
        %930 = vmatmul.mubr.f32.gmra.mrb[0].mxu0 %v710
        %v931 = vpop.f32.mrb[0].mxu0
        %v932 = vadd.f32 %v611, %v931
        %v933 = vpop.f32.mrb[0].mxu0
        %934 = vmatprep.mubr.f32.mxu0 0.0
        %935 = vmatmul.mubr.f32.gmra.mrb[0].mxu0 %v713
        %v936 = vpop.f32.mrb[0].mxu0
        %v937 = vadd.f32 %v616, %v936
        %v938 = vpop.f32.mrb[0].mxu0
        %939 = vdwg.mxu0
        %v940 = vld [vmem:[%s222 + $0x1] sm:$0xff]
        %v941 = vld [vmem:[%s222 + $0x9] sm:$0xff]
        %v942 = vld [vmem:[%s222 + $0x19] sm:$0xff]
        %v943 = vld [vmem:[%s222 + $0x21] sm:$0xff]
        %v944 = vld [vmem:[%s222 + $0x31] sm:$0xff]
        %v945 = vld [vmem:[%s222 + $0x39] sm:$0xff]
        %v946 = vld [vmem:[%s222 + $0x49] sm:$0xff]
        %v947 = vld [vmem:[%s222 + $0x51] sm:$0xff]
        %v948 = vld [vmem:[%s222 + $0x61] sm:$0xff]
        %v949 = vld [vmem:[%s222 + $0x69] sm:$0xff]
        %v950 = vld [vmem:[%s222 + $0x79] sm:$0xff]
        %v951 = vld [vmem:[%s222 + $0x81] sm:$0xff]
        %v952 = vld [vmem:[%s222 + $0x91] sm:$0xff]
        %v953 = vld [vmem:[%s222 + $0x99] sm:$0xff]
        %v954 = vld [vmem:[%s222 + $0xa9] sm:$0xff]
        %v955 = vld [vmem:[%s222 + $0xb1] sm:$0xff]
        %v956 = vld [vmem:[%s222 + $0xc1] sm:$0xff]
        %v957 = vld [vmem:[%s222 + $0xc9] sm:$0xff]
        %v958 = vld [vmem:[%s222 + $0xd9] sm:$0xff]
        %v959 = vld [vmem:[%s222 + $0xe1] sm:$0xff]
        %v960 = vld [vmem:[%s222 + $0xf1] sm:$0xff]
        %v961 = vld [vmem:[%s222 + $0xf9] sm:$0xff]
        %v962 = vld [vmem:[%s222 + $0x109] sm:$0xff]
        %v963 = vld [vmem:[%s222 + $0x111] sm:$0xff]
        %v964 = vld [vmem:[%s222 + $0x121] sm:$0xff]
        %v965 = vld [vmem:[%s222 + $0x129] sm:$0xff]
        %v966 = vld [vmem:[%s222 + $0x139] sm:$0xff]
        %v967 = vld [vmem:[%s222 + $0x141] sm:$0xff]
        %v968 = vld [vmem:[%s222 + $0x151] sm:$0xff]
        %v969 = vld [vmem:[%s222 + $0x159] sm:$0xff]
        %v970 = vld [vmem:[%s222 + $0x169] sm:$0xff]
        %v971 = vld [vmem:[%s222 + $0x171] sm:$0xff]
        %s972 = scalar_lea.vmem %s1, 32
        %v973 = vld [vmem:[%s972] sm:$0xff]
        %v974 = vld [vmem:[%s972 + $0x8] sm:$0xff]
        %v975 = vld [vmem:[%s972 + $0x10] sm:$0xff]
        %v976 = vld [vmem:[%s972 + $0x18] sm:$0xff]
        %v978 = vsel %vm297, %v940, 0
        %v981 = vsel %vm297, %v941, 0
        %v984 = vsel %vm297, %v942, 0
        %v987 = vsel %vm297, %v943, 0
        %v990 = vsel %vm297, %v944, 0
        %v993 = vsel %vm297, %v945, 0
        %v996 = vsel %vm297, %v946, 0
        %v999 = vsel %vm297, %v947, 0
        %v1002 = vsel %vm297, %v948, 0
        %v1005 = vsel %vm297, %v949, 0
        %v1008 = vsel %vm297, %v950, 0
        %v1011 = vsel %vm297, %v951, 0
        %v1014 = vsel %vm297, %v952, 0
        %v1017 = vsel %vm297, %v953, 0
        %v1020 = vsel %vm297, %v954, 0
        %v1023 = vsel %vm297, %v955, 0
        %v1026 = vsel %vm297, %v956, 0
        %v1029 = vsel %vm297, %v957, 0
        %v1032 = vsel %vm297, %v958, 0
        %v1035 = vsel %vm297, %v959, 0
        %v1038 = vsel %vm297, %v960, 0
        %v1041 = vsel %vm297, %v961, 0
        %v1044 = vsel %vm297, %v962, 0
        %v1047 = vsel %vm297, %v963, 0
        %v1050 = vsel %vm297, %v964, 0
        %v1053 = vsel %vm297, %v965, 0
        %v1056 = vsel %vm297, %v966, 0
        %v1059 = vsel %vm297, %v967, 0
        %v1062 = vsel %vm297, %v968, 0
        %v1065 = vsel %vm297, %v969, 0
        %v1068 = vsel %vm297, %v970, 0
        %v1071 = vsel %vm297, %v971, 0
        %1073 = vmatprep.subr.mxu0 0.0
        %1074 = vmatpush1.msra.mxu0 %v973
        %1075 = vmatprep.subr.mxu0 0.0
        %1076 = vmatpush1.msra.mxu0 %v974
        %1077 = vmatprep.subr.mxu0 0.0
        %1078 = vmatpush1.msra.mxu0 %v975
        %1079 = vmatprep.subr.mxu0 0.0
        %1080 = vmatpush1.msra.mxu0 %v976
        %1081 = vmatprep.subr.mxu0 0.0
        %1082 = vmatpush1.msra.mxu0 0.0
        %1083 = vmatprep.subr.mxu0 0.0
        %1084 = vmatpush1.msra.mxu0 0.0
        %1085 = vmatprep.subr.mxu0 0.0
        %1086 = vmatpush1.msra.mxu0 0.0
        %1087 = vmatprep.subr.mxu0 0.0
        %1088 = vmatpush1.msra.mxu0 0.0
        %1089 = vmatprep.subr.mxu0 0.0
        %1090 = vmatpush1.msra.mxu0 0.0
        %1091 = vmatprep.subr.mxu0 0.0
        %1092 = vmatpush1.msra.mxu0 0.0
        %1093 = vmatprep.subr.mxu0 0.0
        %1094 = vmatpush1.msra.mxu0 0.0
        %1095 = vmatprep.subr.mxu0 0.0
        %1096 = vmatpush1.msra.mxu0 0.0
        %1097 = vmatprep.subr.mxu0 0.0
        %1098 = vmatpush1.msra.mxu0 0.0
        %1099 = vmatprep.subr.mxu0 0.0
        %1100 = vmatpush1.msra.mxu0 0.0
        %1101 = vmatprep.subr.mxu0 0.0
        %1102 = vmatpush1.msra.mxu0 0.0
        %1103 = vmatprep.subr.mxu0 0.0
        %1104 = vmatpush1.msra.mxu0 0.0
        %1105 = vmatprep.subr.mxu0 0.0
        %1106 = vmatpush1.msra.mxu0 0.0
        %1107 = vmatprep.subr.mxu0 0.0
        %1108 = vmatpush1.msra.mxu0 0.0
        %1109 = vmatprep.subr.mxu0 0.0
        %1110 = vmatpush1.msra.mxu0 0.0
        %1111 = vmatprep.subr.mxu0 0.0
        %1112 = vmatpush1.msra.mxu0 0.0
        %1113 = vmatprep.subr.mxu0 0.0
        %1114 = vmatpush1.msra.mxu0 0.0
        %1115 = vmatprep.subr.mxu0 0.0
        %1116 = vmatpush1.msra.mxu0 0.0
        %1117 = vmatprep.subr.mxu0 0.0
        %1118 = vmatpush1.msra.mxu0 0.0
        %1119 = vmatprep.subr.mxu0 0.0
        %1120 = vmatpush1.msra.mxu0 0.0
        %1121 = vmatprep.subr.mxu0 0.0
        %1122 = vmatpush1.msra.mxu0 0.0
        %1123 = vmatprep.subr.mxu0 0.0
        %1124 = vmatpush1.msra.mxu0 0.0
        %1125 = vmatprep.subr.mxu0 0.0
        %1126 = vmatpush1.msra.mxu0 0.0
        %1127 = vmatprep.subr.mxu0 0.0
        %1128 = vmatpush1.msra.mxu0 0.0
        %1129 = vmatprep.subr.mxu0 0.0
        %1130 = vmatpush1.msra.mxu0 0.0
        %1131 = vmatprep.subr.mxu0 0.0
        %1132 = vmatpush1.msra.mxu0 0.0
        %1133 = vmatprep.subr.mxu0 0.0
        %1134 = vmatpush1.msra.mxu0 0.0
        %1135 = vmatprep.subr.mxu0 0.0
        %1136 = vmatpush1.msra.mxu0 0.0
        %1137 = vmatprep.mubr.f32.mxu0 0.0
        %1138 = vmatmul.mubr.f32.gmra.mrb[0].mxu0 %v978
        %v1139 = vpop.f32.mrb[0].mxu0
        %v1140 = vadd.f32 0.0, %v1139
        %v1141 = vpop.f32.mrb[0].mxu0
        %1142 = vmatprep.mubr.f32.mxu0 0.0
        %1143 = vmatmul.mubr.f32.gmra.mrb[0].mxu0 %v981
        %v1144 = vpop.f32.mrb[0].mxu0
        %v1145 = vadd.f32 0.0, %v1144
        %v1146 = vpop.f32.mrb[0].mxu0
        %1147 = vmatprep.mubr.f32.mxu0 0.0
        %1148 = vmatmul.mubr.f32.gmra.mrb[0].mxu0 %v984
        %v1149 = vpop.f32.mrb[0].mxu0
        %v1150 = vadd.f32 0.0, %v1149
        %v1151 = vpop.f32.mrb[0].mxu0
        %1152 = vmatprep.mubr.f32.mxu0 0.0
        %1153 = vmatmul.mubr.f32.gmra.mrb[0].mxu0 %v987
        %v1154 = vpop.f32.mrb[0].mxu0
        %v1155 = vadd.f32 0.0, %v1154
        %v1156 = vpop.f32.mrb[0].mxu0
        %1157 = vmatprep.mubr.f32.mxu0 0.0
        %1158 = vmatmul.mubr.f32.gmra.mrb[0].mxu0 %v990
        %v1159 = vpop.f32.mrb[0].mxu0
        %v1160 = vadd.f32 0.0, %v1159
        %v1161 = vpop.f32.mrb[0].mxu0
        %1162 = vmatprep.mubr.f32.mxu0 0.0
        %1163 = vmatmul.mubr.f32.gmra.mrb[0].mxu0 %v993
        %v1164 = vpop.f32.mrb[0].mxu0
        %v1165 = vadd.f32 0.0, %v1164
        %v1166 = vpop.f32.mrb[0].mxu0
        %1167 = vmatprep.mubr.f32.mxu0 0.0
        %1168 = vmatmul.mubr.f32.gmra.mrb[0].mxu0 %v996
        %v1169 = vpop.f32.mrb[0].mxu0
        %v1170 = vadd.f32 0.0, %v1169
        %v1171 = vpop.f32.mrb[0].mxu0
        %1172 = vmatprep.mubr.f32.mxu0 0.0
        %1173 = vmatmul.mubr.f32.gmra.mrb[0].mxu0 %v999
        %v1174 = vpop.f32.mrb[0].mxu0
        %v1175 = vadd.f32 0.0, %v1174
        %v1176 = vpop.f32.mrb[0].mxu0
        %1177 = vmatprep.mubr.f32.mxu0 0.0
        %1178 = vmatmul.mubr.f32.gmra.mrb[0].mxu0 %v1002
        %v1179 = vpop.f32.mrb[0].mxu0
        %v1180 = vadd.f32 0.0, %v1179
        %v1181 = vpop.f32.mrb[0].mxu0
        %1182 = vmatprep.mubr.f32.mxu0 0.0
        %1183 = vmatmul.mubr.f32.gmra.mrb[0].mxu0 %v1005
        %v1184 = vpop.f32.mrb[0].mxu0
        %v1185 = vadd.f32 0.0, %v1184
        %v1186 = vpop.f32.mrb[0].mxu0
        %1187 = vmatprep.mubr.f32.mxu0 0.0
        %1188 = vmatmul.mubr.f32.gmra.mrb[0].mxu0 %v1008
        %v1189 = vpop.f32.mrb[0].mxu0
        %v1190 = vadd.f32 0.0, %v1189
        %v1191 = vpop.f32.mrb[0].mxu0
        %1192 = vmatprep.mubr.f32.mxu0 0.0
        %1193 = vmatmul.mubr.f32.gmra.mrb[0].mxu0 %v1011
        %v1194 = vpop.f32.mrb[0].mxu0
        %v1195 = vadd.f32 0.0, %v1194
        %v1196 = vpop.f32.mrb[0].mxu0
        %1197 = vmatprep.mubr.f32.mxu0 0.0
        %1198 = vmatmul.mubr.f32.gmra.mrb[0].mxu0 %v1014
        %v1199 = vpop.f32.mrb[0].mxu0
        %v1200 = vadd.f32 0.0, %v1199
        %v1201 = vpop.f32.mrb[0].mxu0
        %1202 = vmatprep.mubr.f32.mxu0 0.0
        %1203 = vmatmul.mubr.f32.gmra.mrb[0].mxu0 %v1017
        %v1204 = vpop.f32.mrb[0].mxu0
        %v1205 = vadd.f32 0.0, %v1204
        %v1206 = vpop.f32.mrb[0].mxu0
        %1207 = vmatprep.mubr.f32.mxu0 0.0
        %1208 = vmatmul.mubr.f32.gmra.mrb[0].mxu0 %v1020
        %v1209 = vpop.f32.mrb[0].mxu0
        %v1210 = vadd.f32 0.0, %v1209
        %v1211 = vpop.f32.mrb[0].mxu0
        %1212 = vmatprep.mubr.f32.mxu0 0.0
        %1213 = vmatmul.mubr.f32.gmra.mrb[0].mxu0 %v1023
        %v1214 = vpop.f32.mrb[0].mxu0
        %v1215 = vadd.f32 0.0, %v1214
        %v1216 = vpop.f32.mrb[0].mxu0
        %1217 = vmatprep.mubr.f32.mxu0 0.0
        %1218 = vmatmul.mubr.f32.gmra.mrb[0].mxu0 %v1026
        %v1219 = vpop.f32.mrb[0].mxu0
        %v1220 = vadd.f32 0.0, %v1219
        %v1221 = vpop.f32.mrb[0].mxu0
        %1222 = vmatprep.mubr.f32.mxu0 0.0
        %1223 = vmatmul.mubr.f32.gmra.mrb[0].mxu0 %v1029
        %v1224 = vpop.f32.mrb[0].mxu0
        %v1225 = vadd.f32 0.0, %v1224
        %v1226 = vpop.f32.mrb[0].mxu0
        %1227 = vmatprep.mubr.f32.mxu0 0.0
        %1228 = vmatmul.mubr.f32.gmra.mrb[0].mxu0 %v1032
        %v1229 = vpop.f32.mrb[0].mxu0
        %v1230 = vadd.f32 0.0, %v1229
        %v1231 = vpop.f32.mrb[0].mxu0
        %1232 = vmatprep.mubr.f32.mxu0 0.0
        %1233 = vmatmul.mubr.f32.gmra.mrb[0].mxu0 %v1035
        %v1234 = vpop.f32.mrb[0].mxu0
        %v1235 = vadd.f32 0.0, %v1234
        %v1236 = vpop.f32.mrb[0].mxu0
        %1237 = vmatprep.mubr.f32.mxu0 0.0
        %1238 = vmatmul.mubr.f32.gmra.mrb[0].mxu0 %v1038
        %v1239 = vpop.f32.mrb[0].mxu0
        %v1240 = vadd.f32 0.0, %v1239
        %v1241 = vpop.f32.mrb[0].mxu0
        %1242 = vmatprep.mubr.f32.mxu0 0.0
        %1243 = vmatmul.mubr.f32.gmra.mrb[0].mxu0 %v1041
        %v1244 = vpop.f32.mrb[0].mxu0
        %v1245 = vadd.f32 0.0, %v1244
        %v1246 = vpop.f32.mrb[0].mxu0
        %1247 = vmatprep.mubr.f32.mxu0 0.0
        %1248 = vmatmul.mubr.f32.gmra.mrb[0].mxu0 %v1044
        %v1249 = vpop.f32.mrb[0].mxu0
        %v1250 = vadd.f32 0.0, %v1249
        %v1251 = vpop.f32.mrb[0].mxu0
        %1252 = vmatprep.mubr.f32.mxu0 0.0
        %1253 = vmatmul.mubr.f32.gmra.mrb[0].mxu0 %v1047
        %v1254 = vpop.f32.mrb[0].mxu0
        %v1255 = vadd.f32 0.0, %v1254
        %v1256 = vpop.f32.mrb[0].mxu0
        %1257 = vmatprep.mubr.f32.mxu0 0.0
        %1258 = vmatmul.mubr.f32.gmra.mrb[0].mxu0 %v1050
        %v1259 = vpop.f32.mrb[0].mxu0
        %v1260 = vadd.f32 0.0, %v1259
        %v1261 = vpop.f32.mrb[0].mxu0
        %1262 = vmatprep.mubr.f32.mxu0 0.0
        %1263 = vmatmul.mubr.f32.gmra.mrb[0].mxu0 %v1053
        %v1264 = vpop.f32.mrb[0].mxu0
        %v1265 = vadd.f32 0.0, %v1264
        %v1266 = vpop.f32.mrb[0].mxu0
        %1267 = vmatprep.mubr.f32.mxu0 0.0
        %1268 = vmatmul.mubr.f32.gmra.mrb[0].mxu0 %v1056
        %v1269 = vpop.f32.mrb[0].mxu0
        %v1270 = vadd.f32 0.0, %v1269
        %v1271 = vpop.f32.mrb[0].mxu0
        %1272 = vmatprep.mubr.f32.mxu0 0.0
        %1273 = vmatmul.mubr.f32.gmra.mrb[0].mxu0 %v1059
        %v1274 = vpop.f32.mrb[0].mxu0
        %v1275 = vadd.f32 0.0, %v1274
        %v1276 = vpop.f32.mrb[0].mxu0
        %1277 = vmatprep.mubr.f32.mxu0 0.0
        %1278 = vmatmul.mubr.f32.gmra.mrb[0].mxu0 %v1062
        %v1279 = vpop.f32.mrb[0].mxu0
        %v1280 = vadd.f32 0.0, %v1279
        %v1281 = vpop.f32.mrb[0].mxu0
        %1282 = vmatprep.mubr.f32.mxu0 0.0
        %1283 = vmatmul.mubr.f32.gmra.mrb[0].mxu0 %v1065
        %v1284 = vpop.f32.mrb[0].mxu0
        %v1285 = vadd.f32 0.0, %v1284
        %v1286 = vpop.f32.mrb[0].mxu0
        %1287 = vmatprep.mubr.f32.mxu0 0.0
        %1288 = vmatmul.mubr.f32.gmra.mrb[0].mxu0 %v1068
        %v1289 = vpop.f32.mrb[0].mxu0
        %v1290 = vadd.f32 0.0, %v1289
        %v1291 = vpop.f32.mrb[0].mxu0
        %1292 = vmatprep.mubr.f32.mxu0 0.0
        %1293 = vmatmul.mubr.f32.gmra.mrb[0].mxu0 %v1071
        %v1294 = vpop.f32.mrb[0].mxu0
        %v1295 = vadd.f32 0.0, %v1294
        %v1296 = vpop.f32.mrb[0].mxu0
        %1297 = vdwg.mxu0
        %v1298 = vadd.f32 %v782, %v1140
        %v1299 = vadd.f32 %v787, %v1145
        %v1300 = vadd.f32 %v792, %v1150
        %v1301 = vadd.f32 %v797, %v1155
        %v1302 = vadd.f32 %v802, %v1160
        %v1303 = vadd.f32 %v807, %v1165
        %v1304 = vadd.f32 %v812, %v1170
        %v1305 = vadd.f32 %v817, %v1175
        %v1306 = vadd.f32 %v822, %v1180
        %v1307 = vadd.f32 %v827, %v1185
        %v1308 = vadd.f32 %v832, %v1190
        %v1309 = vadd.f32 %v837, %v1195
        %v1310 = vadd.f32 %v842, %v1200
        %v1311 = vadd.f32 %v847, %v1205
        %v1312 = vadd.f32 %v852, %v1210
        %v1313 = vadd.f32 %v857, %v1215
        %v1314 = vadd.f32 %v862, %v1220
        %v1315 = vadd.f32 %v867, %v1225
        %v1316 = vadd.f32 %v872, %v1230
        %v1317 = vadd.f32 %v877, %v1235
        %v1318 = vadd.f32 %v882, %v1240
        %v1319 = vadd.f32 %v887, %v1245
        %v1320 = vadd.f32 %v892, %v1250
        %v1321 = vadd.f32 %v897, %v1255
        %v1322 = vadd.f32 %v902, %v1260
        %v1323 = vadd.f32 %v907, %v1265
        %v1324 = vadd.f32 %v912, %v1270
        %v1325 = vadd.f32 %v917, %v1275
        %v1326 = vadd.f32 %v922, %v1280
        %v1327 = vadd.f32 %v927, %v1285
        %v1328 = vadd.f32 %v932, %v1290
        %v1329 = vadd.f32 %v937, %v1295
        %v1330 = vld [vmem:[%s222 + $0x2] sm:$0xff]
        %v1331 = vld [vmem:[%s222 + $0xa] sm:$0xff]
        %v1332 = vld [vmem:[%s222 + $0x1a] sm:$0xff]
        %v1333 = vld [vmem:[%s222 + $0x22] sm:$0xff]
        %v1334 = vld [vmem:[%s222 + $0x32] sm:$0xff]
        %v1335 = vld [vmem:[%s222 + $0x3a] sm:$0xff]
        %v1336 = vld [vmem:[%s222 + $0x4a] sm:$0xff]
        %v1337 = vld [vmem:[%s222 + $0x52] sm:$0xff]
        %v1338 = vld [vmem:[%s222 + $0x62] sm:$0xff]
        %v1339 = vld [vmem:[%s222 + $0x6a] sm:$0xff]
        %v1340 = vld [vmem:[%s222 + $0x7a] sm:$0xff]
        %v1341 = vld [vmem:[%s222 + $0x82] sm:$0xff]
        %v1342 = vld [vmem:[%s222 + $0x92] sm:$0xff]
        %v1343 = vld [vmem:[%s222 + $0x9a] sm:$0xff]
        %v1344 = vld [vmem:[%s222 + $0xaa] sm:$0xff]
        %v1345 = vld [vmem:[%s222 + $0xb2] sm:$0xff]
        %v1346 = vld [vmem:[%s222 + $0xc2] sm:$0xff]
        %v1347 = vld [vmem:[%s222 + $0xca] sm:$0xff]
        %v1348 = vld [vmem:[%s222 + $0xda] sm:$0xff]
        %v1349 = vld [vmem:[%s222 + $0xe2] sm:$0xff]
        %v1350 = vld [vmem:[%s222 + $0xf2] sm:$0xff]
        %v1351 = vld [vmem:[%s222 + $0xfa] sm:$0xff]
        %v1352 = vld [vmem:[%s222 + $0x10a] sm:$0xff]
        %v1353 = vld [vmem:[%s222 + $0x112] sm:$0xff]
        %v1354 = vld [vmem:[%s222 + $0x122] sm:$0xff]
        %v1355 = vld [vmem:[%s222 + $0x12a] sm:$0xff]
        %v1356 = vld [vmem:[%s222 + $0x13a] sm:$0xff]
        %v1357 = vld [vmem:[%s222 + $0x142] sm:$0xff]
        %v1358 = vld [vmem:[%s222 + $0x152] sm:$0xff]
        %v1359 = vld [vmem:[%s222 + $0x15a] sm:$0xff]
        %v1360 = vld [vmem:[%s222 + $0x16a] sm:$0xff]
        %v1361 = vld [vmem:[%s222 + $0x172] sm:$0xff]
        %s1362 = scalar_lea.vmem %s1, 64
        %v1363 = vld [vmem:[%s1362] sm:$0xff]
        %v1364 = vld [vmem:[%s1362 + $0x8] sm:$0xff]
        %v1365 = vld [vmem:[%s1362 + $0x10] sm:$0xff]
        %v1366 = vld [vmem:[%s1362 + $0x18] sm:$0xff]
        %v1368 = vsel %vm297, %v1330, 0
        %v1371 = vsel %vm297, %v1331, 0
        %v1374 = vsel %vm297, %v1332, 0
        %v1377 = vsel %vm297, %v1333, 0
        %v1380 = vsel %vm297, %v1334, 0
        %v1383 = vsel %vm297, %v1335, 0
        %v1386 = vsel %vm297, %v1336, 0
        %v1389 = vsel %vm297, %v1337, 0
        %v1392 = vsel %vm297, %v1338, 0
        %v1395 = vsel %vm297, %v1339, 0
        %v1398 = vsel %vm297, %v1340, 0
        %v1401 = vsel %vm297, %v1341, 0
        %v1404 = vsel %vm297, %v1342, 0
        %v1407 = vsel %vm297, %v1343, 0
        %v1410 = vsel %vm297, %v1344, 0
        %v1413 = vsel %vm297, %v1345, 0
        %v1416 = vsel %vm297, %v1346, 0
        %v1419 = vsel %vm297, %v1347, 0
        %v1422 = vsel %vm297, %v1348, 0
        %v1425 = vsel %vm297, %v1349, 0
        %v1428 = vsel %vm297, %v1350, 0
        %v1431 = vsel %vm297, %v1351, 0
        %v1434 = vsel %vm297, %v1352, 0
        %v1437 = vsel %vm297, %v1353, 0
        %v1440 = vsel %vm297, %v1354, 0
        %v1443 = vsel %vm297, %v1355, 0
        %v1446 = vsel %vm297, %v1356, 0
        %v1449 = vsel %vm297, %v1357, 0
        %v1452 = vsel %vm297, %v1358, 0
        %v1455 = vsel %vm297, %v1359, 0
        %v1458 = vsel %vm297, %v1360, 0
        %v1461 = vsel %vm297, %v1361, 0
        %1463 = vmatprep.subr.mxu0 0.0
        %1464 = vmatpush1.msra.mxu0 %v1363
        %1465 = vmatprep.subr.mxu0 0.0
        %1466 = vmatpush1.msra.mxu0 %v1364
        %1467 = vmatprep.subr.mxu0 0.0
        %1468 = vmatpush1.msra.mxu0 %v1365
        %1469 = vmatprep.subr.mxu0 0.0
        %1470 = vmatpush1.msra.mxu0 %v1366
        %1471 = vmatprep.subr.mxu0 0.0
        %1472 = vmatpush1.msra.mxu0 0.0
        %1473 = vmatprep.subr.mxu0 0.0
        %1474 = vmatpush1.msra.mxu0 0.0
        %1475 = vmatprep.subr.mxu0 0.0
        %1476 = vmatpush1.msra.mxu0 0.0
        %1477 = vmatprep.subr.mxu0 0.0
        %1478 = vmatpush1.msra.mxu0 0.0
        %1479 = vmatprep.subr.mxu0 0.0
        %1480 = vmatpush1.msra.mxu0 0.0
        %1481 = vmatprep.subr.mxu0 0.0
        %1482 = vmatpush1.msra.mxu0 0.0
        %1483 = vmatprep.subr.mxu0 0.0
        %1484 = vmatpush1.msra.mxu0 0.0
        %1485 = vmatprep.subr.mxu0 0.0
        %1486 = vmatpush1.msra.mxu0 0.0
        %1487 = vmatprep.subr.mxu0 0.0
        %1488 = vmatpush1.msra.mxu0 0.0
        %1489 = vmatprep.subr.mxu0 0.0
        %1490 = vmatpush1.msra.mxu0 0.0
        %1491 = vmatprep.subr.mxu0 0.0
        %1492 = vmatpush1.msra.mxu0 0.0
        %1493 = vmatprep.subr.mxu0 0.0
        %1494 = vmatpush1.msra.mxu0 0.0
        %1495 = vmatprep.subr.mxu0 0.0
        %1496 = vmatpush1.msra.mxu0 0.0
        %1497 = vmatprep.subr.mxu0 0.0
        %1498 = vmatpush1.msra.mxu0 0.0
        %1499 = vmatprep.subr.mxu0 0.0
        %1500 = vmatpush1.msra.mxu0 0.0
        %1501 = vmatprep.subr.mxu0 0.0
        %1502 = vmatpush1.msra.mxu0 0.0
        %1503 = vmatprep.subr.mxu0 0.0
        %1504 = vmatpush1.msra.mxu0 0.0
        %1505 = vmatprep.subr.mxu0 0.0
        %1506 = vmatpush1.msra.mxu0 0.0
        %1507 = vmatprep.subr.mxu0 0.0
        %1508 = vmatpush1.msra.mxu0 0.0
        %1509 = vmatprep.subr.mxu0 0.0
        %1510 = vmatpush1.msra.mxu0 0.0
        %1511 = vmatprep.subr.mxu0 0.0
        %1512 = vmatpush1.msra.mxu0 0.0
        %1513 = vmatprep.subr.mxu0 0.0
        %1514 = vmatpush1.msra.mxu0 0.0
        %1515 = vmatprep.subr.mxu0 0.0
        %1516 = vmatpush1.msra.mxu0 0.0
        %1517 = vmatprep.subr.mxu0 0.0
        %1518 = vmatpush1.msra.mxu0 0.0
        %1519 = vmatprep.subr.mxu0 0.0
        %1520 = vmatpush1.msra.mxu0 0.0
        %1521 = vmatprep.subr.mxu0 0.0
        %1522 = vmatpush1.msra.mxu0 0.0
        %1523 = vmatprep.subr.mxu0 0.0
        %1524 = vmatpush1.msra.mxu0 0.0
        %1525 = vmatprep.subr.mxu0 0.0
        %1526 = vmatpush1.msra.mxu0 0.0
        %1527 = vmatprep.mubr.f32.mxu0 0.0
        %1528 = vmatmul.mubr.f32.gmra.mrb[0].mxu0 %v1368
        %v1529 = vpop.f32.mrb[0].mxu0
        %v1530 = vadd.f32 0.0, %v1529
        %v1531 = vpop.f32.mrb[0].mxu0
        %1532 = vmatprep.mubr.f32.mxu0 0.0
        %1533 = vmatmul.mubr.f32.gmra.mrb[0].mxu0 %v1371
        %v1534 = vpop.f32.mrb[0].mxu0
        %v1535 = vadd.f32 0.0, %v1534
        %v1536 = vpop.f32.mrb[0].mxu0
        %1537 = vmatprep.mubr.f32.mxu0 0.0
        %1538 = vmatmul.mubr.f32.gmra.mrb[0].mxu0 %v1374
        %v1539 = vpop.f32.mrb[0].mxu0
        %v1540 = vadd.f32 0.0, %v1539
        %v1541 = vpop.f32.mrb[0].mxu0
        %1542 = vmatprep.mubr.f32.mxu0 0.0
        %1543 = vmatmul.mubr.f32.gmra.mrb[0].mxu0 %v1377
        %v1544 = vpop.f32.mrb[0].mxu0
        %v1545 = vadd.f32 0.0, %v1544
        %v1546 = vpop.f32.mrb[0].mxu0
        %1547 = vmatprep.mubr.f32.mxu0 0.0
        %1548 = vmatmul.mubr.f32.gmra.mrb[0].mxu0 %v1380
        %v1549 = vpop.f32.mrb[0].mxu0
        %v1550 = vadd.f32 0.0, %v1549
        %v1551 = vpop.f32.mrb[0].mxu0
        %1552 = vmatprep.mubr.f32.mxu0 0.0
        %1553 = vmatmul.mubr.f32.gmra.mrb[0].mxu0 %v1383
        %v1554 = vpop.f32.mrb[0].mxu0
        %v1555 = vadd.f32 0.0, %v1554
        %v1556 = vpop.f32.mrb[0].mxu0
        %1557 = vmatprep.mubr.f32.mxu0 0.0
        %1558 = vmatmul.mubr.f32.gmra.mrb[0].mxu0 %v1386
        %v1559 = vpop.f32.mrb[0].mxu0
        %v1560 = vadd.f32 0.0, %v1559
        %v1561 = vpop.f32.mrb[0].mxu0
        %1562 = vmatprep.mubr.f32.mxu0 0.0
        %1563 = vmatmul.mubr.f32.gmra.mrb[0].mxu0 %v1389
        %v1564 = vpop.f32.mrb[0].mxu0
        %v1565 = vadd.f32 0.0, %v1564
        %v1566 = vpop.f32.mrb[0].mxu0
        %1567 = vmatprep.mubr.f32.mxu0 0.0
        %1568 = vmatmul.mubr.f32.gmra.mrb[0].mxu0 %v1392
        %v1569 = vpop.f32.mrb[0].mxu0
        %v1570 = vadd.f32 0.0, %v1569
        %v1571 = vpop.f32.mrb[0].mxu0
        %1572 = vmatprep.mubr.f32.mxu0 0.0
        %1573 = vmatmul.mubr.f32.gmra.mrb[0].mxu0 %v1395
        %v1574 = vpop.f32.mrb[0].mxu0
        %v1575 = vadd.f32 0.0, %v1574
        %v1576 = vpop.f32.mrb[0].mxu0
        %1577 = vmatprep.mubr.f32.mxu0 0.0
        %1578 = vmatmul.mubr.f32.gmra.mrb[0].mxu0 %v1398
        %v1579 = vpop.f32.mrb[0].mxu0
        %v1580 = vadd.f32 0.0, %v1579
        %v1581 = vpop.f32.mrb[0].mxu0
        %1582 = vmatprep.mubr.f32.mxu0 0.0
        %1583 = vmatmul.mubr.f32.gmra.mrb[0].mxu0 %v1401
        %v1584 = vpop.f32.mrb[0].mxu0
        %v1585 = vadd.f32 0.0, %v1584
        %v1586 = vpop.f32.mrb[0].mxu0
        %1587 = vmatprep.mubr.f32.mxu0 0.0
        %1588 = vmatmul.mubr.f32.gmra.mrb[0].mxu0 %v1404
        %v1589 = vpop.f32.mrb[0].mxu0
        %v1590 = vadd.f32 0.0, %v1589
        %v1591 = vpop.f32.mrb[0].mxu0
        %1592 = vmatprep.mubr.f32.mxu0 0.0
        %1593 = vmatmul.mubr.f32.gmra.mrb[0].mxu0 %v1407
        %v1594 = vpop.f32.mrb[0].mxu0
        %v1595 = vadd.f32 0.0, %v1594
        %v1596 = vpop.f32.mrb[0].mxu0
        %1597 = vmatprep.mubr.f32.mxu0 0.0
        %1598 = vmatmul.mubr.f32.gmra.mrb[0].mxu0 %v1410
        %v1599 = vpop.f32.mrb[0].mxu0
        %v1600 = vadd.f32 0.0, %v1599
        %v1601 = vpop.f32.mrb[0].mxu0
        %1602 = vmatprep.mubr.f32.mxu0 0.0
        %1603 = vmatmul.mubr.f32.gmra.mrb[0].mxu0 %v1413
        %v1604 = vpop.f32.mrb[0].mxu0
        %v1605 = vadd.f32 0.0, %v1604
        %v1606 = vpop.f32.mrb[0].mxu0
        %1607 = vmatprep.mubr.f32.mxu0 0.0
        %1608 = vmatmul.mubr.f32.gmra.mrb[0].mxu0 %v1416
        %v1609 = vpop.f32.mrb[0].mxu0
        %v1610 = vadd.f32 0.0, %v1609
        %v1611 = vpop.f32.mrb[0].mxu0
        %1612 = vmatprep.mubr.f32.mxu0 0.0
        %1613 = vmatmul.mubr.f32.gmra.mrb[0].mxu0 %v1419
        %v1614 = vpop.f32.mrb[0].mxu0
        %v1615 = vadd.f32 0.0, %v1614
        %v1616 = vpop.f32.mrb[0].mxu0
        %1617 = vmatprep.mubr.f32.mxu0 0.0
        %1618 = vmatmul.mubr.f32.gmra.mrb[0].mxu0 %v1422
        %v1619 = vpop.f32.mrb[0].mxu0
        %v1620 = vadd.f32 0.0, %v1619
        %v1621 = vpop.f32.mrb[0].mxu0
        %1622 = vmatprep.mubr.f32.mxu0 0.0
        %1623 = vmatmul.mubr.f32.gmra.mrb[0].mxu0 %v1425
        %v1624 = vpop.f32.mrb[0].mxu0
        %v1625 = vadd.f32 0.0, %v1624
        %v1626 = vpop.f32.mrb[0].mxu0
        %1627 = vmatprep.mubr.f32.mxu0 0.0
        %1628 = vmatmul.mubr.f32.gmra.mrb[0].mxu0 %v1428
        %v1629 = vpop.f32.mrb[0].mxu0
        %v1630 = vadd.f32 0.0, %v1629
        %v1631 = vpop.f32.mrb[0].mxu0
        %1632 = vmatprep.mubr.f32.mxu0 0.0
        %1633 = vmatmul.mubr.f32.gmra.mrb[0].mxu0 %v1431
        %v1634 = vpop.f32.mrb[0].mxu0
        %v1635 = vadd.f32 0.0, %v1634
        %v1636 = vpop.f32.mrb[0].mxu0
        %1637 = vmatprep.mubr.f32.mxu0 0.0
        %1638 = vmatmul.mubr.f32.gmra.mrb[0].mxu0 %v1434
        %v1639 = vpop.f32.mrb[0].mxu0
        %v1640 = vadd.f32 0.0, %v1639
        %v1641 = vpop.f32.mrb[0].mxu0
        %1642 = vmatprep.mubr.f32.mxu0 0.0
        %1643 = vmatmul.mubr.f32.gmra.mrb[0].mxu0 %v1437
        %v1644 = vpop.f32.mrb[0].mxu0
        %v1645 = vadd.f32 0.0, %v1644
        %v1646 = vpop.f32.mrb[0].mxu0
        %1647 = vmatprep.mubr.f32.mxu0 0.0
        %1648 = vmatmul.mubr.f32.gmra.mrb[0].mxu0 %v1440
        %v1649 = vpop.f32.mrb[0].mxu0
        %v1650 = vadd.f32 0.0, %v1649
        %v1651 = vpop.f32.mrb[0].mxu0
        %1652 = vmatprep.mubr.f32.mxu0 0.0
        %1653 = vmatmul.mubr.f32.gmra.mrb[0].mxu0 %v1443
        %v1654 = vpop.f32.mrb[0].mxu0
        %v1655 = vadd.f32 0.0, %v1654
        %v1656 = vpop.f32.mrb[0].mxu0
        %1657 = vmatprep.mubr.f32.mxu0 0.0
        %1658 = vmatmul.mubr.f32.gmra.mrb[0].mxu0 %v1446
        %v1659 = vpop.f32.mrb[0].mxu0
        %v1660 = vadd.f32 0.0, %v1659
        %v1661 = vpop.f32.mrb[0].mxu0
        %1662 = vmatprep.mubr.f32.mxu0 0.0
        %1663 = vmatmul.mubr.f32.gmra.mrb[0].mxu0 %v1449
        %v1664 = vpop.f32.mrb[0].mxu0
        %v1665 = vadd.f32 0.0, %v1664
        %v1666 = vpop.f32.mrb[0].mxu0
        %1667 = vmatprep.mubr.f32.mxu0 0.0
        %1668 = vmatmul.mubr.f32.gmra.mrb[0].mxu0 %v1452
        %v1669 = vpop.f32.mrb[0].mxu0
        %v1670 = vadd.f32 0.0, %v1669
        %v1671 = vpop.f32.mrb[0].mxu0
        %1672 = vmatprep.mubr.f32.mxu0 0.0
        %1673 = vmatmul.mubr.f32.gmra.mrb[0].mxu0 %v1455
        %v1674 = vpop.f32.mrb[0].mxu0
        %v1675 = vadd.f32 0.0, %v1674
        %v1676 = vpop.f32.mrb[0].mxu0
        %1677 = vmatprep.mubr.f32.mxu0 0.0
        %1678 = vmatmul.mubr.f32.gmra.mrb[0].mxu0 %v1458
        %v1679 = vpop.f32.mrb[0].mxu0
        %v1680 = vadd.f32 0.0, %v1679
        %v1681 = vpop.f32.mrb[0].mxu0
        %1682 = vmatprep.mubr.f32.mxu0 0.0
        %1683 = vmatmul.mubr.f32.gmra.mrb[0].mxu0 %v1461
        %v1684 = vpop.f32.mrb[0].mxu0
        %v1685 = vadd.f32 0.0, %v1684
        %v1686 = vpop.f32.mrb[0].mxu0
        %1687 = vdwg.mxu0
        %v1688 = vadd.f32 %v1298, %v1530
        %v1689 = vadd.f32 %v1299, %v1535
        %v1690 = vadd.f32 %v1300, %v1540
        %v1691 = vadd.f32 %v1301, %v1545
        %v1692 = vadd.f32 %v1302, %v1550
        %v1693 = vadd.f32 %v1303, %v1555
        %v1694 = vadd.f32 %v1304, %v1560
        %v1695 = vadd.f32 %v1305, %v1565
        %v1696 = vadd.f32 %v1306, %v1570
        %v1697 = vadd.f32 %v1307, %v1575
        %v1698 = vadd.f32 %v1308, %v1580
        %v1699 = vadd.f32 %v1309, %v1585
        %v1700 = vadd.f32 %v1310, %v1590
        %v1701 = vadd.f32 %v1311, %v1595
        %v1702 = vadd.f32 %v1312, %v1600
        %v1703 = vadd.f32 %v1313, %v1605
        %v1704 = vadd.f32 %v1314, %v1610
        %v1705 = vadd.f32 %v1315, %v1615
        %v1706 = vadd.f32 %v1316, %v1620
        %v1707 = vadd.f32 %v1317, %v1625
        %v1708 = vadd.f32 %v1318, %v1630
        %v1709 = vadd.f32 %v1319, %v1635
        %v1710 = vadd.f32 %v1320, %v1640
        %v1711 = vadd.f32 %v1321, %v1645
        %v1712 = vadd.f32 %v1322, %v1650
        %v1713 = vadd.f32 %v1323, %v1655
        %v1714 = vadd.f32 %v1324, %v1660
        %v1715 = vadd.f32 %v1325, %v1665
        %v1716 = vadd.f32 %v1326, %v1670
        %v1717 = vadd.f32 %v1327, %v1675
        %v1718 = vadd.f32 %v1328, %v1680
        %v1719 = vadd.f32 %v1329, %v1685
        %v1720 = vld [vmem:[%s223] sm:$0xff]
        %v1721 = vld [vmem:[%s223 + $0x8] sm:$0xff]
        %v1722 = vld [vmem:[%s223 + $0x18] sm:$0xff]
        %v1723 = vld [vmem:[%s223 + $0x20] sm:$0xff]
        %v1724 = vld [vmem:[%s223 + $0x30] sm:$0xff]
        %v1725 = vld [vmem:[%s223 + $0x38] sm:$0xff]
        %v1726 = vld [vmem:[%s223 + $0x48] sm:$0xff]
        %v1727 = vld [vmem:[%s223 + $0x50] sm:$0xff]
        %v1728 = vld [vmem:[%s223 + $0x60] sm:$0xff]
        %v1729 = vld [vmem:[%s223 + $0x68] sm:$0xff]
        %v1730 = vld [vmem:[%s223 + $0x78] sm:$0xff]
        %v1731 = vld [vmem:[%s223 + $0x80] sm:$0xff]
        %v1732 = vld [vmem:[%s223 + $0x90] sm:$0xff]
        %v1733 = vld [vmem:[%s223 + $0x98] sm:$0xff]
        %v1734 = vld [vmem:[%s223 + $0xa8] sm:$0xff]
        %v1735 = vld [vmem:[%s223 + $0xb0] sm:$0xff]
        %v1736 = vld [vmem:[%s223 + $0xc0] sm:$0xff]
        %v1737 = vld [vmem:[%s223 + $0xc8] sm:$0xff]
        %v1738 = vld [vmem:[%s223 + $0xd8] sm:$0xff]
        %v1739 = vld [vmem:[%s223 + $0xe0] sm:$0xff]
        %v1740 = vld [vmem:[%s223 + $0xf0] sm:$0xff]
        %v1741 = vld [vmem:[%s223 + $0xf8] sm:$0xff]
        %v1742 = vld [vmem:[%s223 + $0x108] sm:$0xff]
        %v1743 = vld [vmem:[%s223 + $0x110] sm:$0xff]
        %v1744 = vld [vmem:[%s223 + $0x120] sm:$0xff]
        %v1745 = vld [vmem:[%s223 + $0x128] sm:$0xff]
        %v1746 = vld [vmem:[%s223 + $0x138] sm:$0xff]
        %v1747 = vld [vmem:[%s223 + $0x140] sm:$0xff]
        %v1748 = vld [vmem:[%s223 + $0x150] sm:$0xff]
        %v1749 = vld [vmem:[%s223 + $0x158] sm:$0xff]
        %v1750 = vld [vmem:[%s223 + $0x168] sm:$0xff]
        %v1751 = vld [vmem:[%s223 + $0x170] sm:$0xff]
        %s1752 = scalar_lea.vmem %s1, 96
        %v1753 = vld [vmem:[%s1752] sm:$0xff]
        %v1754 = vld [vmem:[%s1752 + $0x8] sm:$0xff]
        %v1755 = vld [vmem:[%s1752 + $0x10] sm:$0xff]
        %v1756 = vld [vmem:[%s1752 + $0x18] sm:$0xff]
        %v1758 = vsel %vm297, %v1720, 0
        %v1761 = vsel %vm297, %v1721, 0
        %v1764 = vsel %vm297, %v1722, 0
        %v1767 = vsel %vm297, %v1723, 0
        %v1770 = vsel %vm297, %v1724, 0
        %v1773 = vsel %vm297, %v1725, 0
        %v1776 = vsel %vm297, %v1726, 0
        %v1779 = vsel %vm297, %v1727, 0
        %v1782 = vsel %vm297, %v1728, 0
        %v1785 = vsel %vm297, %v1729, 0
        %v1788 = vsel %vm297, %v1730, 0
        %v1791 = vsel %vm297, %v1731, 0
        %v1794 = vsel %vm297, %v1732, 0
        %v1797 = vsel %vm297, %v1733, 0
        %v1800 = vsel %vm297, %v1734, 0
        %v1803 = vsel %vm297, %v1735, 0
        %v1806 = vsel %vm297, %v1736, 0
        %v1809 = vsel %vm297, %v1737, 0
        %v1812 = vsel %vm297, %v1738, 0
        %v1815 = vsel %vm297, %v1739, 0
        %v1818 = vsel %vm297, %v1740, 0
        %v1821 = vsel %vm297, %v1741, 0
        %v1824 = vsel %vm297, %v1742, 0
        %v1827 = vsel %vm297, %v1743, 0
        %v1830 = vsel %vm297, %v1744, 0
        %v1833 = vsel %vm297, %v1745, 0
        %v1836 = vsel %vm297, %v1746, 0
        %v1839 = vsel %vm297, %v1747, 0
        %v1842 = vsel %vm297, %v1748, 0
        %v1845 = vsel %vm297, %v1749, 0
        %v1848 = vsel %vm297, %v1750, 0
        %v1851 = vsel %vm297, %v1751, 0
        %1853 = vmatprep.subr.mxu0 0.0
        %1854 = vmatpush1.msra.mxu0 %v1753
        %1855 = vmatprep.subr.mxu0 0.0
        %1856 = vmatpush1.msra.mxu0 %v1754
        %1857 = vmatprep.subr.mxu0 0.0
        %1858 = vmatpush1.msra.mxu0 %v1755
        %1859 = vmatprep.subr.mxu0 0.0
        %1860 = vmatpush1.msra.mxu0 %v1756
        %1861 = vmatprep.subr.mxu0 0.0
        %1862 = vmatpush1.msra.mxu0 0.0
        %1863 = vmatprep.subr.mxu0 0.0
        %1864 = vmatpush1.msra.mxu0 0.0
        %1865 = vmatprep.subr.mxu0 0.0
        %1866 = vmatpush1.msra.mxu0 0.0
        %1867 = vmatprep.subr.mxu0 0.0
        %1868 = vmatpush1.msra.mxu0 0.0
        %1869 = vmatprep.subr.mxu0 0.0
        %1870 = vmatpush1.msra.mxu0 0.0
        %1871 = vmatprep.subr.mxu0 0.0
        %1872 = vmatpush1.msra.mxu0 0.0
        %1873 = vmatprep.subr.mxu0 0.0
        %1874 = vmatpush1.msra.mxu0 0.0
        %1875 = vmatprep.subr.mxu0 0.0
        %1876 = vmatpush1.msra.mxu0 0.0
        %1877 = vmatprep.subr.mxu0 0.0
        %1878 = vmatpush1.msra.mxu0 0.0
        %1879 = vmatprep.subr.mxu0 0.0
        %1880 = vmatpush1.msra.mxu0 0.0
        %1881 = vmatprep.subr.mxu0 0.0
        %1882 = vmatpush1.msra.mxu0 0.0
        %1883 = vmatprep.subr.mxu0 0.0
        %1884 = vmatpush1.msra.mxu0 0.0
        %1885 = vmatprep.subr.mxu0 0.0
        %1886 = vmatpush1.msra.mxu0 0.0
        %1887 = vmatprep.subr.mxu0 0.0
        %1888 = vmatpush1.msra.mxu0 0.0
        %1889 = vmatprep.subr.mxu0 0.0
        %1890 = vmatpush1.msra.mxu0 0.0
        %1891 = vmatprep.subr.mxu0 0.0
        %1892 = vmatpush1.msra.mxu0 0.0
        %1893 = vmatprep.subr.mxu0 0.0
        %1894 = vmatpush1.msra.mxu0 0.0
        %1895 = vmatprep.subr.mxu0 0.0
        %1896 = vmatpush1.msra.mxu0 0.0
        %1897 = vmatprep.subr.mxu0 0.0
        %1898 = vmatpush1.msra.mxu0 0.0
        %1899 = vmatprep.subr.mxu0 0.0
        %1900 = vmatpush1.msra.mxu0 0.0
        %1901 = vmatprep.subr.mxu0 0.0
        %1902 = vmatpush1.msra.mxu0 0.0
        %1903 = vmatprep.subr.mxu0 0.0
        %1904 = vmatpush1.msra.mxu0 0.0
        %1905 = vmatprep.subr.mxu0 0.0
        %1906 = vmatpush1.msra.mxu0 0.0
        %1907 = vmatprep.subr.mxu0 0.0
        %1908 = vmatpush1.msra.mxu0 0.0
        %1909 = vmatprep.subr.mxu0 0.0
        %1910 = vmatpush1.msra.mxu0 0.0
        %1911 = vmatprep.subr.mxu0 0.0
        %1912 = vmatpush1.msra.mxu0 0.0
        %1913 = vmatprep.subr.mxu0 0.0
        %1914 = vmatpush1.msra.mxu0 0.0
        %1915 = vmatprep.subr.mxu0 0.0
        %1916 = vmatpush1.msra.mxu0 0.0
        %1917 = vmatprep.mubr.f32.mxu0 0.0
        %1918 = vmatmul.mubr.f32.gmra.mrb[0].mxu0 %v1758
        %v1919 = vpop.f32.mrb[0].mxu0
        %v1920 = vadd.f32 0.0, %v1919
        %v1921 = vpop.f32.mrb[0].mxu0
        %1922 = vmatprep.mubr.f32.mxu0 0.0
        %1923 = vmatmul.mubr.f32.gmra.mrb[0].mxu0 %v1761
        %v1924 = vpop.f32.mrb[0].mxu0
        %v1925 = vadd.f32 0.0, %v1924
        %v1926 = vpop.f32.mrb[0].mxu0
        %1927 = vmatprep.mubr.f32.mxu0 0.0
        %1928 = vmatmul.mubr.f32.gmra.mrb[0].mxu0 %v1764
        %v1929 = vpop.f32.mrb[0].mxu0
        %v1930 = vadd.f32 0.0, %v1929
        %v1931 = vpop.f32.mrb[0].mxu0
        %1932 = vmatprep.mubr.f32.mxu0 0.0
        %1933 = vmatmul.mubr.f32.gmra.mrb[0].mxu0 %v1767
        %v1934 = vpop.f32.mrb[0].mxu0
        %v1935 = vadd.f32 0.0, %v1934
        %v1936 = vpop.f32.mrb[0].mxu0
        %1937 = vmatprep.mubr.f32.mxu0 0.0
        %1938 = vmatmul.mubr.f32.gmra.mrb[0].mxu0 %v1770
        %v1939 = vpop.f32.mrb[0].mxu0
        %v1940 = vadd.f32 0.0, %v1939
        %v1941 = vpop.f32.mrb[0].mxu0
        %1942 = vmatprep.mubr.f32.mxu0 0.0
        %1943 = vmatmul.mubr.f32.gmra.mrb[0].mxu0 %v1773
        %v1944 = vpop.f32.mrb[0].mxu0
        %v1945 = vadd.f32 0.0, %v1944
        %v1946 = vpop.f32.mrb[0].mxu0
        %1947 = vmatprep.mubr.f32.mxu0 0.0
        %1948 = vmatmul.mubr.f32.gmra.mrb[0].mxu0 %v1776
        %v1949 = vpop.f32.mrb[0].mxu0
        %v1950 = vadd.f32 0.0, %v1949
        %v1951 = vpop.f32.mrb[0].mxu0
        %1952 = vmatprep.mubr.f32.mxu0 0.0
        %1953 = vmatmul.mubr.f32.gmra.mrb[0].mxu0 %v1779
        %v1954 = vpop.f32.mrb[0].mxu0
        %v1955 = vadd.f32 0.0, %v1954
        %v1956 = vpop.f32.mrb[0].mxu0
        %1957 = vmatprep.mubr.f32.mxu0 0.0
        %1958 = vmatmul.mubr.f32.gmra.mrb[0].mxu0 %v1782
        %v1959 = vpop.f32.mrb[0].mxu0
        %v1960 = vadd.f32 0.0, %v1959
        %v1961 = vpop.f32.mrb[0].mxu0
        %1962 = vmatprep.mubr.f32.mxu0 0.0
        %1963 = vmatmul.mubr.f32.gmra.mrb[0].mxu0 %v1785
        %v1964 = vpop.f32.mrb[0].mxu0
        %v1965 = vadd.f32 0.0, %v1964
        %v1966 = vpop.f32.mrb[0].mxu0
        %1967 = vmatprep.mubr.f32.mxu0 0.0
        %1968 = vmatmul.mubr.f32.gmra.mrb[0].mxu0 %v1788
        %v1969 = vpop.f32.mrb[0].mxu0
        %v1970 = vadd.f32 0.0, %v1969
        %v1971 = vpop.f32.mrb[0].mxu0
        %1972 = vmatprep.mubr.f32.mxu0 0.0
        %1973 = vmatmul.mubr.f32.gmra.mrb[0].mxu0 %v1791
        %v1974 = vpop.f32.mrb[0].mxu0
        %v1975 = vadd.f32 0.0, %v1974
        %v1976 = vpop.f32.mrb[0].mxu0
        %1977 = vmatprep.mubr.f32.mxu0 0.0
        %1978 = vmatmul.mubr.f32.gmra.mrb[0].mxu0 %v1794
        %v1979 = vpop.f32.mrb[0].mxu0
        %v1980 = vadd.f32 0.0, %v1979
        %v1981 = vpop.f32.mrb[0].mxu0
        %1982 = vmatprep.mubr.f32.mxu0 0.0
        %1983 = vmatmul.mubr.f32.gmra.mrb[0].mxu0 %v1797
        %v1984 = vpop.f32.mrb[0].mxu0
        %v1985 = vadd.f32 0.0, %v1984
        %v1986 = vpop.f32.mrb[0].mxu0
        %1987 = vmatprep.mubr.f32.mxu0 0.0
        %1988 = vmatmul.mubr.f32.gmra.mrb[0].mxu0 %v1800
        %v1989 = vpop.f32.mrb[0].mxu0
        %v1990 = vadd.f32 0.0, %v1989
        %v1991 = vpop.f32.mrb[0].mxu0
        %1992 = vmatprep.mubr.f32.mxu0 0.0
        %1993 = vmatmul.mubr.f32.gmra.mrb[0].mxu0 %v1803
        %v1994 = vpop.f32.mrb[0].mxu0
        %v1995 = vadd.f32 0.0, %v1994
        %v1996 = vpop.f32.mrb[0].mxu0
        %1997 = vmatprep.mubr.f32.mxu0 0.0
        %1998 = vmatmul.mubr.f32.gmra.mrb[0].mxu0 %v1806
        %v1999 = vpop.f32.mrb[0].mxu0
        %v2000 = vadd.f32 0.0, %v1999
        %v2001 = vpop.f32.mrb[0].mxu0
        %2002 = vmatprep.mubr.f32.mxu0 0.0
        %2003 = vmatmul.mubr.f32.gmra.mrb[0].mxu0 %v1809
        %v2004 = vpop.f32.mrb[0].mxu0
        %v2005 = vadd.f32 0.0, %v2004
        %v2006 = vpop.f32.mrb[0].mxu0
        %2007 = vmatprep.mubr.f32.mxu0 0.0
        %2008 = vmatmul.mubr.f32.gmra.mrb[0].mxu0 %v1812
        %v2009 = vpop.f32.mrb[0].mxu0
        %v2010 = vadd.f32 0.0, %v2009
        %v2011 = vpop.f32.mrb[0].mxu0
        %2012 = vmatprep.mubr.f32.mxu0 0.0
        %2013 = vmatmul.mubr.f32.gmra.mrb[0].mxu0 %v1815
        %v2014 = vpop.f32.mrb[0].mxu0
        %v2015 = vadd.f32 0.0, %v2014
        %v2016 = vpop.f32.mrb[0].mxu0
        %2017 = vmatprep.mubr.f32.mxu0 0.0
        %2018 = vmatmul.mubr.f32.gmra.mrb[0].mxu0 %v1818
        %v2019 = vpop.f32.mrb[0].mxu0
        %v2020 = vadd.f32 0.0, %v2019
        %v2021 = vpop.f32.mrb[0].mxu0
        %2022 = vmatprep.mubr.f32.mxu0 0.0
        %2023 = vmatmul.mubr.f32.gmra.mrb[0].mxu0 %v1821
        %v2024 = vpop.f32.mrb[0].mxu0
        %v2025 = vadd.f32 0.0, %v2024
        %v2026 = vpop.f32.mrb[0].mxu0
        %2027 = vmatprep.mubr.f32.mxu0 0.0
        %2028 = vmatmul.mubr.f32.gmra.mrb[0].mxu0 %v1824
        %v2029 = vpop.f32.mrb[0].mxu0
        %v2030 = vadd.f32 0.0, %v2029
        %v2031 = vpop.f32.mrb[0].mxu0
        %2032 = vmatprep.mubr.f32.mxu0 0.0
        %2033 = vmatmul.mubr.f32.gmra.mrb[0].mxu0 %v1827
        %v2034 = vpop.f32.mrb[0].mxu0
        %v2035 = vadd.f32 0.0, %v2034
        %v2036 = vpop.f32.mrb[0].mxu0
        %2037 = vmatprep.mubr.f32.mxu0 0.0
        %2038 = vmatmul.mubr.f32.gmra.mrb[0].mxu0 %v1830
        %v2039 = vpop.f32.mrb[0].mxu0
        %v2040 = vadd.f32 0.0, %v2039
        %v2041 = vpop.f32.mrb[0].mxu0
        %2042 = vmatprep.mubr.f32.mxu0 0.0
        %2043 = vmatmul.mubr.f32.gmra.mrb[0].mxu0 %v1833
        %v2044 = vpop.f32.mrb[0].mxu0
        %v2045 = vadd.f32 0.0, %v2044
        %v2046 = vpop.f32.mrb[0].mxu0
        %2047 = vmatprep.mubr.f32.mxu0 0.0
        %2048 = vmatmul.mubr.f32.gmra.mrb[0].mxu0 %v1836
        %v2049 = vpop.f32.mrb[0].mxu0
        %v2050 = vadd.f32 0.0, %v2049
        %v2051 = vpop.f32.mrb[0].mxu0
        %2052 = vmatprep.mubr.f32.mxu0 0.0
        %2053 = vmatmul.mubr.f32.gmra.mrb[0].mxu0 %v1839
        %v2054 = vpop.f32.mrb[0].mxu0
        %v2055 = vadd.f32 0.0, %v2054
        %v2056 = vpop.f32.mrb[0].mxu0
        %2057 = vmatprep.mubr.f32.mxu0 0.0
        %2058 = vmatmul.mubr.f32.gmra.mrb[0].mxu0 %v1842
        %v2059 = vpop.f32.mrb[0].mxu0
        %v2060 = vadd.f32 0.0, %v2059
        %v2061 = vpop.f32.mrb[0].mxu0
        %2062 = vmatprep.mubr.f32.mxu0 0.0
        %2063 = vmatmul.mubr.f32.gmra.mrb[0].mxu0 %v1845
        %v2064 = vpop.f32.mrb[0].mxu0
        %v2065 = vadd.f32 0.0, %v2064
        %v2066 = vpop.f32.mrb[0].mxu0
        %2067 = vmatprep.mubr.f32.mxu0 0.0
        %2068 = vmatmul.mubr.f32.gmra.mrb[0].mxu0 %v1848
        %v2069 = vpop.f32.mrb[0].mxu0
        %v2070 = vadd.f32 0.0, %v2069
        %v2071 = vpop.f32.mrb[0].mxu0
        %2072 = vmatprep.mubr.f32.mxu0 0.0
        %2073 = vmatmul.mubr.f32.gmra.mrb[0].mxu0 %v1851
        %v2074 = vpop.f32.mrb[0].mxu0
        %v2075 = vadd.f32 0.0, %v2074
        %v2076 = vpop.f32.mrb[0].mxu0
        %2077 = vdwg.mxu0
        %v2078 = vadd.f32 %v1688, %v1920
        %v2079 = vadd.f32 %v1689, %v1925
        %v2080 = vadd.f32 %v1690, %v1930
        %v2081 = vadd.f32 %v1691, %v1935
        %v2082 = vadd.f32 %v1692, %v1940
        %v2083 = vadd.f32 %v1693, %v1945
        %v2084 = vadd.f32 %v1694, %v1950
        %v2085 = vadd.f32 %v1695, %v1955
        %v2086 = vadd.f32 %v1696, %v1960
        %v2087 = vadd.f32 %v1697, %v1965
        %v2088 = vadd.f32 %v1698, %v1970
        %v2089 = vadd.f32 %v1699, %v1975
        %v2090 = vadd.f32 %v1700, %v1980
        %v2091 = vadd.f32 %v1701, %v1985
        %v2092 = vadd.f32 %v1702, %v1990
        %v2093 = vadd.f32 %v1703, %v1995
        %v2094 = vadd.f32 %v1704, %v2000
        %v2095 = vadd.f32 %v1705, %v2005
        %v2096 = vadd.f32 %v1706, %v2010
        %v2097 = vadd.f32 %v1707, %v2015
        %v2098 = vadd.f32 %v1708, %v2020
        %v2099 = vadd.f32 %v1709, %v2025
        %v2100 = vadd.f32 %v1710, %v2030
        %v2101 = vadd.f32 %v1711, %v2035
        %v2102 = vadd.f32 %v1712, %v2040
        %v2103 = vadd.f32 %v1713, %v2045
        %v2104 = vadd.f32 %v1714, %v2050
        %v2105 = vadd.f32 %v1715, %v2055
        %v2106 = vadd.f32 %v1716, %v2060
        %v2107 = vadd.f32 %v1717, %v2065
        %v2108 = vadd.f32 %v1718, %v2070
        %v2109 = vadd.f32 %v1719, %v2075
        %v2110 = vld [vmem:[%s223 + $0x2] sm:$0xff]
        %v2111 = vld [vmem:[%s223 + $0xa] sm:$0xff]
        %v2112 = vld [vmem:[%s223 + $0x1a] sm:$0xff]
        %v2113 = vld [vmem:[%s223 + $0x22] sm:$0xff]
        %v2114 = vld [vmem:[%s223 + $0x32] sm:$0xff]
        %v2115 = vld [vmem:[%s223 + $0x3a] sm:$0xff]
        %v2116 = vld [vmem:[%s223 + $0x4a] sm:$0xff]
        %v2117 = vld [vmem:[%s223 + $0x52] sm:$0xff]
        %v2118 = vld [vmem:[%s223 + $0x62] sm:$0xff]
        %v2119 = vld [vmem:[%s223 + $0x6a] sm:$0xff]
        %v2120 = vld [vmem:[%s223 + $0x7a] sm:$0xff]
        %v2121 = vld [vmem:[%s223 + $0x82] sm:$0xff]
        %v2122 = vld [vmem:[%s223 + $0x92] sm:$0xff]
        %v2123 = vld [vmem:[%s223 + $0x9a] sm:$0xff]
        %v2124 = vld [vmem:[%s223 + $0xaa] sm:$0xff]
        %v2125 = vld [vmem:[%s223 + $0xb2] sm:$0xff]
        %v2126 = vld [vmem:[%s223 + $0xc2] sm:$0xff]
        %v2127 = vld [vmem:[%s223 + $0xca] sm:$0xff]
        %v2128 = vld [vmem:[%s223 + $0xda] sm:$0xff]
        %v2129 = vld [vmem:[%s223 + $0xe2] sm:$0xff]
        %v2130 = vld [vmem:[%s223 + $0xf2] sm:$0xff]
        %v2131 = vld [vmem:[%s223 + $0xfa] sm:$0xff]
        %v2132 = vld [vmem:[%s223 + $0x10a] sm:$0xff]
        %v2133 = vld [vmem:[%s223 + $0x112] sm:$0xff]
        %v2134 = vld [vmem:[%s223 + $0x122] sm:$0xff]
        %v2135 = vld [vmem:[%s223 + $0x12a] sm:$0xff]
        %v2136 = vld [vmem:[%s223 + $0x13a] sm:$0xff]
        %v2137 = vld [vmem:[%s223 + $0x142] sm:$0xff]
        %v2138 = vld [vmem:[%s223 + $0x152] sm:$0xff]
        %v2139 = vld [vmem:[%s223 + $0x15a] sm:$0xff]
        %v2140 = vld [vmem:[%s223 + $0x16a] sm:$0xff]
        %v2141 = vld [vmem:[%s223 + $0x172] sm:$0xff]
        %s2142 = scalar_lea.vmem %s1, 160
        %v2143 = vld [vmem:[%s2142] sm:$0xff]
        %v2144 = vld [vmem:[%s2142 + $0x8] sm:$0xff]
        %v2145 = vld [vmem:[%s2142 + $0x10] sm:$0xff]
        %v2146 = vld [vmem:[%s2142 + $0x18] sm:$0xff]
        %v2148 = vsel %vm297, %v2110, 0
        %v2151 = vsel %vm297, %v2111, 0
        %v2154 = vsel %vm297, %v2112, 0
        %v2157 = vsel %vm297, %v2113, 0
        %v2160 = vsel %vm297, %v2114, 0
        %v2163 = vsel %vm297, %v2115, 0
        %v2166 = vsel %vm297, %v2116, 0
        %v2169 = vsel %vm297, %v2117, 0
        %v2172 = vsel %vm297, %v2118, 0
        %v2175 = vsel %vm297, %v2119, 0
        %v2178 = vsel %vm297, %v2120, 0
        %v2181 = vsel %vm297, %v2121, 0
        %v2184 = vsel %vm297, %v2122, 0
        %v2187 = vsel %vm297, %v2123, 0
        %v2190 = vsel %vm297, %v2124, 0
        %v2193 = vsel %vm297, %v2125, 0
        %v2196 = vsel %vm297, %v2126, 0
        %v2199 = vsel %vm297, %v2127, 0
        %v2202 = vsel %vm297, %v2128, 0
        %v2205 = vsel %vm297, %v2129, 0
        %v2208 = vsel %vm297, %v2130, 0
        %v2211 = vsel %vm297, %v2131, 0
        %v2214 = vsel %vm297, %v2132, 0
        %v2217 = vsel %vm297, %v2133, 0
        %v2220 = vsel %vm297, %v2134, 0
        %v2223 = vsel %vm297, %v2135, 0
        %v2226 = vsel %vm297, %v2136, 0
        %v2229 = vsel %vm297, %v2137, 0
        %v2232 = vsel %vm297, %v2138, 0
        %v2235 = vsel %vm297, %v2139, 0
        %v2238 = vsel %vm297, %v2140, 0
        %v2241 = vsel %vm297, %v2141, 0
        %2243 = vmatprep.subr.mxu0 0.0
        %2244 = vmatpush1.msra.mxu0 %v2143
        %2245 = vmatprep.subr.mxu0 0.0
        %2246 = vmatpush1.msra.mxu0 %v2144
        %2247 = vmatprep.subr.mxu0 0.0
        %2248 = vmatpush1.msra.mxu0 %v2145
        %2249 = vmatprep.subr.mxu0 0.0
        %2250 = vmatpush1.msra.mxu0 %v2146
        %2251 = vmatprep.subr.mxu0 0.0
        %2252 = vmatpush1.msra.mxu0 0.0
        %2253 = vmatprep.subr.mxu0 0.0
        %2254 = vmatpush1.msra.mxu0 0.0
        %2255 = vmatprep.subr.mxu0 0.0
        %2256 = vmatpush1.msra.mxu0 0.0
        %2257 = vmatprep.subr.mxu0 0.0
        %2258 = vmatpush1.msra.mxu0 0.0
        %2259 = vmatprep.subr.mxu0 0.0
        %2260 = vmatpush1.msra.mxu0 0.0
        %2261 = vmatprep.subr.mxu0 0.0
        %2262 = vmatpush1.msra.mxu0 0.0
        %2263 = vmatprep.subr.mxu0 0.0
        %2264 = vmatpush1.msra.mxu0 0.0
        %2265 = vmatprep.subr.mxu0 0.0
        %2266 = vmatpush1.msra.mxu0 0.0
        %2267 = vmatprep.subr.mxu0 0.0
        %2268 = vmatpush1.msra.mxu0 0.0
        %2269 = vmatprep.subr.mxu0 0.0
        %2270 = vmatpush1.msra.mxu0 0.0
        %2271 = vmatprep.subr.mxu0 0.0
        %2272 = vmatpush1.msra.mxu0 0.0
        %2273 = vmatprep.subr.mxu0 0.0
        %2274 = vmatpush1.msra.mxu0 0.0
        %2275 = vmatprep.subr.mxu0 0.0
        %2276 = vmatpush1.msra.mxu0 0.0
        %2277 = vmatprep.subr.mxu0 0.0
        %2278 = vmatpush1.msra.mxu0 0.0
        %2279 = vmatprep.subr.mxu0 0.0
        %2280 = vmatpush1.msra.mxu0 0.0
        %2281 = vmatprep.subr.mxu0 0.0
        %2282 = vmatpush1.msra.mxu0 0.0
        %2283 = vmatprep.subr.mxu0 0.0
        %2284 = vmatpush1.msra.mxu0 0.0
        %2285 = vmatprep.subr.mxu0 0.0
        %2286 = vmatpush1.msra.mxu0 0.0
        %2287 = vmatprep.subr.mxu0 0.0
        %2288 = vmatpush1.msra.mxu0 0.0
        %2289 = vmatprep.subr.mxu0 0.0
        %2290 = vmatpush1.msra.mxu0 0.0
        %2291 = vmatprep.subr.mxu0 0.0
        %2292 = vmatpush1.msra.mxu0 0.0
        %2293 = vmatprep.subr.mxu0 0.0
        %2294 = vmatpush1.msra.mxu0 0.0
        %2295 = vmatprep.subr.mxu0 0.0
        %2296 = vmatpush1.msra.mxu0 0.0
        %2297 = vmatprep.subr.mxu0 0.0
        %2298 = vmatpush1.msra.mxu0 0.0
        %2299 = vmatprep.subr.mxu0 0.0
        %2300 = vmatpush1.msra.mxu0 0.0
        %2301 = vmatprep.subr.mxu0 0.0
        %2302 = vmatpush1.msra.mxu0 0.0
        %2303 = vmatprep.subr.mxu0 0.0
        %2304 = vmatpush1.msra.mxu0 0.0
        %2305 = vmatprep.subr.mxu0 0.0
        %2306 = vmatpush1.msra.mxu0 0.0
        %2307 = vmatprep.mubr.f32.mxu0 0.0
        %2308 = vmatmul.mubr.f32.gmra.mrb[0].mxu0 %v2148
        %v2309 = vpop.f32.mrb[0].mxu0
        %v2310 = vadd.f32 0.0, %v2309
        %v2311 = vpop.f32.mrb[0].mxu0
        %2312 = vmatprep.mubr.f32.mxu0 0.0
        %2313 = vmatmul.mubr.f32.gmra.mrb[0].mxu0 %v2151
        %v2314 = vpop.f32.mrb[0].mxu0
        %v2315 = vadd.f32 0.0, %v2314
        %v2316 = vpop.f32.mrb[0].mxu0
        %2317 = vmatprep.mubr.f32.mxu0 0.0
        %2318 = vmatmul.mubr.f32.gmra.mrb[0].mxu0 %v2154
        %v2319 = vpop.f32.mrb[0].mxu0
        %v2320 = vadd.f32 0.0, %v2319
        %v2321 = vpop.f32.mrb[0].mxu0
        %2322 = vmatprep.mubr.f32.mxu0 0.0
        %2323 = vmatmul.mubr.f32.gmra.mrb[0].mxu0 %v2157
        %v2324 = vpop.f32.mrb[0].mxu0
        %v2325 = vadd.f32 0.0, %v2324
        %v2326 = vpop.f32.mrb[0].mxu0
        %2327 = vmatprep.mubr.f32.mxu0 0.0
        %2328 = vmatmul.mubr.f32.gmra.mrb[0].mxu0 %v2160
        %v2329 = vpop.f32.mrb[0].mxu0
        %v2330 = vadd.f32 0.0, %v2329
        %v2331 = vpop.f32.mrb[0].mxu0
        %2332 = vmatprep.mubr.f32.mxu0 0.0
        %2333 = vmatmul.mubr.f32.gmra.mrb[0].mxu0 %v2163
        %v2334 = vpop.f32.mrb[0].mxu0
        %v2335 = vadd.f32 0.0, %v2334
        %v2336 = vpop.f32.mrb[0].mxu0
        %2337 = vmatprep.mubr.f32.mxu0 0.0
        %2338 = vmatmul.mubr.f32.gmra.mrb[0].mxu0 %v2166
        %v2339 = vpop.f32.mrb[0].mxu0
        %v2340 = vadd.f32 0.0, %v2339
        %v2341 = vpop.f32.mrb[0].mxu0
        %2342 = vmatprep.mubr.f32.mxu0 0.0
        %2343 = vmatmul.mubr.f32.gmra.mrb[0].mxu0 %v2169
        %v2344 = vpop.f32.mrb[0].mxu0
        %v2345 = vadd.f32 0.0, %v2344
        %v2346 = vpop.f32.mrb[0].mxu0
        %2347 = vmatprep.mubr.f32.mxu0 0.0
        %2348 = vmatmul.mubr.f32.gmra.mrb[0].mxu0 %v2172
        %v2349 = vpop.f32.mrb[0].mxu0
        %v2350 = vadd.f32 0.0, %v2349
        %v2351 = vpop.f32.mrb[0].mxu0
        %2352 = vmatprep.mubr.f32.mxu0 0.0
        %2353 = vmatmul.mubr.f32.gmra.mrb[0].mxu0 %v2175
        %v2354 = vpop.f32.mrb[0].mxu0
        %v2355 = vadd.f32 0.0, %v2354
        %v2356 = vpop.f32.mrb[0].mxu0
        %2357 = vmatprep.mubr.f32.mxu0 0.0
        %2358 = vmatmul.mubr.f32.gmra.mrb[0].mxu0 %v2178
        %v2359 = vpop.f32.mrb[0].mxu0
        %v2360 = vadd.f32 0.0, %v2359
        %v2361 = vpop.f32.mrb[0].mxu0
        %2362 = vmatprep.mubr.f32.mxu0 0.0
        %2363 = vmatmul.mubr.f32.gmra.mrb[0].mxu0 %v2181
        %v2364 = vpop.f32.mrb[0].mxu0
        %v2365 = vadd.f32 0.0, %v2364
        %v2366 = vpop.f32.mrb[0].mxu0
        %2367 = vmatprep.mubr.f32.mxu0 0.0
        %2368 = vmatmul.mubr.f32.gmra.mrb[0].mxu0 %v2184
        %v2369 = vpop.f32.mrb[0].mxu0
        %v2370 = vadd.f32 0.0, %v2369
        %v2371 = vpop.f32.mrb[0].mxu0
        %2372 = vmatprep.mubr.f32.mxu0 0.0
        %2373 = vmatmul.mubr.f32.gmra.mrb[0].mxu0 %v2187
        %v2374 = vpop.f32.mrb[0].mxu0
        %v2375 = vadd.f32 0.0, %v2374
        %v2376 = vpop.f32.mrb[0].mxu0
        %2377 = vmatprep.mubr.f32.mxu0 0.0
        %2378 = vmatmul.mubr.f32.gmra.mrb[0].mxu0 %v2190
        %v2379 = vpop.f32.mrb[0].mxu0
        %v2380 = vadd.f32 0.0, %v2379
        %v2381 = vpop.f32.mrb[0].mxu0
        %2382 = vmatprep.mubr.f32.mxu0 0.0
        %2383 = vmatmul.mubr.f32.gmra.mrb[0].mxu0 %v2193
        %v2384 = vpop.f32.mrb[0].mxu0
        %v2385 = vadd.f32 0.0, %v2384
        %v2386 = vpop.f32.mrb[0].mxu0
        %2387 = vmatprep.mubr.f32.mxu0 0.0
        %2388 = vmatmul.mubr.f32.gmra.mrb[0].mxu0 %v2196
        %v2389 = vpop.f32.mrb[0].mxu0
        %v2390 = vadd.f32 0.0, %v2389
        %v2391 = vpop.f32.mrb[0].mxu0
        %2392 = vmatprep.mubr.f32.mxu0 0.0
        %2393 = vmatmul.mubr.f32.gmra.mrb[0].mxu0 %v2199
        %v2394 = vpop.f32.mrb[0].mxu0
        %v2395 = vadd.f32 0.0, %v2394
        %v2396 = vpop.f32.mrb[0].mxu0
        %2397 = vmatprep.mubr.f32.mxu0 0.0
        %2398 = vmatmul.mubr.f32.gmra.mrb[0].mxu0 %v2202
        %v2399 = vpop.f32.mrb[0].mxu0
        %v2400 = vadd.f32 0.0, %v2399
        %v2401 = vpop.f32.mrb[0].mxu0
        %2402 = vmatprep.mubr.f32.mxu0 0.0
        %2403 = vmatmul.mubr.f32.gmra.mrb[0].mxu0 %v2205
        %v2404 = vpop.f32.mrb[0].mxu0
        %v2405 = vadd.f32 0.0, %v2404
        %v2406 = vpop.f32.mrb[0].mxu0
        %2407 = vmatprep.mubr.f32.mxu0 0.0
        %2408 = vmatmul.mubr.f32.gmra.mrb[0].mxu0 %v2208
        %v2409 = vpop.f32.mrb[0].mxu0
        %v2410 = vadd.f32 0.0, %v2409
        %v2411 = vpop.f32.mrb[0].mxu0
        %2412 = vmatprep.mubr.f32.mxu0 0.0
        %2413 = vmatmul.mubr.f32.gmra.mrb[0].mxu0 %v2211
        %v2414 = vpop.f32.mrb[0].mxu0
        %v2415 = vadd.f32 0.0, %v2414
        %v2416 = vpop.f32.mrb[0].mxu0
        %2417 = vmatprep.mubr.f32.mxu0 0.0
        %2418 = vmatmul.mubr.f32.gmra.mrb[0].mxu0 %v2214
        %v2419 = vpop.f32.mrb[0].mxu0
        %v2420 = vadd.f32 0.0, %v2419
        %v2421 = vpop.f32.mrb[0].mxu0
        %2422 = vmatprep.mubr.f32.mxu0 0.0
        %2423 = vmatmul.mubr.f32.gmra.mrb[0].mxu0 %v2217
        %v2424 = vpop.f32.mrb[0].mxu0
        %v2425 = vadd.f32 0.0, %v2424
        %v2426 = vpop.f32.mrb[0].mxu0
        %2427 = vmatprep.mubr.f32.mxu0 0.0
        %2428 = vmatmul.mubr.f32.gmra.mrb[0].mxu0 %v2220
        %v2429 = vpop.f32.mrb[0].mxu0
        %v2430 = vadd.f32 0.0, %v2429
        %v2431 = vpop.f32.mrb[0].mxu0
        %2432 = vmatprep.mubr.f32.mxu0 0.0
        %2433 = vmatmul.mubr.f32.gmra.mrb[0].mxu0 %v2223
        %v2434 = vpop.f32.mrb[0].mxu0
        %v2435 = vadd.f32 0.0, %v2434
        %v2436 = vpop.f32.mrb[0].mxu0
        %2437 = vmatprep.mubr.f32.mxu0 0.0
        %2438 = vmatmul.mubr.f32.gmra.mrb[0].mxu0 %v2226
        %v2439 = vpop.f32.mrb[0].mxu0
        %v2440 = vadd.f32 0.0, %v2439
        %v2441 = vpop.f32.mrb[0].mxu0
        %2442 = vmatprep.mubr.f32.mxu0 0.0
        %2443 = vmatmul.mubr.f32.gmra.mrb[0].mxu0 %v2229
        %v2444 = vpop.f32.mrb[0].mxu0
        %v2445 = vadd.f32 0.0, %v2444
        %v2446 = vpop.f32.mrb[0].mxu0
        %2447 = vmatprep.mubr.f32.mxu0 0.0
        %2448 = vmatmul.mubr.f32.gmra.mrb[0].mxu0 %v2232
        %v2449 = vpop.f32.mrb[0].mxu0
        %v2450 = vadd.f32 0.0, %v2449
        %v2451 = vpop.f32.mrb[0].mxu0
        %2452 = vmatprep.mubr.f32.mxu0 0.0
        %2453 = vmatmul.mubr.f32.gmra.mrb[0].mxu0 %v2235
        %v2454 = vpop.f32.mrb[0].mxu0
        %v2455 = vadd.f32 0.0, %v2454
        %v2456 = vpop.f32.mrb[0].mxu0
        %2457 = vmatprep.mubr.f32.mxu0 0.0
        %2458 = vmatmul.mubr.f32.gmra.mrb[0].mxu0 %v2238
        %v2459 = vpop.f32.mrb[0].mxu0
        %v2460 = vadd.f32 0.0, %v2459
        %v2461 = vpop.f32.mrb[0].mxu0
        %2462 = vmatprep.mubr.f32.mxu0 0.0
        %2463 = vmatmul.mubr.f32.gmra.mrb[0].mxu0 %v2241
        %v2464 = vpop.f32.mrb[0].mxu0
        %v2465 = vadd.f32 0.0, %v2464
        %v2466 = vpop.f32.mrb[0].mxu0
        %2467 = vdwg.mxu0
        %v2468 = vadd.f32 %v2078, %v2310
        %v2469 = vadd.f32 %v2079, %v2315
        %v2470 = vadd.f32 %v2080, %v2320
        %v2471 = vadd.f32 %v2081, %v2325
        %v2472 = vadd.f32 %v2082, %v2330
        %v2473 = vadd.f32 %v2083, %v2335
        %v2474 = vadd.f32 %v2084, %v2340
        %v2475 = vadd.f32 %v2085, %v2345
        %v2476 = vadd.f32 %v2086, %v2350
        %v2477 = vadd.f32 %v2087, %v2355
        %v2478 = vadd.f32 %v2088, %v2360
        %v2479 = vadd.f32 %v2089, %v2365
        %v2480 = vadd.f32 %v2090, %v2370
        %v2481 = vadd.f32 %v2091, %v2375
        %v2482 = vadd.f32 %v2092, %v2380
        %v2483 = vadd.f32 %v2093, %v2385
        %v2484 = vadd.f32 %v2094, %v2390
        %v2485 = vadd.f32 %v2095, %v2395
        %v2486 = vadd.f32 %v2096, %v2400
        %v2487 = vadd.f32 %v2097, %v2405
        %v2488 = vadd.f32 %v2098, %v2410
        %v2489 = vadd.f32 %v2099, %v2415
        %v2490 = vadd.f32 %v2100, %v2420
        %v2491 = vadd.f32 %v2101, %v2425
        %v2492 = vadd.f32 %v2102, %v2430
        %v2493 = vadd.f32 %v2103, %v2435
        %v2494 = vadd.f32 %v2104, %v2440
        %v2495 = vadd.f32 %v2105, %v2445
        %v2496 = vadd.f32 %v2106, %v2450
        %v2497 = vadd.f32 %v2107, %v2455
        %v2498 = vadd.f32 %v2108, %v2460
        %v2499 = vadd.f32 %v2109, %v2465
        %s2500 = scalar_lea.vmem %s222, 48
        %v2501 = vld [vmem:[%s2500] sm:$0xff]
        %v2502 = vld [vmem:[%s2500 + $0x8] sm:$0xff]
        %v2503 = vld [vmem:[%s2500 + $0x18] sm:$0xff]
        %v2504 = vld [vmem:[%s2500 + $0x20] sm:$0xff]
        %v2505 = vld [vmem:[%s2500 + $0x30] sm:$0xff]
        %v2506 = vld [vmem:[%s2500 + $0x38] sm:$0xff]
        %v2507 = vld [vmem:[%s2500 + $0x48] sm:$0xff]
        %v2508 = vld [vmem:[%s2500 + $0x50] sm:$0xff]
        %v2509 = vld [vmem:[%s2500 + $0x60] sm:$0xff]
        %v2510 = vld [vmem:[%s2500 + $0x68] sm:$0xff]
        %v2511 = vld [vmem:[%s2500 + $0x78] sm:$0xff]
        %v2512 = vld [vmem:[%s2500 + $0x80] sm:$0xff]
        %v2513 = vld [vmem:[%s2500 + $0x90] sm:$0xff]
        %v2514 = vld [vmem:[%s2500 + $0x98] sm:$0xff]
        %v2515 = vld [vmem:[%s2500 + $0xa8] sm:$0xff]
        %v2516 = vld [vmem:[%s2500 + $0xb0] sm:$0xff]
        %v2517 = vld [vmem:[%s2500 + $0xc0] sm:$0xff]
        %v2518 = vld [vmem:[%s2500 + $0xc8] sm:$0xff]
        %v2519 = vld [vmem:[%s2500 + $0xd8] sm:$0xff]
        %v2520 = vld [vmem:[%s2500 + $0xe0] sm:$0xff]
        %v2521 = vld [vmem:[%s2500 + $0xf0] sm:$0xff]
        %v2522 = vld [vmem:[%s2500 + $0xf8] sm:$0xff]
        %v2523 = vld [vmem:[%s2500 + $0x108] sm:$0xff]
        %v2524 = vld [vmem:[%s2500 + $0x110] sm:$0xff]
        %v2525 = vld [vmem:[%s2500 + $0x120] sm:$0xff]
        %v2526 = vld [vmem:[%s2500 + $0x128] sm:$0xff]
        %v2527 = vld [vmem:[%s2500 + $0x138] sm:$0xff]
        %v2528 = vld [vmem:[%s2500 + $0x140] sm:$0xff]
        %v2529 = vld [vmem:[%s2500 + $0x150] sm:$0xff]
        %v2530 = vld [vmem:[%s2500 + $0x158] sm:$0xff]
        %v2531 = vld [vmem:[%s2500 + $0x168] sm:$0xff]
        %v2532 = vld [vmem:[%s2500 + $0x170] sm:$0xff]
        %s2533 = scalar_lea.vmem %s1, 192
        %v2534 = vld [vmem:[%s2533] sm:$0xff]
        %v2535 = vld [vmem:[%s2533 + $0x8] sm:$0xff]
        %v2536 = vld [vmem:[%s2533 + $0x10] sm:$0xff]
        %v2537 = vld [vmem:[%s2533 + $0x18] sm:$0xff]
        %v2539 = vsel %vm297, %v2501, 0
        %v2542 = vsel %vm297, %v2502, 0
        %v2545 = vsel %vm297, %v2503, 0
        %v2548 = vsel %vm297, %v2504, 0
        %v2551 = vsel %vm297, %v2505, 0
        %v2554 = vsel %vm297, %v2506, 0
        %v2557 = vsel %vm297, %v2507, 0
        %v2560 = vsel %vm297, %v2508, 0
        %v2563 = vsel %vm297, %v2509, 0
        %v2566 = vsel %vm297, %v2510, 0
        %v2569 = vsel %vm297, %v2511, 0
        %v2572 = vsel %vm297, %v2512, 0
        %v2575 = vsel %vm297, %v2513, 0
        %v2578 = vsel %vm297, %v2514, 0
        %v2581 = vsel %vm297, %v2515, 0
        %v2584 = vsel %vm297, %v2516, 0
        %v2587 = vsel %vm297, %v2517, 0
        %v2590 = vsel %vm297, %v2518, 0
        %v2593 = vsel %vm297, %v2519, 0
        %v2596 = vsel %vm297, %v2520, 0
        %v2599 = vsel %vm297, %v2521, 0
        %v2602 = vsel %vm297, %v2522, 0
        %v2605 = vsel %vm297, %v2523, 0
        %v2608 = vsel %vm297, %v2524, 0
        %v2611 = vsel %vm297, %v2525, 0
        %v2614 = vsel %vm297, %v2526, 0
        %v2617 = vsel %vm297, %v2527, 0
        %v2620 = vsel %vm297, %v2528, 0
        %v2623 = vsel %vm297, %v2529, 0
        %v2626 = vsel %vm297, %v2530, 0
        %v2629 = vsel %vm297, %v2531, 0
        %v2632 = vsel %vm297, %v2532, 0
        %2634 = vmatprep.subr.mxu0 0.0
        %2635 = vmatpush1.msra.mxu0 %v2534
        %2636 = vmatprep.subr.mxu0 0.0
        %2637 = vmatpush1.msra.mxu0 %v2535
        %2638 = vmatprep.subr.mxu0 0.0
        %2639 = vmatpush1.msra.mxu0 %v2536
        %2640 = vmatprep.subr.mxu0 0.0
        %2641 = vmatpush1.msra.mxu0 %v2537
        %2642 = vmatprep.subr.mxu0 0.0
        %2643 = vmatpush1.msra.mxu0 0.0
        %2644 = vmatprep.subr.mxu0 0.0
        %2645 = vmatpush1.msra.mxu0 0.0
        %2646 = vmatprep.subr.mxu0 0.0
        %2647 = vmatpush1.msra.mxu0 0.0
        %2648 = vmatprep.subr.mxu0 0.0
        %2649 = vmatpush1.msra.mxu0 0.0
        %2650 = vmatprep.subr.mxu0 0.0
        %2651 = vmatpush1.msra.mxu0 0.0
        %2652 = vmatprep.subr.mxu0 0.0
        %2653 = vmatpush1.msra.mxu0 0.0
        %2654 = vmatprep.subr.mxu0 0.0
        %2655 = vmatpush1.msra.mxu0 0.0
        %2656 = vmatprep.subr.mxu0 0.0
        %2657 = vmatpush1.msra.mxu0 0.0
        %2658 = vmatprep.subr.mxu0 0.0
        %2659 = vmatpush1.msra.mxu0 0.0
        %2660 = vmatprep.subr.mxu0 0.0
        %2661 = vmatpush1.msra.mxu0 0.0
        %2662 = vmatprep.subr.mxu0 0.0
        %2663 = vmatpush1.msra.mxu0 0.0
        %2664 = vmatprep.subr.mxu0 0.0
        %2665 = vmatpush1.msra.mxu0 0.0
        %2666 = vmatprep.subr.mxu0 0.0
        %2667 = vmatpush1.msra.mxu0 0.0
        %2668 = vmatprep.subr.mxu0 0.0
        %2669 = vmatpush1.msra.mxu0 0.0
        %2670 = vmatprep.subr.mxu0 0.0
        %2671 = vmatpush1.msra.mxu0 0.0
        %2672 = vmatprep.subr.mxu0 0.0
        %2673 = vmatpush1.msra.mxu0 0.0
        %2674 = vmatprep.subr.mxu0 0.0
        %2675 = vmatpush1.msra.mxu0 0.0
        %2676 = vmatprep.subr.mxu0 0.0
        %2677 = vmatpush1.msra.mxu0 0.0
        %2678 = vmatprep.subr.mxu0 0.0
        %2679 = vmatpush1.msra.mxu0 0.0
        %2680 = vmatprep.subr.mxu0 0.0
        %2681 = vmatpush1.msra.mxu0 0.0
        %2682 = vmatprep.subr.mxu0 0.0
        %2683 = vmatpush1.msra.mxu0 0.0
        %2684 = vmatprep.subr.mxu0 0.0
        %2685 = vmatpush1.msra.mxu0 0.0
        %2686 = vmatprep.subr.mxu0 0.0
        %2687 = vmatpush1.msra.mxu0 0.0
        %2688 = vmatprep.subr.mxu0 0.0
        %2689 = vmatpush1.msra.mxu0 0.0
        %2690 = vmatprep.subr.mxu0 0.0
        %2691 = vmatpush1.msra.mxu0 0.0
        %2692 = vmatprep.subr.mxu0 0.0
        %2693 = vmatpush1.msra.mxu0 0.0
        %2694 = vmatprep.subr.mxu0 0.0
        %2695 = vmatpush1.msra.mxu0 0.0
        %2696 = vmatprep.subr.mxu0 0.0
        %2697 = vmatpush1.msra.mxu0 0.0
        %2698 = vmatprep.mubr.f32.mxu0 0.0
        %2699 = vmatmul.mubr.f32.gmra.mrb[0].mxu0 %v2539
        %v2700 = vpop.f32.mrb[0].mxu0
        %v2701 = vadd.f32 0.0, %v2700
        %v2702 = vpop.f32.mrb[0].mxu0
        %2703 = vmatprep.mubr.f32.mxu0 0.0
        %2704 = vmatmul.mubr.f32.gmra.mrb[0].mxu0 %v2542
        %v2705 = vpop.f32.mrb[0].mxu0
        %v2706 = vadd.f32 0.0, %v2705
        %v2707 = vpop.f32.mrb[0].mxu0
        %2708 = vmatprep.mubr.f32.mxu0 0.0
        %2709 = vmatmul.mubr.f32.gmra.mrb[0].mxu0 %v2545
        %v2710 = vpop.f32.mrb[0].mxu0
        %v2711 = vadd.f32 0.0, %v2710
        %v2712 = vpop.f32.mrb[0].mxu0
        %2713 = vmatprep.mubr.f32.mxu0 0.0
        %2714 = vmatmul.mubr.f32.gmra.mrb[0].mxu0 %v2548
        %v2715 = vpop.f32.mrb[0].mxu0
        %v2716 = vadd.f32 0.0, %v2715
        %v2717 = vpop.f32.mrb[0].mxu0
        %2718 = vmatprep.mubr.f32.mxu0 0.0
        %2719 = vmatmul.mubr.f32.gmra.mrb[0].mxu0 %v2551
        %v2720 = vpop.f32.mrb[0].mxu0
        %v2721 = vadd.f32 0.0, %v2720
        %v2722 = vpop.f32.mrb[0].mxu0
        %2723 = vmatprep.mubr.f32.mxu0 0.0
        %2724 = vmatmul.mubr.f32.gmra.mrb[0].mxu0 %v2554
        %v2725 = vpop.f32.mrb[0].mxu0
        %v2726 = vadd.f32 0.0, %v2725
        %v2727 = vpop.f32.mrb[0].mxu0
        %2728 = vmatprep.mubr.f32.mxu0 0.0
        %2729 = vmatmul.mubr.f32.gmra.mrb[0].mxu0 %v2557
        %v2730 = vpop.f32.mrb[0].mxu0
        %v2731 = vadd.f32 0.0, %v2730
        %v2732 = vpop.f32.mrb[0].mxu0
        %2733 = vmatprep.mubr.f32.mxu0 0.0
        %2734 = vmatmul.mubr.f32.gmra.mrb[0].mxu0 %v2560
        %v2735 = vpop.f32.mrb[0].mxu0
        %v2736 = vadd.f32 0.0, %v2735
        %v2737 = vpop.f32.mrb[0].mxu0
        %2738 = vmatprep.mubr.f32.mxu0 0.0
        %2739 = vmatmul.mubr.f32.gmra.mrb[0].mxu0 %v2563
        %v2740 = vpop.f32.mrb[0].mxu0
        %v2741 = vadd.f32 0.0, %v2740
        %v2742 = vpop.f32.mrb[0].mxu0
        %2743 = vmatprep.mubr.f32.mxu0 0.0
        %2744 = vmatmul.mubr.f32.gmra.mrb[0].mxu0 %v2566
        %v2745 = vpop.f32.mrb[0].mxu0
        %v2746 = vadd.f32 0.0, %v2745
        %v2747 = vpop.f32.mrb[0].mxu0
        %2748 = vmatprep.mubr.f32.mxu0 0.0
        %2749 = vmatmul.mubr.f32.gmra.mrb[0].mxu0 %v2569
        %v2750 = vpop.f32.mrb[0].mxu0
        %v2751 = vadd.f32 0.0, %v2750
        %v2752 = vpop.f32.mrb[0].mxu0
        %2753 = vmatprep.mubr.f32.mxu0 0.0
        %2754 = vmatmul.mubr.f32.gmra.mrb[0].mxu0 %v2572
        %v2755 = vpop.f32.mrb[0].mxu0
        %v2756 = vadd.f32 0.0, %v2755
        %v2757 = vpop.f32.mrb[0].mxu0
        %2758 = vmatprep.mubr.f32.mxu0 0.0
        %2759 = vmatmul.mubr.f32.gmra.mrb[0].mxu0 %v2575
        %v2760 = vpop.f32.mrb[0].mxu0
        %v2761 = vadd.f32 0.0, %v2760
        %v2762 = vpop.f32.mrb[0].mxu0
        %2763 = vmatprep.mubr.f32.mxu0 0.0
        %2764 = vmatmul.mubr.f32.gmra.mrb[0].mxu0 %v2578
        %v2765 = vpop.f32.mrb[0].mxu0
        %v2766 = vadd.f32 0.0, %v2765
        %v2767 = vpop.f32.mrb[0].mxu0
        %2768 = vmatprep.mubr.f32.mxu0 0.0
        %2769 = vmatmul.mubr.f32.gmra.mrb[0].mxu0 %v2581
        %v2770 = vpop.f32.mrb[0].mxu0
        %v2771 = vadd.f32 0.0, %v2770
        %v2772 = vpop.f32.mrb[0].mxu0
        %2773 = vmatprep.mubr.f32.mxu0 0.0
        %2774 = vmatmul.mubr.f32.gmra.mrb[0].mxu0 %v2584
        %v2775 = vpop.f32.mrb[0].mxu0
        %v2776 = vadd.f32 0.0, %v2775
        %v2777 = vpop.f32.mrb[0].mxu0
        %2778 = vmatprep.mubr.f32.mxu0 0.0
        %2779 = vmatmul.mubr.f32.gmra.mrb[0].mxu0 %v2587
        %v2780 = vpop.f32.mrb[0].mxu0
        %v2781 = vadd.f32 0.0, %v2780
        %v2782 = vpop.f32.mrb[0].mxu0
        %2783 = vmatprep.mubr.f32.mxu0 0.0
        %2784 = vmatmul.mubr.f32.gmra.mrb[0].mxu0 %v2590
        %v2785 = vpop.f32.mrb[0].mxu0
        %v2786 = vadd.f32 0.0, %v2785
        %v2787 = vpop.f32.mrb[0].mxu0
        %2788 = vmatprep.mubr.f32.mxu0 0.0
        %2789 = vmatmul.mubr.f32.gmra.mrb[0].mxu0 %v2593
        %v2790 = vpop.f32.mrb[0].mxu0
        %v2791 = vadd.f32 0.0, %v2790
        %v2792 = vpop.f32.mrb[0].mxu0
        %2793 = vmatprep.mubr.f32.mxu0 0.0
        %2794 = vmatmul.mubr.f32.gmra.mrb[0].mxu0 %v2596
        %v2795 = vpop.f32.mrb[0].mxu0
        %v2796 = vadd.f32 0.0, %v2795
        %v2797 = vpop.f32.mrb[0].mxu0
        %2798 = vmatprep.mubr.f32.mxu0 0.0
        %2799 = vmatmul.mubr.f32.gmra.mrb[0].mxu0 %v2599
        %v2800 = vpop.f32.mrb[0].mxu0
        %v2801 = vadd.f32 0.0, %v2800
        %v2802 = vpop.f32.mrb[0].mxu0
        %2803 = vmatprep.mubr.f32.mxu0 0.0
        %2804 = vmatmul.mubr.f32.gmra.mrb[0].mxu0 %v2602
        %v2805 = vpop.f32.mrb[0].mxu0
        %v2806 = vadd.f32 0.0, %v2805
        %v2807 = vpop.f32.mrb[0].mxu0
        %2808 = vmatprep.mubr.f32.mxu0 0.0
        %2809 = vmatmul.mubr.f32.gmra.mrb[0].mxu0 %v2605
        %v2810 = vpop.f32.mrb[0].mxu0
        %v2811 = vadd.f32 0.0, %v2810
        %v2812 = vpop.f32.mrb[0].mxu0
        %2813 = vmatprep.mubr.f32.mxu0 0.0
        %2814 = vmatmul.mubr.f32.gmra.mrb[0].mxu0 %v2608
        %v2815 = vpop.f32.mrb[0].mxu0
        %v2816 = vadd.f32 0.0, %v2815
        %v2817 = vpop.f32.mrb[0].mxu0
        %2818 = vmatprep.mubr.f32.mxu0 0.0
        %2819 = vmatmul.mubr.f32.gmra.mrb[0].mxu0 %v2611
        %v2820 = vpop.f32.mrb[0].mxu0
        %v2821 = vadd.f32 0.0, %v2820
        %v2822 = vpop.f32.mrb[0].mxu0
        %2823 = vmatprep.mubr.f32.mxu0 0.0
        %2824 = vmatmul.mubr.f32.gmra.mrb[0].mxu0 %v2614
        %v2825 = vpop.f32.mrb[0].mxu0
        %v2826 = vadd.f32 0.0, %v2825
        %v2827 = vpop.f32.mrb[0].mxu0
        %2828 = vmatprep.mubr.f32.mxu0 0.0
        %2829 = vmatmul.mubr.f32.gmra.mrb[0].mxu0 %v2617
        %v2830 = vpop.f32.mrb[0].mxu0
        %v2831 = vadd.f32 0.0, %v2830
        %v2832 = vpop.f32.mrb[0].mxu0
        %2833 = vmatprep.mubr.f32.mxu0 0.0
        %2834 = vmatmul.mubr.f32.gmra.mrb[0].mxu0 %v2620
        %v2835 = vpop.f32.mrb[0].mxu0
        %v2836 = vadd.f32 0.0, %v2835
        %v2837 = vpop.f32.mrb[0].mxu0
        %2838 = vmatprep.mubr.f32.mxu0 0.0
        %2839 = vmatmul.mubr.f32.gmra.mrb[0].mxu0 %v2623
        %v2840 = vpop.f32.mrb[0].mxu0
        %v2841 = vadd.f32 0.0, %v2840
        %v2842 = vpop.f32.mrb[0].mxu0
        %2843 = vmatprep.mubr.f32.mxu0 0.0
        %2844 = vmatmul.mubr.f32.gmra.mrb[0].mxu0 %v2626
        %v2845 = vpop.f32.mrb[0].mxu0
        %v2846 = vadd.f32 0.0, %v2845
        %v2847 = vpop.f32.mrb[0].mxu0
        %2848 = vmatprep.mubr.f32.mxu0 0.0
        %2849 = vmatmul.mubr.f32.gmra.mrb[0].mxu0 %v2629
        %v2850 = vpop.f32.mrb[0].mxu0
        %v2851 = vadd.f32 0.0, %v2850
        %v2852 = vpop.f32.mrb[0].mxu0
        %2853 = vmatprep.mubr.f32.mxu0 0.0
        %2854 = vmatmul.mubr.f32.gmra.mrb[0].mxu0 %v2632
        %v2855 = vpop.f32.mrb[0].mxu0
        %v2856 = vadd.f32 0.0, %v2855
        %v2857 = vpop.f32.mrb[0].mxu0
        %2858 = vdwg.mxu0
        %v2859 = vadd.f32 %v2468, %v2701
        %v2860 = vadd.f32 %v2469, %v2706
        %v2861 = vadd.f32 %v2470, %v2711
        %v2862 = vadd.f32 %v2471, %v2716
        %v2863 = vadd.f32 %v2472, %v2721
        %v2864 = vadd.f32 %v2473, %v2726
        %v2865 = vadd.f32 %v2474, %v2731
        %v2866 = vadd.f32 %v2475, %v2736
        %v2867 = vadd.f32 %v2476, %v2741
        %v2868 = vadd.f32 %v2477, %v2746
        %v2869 = vadd.f32 %v2478, %v2751
        %v2870 = vadd.f32 %v2479, %v2756
        %v2871 = vadd.f32 %v2480, %v2761
        %v2872 = vadd.f32 %v2481, %v2766
        %v2873 = vadd.f32 %v2482, %v2771
        %v2874 = vadd.f32 %v2483, %v2776
        %v2875 = vadd.f32 %v2484, %v2781
        %v2876 = vadd.f32 %v2485, %v2786
        %v2877 = vadd.f32 %v2486, %v2791
        %v2878 = vadd.f32 %v2487, %v2796
        %v2879 = vadd.f32 %v2488, %v2801
        %v2880 = vadd.f32 %v2489, %v2806
        %v2881 = vadd.f32 %v2490, %v2811
        %v2882 = vadd.f32 %v2491, %v2816
        %v2883 = vadd.f32 %v2492, %v2821
        %v2884 = vadd.f32 %v2493, %v2826
        %v2885 = vadd.f32 %v2494, %v2831
        %v2886 = vadd.f32 %v2495, %v2836
        %v2887 = vadd.f32 %v2496, %v2841
        %v2888 = vadd.f32 %v2497, %v2846
        %v2889 = vadd.f32 %v2498, %v2851
        %v2890 = vadd.f32 %v2499, %v2856
        %v2891 = vld [vmem:[%s2500 + $0x1] sm:$0xff]
        %v2892 = vld [vmem:[%s2500 + $0x9] sm:$0xff]
        %v2893 = vld [vmem:[%s2500 + $0x19] sm:$0xff]
        %v2894 = vld [vmem:[%s2500 + $0x21] sm:$0xff]
        %v2895 = vld [vmem:[%s2500 + $0x31] sm:$0xff]
        %v2896 = vld [vmem:[%s2500 + $0x39] sm:$0xff]
        %v2897 = vld [vmem:[%s2500 + $0x49] sm:$0xff]
        %v2898 = vld [vmem:[%s2500 + $0x51] sm:$0xff]
        %v2899 = vld [vmem:[%s2500 + $0x61] sm:$0xff]
        %v2900 = vld [vmem:[%s2500 + $0x69] sm:$0xff]
        %v2901 = vld [vmem:[%s2500 + $0x79] sm:$0xff]
        %v2902 = vld [vmem:[%s2500 + $0x81] sm:$0xff]
        %v2903 = vld [vmem:[%s2500 + $0x91] sm:$0xff]
        %v2904 = vld [vmem:[%s2500 + $0x99] sm:$0xff]
        %v2905 = vld [vmem:[%s2500 + $0xa9] sm:$0xff]
        %v2906 = vld [vmem:[%s2500 + $0xb1] sm:$0xff]
        %v2907 = vld [vmem:[%s2500 + $0xc1] sm:$0xff]
        %v2908 = vld [vmem:[%s2500 + $0xc9] sm:$0xff]
        %v2909 = vld [vmem:[%s2500 + $0xd9] sm:$0xff]
        %v2910 = vld [vmem:[%s2500 + $0xe1] sm:$0xff]
        %v2911 = vld [vmem:[%s2500 + $0xf1] sm:$0xff]
        %v2912 = vld [vmem:[%s2500 + $0xf9] sm:$0xff]
        %v2913 = vld [vmem:[%s2500 + $0x109] sm:$0xff]
        %v2914 = vld [vmem:[%s2500 + $0x111] sm:$0xff]
        %v2915 = vld [vmem:[%s2500 + $0x121] sm:$0xff]
        %v2916 = vld [vmem:[%s2500 + $0x129] sm:$0xff]
        %v2917 = vld [vmem:[%s2500 + $0x139] sm:$0xff]
        %v2918 = vld [vmem:[%s2500 + $0x141] sm:$0xff]
        %v2919 = vld [vmem:[%s2500 + $0x151] sm:$0xff]
        %v2920 = vld [vmem:[%s2500 + $0x159] sm:$0xff]
        %v2921 = vld [vmem:[%s2500 + $0x169] sm:$0xff]
        %v2922 = vld [vmem:[%s2500 + $0x171] sm:$0xff]
        %s2923 = scalar_lea.vmem %s1, 224
        %v2924 = vld [vmem:[%s2923] sm:$0xff]
        %v2925 = vld [vmem:[%s2923 + $0x8] sm:$0xff]
        %v2926 = vld [vmem:[%s2923 + $0x10] sm:$0xff]
        %v2927 = vld [vmem:[%s2923 + $0x18] sm:$0xff]
        %v2929 = vsel %vm297, %v2891, 0
        %v2932 = vsel %vm297, %v2892, 0
        %v2935 = vsel %vm297, %v2893, 0
        %v2938 = vsel %vm297, %v2894, 0
        %v2941 = vsel %vm297, %v2895, 0
        %v2944 = vsel %vm297, %v2896, 0
        %v2947 = vsel %vm297, %v2897, 0
        %v2950 = vsel %vm297, %v2898, 0
        %v2953 = vsel %vm297, %v2899, 0
        %v2956 = vsel %vm297, %v2900, 0
        %v2959 = vsel %vm297, %v2901, 0
        %v2962 = vsel %vm297, %v2902, 0
        %v2965 = vsel %vm297, %v2903, 0
        %v2968 = vsel %vm297, %v2904, 0
        %v2971 = vsel %vm297, %v2905, 0
        %v2974 = vsel %vm297, %v2906, 0
        %v2977 = vsel %vm297, %v2907, 0
        %v2980 = vsel %vm297, %v2908, 0
        %v2983 = vsel %vm297, %v2909, 0
        %v2986 = vsel %vm297, %v2910, 0
        %v2989 = vsel %vm297, %v2911, 0
        %v2992 = vsel %vm297, %v2912, 0
        %v2995 = vsel %vm297, %v2913, 0
        %v2998 = vsel %vm297, %v2914, 0
        %v3001 = vsel %vm297, %v2915, 0
        %v3004 = vsel %vm297, %v2916, 0
        %v3007 = vsel %vm297, %v2917, 0
        %v3010 = vsel %vm297, %v2918, 0
        %v3013 = vsel %vm297, %v2919, 0
        %v3016 = vsel %vm297, %v2920, 0
        %v3019 = vsel %vm297, %v2921, 0
        %v3022 = vsel %vm297, %v2922, 0
        %3024 = vmatprep.subr.mxu0 0.0
        %3025 = vmatpush1.msra.mxu0 %v2924
        %3026 = vmatprep.subr.mxu0 0.0
        %3027 = vmatpush1.msra.mxu0 %v2925
        %3028 = vmatprep.subr.mxu0 0.0
        %3029 = vmatpush1.msra.mxu0 %v2926
        %3030 = vmatprep.subr.mxu0 0.0
        %3031 = vmatpush1.msra.mxu0 %v2927
        %3032 = vmatprep.subr.mxu0 0.0
        %3033 = vmatpush1.msra.mxu0 0.0
        %3034 = vmatprep.subr.mxu0 0.0
        %3035 = vmatpush1.msra.mxu0 0.0
        %3036 = vmatprep.subr.mxu0 0.0
        %3037 = vmatpush1.msra.mxu0 0.0
        %3038 = vmatprep.subr.mxu0 0.0
        %3039 = vmatpush1.msra.mxu0 0.0
        %3040 = vmatprep.subr.mxu0 0.0
        %3041 = vmatpush1.msra.mxu0 0.0
        %3042 = vmatprep.subr.mxu0 0.0
        %3043 = vmatpush1.msra.mxu0 0.0
        %3044 = vmatprep.subr.mxu0 0.0
        %3045 = vmatpush1.msra.mxu0 0.0
        %3046 = vmatprep.subr.mxu0 0.0
        %3047 = vmatpush1.msra.mxu0 0.0
        %3048 = vmatprep.subr.mxu0 0.0
        %3049 = vmatpush1.msra.mxu0 0.0
        %3050 = vmatprep.subr.mxu0 0.0
        %3051 = vmatpush1.msra.mxu0 0.0
        %3052 = vmatprep.subr.mxu0 0.0
        %3053 = vmatpush1.msra.mxu0 0.0
        %3054 = vmatprep.subr.mxu0 0.0
        %3055 = vmatpush1.msra.mxu0 0.0
        %3056 = vmatprep.subr.mxu0 0.0
        %3057 = vmatpush1.msra.mxu0 0.0
        %3058 = vmatprep.subr.mxu0 0.0
        %3059 = vmatpush1.msra.mxu0 0.0
        %3060 = vmatprep.subr.mxu0 0.0
        %3061 = vmatpush1.msra.mxu0 0.0
        %3062 = vmatprep.subr.mxu0 0.0
        %3063 = vmatpush1.msra.mxu0 0.0
        %3064 = vmatprep.subr.mxu0 0.0
        %3065 = vmatpush1.msra.mxu0 0.0
        %3066 = vmatprep.subr.mxu0 0.0
        %3067 = vmatpush1.msra.mxu0 0.0
        %3068 = vmatprep.subr.mxu0 0.0
        %3069 = vmatpush1.msra.mxu0 0.0
        %3070 = vmatprep.subr.mxu0 0.0
        %3071 = vmatpush1.msra.mxu0 0.0
        %3072 = vmatprep.subr.mxu0 0.0
        %3073 = vmatpush1.msra.mxu0 0.0
        %3074 = vmatprep.subr.mxu0 0.0
        %3075 = vmatpush1.msra.mxu0 0.0
        %3076 = vmatprep.subr.mxu0 0.0
        %3077 = vmatpush1.msra.mxu0 0.0
        %3078 = vmatprep.subr.mxu0 0.0
        %3079 = vmatpush1.msra.mxu0 0.0
        %3080 = vmatprep.subr.mxu0 0.0
        %3081 = vmatpush1.msra.mxu0 0.0
        %3082 = vmatprep.subr.mxu0 0.0
        %3083 = vmatpush1.msra.mxu0 0.0
        %3084 = vmatprep.subr.mxu0 0.0
        %3085 = vmatpush1.msra.mxu0 0.0
        %3086 = vmatprep.subr.mxu0 0.0
        %3087 = vmatpush1.msra.mxu0 0.0
        %3088 = vmatprep.mubr.f32.mxu0 0.0
        %3089 = vmatmul.mubr.f32.gmra.mrb[0].mxu0 %v2929
        %v3090 = vpop.f32.mrb[0].mxu0
        %v3091 = vadd.f32 0.0, %v3090
        %v3092 = vpop.f32.mrb[0].mxu0
        %3093 = vmatprep.mubr.f32.mxu0 0.0
        %3094 = vmatmul.mubr.f32.gmra.mrb[0].mxu0 %v2932
        %v3095 = vpop.f32.mrb[0].mxu0
        %v3096 = vadd.f32 0.0, %v3095
        %v3097 = vpop.f32.mrb[0].mxu0
        %3098 = vmatprep.mubr.f32.mxu0 0.0
        %3099 = vmatmul.mubr.f32.gmra.mrb[0].mxu0 %v2935
        %v3100 = vpop.f32.mrb[0].mxu0
        %v3101 = vadd.f32 0.0, %v3100
        %v3102 = vpop.f32.mrb[0].mxu0
        %3103 = vmatprep.mubr.f32.mxu0 0.0
        %3104 = vmatmul.mubr.f32.gmra.mrb[0].mxu0 %v2938
        %v3105 = vpop.f32.mrb[0].mxu0
        %v3106 = vadd.f32 0.0, %v3105
        %v3107 = vpop.f32.mrb[0].mxu0
        %3108 = vmatprep.mubr.f32.mxu0 0.0
        %3109 = vmatmul.mubr.f32.gmra.mrb[0].mxu0 %v2941
        %v3110 = vpop.f32.mrb[0].mxu0
        %v3111 = vadd.f32 0.0, %v3110
        %v3112 = vpop.f32.mrb[0].mxu0
        %3113 = vmatprep.mubr.f32.mxu0 0.0
        %3114 = vmatmul.mubr.f32.gmra.mrb[0].mxu0 %v2944
        %v3115 = vpop.f32.mrb[0].mxu0
        %v3116 = vadd.f32 0.0, %v3115
        %v3117 = vpop.f32.mrb[0].mxu0
        %3118 = vmatprep.mubr.f32.mxu0 0.0
        %3119 = vmatmul.mubr.f32.gmra.mrb[0].mxu0 %v2947
        %v3120 = vpop.f32.mrb[0].mxu0
        %v3121 = vadd.f32 0.0, %v3120
        %v3122 = vpop.f32.mrb[0].mxu0
        %3123 = vmatprep.mubr.f32.mxu0 0.0
        %3124 = vmatmul.mubr.f32.gmra.mrb[0].mxu0 %v2950
        %v3125 = vpop.f32.mrb[0].mxu0
        %v3126 = vadd.f32 0.0, %v3125
        %v3127 = vpop.f32.mrb[0].mxu0
        %3128 = vmatprep.mubr.f32.mxu0 0.0
        %3129 = vmatmul.mubr.f32.gmra.mrb[0].mxu0 %v2953
        %v3130 = vpop.f32.mrb[0].mxu0
        %v3131 = vadd.f32 0.0, %v3130
        %v3132 = vpop.f32.mrb[0].mxu0
        %3133 = vmatprep.mubr.f32.mxu0 0.0
        %3134 = vmatmul.mubr.f32.gmra.mrb[0].mxu0 %v2956
        %v3135 = vpop.f32.mrb[0].mxu0
        %v3136 = vadd.f32 0.0, %v3135
        %v3137 = vpop.f32.mrb[0].mxu0
        %3138 = vmatprep.mubr.f32.mxu0 0.0
        %3139 = vmatmul.mubr.f32.gmra.mrb[0].mxu0 %v2959
        %v3140 = vpop.f32.mrb[0].mxu0
        %v3141 = vadd.f32 0.0, %v3140
        %v3142 = vpop.f32.mrb[0].mxu0
        %3143 = vmatprep.mubr.f32.mxu0 0.0
        %3144 = vmatmul.mubr.f32.gmra.mrb[0].mxu0 %v2962
        %v3145 = vpop.f32.mrb[0].mxu0
        %v3146 = vadd.f32 0.0, %v3145
        %v3147 = vpop.f32.mrb[0].mxu0
        %3148 = vmatprep.mubr.f32.mxu0 0.0
        %3149 = vmatmul.mubr.f32.gmra.mrb[0].mxu0 %v2965
        %v3150 = vpop.f32.mrb[0].mxu0
        %v3151 = vadd.f32 0.0, %v3150
        %v3152 = vpop.f32.mrb[0].mxu0
        %3153 = vmatprep.mubr.f32.mxu0 0.0
        %3154 = vmatmul.mubr.f32.gmra.mrb[0].mxu0 %v2968
        %v3155 = vpop.f32.mrb[0].mxu0
        %v3156 = vadd.f32 0.0, %v3155
        %v3157 = vpop.f32.mrb[0].mxu0
        %3158 = vmatprep.mubr.f32.mxu0 0.0
        %3159 = vmatmul.mubr.f32.gmra.mrb[0].mxu0 %v2971
        %v3160 = vpop.f32.mrb[0].mxu0
        %v3161 = vadd.f32 0.0, %v3160
        %v3162 = vpop.f32.mrb[0].mxu0
        %3163 = vmatprep.mubr.f32.mxu0 0.0
        %3164 = vmatmul.mubr.f32.gmra.mrb[0].mxu0 %v2974
        %v3165 = vpop.f32.mrb[0].mxu0
        %v3166 = vadd.f32 0.0, %v3165
        %v3167 = vpop.f32.mrb[0].mxu0
        %3168 = vmatprep.mubr.f32.mxu0 0.0
        %3169 = vmatmul.mubr.f32.gmra.mrb[0].mxu0 %v2977
        %v3170 = vpop.f32.mrb[0].mxu0
        %v3171 = vadd.f32 0.0, %v3170
        %v3172 = vpop.f32.mrb[0].mxu0
        %3173 = vmatprep.mubr.f32.mxu0 0.0
        %3174 = vmatmul.mubr.f32.gmra.mrb[0].mxu0 %v2980
        %v3175 = vpop.f32.mrb[0].mxu0
        %v3176 = vadd.f32 0.0, %v3175
        %v3177 = vpop.f32.mrb[0].mxu0
        %3178 = vmatprep.mubr.f32.mxu0 0.0
        %3179 = vmatmul.mubr.f32.gmra.mrb[0].mxu0 %v2983
        %v3180 = vpop.f32.mrb[0].mxu0
        %v3181 = vadd.f32 0.0, %v3180
        %v3182 = vpop.f32.mrb[0].mxu0
        %3183 = vmatprep.mubr.f32.mxu0 0.0
        %3184 = vmatmul.mubr.f32.gmra.mrb[0].mxu0 %v2986
        %v3185 = vpop.f32.mrb[0].mxu0
        %v3186 = vadd.f32 0.0, %v3185
        %v3187 = vpop.f32.mrb[0].mxu0
        %3188 = vmatprep.mubr.f32.mxu0 0.0
        %3189 = vmatmul.mubr.f32.gmra.mrb[0].mxu0 %v2989
        %v3190 = vpop.f32.mrb[0].mxu0
        %v3191 = vadd.f32 0.0, %v3190
        %v3192 = vpop.f32.mrb[0].mxu0
        %3193 = vmatprep.mubr.f32.mxu0 0.0
        %3194 = vmatmul.mubr.f32.gmra.mrb[0].mxu0 %v2992
        %v3195 = vpop.f32.mrb[0].mxu0
        %v3196 = vadd.f32 0.0, %v3195
        %v3197 = vpop.f32.mrb[0].mxu0
        %3198 = vmatprep.mubr.f32.mxu0 0.0
        %3199 = vmatmul.mubr.f32.gmra.mrb[0].mxu0 %v2995
        %v3200 = vpop.f32.mrb[0].mxu0
        %v3201 = vadd.f32 0.0, %v3200
        %v3202 = vpop.f32.mrb[0].mxu0
        %3203 = vmatprep.mubr.f32.mxu0 0.0
        %3204 = vmatmul.mubr.f32.gmra.mrb[0].mxu0 %v2998
        %v3205 = vpop.f32.mrb[0].mxu0
        %v3206 = vadd.f32 0.0, %v3205
        %v3207 = vpop.f32.mrb[0].mxu0
        %3208 = vmatprep.mubr.f32.mxu0 0.0
        %3209 = vmatmul.mubr.f32.gmra.mrb[0].mxu0 %v3001
        %v3210 = vpop.f32.mrb[0].mxu0
        %v3211 = vadd.f32 0.0, %v3210
        %v3212 = vpop.f32.mrb[0].mxu0
        %3213 = vmatprep.mubr.f32.mxu0 0.0
        %3214 = vmatmul.mubr.f32.gmra.mrb[0].mxu0 %v3004
        %v3215 = vpop.f32.mrb[0].mxu0
        %v3216 = vadd.f32 0.0, %v3215
        %v3217 = vpop.f32.mrb[0].mxu0
        %3218 = vmatprep.mubr.f32.mxu0 0.0
        %3219 = vmatmul.mubr.f32.gmra.mrb[0].mxu0 %v3007
        %v3220 = vpop.f32.mrb[0].mxu0
        %v3221 = vadd.f32 0.0, %v3220
        %v3222 = vpop.f32.mrb[0].mxu0
        %3223 = vmatprep.mubr.f32.mxu0 0.0
        %3224 = vmatmul.mubr.f32.gmra.mrb[0].mxu0 %v3010
        %v3225 = vpop.f32.mrb[0].mxu0
        %v3226 = vadd.f32 0.0, %v3225
        %v3227 = vpop.f32.mrb[0].mxu0
        %3228 = vmatprep.mubr.f32.mxu0 0.0
        %3229 = vmatmul.mubr.f32.gmra.mrb[0].mxu0 %v3013
        %v3230 = vpop.f32.mrb[0].mxu0
        %v3231 = vadd.f32 0.0, %v3230
        %v3232 = vpop.f32.mrb[0].mxu0
        %3233 = vmatprep.mubr.f32.mxu0 0.0
        %3234 = vmatmul.mubr.f32.gmra.mrb[0].mxu0 %v3016
        %v3235 = vpop.f32.mrb[0].mxu0
        %v3236 = vadd.f32 0.0, %v3235
        %v3237 = vpop.f32.mrb[0].mxu0
        %3238 = vmatprep.mubr.f32.mxu0 0.0
        %3239 = vmatmul.mubr.f32.gmra.mrb[0].mxu0 %v3019
        %v3240 = vpop.f32.mrb[0].mxu0
        %v3241 = vadd.f32 0.0, %v3240
        %v3242 = vpop.f32.mrb[0].mxu0
        %3243 = vmatprep.mubr.f32.mxu0 0.0
        %3244 = vmatmul.mubr.f32.gmra.mrb[0].mxu0 %v3022
        %v3245 = vpop.f32.mrb[0].mxu0
        %v3246 = vadd.f32 0.0, %v3245
        %v3247 = vpop.f32.mrb[0].mxu0
        %3248 = vdwg.mxu0
        %v3249 = vadd.f32 %v2859, %v3091
        %v3250 = vadd.f32 %v2860, %v3096
        %v3251 = vadd.f32 %v2861, %v3101
        %v3252 = vadd.f32 %v2862, %v3106
        %v3253 = vadd.f32 %v2863, %v3111
        %v3254 = vadd.f32 %v2864, %v3116
        %v3255 = vadd.f32 %v2865, %v3121
        %v3256 = vadd.f32 %v2866, %v3126
        %v3257 = vadd.f32 %v2867, %v3131
        %v3258 = vadd.f32 %v2868, %v3136
        %v3259 = vadd.f32 %v2869, %v3141
        %v3260 = vadd.f32 %v2870, %v3146
        %v3261 = vadd.f32 %v2871, %v3151
        %v3262 = vadd.f32 %v2872, %v3156
        %v3263 = vadd.f32 %v2873, %v3161
        %v3264 = vadd.f32 %v2874, %v3166
        %v3265 = vadd.f32 %v2875, %v3171
        %v3266 = vadd.f32 %v2876, %v3176
        %v3267 = vadd.f32 %v2877, %v3181
        %v3268 = vadd.f32 %v2878, %v3186
        %v3269 = vadd.f32 %v2879, %v3191
        %v3270 = vadd.f32 %v2880, %v3196
        %v3271 = vadd.f32 %v2881, %v3201
        %v3272 = vadd.f32 %v2882, %v3206
        %v3273 = vadd.f32 %v2883, %v3211
        %v3274 = vadd.f32 %v2884, %v3216
        %v3275 = vadd.f32 %v2885, %v3221
        %v3276 = vadd.f32 %v2886, %v3226
        %v3277 = vadd.f32 %v2887, %v3231
        %v3278 = vadd.f32 %v2888, %v3236
        %v3279 = vadd.f32 %v2889, %v3241
        %v3280 = vadd.f32 %v2890, %v3246
        %v3281 = vld [vmem:[%s2500 + $0x2] sm:$0xff]
        %v3282 = vld [vmem:[%s2500 + $0xa] sm:$0xff]
        %v3283 = vld [vmem:[%s2500 + $0x1a] sm:$0xff]
        %v3284 = vld [vmem:[%s2500 + $0x22] sm:$0xff]
        %v3285 = vld [vmem:[%s2500 + $0x32] sm:$0xff]
        %v3286 = vld [vmem:[%s2500 + $0x3a] sm:$0xff]
        %v3287 = vld [vmem:[%s2500 + $0x4a] sm:$0xff]
        %v3288 = vld [vmem:[%s2500 + $0x52] sm:$0xff]
        %v3289 = vld [vmem:[%s2500 + $0x62] sm:$0xff]
        %v3290 = vld [vmem:[%s2500 + $0x6a] sm:$0xff]
        %v3291 = vld [vmem:[%s2500 + $0x7a] sm:$0xff]
        %v3292 = vld [vmem:[%s2500 + $0x82] sm:$0xff]
        %v3293 = vld [vmem:[%s2500 + $0x92] sm:$0xff]
        %v3294 = vld [vmem:[%s2500 + $0x9a] sm:$0xff]
        %v3295 = vld [vmem:[%s2500 + $0xaa] sm:$0xff]
        %v3296 = vld [vmem:[%s2500 + $0xb2] sm:$0xff]
        %v3297 = vld [vmem:[%s2500 + $0xc2] sm:$0xff]
        %v3298 = vld [vmem:[%s2500 + $0xca] sm:$0xff]
        %v3299 = vld [vmem:[%s2500 + $0xda] sm:$0xff]
        %v3300 = vld [vmem:[%s2500 + $0xe2] sm:$0xff]
        %v3301 = vld [vmem:[%s2500 + $0xf2] sm:$0xff]
        %v3302 = vld [vmem:[%s2500 + $0xfa] sm:$0xff]
        %v3303 = vld [vmem:[%s2500 + $0x10a] sm:$0xff]
        %v3304 = vld [vmem:[%s2500 + $0x112] sm:$0xff]
        %v3305 = vld [vmem:[%s2500 + $0x122] sm:$0xff]
        %v3306 = vld [vmem:[%s2500 + $0x12a] sm:$0xff]
        %v3307 = vld [vmem:[%s2500 + $0x13a] sm:$0xff]
        %v3308 = vld [vmem:[%s2500 + $0x142] sm:$0xff]
        %v3309 = vld [vmem:[%s2500 + $0x152] sm:$0xff]
        %v3310 = vld [vmem:[%s2500 + $0x15a] sm:$0xff]
        %v3311 = vld [vmem:[%s2500 + $0x16a] sm:$0xff]
        %v3312 = vld [vmem:[%s2500 + $0x172] sm:$0xff]
        %s3313 = scalar_lea.vmem %s1, 256
        %v3314 = vld [vmem:[%s3313] sm:$0xff]
        %v3315 = vld [vmem:[%s3313 + $0x8] sm:$0xff]
        %v3316 = vld [vmem:[%s3313 + $0x10] sm:$0xff]
        %v3317 = vld [vmem:[%s3313 + $0x18] sm:$0xff]
        %v3319 = vsel %vm297, %v3281, 0
        %v3322 = vsel %vm297, %v3282, 0
        %v3325 = vsel %vm297, %v3283, 0
        %v3328 = vsel %vm297, %v3284, 0
        %v3331 = vsel %vm297, %v3285, 0
        %v3334 = vsel %vm297, %v3286, 0
        %v3337 = vsel %vm297, %v3287, 0
        %v3340 = vsel %vm297, %v3288, 0
        %v3343 = vsel %vm297, %v3289, 0
        %v3346 = vsel %vm297, %v3290, 0
        %v3349 = vsel %vm297, %v3291, 0
        %v3352 = vsel %vm297, %v3292, 0
        %v3355 = vsel %vm297, %v3293, 0
        %v3358 = vsel %vm297, %v3294, 0
        %v3361 = vsel %vm297, %v3295, 0
        %v3364 = vsel %vm297, %v3296, 0
        %v3367 = vsel %vm297, %v3297, 0
        %v3370 = vsel %vm297, %v3298, 0
        %v3373 = vsel %vm297, %v3299, 0
        %v3376 = vsel %vm297, %v3300, 0
        %v3379 = vsel %vm297, %v3301, 0
        %v3382 = vsel %vm297, %v3302, 0
        %v3385 = vsel %vm297, %v3303, 0
        %v3388 = vsel %vm297, %v3304, 0
        %v3391 = vsel %vm297, %v3305, 0
        %v3394 = vsel %vm297, %v3306, 0
        %v3397 = vsel %vm297, %v3307, 0
        %v3400 = vsel %vm297, %v3308, 0
        %v3403 = vsel %vm297, %v3309, 0
        %v3406 = vsel %vm297, %v3310, 0
        %v3409 = vsel %vm297, %v3311, 0
        %v3412 = vsel %vm297, %v3312, 0
        %3414 = vmatprep.subr.mxu0 0.0
        %3415 = vmatpush1.msra.mxu0 %v3314
        %3416 = vmatprep.subr.mxu0 0.0
        %3417 = vmatpush1.msra.mxu0 %v3315
        %3418 = vmatprep.subr.mxu0 0.0
        %3419 = vmatpush1.msra.mxu0 %v3316
        %3420 = vmatprep.subr.mxu0 0.0
        %3421 = vmatpush1.msra.mxu0 %v3317
        %3422 = vmatprep.subr.mxu0 0.0
        %3423 = vmatpush1.msra.mxu0 0.0
        %3424 = vmatprep.subr.mxu0 0.0
        %3425 = vmatpush1.msra.mxu0 0.0
        %3426 = vmatprep.subr.mxu0 0.0
        %3427 = vmatpush1.msra.mxu0 0.0
        %3428 = vmatprep.subr.mxu0 0.0
        %3429 = vmatpush1.msra.mxu0 0.0
        %3430 = vmatprep.subr.mxu0 0.0
        %3431 = vmatpush1.msra.mxu0 0.0
        %3432 = vmatprep.subr.mxu0 0.0
        %3433 = vmatpush1.msra.mxu0 0.0
        %3434 = vmatprep.subr.mxu0 0.0
        %3435 = vmatpush1.msra.mxu0 0.0
        %3436 = vmatprep.subr.mxu0 0.0
        %3437 = vmatpush1.msra.mxu0 0.0
        %3438 = vmatprep.subr.mxu0 0.0
        %3439 = vmatpush1.msra.mxu0 0.0
        %3440 = vmatprep.subr.mxu0 0.0
        %3441 = vmatpush1.msra.mxu0 0.0
        %3442 = vmatprep.subr.mxu0 0.0
        %3443 = vmatpush1.msra.mxu0 0.0
        %3444 = vmatprep.subr.mxu0 0.0
        %3445 = vmatpush1.msra.mxu0 0.0
        %3446 = vmatprep.subr.mxu0 0.0
        %3447 = vmatpush1.msra.mxu0 0.0
        %3448 = vmatprep.subr.mxu0 0.0
        %3449 = vmatpush1.msra.mxu0 0.0
        %3450 = vmatprep.subr.mxu0 0.0
        %3451 = vmatpush1.msra.mxu0 0.0
        %3452 = vmatprep.subr.mxu0 0.0
        %3453 = vmatpush1.msra.mxu0 0.0
        %3454 = vmatprep.subr.mxu0 0.0
        %3455 = vmatpush1.msra.mxu0 0.0
        %3456 = vmatprep.subr.mxu0 0.0
        %3457 = vmatpush1.msra.mxu0 0.0
        %3458 = vmatprep.subr.mxu0 0.0
        %3459 = vmatpush1.msra.mxu0 0.0
        %3460 = vmatprep.subr.mxu0 0.0
        %3461 = vmatpush1.msra.mxu0 0.0
        %3462 = vmatprep.subr.mxu0 0.0
        %3463 = vmatpush1.msra.mxu0 0.0
        %3464 = vmatprep.subr.mxu0 0.0
        %3465 = vmatpush1.msra.mxu0 0.0
        %3466 = vmatprep.subr.mxu0 0.0
        %3467 = vmatpush1.msra.mxu0 0.0
        %3468 = vmatprep.subr.mxu0 0.0
        %3469 = vmatpush1.msra.mxu0 0.0
        %3470 = vmatprep.subr.mxu0 0.0
        %3471 = vmatpush1.msra.mxu0 0.0
        %3472 = vmatprep.subr.mxu0 0.0
        %3473 = vmatpush1.msra.mxu0 0.0
        %3474 = vmatprep.subr.mxu0 0.0
        %3475 = vmatpush1.msra.mxu0 0.0
        %3476 = vmatprep.subr.mxu0 0.0
        %3477 = vmatpush1.msra.mxu0 0.0
        %3478 = vmatprep.mubr.f32.mxu0 0.0
        %3479 = vmatmul.mubr.f32.gmra.mrb[0].mxu0 %v3319
        %v3480 = vpop.f32.mrb[0].mxu0
        %v3481 = vadd.f32 0.0, %v3480
        %v3482 = vpop.f32.mrb[0].mxu0
        %3483 = vmatprep.mubr.f32.mxu0 0.0
        %3484 = vmatmul.mubr.f32.gmra.mrb[0].mxu0 %v3322
        %v3485 = vpop.f32.mrb[0].mxu0
        %v3486 = vadd.f32 0.0, %v3485
        %v3487 = vpop.f32.mrb[0].mxu0
        %3488 = vmatprep.mubr.f32.mxu0 0.0
        %3489 = vmatmul.mubr.f32.gmra.mrb[0].mxu0 %v3325
        %v3490 = vpop.f32.mrb[0].mxu0
        %v3491 = vadd.f32 0.0, %v3490
        %v3492 = vpop.f32.mrb[0].mxu0
        %3493 = vmatprep.mubr.f32.mxu0 0.0
        %3494 = vmatmul.mubr.f32.gmra.mrb[0].mxu0 %v3328
        %v3495 = vpop.f32.mrb[0].mxu0
        %v3496 = vadd.f32 0.0, %v3495
        %v3497 = vpop.f32.mrb[0].mxu0
        %3498 = vmatprep.mubr.f32.mxu0 0.0
        %3499 = vmatmul.mubr.f32.gmra.mrb[0].mxu0 %v3331
        %v3500 = vpop.f32.mrb[0].mxu0
        %v3501 = vadd.f32 0.0, %v3500
        %v3502 = vpop.f32.mrb[0].mxu0
        %3503 = vmatprep.mubr.f32.mxu0 0.0
        %3504 = vmatmul.mubr.f32.gmra.mrb[0].mxu0 %v3334
        %v3505 = vpop.f32.mrb[0].mxu0
        %v3506 = vadd.f32 0.0, %v3505
        %v3507 = vpop.f32.mrb[0].mxu0
        %3508 = vmatprep.mubr.f32.mxu0 0.0
        %3509 = vmatmul.mubr.f32.gmra.mrb[0].mxu0 %v3337
        %v3510 = vpop.f32.mrb[0].mxu0
        %v3511 = vadd.f32 0.0, %v3510
        %v3512 = vpop.f32.mrb[0].mxu0
        %3513 = vmatprep.mubr.f32.mxu0 0.0
        %3514 = vmatmul.mubr.f32.gmra.mrb[0].mxu0 %v3340
        %v3515 = vpop.f32.mrb[0].mxu0
        %v3516 = vadd.f32 0.0, %v3515
        %v3517 = vpop.f32.mrb[0].mxu0
        %3518 = vmatprep.mubr.f32.mxu0 0.0
        %3519 = vmatmul.mubr.f32.gmra.mrb[0].mxu0 %v3343
        %v3520 = vpop.f32.mrb[0].mxu0
        %v3521 = vadd.f32 0.0, %v3520
        %v3522 = vpop.f32.mrb[0].mxu0
        %3523 = vmatprep.mubr.f32.mxu0 0.0
        %3524 = vmatmul.mubr.f32.gmra.mrb[0].mxu0 %v3346
        %v3525 = vpop.f32.mrb[0].mxu0
        %v3526 = vadd.f32 0.0, %v3525
        %v3527 = vpop.f32.mrb[0].mxu0
        %3528 = vmatprep.mubr.f32.mxu0 0.0
        %3529 = vmatmul.mubr.f32.gmra.mrb[0].mxu0 %v3349
        %v3530 = vpop.f32.mrb[0].mxu0
        %v3531 = vadd.f32 0.0, %v3530
        %v3532 = vpop.f32.mrb[0].mxu0
        %3533 = vmatprep.mubr.f32.mxu0 0.0
        %3534 = vmatmul.mubr.f32.gmra.mrb[0].mxu0 %v3352
        %v3535 = vpop.f32.mrb[0].mxu0
        %v3536 = vadd.f32 0.0, %v3535
        %v3537 = vpop.f32.mrb[0].mxu0
        %3538 = vmatprep.mubr.f32.mxu0 0.0
        %3539 = vmatmul.mubr.f32.gmra.mrb[0].mxu0 %v3355
        %v3540 = vpop.f32.mrb[0].mxu0
        %v3541 = vadd.f32 0.0, %v3540
        %v3542 = vpop.f32.mrb[0].mxu0
        %3543 = vmatprep.mubr.f32.mxu0 0.0
        %3544 = vmatmul.mubr.f32.gmra.mrb[0].mxu0 %v3358
        %v3545 = vpop.f32.mrb[0].mxu0
        %v3546 = vadd.f32 0.0, %v3545
        %v3547 = vpop.f32.mrb[0].mxu0
        %3548 = vmatprep.mubr.f32.mxu0 0.0
        %3549 = vmatmul.mubr.f32.gmra.mrb[0].mxu0 %v3361
        %v3550 = vpop.f32.mrb[0].mxu0
        %v3551 = vadd.f32 0.0, %v3550
        %v3552 = vpop.f32.mrb[0].mxu0
        %3553 = vmatprep.mubr.f32.mxu0 0.0
        %3554 = vmatmul.mubr.f32.gmra.mrb[0].mxu0 %v3364
        %v3555 = vpop.f32.mrb[0].mxu0
        %v3556 = vadd.f32 0.0, %v3555
        %v3557 = vpop.f32.mrb[0].mxu0
        %3558 = vmatprep.mubr.f32.mxu0 0.0
        %3559 = vmatmul.mubr.f32.gmra.mrb[0].mxu0 %v3367
        %v3560 = vpop.f32.mrb[0].mxu0
        %v3561 = vadd.f32 0.0, %v3560
        %v3562 = vpop.f32.mrb[0].mxu0
        %3563 = vmatprep.mubr.f32.mxu0 0.0
        %3564 = vmatmul.mubr.f32.gmra.mrb[0].mxu0 %v3370
        %v3565 = vpop.f32.mrb[0].mxu0
        %v3566 = vadd.f32 0.0, %v3565
        %v3567 = vpop.f32.mrb[0].mxu0
        %3568 = vmatprep.mubr.f32.mxu0 0.0
        %3569 = vmatmul.mubr.f32.gmra.mrb[0].mxu0 %v3373
        %v3570 = vpop.f32.mrb[0].mxu0
        %v3571 = vadd.f32 0.0, %v3570
        %v3572 = vpop.f32.mrb[0].mxu0
        %3573 = vmatprep.mubr.f32.mxu0 0.0
        %3574 = vmatmul.mubr.f32.gmra.mrb[0].mxu0 %v3376
        %v3575 = vpop.f32.mrb[0].mxu0
        %v3576 = vadd.f32 0.0, %v3575
        %v3577 = vpop.f32.mrb[0].mxu0
        %3578 = vmatprep.mubr.f32.mxu0 0.0
        %3579 = vmatmul.mubr.f32.gmra.mrb[0].mxu0 %v3379
        %v3580 = vpop.f32.mrb[0].mxu0
        %v3581 = vadd.f32 0.0, %v3580
        %v3582 = vpop.f32.mrb[0].mxu0
        %3583 = vmatprep.mubr.f32.mxu0 0.0
        %3584 = vmatmul.mubr.f32.gmra.mrb[0].mxu0 %v3382
        %v3585 = vpop.f32.mrb[0].mxu0
        %v3586 = vadd.f32 0.0, %v3585
        %v3587 = vpop.f32.mrb[0].mxu0
        %3588 = vmatprep.mubr.f32.mxu0 0.0
        %3589 = vmatmul.mubr.f32.gmra.mrb[0].mxu0 %v3385
        %v3590 = vpop.f32.mrb[0].mxu0
        %v3591 = vadd.f32 0.0, %v3590
        %v3592 = vpop.f32.mrb[0].mxu0
        %3593 = vmatprep.mubr.f32.mxu0 0.0
        %3594 = vmatmul.mubr.f32.gmra.mrb[0].mxu0 %v3388
        %v3595 = vpop.f32.mrb[0].mxu0
        %v3596 = vadd.f32 0.0, %v3595
        %v3597 = vpop.f32.mrb[0].mxu0
        %3598 = vmatprep.mubr.f32.mxu0 0.0
        %3599 = vmatmul.mubr.f32.gmra.mrb[0].mxu0 %v3391
        %v3600 = vpop.f32.mrb[0].mxu0
        %v3601 = vadd.f32 0.0, %v3600
        %v3602 = vpop.f32.mrb[0].mxu0
        %3603 = vmatprep.mubr.f32.mxu0 0.0
        %3604 = vmatmul.mubr.f32.gmra.mrb[0].mxu0 %v3394
        %v3605 = vpop.f32.mrb[0].mxu0
        %v3606 = vadd.f32 0.0, %v3605
        %v3607 = vpop.f32.mrb[0].mxu0
        %3608 = vmatprep.mubr.f32.mxu0 0.0
        %3609 = vmatmul.mubr.f32.gmra.mrb[0].mxu0 %v3397
        %v3610 = vpop.f32.mrb[0].mxu0
        %v3611 = vadd.f32 0.0, %v3610
        %v3612 = vpop.f32.mrb[0].mxu0
        %3613 = vmatprep.mubr.f32.mxu0 0.0
        %3614 = vmatmul.mubr.f32.gmra.mrb[0].mxu0 %v3400
        %v3615 = vpop.f32.mrb[0].mxu0
        %v3616 = vadd.f32 0.0, %v3615
        %v3617 = vpop.f32.mrb[0].mxu0
        %3618 = vmatprep.mubr.f32.mxu0 0.0
        %3619 = vmatmul.mubr.f32.gmra.mrb[0].mxu0 %v3403
        %v3620 = vpop.f32.mrb[0].mxu0
        %v3621 = vadd.f32 0.0, %v3620
        %v3622 = vpop.f32.mrb[0].mxu0
        %3623 = vmatprep.mubr.f32.mxu0 0.0
        %3624 = vmatmul.mubr.f32.gmra.mrb[0].mxu0 %v3406
        %v3625 = vpop.f32.mrb[0].mxu0
        %v3626 = vadd.f32 0.0, %v3625
        %v3627 = vpop.f32.mrb[0].mxu0
        %3628 = vmatprep.mubr.f32.mxu0 0.0
        %3629 = vmatmul.mubr.f32.gmra.mrb[0].mxu0 %v3409
        %v3630 = vpop.f32.mrb[0].mxu0
        %v3631 = vadd.f32 0.0, %v3630
        %v3632 = vpop.f32.mrb[0].mxu0
        %3633 = vmatprep.mubr.f32.mxu0 0.0
        %3634 = vmatmul.mubr.f32.gmra.mrb[0].mxu0 %v3412
        %v3635 = vpop.f32.mrb[0].mxu0
        %v3636 = vadd.f32 0.0, %v3635
        %v3637 = vpop.f32.mrb[0].mxu0
        %3638 = vdwg.mxu0
        %v3639 = vadd.f32 %v3249, %v3481
        %v3640 = vadd.f32 %v3250, %v3486
        %v3641 = vadd.f32 %v3251, %v3491
        %v3642 = vadd.f32 %v3252, %v3496
        %v3643 = vadd.f32 %v3253, %v3501
        %v3644 = vadd.f32 %v3254, %v3506
        %v3645 = vadd.f32 %v3255, %v3511
        %v3646 = vadd.f32 %v3256, %v3516
        %v3647 = vadd.f32 %v3257, %v3521
        %v3648 = vadd.f32 %v3258, %v3526
        %v3649 = vadd.f32 %v3259, %v3531
        %v3650 = vadd.f32 %v3260, %v3536
        %v3651 = vadd.f32 %v3261, %v3541
        %v3652 = vadd.f32 %v3262, %v3546
        %v3653 = vadd.f32 %v3263, %v3551
        %v3654 = vadd.f32 %v3264, %v3556
        %v3655 = vadd.f32 %v3265, %v3561
        %v3656 = vadd.f32 %v3266, %v3566
        %v3657 = vadd.f32 %v3267, %v3571
        %v3658 = vadd.f32 %v3268, %v3576
        %v3659 = vadd.f32 %v3269, %v3581
        %v3660 = vadd.f32 %v3270, %v3586
        %v3661 = vadd.f32 %v3271, %v3591
        %v3662 = vadd.f32 %v3272, %v3596
        %v3663 = vadd.f32 %v3273, %v3601
        %v3664 = vadd.f32 %v3274, %v3606
        %v3665 = vadd.f32 %v3275, %v3611
        %v3666 = vadd.f32 %v3276, %v3616
        %v3667 = vadd.f32 %v3277, %v3621
        %v3668 = vadd.f32 %v3278, %v3626
        %v3669 = vadd.f32 %v3279, %v3631
        %v3670 = vadd.f32 %v3280, %v3636
        %v3671 = vld [vmem:[%s2] sm:$0x1]
        %v3673 = vlaneseq
        %v3674 = vshrl.u32 %v3673, 7
        %v3675 = vsub.s32 0, %v3674
        %v3676 = vrot.slane %v3671, %v3675
        %v3678 = vadd.f32 %v3639, %v3676
        %v3679 = vadd.f32 %v3640, %v3676
        %v3680 = vadd.f32 %v3641, %v3676
        %v3681 = vadd.f32 %v3642, %v3676
        %v3682 = vadd.f32 %v3643, %v3676
        %v3683 = vadd.f32 %v3644, %v3676
        %v3684 = vadd.f32 %v3645, %v3676
        %v3685 = vadd.f32 %v3646, %v3676
        %v3686 = vadd.f32 %v3647, %v3676
        %v3687 = vadd.f32 %v3648, %v3676
        %v3688 = vadd.f32 %v3649, %v3676
        %v3689 = vadd.f32 %v3650, %v3676
        %v3690 = vadd.f32 %v3651, %v3676
        %v3691 = vadd.f32 %v3652, %v3676
        %v3692 = vadd.f32 %v3653, %v3676
        %v3693 = vadd.f32 %v3654, %v3676
        %v3694 = vadd.f32 %v3655, %v3676
        %v3695 = vadd.f32 %v3656, %v3676
        %v3696 = vadd.f32 %v3657, %v3676
        %v3697 = vadd.f32 %v3658, %v3676
        %v3698 = vadd.f32 %v3659, %v3676
        %v3699 = vadd.f32 %v3660, %v3676
        %v3700 = vadd.f32 %v3661, %v3676
        %v3701 = vadd.f32 %v3662, %v3676
        %v3702 = vadd.f32 %v3663, %v3676
        %v3703 = vadd.f32 %v3664, %v3676
        %v3704 = vadd.f32 %v3665, %v3676
        %v3705 = vadd.f32 %v3666, %v3676
        %v3706 = vadd.f32 %v3667, %v3676
        %v3707 = vadd.f32 %v3668, %v3676
        %v3708 = vadd.f32 %v3669, %v3676
        %v3709 = vadd.f32 %v3670, %v3676
        %v3710 = vsel %vm297, %v3678, 0.0
        %v3711 = vsel %vm297, %v3679, 0.0
        %v3712 = vadd.f32 %v3710, %v3711
        %v3713 = vsel %vm297, %v3680, 0.0
        %v3714 = vadd.f32 %v3712, %v3713
        %v3715 = vsel %vm297, %v3681, 0.0
        %v3716 = vadd.f32 %v3714, %v3715
        %v3717 = vsel %vm297, %v3682, 0.0
        %v3718 = vadd.f32 %v3716, %v3717
        %v3719 = vsel %vm297, %v3683, 0.0
        %v3720 = vadd.f32 %v3718, %v3719
        %v3721 = vsel %vm297, %v3684, 0.0
        %v3722 = vadd.f32 %v3720, %v3721
        %v3723 = vsel %vm297, %v3685, 0.0
        %v3724 = vadd.f32 %v3722, %v3723
        %v3725 = vsel %vm297, %v3686, 0.0
        %v3726 = vadd.f32 %v3724, %v3725
        %v3727 = vsel %vm297, %v3687, 0.0
        %v3728 = vadd.f32 %v3726, %v3727
        %v3729 = vsel %vm297, %v3688, 0.0
        %v3730 = vadd.f32 %v3728, %v3729
        %v3731 = vsel %vm297, %v3689, 0.0
        %v3732 = vadd.f32 %v3730, %v3731
        %v3733 = vsel %vm297, %v3690, 0.0
        %v3734 = vadd.f32 %v3732, %v3733
        %v3735 = vsel %vm297, %v3691, 0.0
        %v3736 = vadd.f32 %v3734, %v3735
        %v3737 = vsel %vm297, %v3692, 0.0
        %v3738 = vadd.f32 %v3736, %v3737
        %v3739 = vsel %vm297, %v3693, 0.0
        %v3740 = vadd.f32 %v3738, %v3739
        %v3741 = vsel %vm297, %v3694, 0.0
        %v3742 = vadd.f32 %v3740, %v3741
        %v3743 = vsel %vm297, %v3695, 0.0
        %v3744 = vadd.f32 %v3742, %v3743
        %v3745 = vsel %vm297, %v3696, 0.0
        %v3746 = vadd.f32 %v3744, %v3745
        %v3747 = vsel %vm297, %v3697, 0.0
        %v3748 = vadd.f32 %v3746, %v3747
        %v3749 = vsel %vm297, %v3698, 0.0
        %v3750 = vadd.f32 %v3748, %v3749
        %v3751 = vsel %vm297, %v3699, 0.0
        %v3752 = vadd.f32 %v3750, %v3751
        %v3753 = vsel %vm297, %v3700, 0.0
        %v3754 = vadd.f32 %v3752, %v3753
        %v3755 = vsel %vm297, %v3701, 0.0
        %v3756 = vadd.f32 %v3754, %v3755
        %v3757 = vsel %vm297, %v3702, 0.0
        %v3758 = vadd.f32 %v3756, %v3757
        %v3759 = vsel %vm297, %v3703, 0.0
        %v3760 = vadd.f32 %v3758, %v3759
        %v3761 = vsel %vm297, %v3704, 0.0
        %v3762 = vadd.f32 %v3760, %v3761
        %v3763 = vsel %vm297, %v3705, 0.0
        %v3764 = vadd.f32 %v3762, %v3763
        %v3765 = vsel %vm297, %v3706, 0.0
        %v3766 = vadd.f32 %v3764, %v3765
        %v3767 = vsel %vm297, %v3707, 0.0
        %v3768 = vadd.f32 %v3766, %v3767
        %v3769 = vsel %vm297, %v3708, 0.0
        %v3770 = vadd.f32 %v3768, %v3769
        %v3771 = vsel %vm297, %v3709, 0.0
        %v3772 = vadd.f32 %v3770, %v3771
        %v3773 = vrot.slane %v3772, 4
        %v3774 = vadd.f32 %v3772, %v3773
        %v3775 = vrot.slane %v3774, 2
        %v3776 = vadd.f32 %v3774, %v3775
        %v3777 = vrot.slane %v3776, 1
        %v3778 = vadd.f32 %v3776, %v3777
        %v3779 = vrcp.pop 256.0
        %v3780 = vmul.f32 %v3778, %v3779
        %v3781 = vsub.f32 %v3678, %v3780
        %v3782 = vsub.f32 %v3679, %v3780
        %v3783 = vsub.f32 %v3680, %v3780
        %v3784 = vsub.f32 %v3681, %v3780
        %v3785 = vsub.f32 %v3682, %v3780
        %v3786 = vsub.f32 %v3683, %v3780
        %v3787 = vsub.f32 %v3684, %v3780
        %v3788 = vsub.f32 %v3685, %v3780
        %v3789 = vsub.f32 %v3686, %v3780
        %v3790 = vsub.f32 %v3687, %v3780
        %v3791 = vsub.f32 %v3688, %v3780
        %v3792 = vsub.f32 %v3689, %v3780
        %v3793 = vsub.f32 %v3690, %v3780
        %v3794 = vsub.f32 %v3691, %v3780
        %v3795 = vsub.f32 %v3692, %v3780
        %v3796 = vsub.f32 %v3693, %v3780
        %v3797 = vsub.f32 %v3694, %v3780
        %v3798 = vsub.f32 %v3695, %v3780
        %v3799 = vsub.f32 %v3696, %v3780
        %v3800 = vsub.f32 %v3697, %v3780
        %v3801 = vsub.f32 %v3698, %v3780
        %v3802 = vsub.f32 %v3699, %v3780
        %v3803 = vsub.f32 %v3700, %v3780
        %v3804 = vsub.f32 %v3701, %v3780
        %v3805 = vsub.f32 %v3702, %v3780
        %v3806 = vsub.f32 %v3703, %v3780
        %v3807 = vsub.f32 %v3704, %v3780
        %v3808 = vsub.f32 %v3705, %v3780
        %v3809 = vsub.f32 %v3706, %v3780
        %v3810 = vsub.f32 %v3707, %v3780
        %v3811 = vsub.f32 %v3708, %v3780
        %v3812 = vsub.f32 %v3709, %v3780
        %v3813 = vmul.f32 %v3781, %v3781
        %v3814 = vmul.f32 %v3782, %v3782
        %v3815 = vmul.f32 %v3783, %v3783
        %v3816 = vmul.f32 %v3784, %v3784
        %v3817 = vmul.f32 %v3785, %v3785
        %v3818 = vmul.f32 %v3786, %v3786
        %v3819 = vmul.f32 %v3787, %v3787
        %v3820 = vmul.f32 %v3788, %v3788
        %v3821 = vmul.f32 %v3789, %v3789
        %v3822 = vmul.f32 %v3790, %v3790
        %v3823 = vmul.f32 %v3791, %v3791
        %v3824 = vmul.f32 %v3792, %v3792
        %v3825 = vmul.f32 %v3793, %v3793
        %v3826 = vmul.f32 %v3794, %v3794
        %v3827 = vmul.f32 %v3795, %v3795
        %v3828 = vmul.f32 %v3796, %v3796
        %v3829 = vmul.f32 %v3797, %v3797
        %v3830 = vmul.f32 %v3798, %v3798
        %v3831 = vmul.f32 %v3799, %v3799
        %v3832 = vmul.f32 %v3800, %v3800
        %v3833 = vmul.f32 %v3801, %v3801
        %v3834 = vmul.f32 %v3802, %v3802
        %v3835 = vmul.f32 %v3803, %v3803
        %v3836 = vmul.f32 %v3804, %v3804
        %v3837 = vmul.f32 %v3805, %v3805
        %v3838 = vmul.f32 %v3806, %v3806
        %v3839 = vmul.f32 %v3807, %v3807
        %v3840 = vmul.f32 %v3808, %v3808
        %v3841 = vmul.f32 %v3809, %v3809
        %v3842 = vmul.f32 %v3810, %v3810
        %v3843 = vmul.f32 %v3811, %v3811
        %v3844 = vmul.f32 %v3812, %v3812
        %v3845 = vsel %vm297, %v3813, 0.0
        %v3846 = vsel %vm297, %v3814, 0.0
        %v3847 = vadd.f32 %v3845, %v3846
        %v3848 = vsel %vm297, %v3815, 0.0
        %v3849 = vadd.f32 %v3847, %v3848
        %v3850 = vsel %vm297, %v3816, 0.0
        %v3851 = vadd.f32 %v3849, %v3850
        %v3852 = vsel %vm297, %v3817, 0.0
        %v3853 = vadd.f32 %v3851, %v3852
        %v3854 = vsel %vm297, %v3818, 0.0
        %v3855 = vadd.f32 %v3853, %v3854
        %v3856 = vsel %vm297, %v3819, 0.0
        %v3857 = vadd.f32 %v3855, %v3856
        %v3858 = vsel %vm297, %v3820, 0.0
        %v3859 = vadd.f32 %v3857, %v3858
        %v3860 = vsel %vm297, %v3821, 0.0
        %v3861 = vadd.f32 %v3859, %v3860
        %v3862 = vsel %vm297, %v3822, 0.0
        %v3863 = vadd.f32 %v3861, %v3862
        %v3864 = vsel %vm297, %v3823, 0.0
        %v3865 = vadd.f32 %v3863, %v3864
        %v3866 = vsel %vm297, %v3824, 0.0
        %v3867 = vadd.f32 %v3865, %v3866
        %v3868 = vsel %vm297, %v3825, 0.0
        %v3869 = vadd.f32 %v3867, %v3868
        %v3870 = vsel %vm297, %v3826, 0.0
        %v3871 = vadd.f32 %v3869, %v3870
        %v3872 = vsel %vm297, %v3827, 0.0
        %v3873 = vadd.f32 %v3871, %v3872
        %v3874 = vsel %vm297, %v3828, 0.0
        %v3875 = vadd.f32 %v3873, %v3874
        %v3876 = vsel %vm297, %v3829, 0.0
        %v3877 = vadd.f32 %v3875, %v3876
        %v3878 = vsel %vm297, %v3830, 0.0
        %v3879 = vadd.f32 %v3877, %v3878
        %v3880 = vsel %vm297, %v3831, 0.0
        %v3881 = vadd.f32 %v3879, %v3880
        %v3882 = vsel %vm297, %v3832, 0.0
        %v3883 = vadd.f32 %v3881, %v3882
        %v3884 = vsel %vm297, %v3833, 0.0
        %v3885 = vadd.f32 %v3883, %v3884
        %v3886 = vsel %vm297, %v3834, 0.0
        %v3887 = vadd.f32 %v3885, %v3886
        %v3888 = vsel %vm297, %v3835, 0.0
        %v3889 = vadd.f32 %v3887, %v3888
        %v3890 = vsel %vm297, %v3836, 0.0
        %v3891 = vadd.f32 %v3889, %v3890
        %v3892 = vsel %vm297, %v3837, 0.0
        %v3893 = vadd.f32 %v3891, %v3892
        %v3894 = vsel %vm297, %v3838, 0.0
        %v3895 = vadd.f32 %v3893, %v3894
        %v3896 = vsel %vm297, %v3839, 0.0
        %v3897 = vadd.f32 %v3895, %v3896
        %v3898 = vsel %vm297, %v3840, 0.0
        %v3899 = vadd.f32 %v3897, %v3898
        %v3900 = vsel %vm297, %v3841, 0.0
        %v3901 = vadd.f32 %v3899, %v3900
        %v3902 = vsel %vm297, %v3842, 0.0
        %v3903 = vadd.f32 %v3901, %v3902
        %v3904 = vsel %vm297, %v3843, 0.0
        %v3905 = vadd.f32 %v3903, %v3904
        %v3906 = vsel %vm297, %v3844, 0.0
        %v3907 = vadd.f32 %v3905, %v3906
        %v3908 = vrot.slane %v3907, 4
        %v3909 = vadd.f32 %v3907, %v3908
        %v3910 = vrot.slane %v3909, 2
        %v3911 = vadd.f32 %v3909, %v3910
        %v3912 = vrot.slane %v3911, 1
        %v3913 = vadd.f32 %v3911, %v3912
        %v3914 = vmul.f32 %v3913, %v3779
        %v3915 = vadd.f32 %v3914, 1e-05
        %v3916 = vrsqrt.pop %v3915
        %v3917 = vmul.f32 %v3781, %v3916
        %v3918 = vmul.f32 %v3782, %v3916
        %v3919 = vmul.f32 %v3783, %v3916
        %v3920 = vmul.f32 %v3784, %v3916
        %v3921 = vmul.f32 %v3785, %v3916
        %v3922 = vmul.f32 %v3786, %v3916
        %v3923 = vmul.f32 %v3787, %v3916
        %v3924 = vmul.f32 %v3788, %v3916
        %v3925 = vmul.f32 %v3789, %v3916
        %v3926 = vmul.f32 %v3790, %v3916
        %v3927 = vmul.f32 %v3791, %v3916
        %v3928 = vmul.f32 %v3792, %v3916
        %v3929 = vmul.f32 %v3793, %v3916
        %v3930 = vmul.f32 %v3794, %v3916
        %v3931 = vmul.f32 %v3795, %v3916
        %v3932 = vmul.f32 %v3796, %v3916
        %v3933 = vmul.f32 %v3797, %v3916
        %v3934 = vmul.f32 %v3798, %v3916
        %v3935 = vmul.f32 %v3799, %v3916
        %v3936 = vmul.f32 %v3800, %v3916
        %v3937 = vmul.f32 %v3801, %v3916
        %v3938 = vmul.f32 %v3802, %v3916
        %v3939 = vmul.f32 %v3803, %v3916
        %v3940 = vmul.f32 %v3804, %v3916
        %v3941 = vmul.f32 %v3805, %v3916
        %v3942 = vmul.f32 %v3806, %v3916
        %v3943 = vmul.f32 %v3807, %v3916
        %v3944 = vmul.f32 %v3808, %v3916
        %v3945 = vmul.f32 %v3809, %v3916
        %v3946 = vmul.f32 %v3810, %v3916
        %v3947 = vmul.f32 %v3811, %v3916
        %v3948 = vmul.f32 %v3812, %v3916
        %v3949 = vmax.f32 %v3917, 0.0
        %v3950 = vmax.f32 %v3918, 0.0
        %v3951 = vmax.f32 %v3919, 0.0
        %v3952 = vmax.f32 %v3920, 0.0
        %v3953 = vmax.f32 %v3921, 0.0
        %v3954 = vmax.f32 %v3922, 0.0
        %v3955 = vmax.f32 %v3923, 0.0
        %v3956 = vmax.f32 %v3924, 0.0
        %v3957 = vmax.f32 %v3925, 0.0
        %v3958 = vmax.f32 %v3926, 0.0
        %v3959 = vmax.f32 %v3927, 0.0
        %v3960 = vmax.f32 %v3928, 0.0
        %v3961 = vmax.f32 %v3929, 0.0
        %v3962 = vmax.f32 %v3930, 0.0
        %v3963 = vmax.f32 %v3931, 0.0
        %v3964 = vmax.f32 %v3932, 0.0
        %v3965 = vmax.f32 %v3933, 0.0
        %v3966 = vmax.f32 %v3934, 0.0
        %v3967 = vmax.f32 %v3935, 0.0
        %v3968 = vmax.f32 %v3936, 0.0
        %v3969 = vmax.f32 %v3937, 0.0
        %v3970 = vmax.f32 %v3938, 0.0
        %v3971 = vmax.f32 %v3939, 0.0
        %v3972 = vmax.f32 %v3940, 0.0
        %v3973 = vmax.f32 %v3941, 0.0
        %v3974 = vmax.f32 %v3942, 0.0
        %v3975 = vmax.f32 %v3943, 0.0
        %v3976 = vmax.f32 %v3944, 0.0
        %v3977 = vmax.f32 %v3945, 0.0
        %v3978 = vmax.f32 %v3946, 0.0
        %v3979 = vmax.f32 %v3947, 0.0
        %v3980 = vmax.f32 %v3948, 0.0
        %3981 = vst.msk [vmem:[#allocation2] sm:$0xff] %vm297, 0.0
        %3982 = vst.msk [vmem:[#allocation2 + $0x8] sm:$0xff] %vm297, 0.0
        %vm3983 = vcmask 254976
        %3984 = vst.msk [vmem:[#allocation2 + $0x10] sm:$0x3] %vm3983, 0.0
        %3985 = vst.msk [vmem:[#allocation2 + $0x18] sm:$0xff] %vm297, 0.0
        %3986 = vst.msk [vmem:[#allocation2 + $0x20] sm:$0xff] %vm297, 0.0
        %3987 = vst.msk [vmem:[#allocation2 + $0x28] sm:$0x3] %vm3983, 0.0
        %3988 = vst.msk [vmem:[#allocation2 + $0x30] sm:$0xff] %vm297, 0.0
        %3989 = vst.msk [vmem:[#allocation2 + $0x38] sm:$0xff] %vm297, 0.0
        %3990 = vst.msk [vmem:[#allocation2 + $0x40] sm:$0x3] %vm3983, 0.0
        %3991 = vst.msk [vmem:[#allocation2 + $0x48] sm:$0xff] %vm297, 0.0
        %3992 = vst.msk [vmem:[#allocation2 + $0x50] sm:$0xff] %vm297, 0.0
        %3993 = vst.msk [vmem:[#allocation2 + $0x58] sm:$0x3] %vm3983, 0.0
        %3994 = vst.msk [vmem:[#allocation2 + $0x60] sm:$0xff] %vm297, 0.0
        %3995 = vst.msk [vmem:[#allocation2 + $0x68] sm:$0xff] %vm297, 0.0
        %3996 = vst.msk [vmem:[#allocation2 + $0x70] sm:$0x3] %vm3983, 0.0
        %3997 = vst.msk [vmem:[#allocation2 + $0x78] sm:$0xff] %vm297, 0.0
        %3998 = vst.msk [vmem:[#allocation2 + $0x80] sm:$0xff] %vm297, 0.0
        %3999 = vst.msk [vmem:[#allocation2 + $0x88] sm:$0x3] %vm3983, 0.0
        %4000 = vst.msk [vmem:[#allocation2 + $0x90] sm:$0xff] %vm297, 0.0
        %4001 = vst.msk [vmem:[#allocation2 + $0x98] sm:$0xff] %vm297, 0.0
        %4002 = vst.msk [vmem:[#allocation2 + $0xa0] sm:$0x3] %vm3983, 0.0
        %4003 = vst.msk [vmem:[#allocation2 + $0xa8] sm:$0xff] %vm297, 0.0
        %4004 = vst.msk [vmem:[#allocation2 + $0xb0] sm:$0xff] %vm297, 0.0
        %4005 = vst.msk [vmem:[#allocation2 + $0xb8] sm:$0x3] %vm3983, 0.0
        %4006 = vst.msk [vmem:[#allocation2 + $0xc0] sm:$0xff] %vm297, 0.0
        %4007 = vst.msk [vmem:[#allocation2 + $0xc8] sm:$0xff] %vm297, 0.0
        %4008 = vst.msk [vmem:[#allocation2 + $0xd0] sm:$0x3] %vm3983, 0.0
        %4009 = vst.msk [vmem:[#allocation2 + $0xd8] sm:$0xff] %vm297, 0.0
        %4010 = vst.msk [vmem:[#allocation2 + $0xe0] sm:$0xff] %vm297, 0.0
        %4011 = vst.msk [vmem:[#allocation2 + $0xe8] sm:$0x3] %vm3983, 0.0
        %4012 = vst.msk [vmem:[#allocation2 + $0xf0] sm:$0xff] %vm297, 0.0
        %4013 = vst.msk [vmem:[#allocation2 + $0xf8] sm:$0xff] %vm297, 0.0
        %4014 = vst.msk [vmem:[#allocation2 + $0x100] sm:$0x3] %vm3983, 0.0
        %4015 = vst.msk [vmem:[#allocation2 + $0x108] sm:$0xff] %vm297, 0.0
        %4016 = vst.msk [vmem:[#allocation2 + $0x110] sm:$0xff] %vm297, 0.0
        %4017 = vst.msk [vmem:[#allocation2 + $0x118] sm:$0x3] %vm3983, 0.0
        %4018 = vst.msk [vmem:[#allocation2 + $0x120] sm:$0xff] %vm297, 0.0
        %4019 = vst.msk [vmem:[#allocation2 + $0x128] sm:$0xff] %vm297, 0.0
        %4020 = vst.msk [vmem:[#allocation2 + $0x130] sm:$0x3] %vm3983, 0.0
        %4021 = vst.msk [vmem:[#allocation2 + $0x138] sm:$0xff] %vm297, 0.0
        %4022 = vst.msk [vmem:[#allocation2 + $0x140] sm:$0xff] %vm297, 0.0
        %4023 = vst.msk [vmem:[#allocation2 + $0x148] sm:$0x3] %vm3983, 0.0
        %4024 = vst.msk [vmem:[#allocation2 + $0x150] sm:$0xff] %vm297, 0.0
        %4025 = vst.msk [vmem:[#allocation2 + $0x158] sm:$0xff] %vm297, 0.0
        %4026 = vst.msk [vmem:[#allocation2 + $0x160] sm:$0x3] %vm3983, 0.0
        %4027 = vst.msk [vmem:[#allocation2 + $0x168] sm:$0xff] %vm297, 0.0
        %4028 = vst.msk [vmem:[#allocation2 + $0x170] sm:$0xff] %vm297, 0.0
        %4029 = vst.msk [vmem:[#allocation2 + $0x178] sm:$0x3] %vm3983, 0.0
        %4030 = vst.msk [vmem:[#allocation2 + $0x180] sm:$0xff] %vm297, 0.0
        %4031 = vst.msk [vmem:[#allocation2 + $0x188] sm:$0xff] %vm297, 0.0
        %4032 = vst.msk [vmem:[#allocation2 + $0x190] sm:$0x3] %vm3983, 0.0
        %4033 = vst.msk [vmem:[#allocation2 + $0x198] sm:$0xff] %vm297, 0.0
        %4034 = vst.msk [vmem:[#allocation2 + $0x1a0] sm:$0xff] %vm297, 0.0
        %4035 = vst.msk [vmem:[#allocation2 + $0x1a8] sm:$0x3] %vm3983, 0.0
        %s4036 = scalar_lea.vmem [#allocation2], 24
        %4037 = vst.msk [vmem:[%s4036 + $0x1] sm:$0xff] %vm297, %v3949
        %4038 = vst.msk [vmem:[%s4036 + $0x9] sm:$0xff] %vm297, %v3950
        %4039 = vst.msk [vmem:[%s4036 + $0x19] sm:$0xff] %vm297, %v3951
        %4040 = vst.msk [vmem:[%s4036 + $0x21] sm:$0xff] %vm297, %v3952
        %4041 = vst.msk [vmem:[%s4036 + $0x31] sm:$0xff] %vm297, %v3953
        %4042 = vst.msk [vmem:[%s4036 + $0x39] sm:$0xff] %vm297, %v3954
        %4043 = vst.msk [vmem:[%s4036 + $0x49] sm:$0xff] %vm297, %v3955
        %4044 = vst.msk [vmem:[%s4036 + $0x51] sm:$0xff] %vm297, %v3956
        %4045 = vst.msk [vmem:[%s4036 + $0x61] sm:$0xff] %vm297, %v3957
        %4046 = vst.msk [vmem:[%s4036 + $0x69] sm:$0xff] %vm297, %v3958
        %4047 = vst.msk [vmem:[%s4036 + $0x79] sm:$0xff] %vm297, %v3959
        %4048 = vst.msk [vmem:[%s4036 + $0x81] sm:$0xff] %vm297, %v3960
        %4049 = vst.msk [vmem:[%s4036 + $0x91] sm:$0xff] %vm297, %v3961
        %4050 = vst.msk [vmem:[%s4036 + $0x99] sm:$0xff] %vm297, %v3962
        %4051 = vst.msk [vmem:[%s4036 + $0xa9] sm:$0xff] %vm297, %v3963
        %4052 = vst.msk [vmem:[%s4036 + $0xb1] sm:$0xff] %vm297, %v3964
        %4053 = vst.msk [vmem:[%s4036 + $0xc1] sm:$0xff] %vm297, %v3965
        %4054 = vst.msk [vmem:[%s4036 + $0xc9] sm:$0xff] %vm297, %v3966
        %4055 = vst.msk [vmem:[%s4036 + $0xd9] sm:$0xff] %vm297, %v3967
        %4056 = vst.msk [vmem:[%s4036 + $0xe1] sm:$0xff] %vm297, %v3968
        %4057 = vst.msk [vmem:[%s4036 + $0xf1] sm:$0xff] %vm297, %v3969
        %4058 = vst.msk [vmem:[%s4036 + $0xf9] sm:$0xff] %vm297, %v3970
        %4059 = vst.msk [vmem:[%s4036 + $0x109] sm:$0xff] %vm297, %v3971
        %4060 = vst.msk [vmem:[%s4036 + $0x111] sm:$0xff] %vm297, %v3972
        %4061 = vst.msk [vmem:[%s4036 + $0x121] sm:$0xff] %vm297, %v3973
        %4062 = vst.msk [vmem:[%s4036 + $0x129] sm:$0xff] %vm297, %v3974
        %4063 = vst.msk [vmem:[%s4036 + $0x139] sm:$0xff] %vm297, %v3975
        %4064 = vst.msk [vmem:[%s4036 + $0x141] sm:$0xff] %vm297, %v3976
        %4065 = vst.msk [vmem:[%s4036 + $0x151] sm:$0xff] %vm297, %v3977
        %4066 = vst.msk [vmem:[%s4036 + $0x159] sm:$0xff] %vm297, %v3978
        %4067 = vst.msk [vmem:[%s4036 + $0x169] sm:$0xff] %vm297, %v3979
        %4068 = vst.msk [vmem:[%s4036 + $0x171] sm:$0xff] %vm297, %v3980
        %s4069 = scalar_lea.vmem %s3, 128
        %v4070 = vld [vmem:[%s4069] sm:$0xff]
        %v4071 = vld [vmem:[%s4069 + $0x8] sm:$0xff]
        %v4072 = vld [vmem:[%s4069 + $0x10] sm:$0xff]
        %v4073 = vld [vmem:[%s4069 + $0x18] sm:$0xff]
        %v4074 = vld [vmem:[#allocation2] sm:$0xff]
        %v4075 = vld [vmem:[#allocation2 + $0x8] sm:$0xff]
        %v4076 = vld [vmem:[#allocation2 + $0x18] sm:$0xff]
        %v4077 = vld [vmem:[#allocation2 + $0x20] sm:$0xff]
        %v4078 = vld [vmem:[#allocation2 + $0x30] sm:$0xff]
        %v4079 = vld [vmem:[#allocation2 + $0x38] sm:$0xff]
        %v4080 = vld [vmem:[#allocation2 + $0x48] sm:$0xff]
        %v4081 = vld [vmem:[#allocation2 + $0x50] sm:$0xff]
        %v4082 = vld [vmem:[#allocation2 + $0x60] sm:$0xff]
        %v4083 = vld [vmem:[#allocation2 + $0x68] sm:$0xff]
        %v4084 = vld [vmem:[#allocation2 + $0x78] sm:$0xff]
        %v4085 = vld [vmem:[#allocation2 + $0x80] sm:$0xff]
        %v4086 = vld [vmem:[#allocation2 + $0x90] sm:$0xff]
        %v4087 = vld [vmem:[#allocation2 + $0x98] sm:$0xff]
        %v4088 = vld [vmem:[#allocation2 + $0xa8] sm:$0xff]
        %v4089 = vld [vmem:[#allocation2 + $0xb0] sm:$0xff]
        %v4090 = vld [vmem:[#allocation2 + $0xc0] sm:$0xff]
        %v4091 = vld [vmem:[#allocation2 + $0xc8] sm:$0xff]
        %v4092 = vld [vmem:[#allocation2 + $0xd8] sm:$0xff]
        %v4093 = vld [vmem:[#allocation2 + $0xe0] sm:$0xff]
        %v4094 = vld [vmem:[#allocation2 + $0xf0] sm:$0xff]
        %v4095 = vld [vmem:[#allocation2 + $0xf8] sm:$0xff]
        %v4096 = vld [vmem:[#allocation2 + $0x108] sm:$0xff]
        %v4097 = vld [vmem:[#allocation2 + $0x110] sm:$0xff]
        %v4098 = vld [vmem:[#allocation2 + $0x120] sm:$0xff]
        %v4099 = vld [vmem:[#allocation2 + $0x128] sm:$0xff]
        %v4100 = vld [vmem:[#allocation2 + $0x138] sm:$0xff]
        %v4101 = vld [vmem:[#allocation2 + $0x140] sm:$0xff]
        %v4102 = vld [vmem:[#allocation2 + $0x150] sm:$0xff]
        %v4103 = vld [vmem:[#allocation2 + $0x158] sm:$0xff]
        %v4104 = vld [vmem:[#allocation2 + $0x168] sm:$0xff]
        %v4105 = vld [vmem:[#allocation2 + $0x170] sm:$0xff]
        %v4106 = vld [vmem:[%s3] sm:$0xff]
        %v4107 = vld [vmem:[%s3 + $0x8] sm:$0xff]
        %v4108 = vld [vmem:[%s3 + $0x10] sm:$0xff]
        %v4109 = vld [vmem:[%s3 + $0x18] sm:$0xff]
        %v4111 = vsel %vm297, %v4074, 0
        %v4114 = vsel %vm297, %v4075, 0
        %v4117 = vsel %vm297, %v4076, 0
        %v4120 = vsel %vm297, %v4077, 0
        %v4123 = vsel %vm297, %v4078, 0
        %v4126 = vsel %vm297, %v4079, 0
        %v4129 = vsel %vm297, %v4080, 0
        %v4132 = vsel %vm297, %v4081, 0
        %v4135 = vsel %vm297, %v4082, 0
        %v4138 = vsel %vm297, %v4083, 0
        %v4141 = vsel %vm297, %v4084, 0
        %v4144 = vsel %vm297, %v4085, 0
        %v4147 = vsel %vm297, %v4086, 0
        %v4150 = vsel %vm297, %v4087, 0
        %v4153 = vsel %vm297, %v4088, 0
        %v4156 = vsel %vm297, %v4089, 0
        %v4159 = vsel %vm297, %v4090, 0
        %v4162 = vsel %vm297, %v4091, 0
        %v4165 = vsel %vm297, %v4092, 0
        %v4168 = vsel %vm297, %v4093, 0
        %v4171 = vsel %vm297, %v4094, 0
        %v4174 = vsel %vm297, %v4095, 0
        %v4177 = vsel %vm297, %v4096, 0
        %v4180 = vsel %vm297, %v4097, 0
        %v4183 = vsel %vm297, %v4098, 0
        %v4186 = vsel %vm297, %v4099, 0
        %v4189 = vsel %vm297, %v4100, 0
        %v4192 = vsel %vm297, %v4101, 0
        %v4195 = vsel %vm297, %v4102, 0
        %v4198 = vsel %vm297, %v4103, 0
        %v4201 = vsel %vm297, %v4104, 0
        %v4204 = vsel %vm297, %v4105, 0
        %4206 = vmatprep.subr.mxu0 0.0
        %4207 = vmatpush1.msra.mxu0 %v4106
        %4208 = vmatprep.subr.mxu0 0.0
        %4209 = vmatpush1.msra.mxu0 %v4107
        %4210 = vmatprep.subr.mxu0 0.0
        %4211 = vmatpush1.msra.mxu0 %v4108
        %4212 = vmatprep.subr.mxu0 0.0
        %4213 = vmatpush1.msra.mxu0 %v4109
        %4214 = vmatprep.subr.mxu0 0.0
        %4215 = vmatpush1.msra.mxu0 0.0
        %4216 = vmatprep.subr.mxu0 0.0
        %4217 = vmatpush1.msra.mxu0 0.0
        %4218 = vmatprep.subr.mxu0 0.0
        %4219 = vmatpush1.msra.mxu0 0.0
        %4220 = vmatprep.subr.mxu0 0.0
        %4221 = vmatpush1.msra.mxu0 0.0
        %4222 = vmatprep.subr.mxu0 0.0
        %4223 = vmatpush1.msra.mxu0 0.0
        %4224 = vmatprep.subr.mxu0 0.0
        %4225 = vmatpush1.msra.mxu0 0.0
        %4226 = vmatprep.subr.mxu0 0.0
        %4227 = vmatpush1.msra.mxu0 0.0
        %4228 = vmatprep.subr.mxu0 0.0
        %4229 = vmatpush1.msra.mxu0 0.0
        %4230 = vmatprep.subr.mxu0 0.0
        %4231 = vmatpush1.msra.mxu0 0.0
        %4232 = vmatprep.subr.mxu0 0.0
        %4233 = vmatpush1.msra.mxu0 0.0
        %4234 = vmatprep.subr.mxu0 0.0
        %4235 = vmatpush1.msra.mxu0 0.0
        %4236 = vmatprep.subr.mxu0 0.0
        %4237 = vmatpush1.msra.mxu0 0.0
        %4238 = vmatprep.subr.mxu0 0.0
        %4239 = vmatpush1.msra.mxu0 0.0
        %4240 = vmatprep.subr.mxu0 0.0
        %4241 = vmatpush1.msra.mxu0 0.0
        %4242 = vmatprep.subr.mxu0 0.0
        %4243 = vmatpush1.msra.mxu0 0.0
        %4244 = vmatprep.subr.mxu0 0.0
        %4245 = vmatpush1.msra.mxu0 0.0
        %4246 = vmatprep.subr.mxu0 0.0
        %4247 = vmatpush1.msra.mxu0 0.0
        %4248 = vmatprep.subr.mxu0 0.0
        %4249 = vmatpush1.msra.mxu0 0.0
        %4250 = vmatprep.subr.mxu0 0.0
        %4251 = vmatpush1.msra.mxu0 0.0
        %4252 = vmatprep.subr.mxu0 0.0
        %4253 = vmatpush1.msra.mxu0 0.0
        %4254 = vmatprep.subr.mxu0 0.0
        %4255 = vmatpush1.msra.mxu0 0.0
        %4256 = vmatprep.subr.mxu0 0.0
        %4257 = vmatpush1.msra.mxu0 0.0
        %4258 = vmatprep.subr.mxu0 0.0
        %4259 = vmatpush1.msra.mxu0 0.0
        %4260 = vmatprep.subr.mxu0 0.0
        %4261 = vmatpush1.msra.mxu0 0.0
        %4262 = vmatprep.subr.mxu0 0.0
        %4263 = vmatpush1.msra.mxu0 0.0
        %4264 = vmatprep.subr.mxu0 0.0
        %4265 = vmatpush1.msra.mxu0 0.0
        %4266 = vmatprep.subr.mxu0 0.0
        %4267 = vmatpush1.msra.mxu0 0.0
        %4268 = vmatprep.subr.mxu0 0.0
        %4269 = vmatpush1.msra.mxu0 0.0
        %4270 = vmatprep.mubr.f32.mxu0 0.0
        %4271 = vmatmul.mubr.f32.gmra.mrb[0].mxu0 %v4111
        %v4272 = vpop.f32.mrb[0].mxu0
        %v4273 = vadd.f32 0.0, %v4272
        %v4274 = vpop.f32.mrb[0].mxu0
        %4275 = vmatprep.mubr.f32.mxu0 0.0
        %4276 = vmatmul.mubr.f32.gmra.mrb[0].mxu0 %v4114
        %v4277 = vpop.f32.mrb[0].mxu0
        %v4278 = vadd.f32 0.0, %v4277
        %v4279 = vpop.f32.mrb[0].mxu0
        %4280 = vmatprep.mubr.f32.mxu0 0.0
        %4281 = vmatmul.mubr.f32.gmra.mrb[0].mxu0 %v4117
        %v4282 = vpop.f32.mrb[0].mxu0
        %v4283 = vadd.f32 0.0, %v4282
        %v4284 = vpop.f32.mrb[0].mxu0
        %4285 = vmatprep.mubr.f32.mxu0 0.0
        %4286 = vmatmul.mubr.f32.gmra.mrb[0].mxu0 %v4120
        %v4287 = vpop.f32.mrb[0].mxu0
        %v4288 = vadd.f32 0.0, %v4287
        %v4289 = vpop.f32.mrb[0].mxu0
        %4290 = vmatprep.mubr.f32.mxu0 0.0
        %4291 = vmatmul.mubr.f32.gmra.mrb[0].mxu0 %v4123
        %v4292 = vpop.f32.mrb[0].mxu0
        %v4293 = vadd.f32 0.0, %v4292
        %v4294 = vpop.f32.mrb[0].mxu0
        %4295 = vmatprep.mubr.f32.mxu0 0.0
        %4296 = vmatmul.mubr.f32.gmra.mrb[0].mxu0 %v4126
        %v4297 = vpop.f32.mrb[0].mxu0
        %v4298 = vadd.f32 0.0, %v4297
        %v4299 = vpop.f32.mrb[0].mxu0
        %4300 = vmatprep.mubr.f32.mxu0 0.0
        %4301 = vmatmul.mubr.f32.gmra.mrb[0].mxu0 %v4129
        %v4302 = vpop.f32.mrb[0].mxu0
        %v4303 = vadd.f32 0.0, %v4302
        %v4304 = vpop.f32.mrb[0].mxu0
        %4305 = vmatprep.mubr.f32.mxu0 0.0
        %4306 = vmatmul.mubr.f32.gmra.mrb[0].mxu0 %v4132
        %v4307 = vpop.f32.mrb[0].mxu0
        %v4308 = vadd.f32 0.0, %v4307
        %v4309 = vpop.f32.mrb[0].mxu0
        %4310 = vmatprep.mubr.f32.mxu0 0.0
        %4311 = vmatmul.mubr.f32.gmra.mrb[0].mxu0 %v4135
        %v4312 = vpop.f32.mrb[0].mxu0
        %v4313 = vadd.f32 0.0, %v4312
        %v4314 = vpop.f32.mrb[0].mxu0
        %4315 = vmatprep.mubr.f32.mxu0 0.0
        %4316 = vmatmul.mubr.f32.gmra.mrb[0].mxu0 %v4138
        %v4317 = vpop.f32.mrb[0].mxu0
        %v4318 = vadd.f32 0.0, %v4317
        %v4319 = vpop.f32.mrb[0].mxu0
        %4320 = vmatprep.mubr.f32.mxu0 0.0
        %4321 = vmatmul.mubr.f32.gmra.mrb[0].mxu0 %v4141
        %v4322 = vpop.f32.mrb[0].mxu0
        %v4323 = vadd.f32 0.0, %v4322
        %v4324 = vpop.f32.mrb[0].mxu0
        %4325 = vmatprep.mubr.f32.mxu0 0.0
        %4326 = vmatmul.mubr.f32.gmra.mrb[0].mxu0 %v4144
        %v4327 = vpop.f32.mrb[0].mxu0
        %v4328 = vadd.f32 0.0, %v4327
        %v4329 = vpop.f32.mrb[0].mxu0
        %4330 = vmatprep.mubr.f32.mxu0 0.0
        %4331 = vmatmul.mubr.f32.gmra.mrb[0].mxu0 %v4147
        %v4332 = vpop.f32.mrb[0].mxu0
        %v4333 = vadd.f32 0.0, %v4332
        %v4334 = vpop.f32.mrb[0].mxu0
        %4335 = vmatprep.mubr.f32.mxu0 0.0
        %4336 = vmatmul.mubr.f32.gmra.mrb[0].mxu0 %v4150
        %v4337 = vpop.f32.mrb[0].mxu0
        %v4338 = vadd.f32 0.0, %v4337
        %v4339 = vpop.f32.mrb[0].mxu0
        %4340 = vmatprep.mubr.f32.mxu0 0.0
        %4341 = vmatmul.mubr.f32.gmra.mrb[0].mxu0 %v4153
        %v4342 = vpop.f32.mrb[0].mxu0
        %v4343 = vadd.f32 0.0, %v4342
        %v4344 = vpop.f32.mrb[0].mxu0
        %4345 = vmatprep.mubr.f32.mxu0 0.0
        %4346 = vmatmul.mubr.f32.gmra.mrb[0].mxu0 %v4156
        %v4347 = vpop.f32.mrb[0].mxu0
        %v4348 = vadd.f32 0.0, %v4347
        %v4349 = vpop.f32.mrb[0].mxu0
        %4350 = vmatprep.mubr.f32.mxu0 0.0
        %4351 = vmatmul.mubr.f32.gmra.mrb[0].mxu0 %v4159
        %v4352 = vpop.f32.mrb[0].mxu0
        %v4353 = vadd.f32 0.0, %v4352
        %v4354 = vpop.f32.mrb[0].mxu0
        %4355 = vmatprep.mubr.f32.mxu0 0.0
        %4356 = vmatmul.mubr.f32.gmra.mrb[0].mxu0 %v4162
        %v4357 = vpop.f32.mrb[0].mxu0
        %v4358 = vadd.f32 0.0, %v4357
        %v4359 = vpop.f32.mrb[0].mxu0
        %4360 = vmatprep.mubr.f32.mxu0 0.0
        %4361 = vmatmul.mubr.f32.gmra.mrb[0].mxu0 %v4165
        %v4362 = vpop.f32.mrb[0].mxu0
        %v4363 = vadd.f32 0.0, %v4362
        %v4364 = vpop.f32.mrb[0].mxu0
        %4365 = vmatprep.mubr.f32.mxu0 0.0
        %4366 = vmatmul.mubr.f32.gmra.mrb[0].mxu0 %v4168
        %v4367 = vpop.f32.mrb[0].mxu0
        %v4368 = vadd.f32 0.0, %v4367
        %v4369 = vpop.f32.mrb[0].mxu0
        %4370 = vmatprep.mubr.f32.mxu0 0.0
        %4371 = vmatmul.mubr.f32.gmra.mrb[0].mxu0 %v4171
        %v4372 = vpop.f32.mrb[0].mxu0
        %v4373 = vadd.f32 0.0, %v4372
        %v4374 = vpop.f32.mrb[0].mxu0
        %4375 = vmatprep.mubr.f32.mxu0 0.0
        %4376 = vmatmul.mubr.f32.gmra.mrb[0].mxu0 %v4174
        %v4377 = vpop.f32.mrb[0].mxu0
        %v4378 = vadd.f32 0.0, %v4377
        %v4379 = vpop.f32.mrb[0].mxu0
        %4380 = vmatprep.mubr.f32.mxu0 0.0
        %4381 = vmatmul.mubr.f32.gmra.mrb[0].mxu0 %v4177
        %v4382 = vpop.f32.mrb[0].mxu0
        %v4383 = vadd.f32 0.0, %v4382
        %v4384 = vpop.f32.mrb[0].mxu0
        %4385 = vmatprep.mubr.f32.mxu0 0.0
        %4386 = vmatmul.mubr.f32.gmra.mrb[0].mxu0 %v4180
        %v4387 = vpop.f32.mrb[0].mxu0
        %v4388 = vadd.f32 0.0, %v4387
        %v4389 = vpop.f32.mrb[0].mxu0
        %4390 = vmatprep.mubr.f32.mxu0 0.0
        %4391 = vmatmul.mubr.f32.gmra.mrb[0].mxu0 %v4183
        %v4392 = vpop.f32.mrb[0].mxu0
        %v4393 = vadd.f32 0.0, %v4392
        %v4394 = vpop.f32.mrb[0].mxu0
        %4395 = vmatprep.mubr.f32.mxu0 0.0
        %4396 = vmatmul.mubr.f32.gmra.mrb[0].mxu0 %v4186
        %v4397 = vpop.f32.mrb[0].mxu0
        %v4398 = vadd.f32 0.0, %v4397
        %v4399 = vpop.f32.mrb[0].mxu0
        %4400 = vmatprep.mubr.f32.mxu0 0.0
        %4401 = vmatmul.mubr.f32.gmra.mrb[0].mxu0 %v4189
        %v4402 = vpop.f32.mrb[0].mxu0
        %v4403 = vadd.f32 0.0, %v4402
        %v4404 = vpop.f32.mrb[0].mxu0
        %4405 = vmatprep.mubr.f32.mxu0 0.0
        %4406 = vmatmul.mubr.f32.gmra.mrb[0].mxu0 %v4192
        %v4407 = vpop.f32.mrb[0].mxu0
        %v4408 = vadd.f32 0.0, %v4407
        %v4409 = vpop.f32.mrb[0].mxu0
        %4410 = vmatprep.mubr.f32.mxu0 0.0
        %4411 = vmatmul.mubr.f32.gmra.mrb[0].mxu0 %v4195
        %v4412 = vpop.f32.mrb[0].mxu0
        %v4413 = vadd.f32 0.0, %v4412
        %v4414 = vpop.f32.mrb[0].mxu0
        %4415 = vmatprep.mubr.f32.mxu0 0.0
        %4416 = vmatmul.mubr.f32.gmra.mrb[0].mxu0 %v4198
        %v4417 = vpop.f32.mrb[0].mxu0
        %v4418 = vadd.f32 0.0, %v4417
        %v4419 = vpop.f32.mrb[0].mxu0
        %4420 = vmatprep.mubr.f32.mxu0 0.0
        %4421 = vmatmul.mubr.f32.gmra.mrb[0].mxu0 %v4201
        %v4422 = vpop.f32.mrb[0].mxu0
        %v4423 = vadd.f32 0.0, %v4422
        %v4424 = vpop.f32.mrb[0].mxu0
        %4425 = vmatprep.mubr.f32.mxu0 0.0
        %4426 = vmatmul.mubr.f32.gmra.mrb[0].mxu0 %v4204
        %v4427 = vpop.f32.mrb[0].mxu0
        %v4428 = vadd.f32 0.0, %v4427
        %v4429 = vpop.f32.mrb[0].mxu0
        %4430 = vdwg.mxu0
        %v4432 = vsel %vm297, %v3949, 0
        %v4435 = vsel %vm297, %v3950, 0
        %v4438 = vsel %vm297, %v3951, 0
        %v4441 = vsel %vm297, %v3952, 0
        %v4444 = vsel %vm297, %v3953, 0
        %v4447 = vsel %vm297, %v3954, 0
        %v4450 = vsel %vm297, %v3955, 0
        %v4453 = vsel %vm297, %v3956, 0
        %v4456 = vsel %vm297, %v3957, 0
        %v4459 = vsel %vm297, %v3958, 0
        %v4462 = vsel %vm297, %v3959, 0
        %v4465 = vsel %vm297, %v3960, 0
        %v4468 = vsel %vm297, %v3961, 0
        %v4471 = vsel %vm297, %v3962, 0
        %v4474 = vsel %vm297, %v3963, 0
        %v4477 = vsel %vm297, %v3964, 0
        %v4480 = vsel %vm297, %v3965, 0
        %v4483 = vsel %vm297, %v3966, 0
        %v4486 = vsel %vm297, %v3967, 0
        %v4489 = vsel %vm297, %v3968, 0
        %v4492 = vsel %vm297, %v3969, 0
        %v4495 = vsel %vm297, %v3970, 0
        %v4498 = vsel %vm297, %v3971, 0
        %v4501 = vsel %vm297, %v3972, 0
        %v4504 = vsel %vm297, %v3973, 0
        %v4507 = vsel %vm297, %v3974, 0
        %v4510 = vsel %vm297, %v3975, 0
        %v4513 = vsel %vm297, %v3976, 0
        %v4516 = vsel %vm297, %v3977, 0
        %v4519 = vsel %vm297, %v3978, 0
        %v4522 = vsel %vm297, %v3979, 0
        %v4525 = vsel %vm297, %v3980, 0
        %4527 = vmatprep.subr.mxu0 0.0
        %4528 = vmatpush1.msra.mxu0 %v4070
        %4529 = vmatprep.subr.mxu0 0.0
        %4530 = vmatpush1.msra.mxu0 %v4071
        %4531 = vmatprep.subr.mxu0 0.0
        %4532 = vmatpush1.msra.mxu0 %v4072
        %4533 = vmatprep.subr.mxu0 0.0
        %4534 = vmatpush1.msra.mxu0 %v4073
        %4535 = vmatprep.subr.mxu0 0.0
        %4536 = vmatpush1.msra.mxu0 0.0
        %4537 = vmatprep.subr.mxu0 0.0
        %4538 = vmatpush1.msra.mxu0 0.0
        %4539 = vmatprep.subr.mxu0 0.0
        %4540 = vmatpush1.msra.mxu0 0.0
        %4541 = vmatprep.subr.mxu0 0.0
        %4542 = vmatpush1.msra.mxu0 0.0
        %4543 = vmatprep.subr.mxu0 0.0
        %4544 = vmatpush1.msra.mxu0 0.0
        %4545 = vmatprep.subr.mxu0 0.0
        %4546 = vmatpush1.msra.mxu0 0.0
        %4547 = vmatprep.subr.mxu0 0.0
        %4548 = vmatpush1.msra.mxu0 0.0
        %4549 = vmatprep.subr.mxu0 0.0
        %4550 = vmatpush1.msra.mxu0 0.0
        %4551 = vmatprep.subr.mxu0 0.0
        %4552 = vmatpush1.msra.mxu0 0.0
        %4553 = vmatprep.subr.mxu0 0.0
        %4554 = vmatpush1.msra.mxu0 0.0
        %4555 = vmatprep.subr.mxu0 0.0
        %4556 = vmatpush1.msra.mxu0 0.0
        %4557 = vmatprep.subr.mxu0 0.0
        %4558 = vmatpush1.msra.mxu0 0.0
        %4559 = vmatprep.subr.mxu0 0.0
        %4560 = vmatpush1.msra.mxu0 0.0
        %4561 = vmatprep.subr.mxu0 0.0
        %4562 = vmatpush1.msra.mxu0 0.0
        %4563 = vmatprep.subr.mxu0 0.0
        %4564 = vmatpush1.msra.mxu0 0.0
        %4565 = vmatprep.subr.mxu0 0.0
        %4566 = vmatpush1.msra.mxu0 0.0
        %4567 = vmatprep.subr.mxu0 0.0
        %4568 = vmatpush1.msra.mxu0 0.0
        %4569 = vmatprep.subr.mxu0 0.0
        %4570 = vmatpush1.msra.mxu0 0.0
        %4571 = vmatprep.subr.mxu0 0.0
        %4572 = vmatpush1.msra.mxu0 0.0
        %4573 = vmatprep.subr.mxu0 0.0
        %4574 = vmatpush1.msra.mxu0 0.0
        %4575 = vmatprep.subr.mxu0 0.0
        %4576 = vmatpush1.msra.mxu0 0.0
        %4577 = vmatprep.subr.mxu0 0.0
        %4578 = vmatpush1.msra.mxu0 0.0
        %4579 = vmatprep.subr.mxu0 0.0
        %4580 = vmatpush1.msra.mxu0 0.0
        %4581 = vmatprep.subr.mxu0 0.0
        %4582 = vmatpush1.msra.mxu0 0.0
        %4583 = vmatprep.subr.mxu0 0.0
        %4584 = vmatpush1.msra.mxu0 0.0
        %4585 = vmatprep.subr.mxu0 0.0
        %4586 = vmatpush1.msra.mxu0 0.0
        %4587 = vmatprep.subr.mxu0 0.0
        %4588 = vmatpush1.msra.mxu0 0.0
        %4589 = vmatprep.subr.mxu0 0.0
        %4590 = vmatpush1.msra.mxu0 0.0
        %4591 = vmatprep.mubr.f32.mxu0 0.0
        %4592 = vmatmul.mubr.f32.gmra.mrb[0].mxu0 %v4432
        %v4593 = vpop.f32.mrb[0].mxu0
        %v4594 = vadd.f32 %v4273, %v4593
        %v4595 = vpop.f32.mrb[0].mxu0
        %4596 = vmatprep.mubr.f32.mxu0 0.0
        %4597 = vmatmul.mubr.f32.gmra.mrb[0].mxu0 %v4435
        %v4598 = vpop.f32.mrb[0].mxu0
        %v4599 = vadd.f32 %v4278, %v4598
        %v4600 = vpop.f32.mrb[0].mxu0
        %4601 = vmatprep.mubr.f32.mxu0 0.0
        %4602 = vmatmul.mubr.f32.gmra.mrb[0].mxu0 %v4438
        %v4603 = vpop.f32.mrb[0].mxu0
        %v4604 = vadd.f32 %v4283, %v4603
        %v4605 = vpop.f32.mrb[0].mxu0
        %4606 = vmatprep.mubr.f32.mxu0 0.0
        %4607 = vmatmul.mubr.f32.gmra.mrb[0].mxu0 %v4441
        %v4608 = vpop.f32.mrb[0].mxu0
        %v4609 = vadd.f32 %v4288, %v4608
        %v4610 = vpop.f32.mrb[0].mxu0
        %4611 = vmatprep.mubr.f32.mxu0 0.0
        %4612 = vmatmul.mubr.f32.gmra.mrb[0].mxu0 %v4444
        %v4613 = vpop.f32.mrb[0].mxu0
        %v4614 = vadd.f32 %v4293, %v4613
        %v4615 = vpop.f32.mrb[0].mxu0
        %4616 = vmatprep.mubr.f32.mxu0 0.0
        %4617 = vmatmul.mubr.f32.gmra.mrb[0].mxu0 %v4447
        %v4618 = vpop.f32.mrb[0].mxu0
        %v4619 = vadd.f32 %v4298, %v4618
        %v4620 = vpop.f32.mrb[0].mxu0
        %4621 = vmatprep.mubr.f32.mxu0 0.0
        %4622 = vmatmul.mubr.f32.gmra.mrb[0].mxu0 %v4450
        %v4623 = vpop.f32.mrb[0].mxu0
        %v4624 = vadd.f32 %v4303, %v4623
        %v4625 = vpop.f32.mrb[0].mxu0
        %4626 = vmatprep.mubr.f32.mxu0 0.0
        %4627 = vmatmul.mubr.f32.gmra.mrb[0].mxu0 %v4453
        %v4628 = vpop.f32.mrb[0].mxu0
        %v4629 = vadd.f32 %v4308, %v4628
        %v4630 = vpop.f32.mrb[0].mxu0
        %4631 = vmatprep.mubr.f32.mxu0 0.0
        %4632 = vmatmul.mubr.f32.gmra.mrb[0].mxu0 %v4456
        %v4633 = vpop.f32.mrb[0].mxu0
        %v4634 = vadd.f32 %v4313, %v4633
        %v4635 = vpop.f32.mrb[0].mxu0
        %4636 = vmatprep.mubr.f32.mxu0 0.0
        %4637 = vmatmul.mubr.f32.gmra.mrb[0].mxu0 %v4459
        %v4638 = vpop.f32.mrb[0].mxu0
        %v4639 = vadd.f32 %v4318, %v4638
        %v4640 = vpop.f32.mrb[0].mxu0
        %4641 = vmatprep.mubr.f32.mxu0 0.0
        %4642 = vmatmul.mubr.f32.gmra.mrb[0].mxu0 %v4462
        %v4643 = vpop.f32.mrb[0].mxu0
        %v4644 = vadd.f32 %v4323, %v4643
        %v4645 = vpop.f32.mrb[0].mxu0
        %4646 = vmatprep.mubr.f32.mxu0 0.0
        %4647 = vmatmul.mubr.f32.gmra.mrb[0].mxu0 %v4465
        %v4648 = vpop.f32.mrb[0].mxu0
        %v4649 = vadd.f32 %v4328, %v4648
        %v4650 = vpop.f32.mrb[0].mxu0
        %4651 = vmatprep.mubr.f32.mxu0 0.0
        %4652 = vmatmul.mubr.f32.gmra.mrb[0].mxu0 %v4468
        %v4653 = vpop.f32.mrb[0].mxu0
        %v4654 = vadd.f32 %v4333, %v4653
        %v4655 = vpop.f32.mrb[0].mxu0
        %4656 = vmatprep.mubr.f32.mxu0 0.0
        %4657 = vmatmul.mubr.f32.gmra.mrb[0].mxu0 %v4471
        %v4658 = vpop.f32.mrb[0].mxu0
        %v4659 = vadd.f32 %v4338, %v4658
        %v4660 = vpop.f32.mrb[0].mxu0
        %4661 = vmatprep.mubr.f32.mxu0 0.0
        %4662 = vmatmul.mubr.f32.gmra.mrb[0].mxu0 %v4474
        %v4663 = vpop.f32.mrb[0].mxu0
        %v4664 = vadd.f32 %v4343, %v4663
        %v4665 = vpop.f32.mrb[0].mxu0
        %4666 = vmatprep.mubr.f32.mxu0 0.0
        %4667 = vmatmul.mubr.f32.gmra.mrb[0].mxu0 %v4477
        %v4668 = vpop.f32.mrb[0].mxu0
        %v4669 = vadd.f32 %v4348, %v4668
        %v4670 = vpop.f32.mrb[0].mxu0
        %4671 = vmatprep.mubr.f32.mxu0 0.0
        %4672 = vmatmul.mubr.f32.gmra.mrb[0].mxu0 %v4480
        %v4673 = vpop.f32.mrb[0].mxu0
        %v4674 = vadd.f32 %v4353, %v4673
        %v4675 = vpop.f32.mrb[0].mxu0
        %4676 = vmatprep.mubr.f32.mxu0 0.0
        %4677 = vmatmul.mubr.f32.gmra.mrb[0].mxu0 %v4483
        %v4678 = vpop.f32.mrb[0].mxu0
        %v4679 = vadd.f32 %v4358, %v4678
        %v4680 = vpop.f32.mrb[0].mxu0
        %4681 = vmatprep.mubr.f32.mxu0 0.0
        %4682 = vmatmul.mubr.f32.gmra.mrb[0].mxu0 %v4486
        %v4683 = vpop.f32.mrb[0].mxu0
        %v4684 = vadd.f32 %v4363, %v4683
        %v4685 = vpop.f32.mrb[0].mxu0
        %4686 = vmatprep.mubr.f32.mxu0 0.0
        %4687 = vmatmul.mubr.f32.gmra.mrb[0].mxu0 %v4489
        %v4688 = vpop.f32.mrb[0].mxu0
        %v4689 = vadd.f32 %v4368, %v4688
        %v4690 = vpop.f32.mrb[0].mxu0
        %4691 = vmatprep.mubr.f32.mxu0 0.0
        %4692 = vmatmul.mubr.f32.gmra.mrb[0].mxu0 %v4492
        %v4693 = vpop.f32.mrb[0].mxu0
        %v4694 = vadd.f32 %v4373, %v4693
        %v4695 = vpop.f32.mrb[0].mxu0
        %4696 = vmatprep.mubr.f32.mxu0 0.0
        %4697 = vmatmul.mubr.f32.gmra.mrb[0].mxu0 %v4495
        %v4698 = vpop.f32.mrb[0].mxu0
        %v4699 = vadd.f32 %v4378, %v4698
        %v4700 = vpop.f32.mrb[0].mxu0
        %4701 = vmatprep.mubr.f32.mxu0 0.0
        %4702 = vmatmul.mubr.f32.gmra.mrb[0].mxu0 %v4498
        %v4703 = vpop.f32.mrb[0].mxu0
        %v4704 = vadd.f32 %v4383, %v4703
        %v4705 = vpop.f32.mrb[0].mxu0
        %4706 = vmatprep.mubr.f32.mxu0 0.0
        %4707 = vmatmul.mubr.f32.gmra.mrb[0].mxu0 %v4501
        %v4708 = vpop.f32.mrb[0].mxu0
        %v4709 = vadd.f32 %v4388, %v4708
        %v4710 = vpop.f32.mrb[0].mxu0
        %4711 = vmatprep.mubr.f32.mxu0 0.0
        %4712 = vmatmul.mubr.f32.gmra.mrb[0].mxu0 %v4504
        %v4713 = vpop.f32.mrb[0].mxu0
        %v4714 = vadd.f32 %v4393, %v4713
        %v4715 = vpop.f32.mrb[0].mxu0
        %4716 = vmatprep.mubr.f32.mxu0 0.0
        %4717 = vmatmul.mubr.f32.gmra.mrb[0].mxu0 %v4507
        %v4718 = vpop.f32.mrb[0].mxu0
        %v4719 = vadd.f32 %v4398, %v4718
        %v4720 = vpop.f32.mrb[0].mxu0
        %4721 = vmatprep.mubr.f32.mxu0 0.0
        %4722 = vmatmul.mubr.f32.gmra.mrb[0].mxu0 %v4510
        %v4723 = vpop.f32.mrb[0].mxu0
        %v4724 = vadd.f32 %v4403, %v4723
        %v4725 = vpop.f32.mrb[0].mxu0
        %4726 = vmatprep.mubr.f32.mxu0 0.0
        %4727 = vmatmul.mubr.f32.gmra.mrb[0].mxu0 %v4513
        %v4728 = vpop.f32.mrb[0].mxu0
        %v4729 = vadd.f32 %v4408, %v4728
        %v4730 = vpop.f32.mrb[0].mxu0
        %4731 = vmatprep.mubr.f32.mxu0 0.0
        %4732 = vmatmul.mubr.f32.gmra.mrb[0].mxu0 %v4516
        %v4733 = vpop.f32.mrb[0].mxu0
        %v4734 = vadd.f32 %v4413, %v4733
        %v4735 = vpop.f32.mrb[0].mxu0
        %4736 = vmatprep.mubr.f32.mxu0 0.0
        %4737 = vmatmul.mubr.f32.gmra.mrb[0].mxu0 %v4519
        %v4738 = vpop.f32.mrb[0].mxu0
        %v4739 = vadd.f32 %v4418, %v4738
        %v4740 = vpop.f32.mrb[0].mxu0
        %4741 = vmatprep.mubr.f32.mxu0 0.0
        %4742 = vmatmul.mubr.f32.gmra.mrb[0].mxu0 %v4522
        %v4743 = vpop.f32.mrb[0].mxu0
        %v4744 = vadd.f32 %v4423, %v4743
        %v4745 = vpop.f32.mrb[0].mxu0
        %4746 = vmatprep.mubr.f32.mxu0 0.0
        %4747 = vmatmul.mubr.f32.gmra.mrb[0].mxu0 %v4525
        %v4748 = vpop.f32.mrb[0].mxu0
        %v4749 = vadd.f32 %v4428, %v4748
        %v4750 = vpop.f32.mrb[0].mxu0
        %4751 = vdwg.mxu0
        %v4752 = vld [vmem:[#allocation2 + $0x1] sm:$0xff]
        %v4753 = vld [vmem:[#allocation2 + $0x9] sm:$0xff]
        %v4754 = vld [vmem:[#allocation2 + $0x19] sm:$0xff]
        %v4755 = vld [vmem:[#allocation2 + $0x21] sm:$0xff]
        %v4756 = vld [vmem:[#allocation2 + $0x31] sm:$0xff]
        %v4757 = vld [vmem:[#allocation2 + $0x39] sm:$0xff]
        %v4758 = vld [vmem:[#allocation2 + $0x49] sm:$0xff]
        %v4759 = vld [vmem:[#allocation2 + $0x51] sm:$0xff]
        %v4760 = vld [vmem:[#allocation2 + $0x61] sm:$0xff]
        %v4761 = vld [vmem:[#allocation2 + $0x69] sm:$0xff]
        %v4762 = vld [vmem:[#allocation2 + $0x79] sm:$0xff]
        %v4763 = vld [vmem:[#allocation2 + $0x81] sm:$0xff]
        %v4764 = vld [vmem:[#allocation2 + $0x91] sm:$0xff]
        %v4765 = vld [vmem:[#allocation2 + $0x99] sm:$0xff]
        %v4766 = vld [vmem:[#allocation2 + $0xa9] sm:$0xff]
        %v4767 = vld [vmem:[#allocation2 + $0xb1] sm:$0xff]
        %v4768 = vld [vmem:[#allocation2 + $0xc1] sm:$0xff]
        %v4769 = vld [vmem:[#allocation2 + $0xc9] sm:$0xff]
        %v4770 = vld [vmem:[#allocation2 + $0xd9] sm:$0xff]
        %v4771 = vld [vmem:[#allocation2 + $0xe1] sm:$0xff]
        %v4772 = vld [vmem:[#allocation2 + $0xf1] sm:$0xff]
        %v4773 = vld [vmem:[#allocation2 + $0xf9] sm:$0xff]
        %v4774 = vld [vmem:[#allocation2 + $0x109] sm:$0xff]
        %v4775 = vld [vmem:[#allocation2 + $0x111] sm:$0xff]
        %v4776 = vld [vmem:[#allocation2 + $0x121] sm:$0xff]
        %v4777 = vld [vmem:[#allocation2 + $0x129] sm:$0xff]
        %v4778 = vld [vmem:[#allocation2 + $0x139] sm:$0xff]
        %v4779 = vld [vmem:[#allocation2 + $0x141] sm:$0xff]
        %v4780 = vld [vmem:[#allocation2 + $0x151] sm:$0xff]
        %v4781 = vld [vmem:[#allocation2 + $0x159] sm:$0xff]
        %v4782 = vld [vmem:[#allocation2 + $0x169] sm:$0xff]
        %v4783 = vld [vmem:[#allocation2 + $0x171] sm:$0xff]
        %s4784 = scalar_lea.vmem %s3, 32
        %v4785 = vld [vmem:[%s4784] sm:$0xff]
        %v4786 = vld [vmem:[%s4784 + $0x8] sm:$0xff]
        %v4787 = vld [vmem:[%s4784 + $0x10] sm:$0xff]
        %v4788 = vld [vmem:[%s4784 + $0x18] sm:$0xff]
        %v4790 = vsel %vm297, %v4752, 0
        %v4793 = vsel %vm297, %v4753, 0
        %v4796 = vsel %vm297, %v4754, 0
        %v4799 = vsel %vm297, %v4755, 0
        %v4802 = vsel %vm297, %v4756, 0
        %v4805 = vsel %vm297, %v4757, 0
        %v4808 = vsel %vm297, %v4758, 0
        %v4811 = vsel %vm297, %v4759, 0
        %v4814 = vsel %vm297, %v4760, 0
        %v4817 = vsel %vm297, %v4761, 0
        %v4820 = vsel %vm297, %v4762, 0
        %v4823 = vsel %vm297, %v4763, 0
        %v4826 = vsel %vm297, %v4764, 0
        %v4829 = vsel %vm297, %v4765, 0
        %v4832 = vsel %vm297, %v4766, 0
        %v4835 = vsel %vm297, %v4767, 0
        %v4838 = vsel %vm297, %v4768, 0
        %v4841 = vsel %vm297, %v4769, 0
        %v4844 = vsel %vm297, %v4770, 0
        %v4847 = vsel %vm297, %v4771, 0
        %v4850 = vsel %vm297, %v4772, 0
        %v4853 = vsel %vm297, %v4773, 0
        %v4856 = vsel %vm297, %v4774, 0
        %v4859 = vsel %vm297, %v4775, 0
        %v4862 = vsel %vm297, %v4776, 0
        %v4865 = vsel %vm297, %v4777, 0
        %v4868 = vsel %vm297, %v4778, 0
        %v4871 = vsel %vm297, %v4779, 0
        %v4874 = vsel %vm297, %v4780, 0
        %v4877 = vsel %vm297, %v4781, 0
        %v4880 = vsel %vm297, %v4782, 0
        %v4883 = vsel %vm297, %v4783, 0
        %4885 = vmatprep.subr.mxu0 0.0
        %4886 = vmatpush1.msra.mxu0 %v4785
        %4887 = vmatprep.subr.mxu0 0.0
        %4888 = vmatpush1.msra.mxu0 %v4786
        %4889 = vmatprep.subr.mxu0 0.0
        %4890 = vmatpush1.msra.mxu0 %v4787
        %4891 = vmatprep.subr.mxu0 0.0
        %4892 = vmatpush1.msra.mxu0 %v4788
        %4893 = vmatprep.subr.mxu0 0.0
        %4894 = vmatpush1.msra.mxu0 0.0
        %4895 = vmatprep.subr.mxu0 0.0
        %4896 = vmatpush1.msra.mxu0 0.0
        %4897 = vmatprep.subr.mxu0 0.0
        %4898 = vmatpush1.msra.mxu0 0.0
        %4899 = vmatprep.subr.mxu0 0.0
        %4900 = vmatpush1.msra.mxu0 0.0
        %4901 = vmatprep.subr.mxu0 0.0
        %4902 = vmatpush1.msra.mxu0 0.0
        %4903 = vmatprep.subr.mxu0 0.0
        %4904 = vmatpush1.msra.mxu0 0.0
        %4905 = vmatprep.subr.mxu0 0.0
        %4906 = vmatpush1.msra.mxu0 0.0
        %4907 = vmatprep.subr.mxu0 0.0
        %4908 = vmatpush1.msra.mxu0 0.0
        %4909 = vmatprep.subr.mxu0 0.0
        %4910 = vmatpush1.msra.mxu0 0.0
        %4911 = vmatprep.subr.mxu0 0.0
        %4912 = vmatpush1.msra.mxu0 0.0
        %4913 = vmatprep.subr.mxu0 0.0
        %4914 = vmatpush1.msra.mxu0 0.0
        %4915 = vmatprep.subr.mxu0 0.0
        %4916 = vmatpush1.msra.mxu0 0.0
        %4917 = vmatprep.subr.mxu0 0.0
        %4918 = vmatpush1.msra.mxu0 0.0
        %4919 = vmatprep.subr.mxu0 0.0
        %4920 = vmatpush1.msra.mxu0 0.0
        %4921 = vmatprep.subr.mxu0 0.0
        %4922 = vmatpush1.msra.mxu0 0.0
        %4923 = vmatprep.subr.mxu0 0.0
        %4924 = vmatpush1.msra.mxu0 0.0
        %4925 = vmatprep.subr.mxu0 0.0
        %4926 = vmatpush1.msra.mxu0 0.0
        %4927 = vmatprep.subr.mxu0 0.0
        %4928 = vmatpush1.msra.mxu0 0.0
        %4929 = vmatprep.subr.mxu0 0.0
        %4930 = vmatpush1.msra.mxu0 0.0
        %4931 = vmatprep.subr.mxu0 0.0
        %4932 = vmatpush1.msra.mxu0 0.0
        %4933 = vmatprep.subr.mxu0 0.0
        %4934 = vmatpush1.msra.mxu0 0.0
        %4935 = vmatprep.subr.mxu0 0.0
        %4936 = vmatpush1.msra.mxu0 0.0
        %4937 = vmatprep.subr.mxu0 0.0
        %4938 = vmatpush1.msra.mxu0 0.0
        %4939 = vmatprep.subr.mxu0 0.0
        %4940 = vmatpush1.msra.mxu0 0.0
        %4941 = vmatprep.subr.mxu0 0.0
        %4942 = vmatpush1.msra.mxu0 0.0
        %4943 = vmatprep.subr.mxu0 0.0
        %4944 = vmatpush1.msra.mxu0 0.0
        %4945 = vmatprep.subr.mxu0 0.0
        %4946 = vmatpush1.msra.mxu0 0.0
        %4947 = vmatprep.subr.mxu0 0.0
        %4948 = vmatpush1.msra.mxu0 0.0
        %4949 = vmatprep.mubr.f32.mxu0 0.0
        %4950 = vmatmul.mubr.f32.gmra.mrb[0].mxu0 %v4790
        %v4951 = vpop.f32.mrb[0].mxu0
        %v4952 = vadd.f32 0.0, %v4951
        %v4953 = vpop.f32.mrb[0].mxu0
        %4954 = vmatprep.mubr.f32.mxu0 0.0
        %4955 = vmatmul.mubr.f32.gmra.mrb[0].mxu0 %v4793
        %v4956 = vpop.f32.mrb[0].mxu0
        %v4957 = vadd.f32 0.0, %v4956
        %v4958 = vpop.f32.mrb[0].mxu0
        %4959 = vmatprep.mubr.f32.mxu0 0.0
        %4960 = vmatmul.mubr.f32.gmra.mrb[0].mxu0 %v4796
        %v4961 = vpop.f32.mrb[0].mxu0
        %v4962 = vadd.f32 0.0, %v4961
        %v4963 = vpop.f32.mrb[0].mxu0
        %4964 = vmatprep.mubr.f32.mxu0 0.0
        %4965 = vmatmul.mubr.f32.gmra.mrb[0].mxu0 %v4799
        %v4966 = vpop.f32.mrb[0].mxu0
        %v4967 = vadd.f32 0.0, %v4966
        %v4968 = vpop.f32.mrb[0].mxu0
        %4969 = vmatprep.mubr.f32.mxu0 0.0
        %4970 = vmatmul.mubr.f32.gmra.mrb[0].mxu0 %v4802
        %v4971 = vpop.f32.mrb[0].mxu0
        %v4972 = vadd.f32 0.0, %v4971
        %v4973 = vpop.f32.mrb[0].mxu0
        %4974 = vmatprep.mubr.f32.mxu0 0.0
        %4975 = vmatmul.mubr.f32.gmra.mrb[0].mxu0 %v4805
        %v4976 = vpop.f32.mrb[0].mxu0
        %v4977 = vadd.f32 0.0, %v4976
        %v4978 = vpop.f32.mrb[0].mxu0
        %4979 = vmatprep.mubr.f32.mxu0 0.0
        %4980 = vmatmul.mubr.f32.gmra.mrb[0].mxu0 %v4808
        %v4981 = vpop.f32.mrb[0].mxu0
        %v4982 = vadd.f32 0.0, %v4981
        %v4983 = vpop.f32.mrb[0].mxu0
        %4984 = vmatprep.mubr.f32.mxu0 0.0
        %4985 = vmatmul.mubr.f32.gmra.mrb[0].mxu0 %v4811
        %v4986 = vpop.f32.mrb[0].mxu0
        %v4987 = vadd.f32 0.0, %v4986
        %v4988 = vpop.f32.mrb[0].mxu0
        %4989 = vmatprep.mubr.f32.mxu0 0.0
        %4990 = vmatmul.mubr.f32.gmra.mrb[0].mxu0 %v4814
        %v4991 = vpop.f32.mrb[0].mxu0
        %v4992 = vadd.f32 0.0, %v4991
        %v4993 = vpop.f32.mrb[0].mxu0
        %4994 = vmatprep.mubr.f32.mxu0 0.0
        %4995 = vmatmul.mubr.f32.gmra.mrb[0].mxu0 %v4817
        %v4996 = vpop.f32.mrb[0].mxu0
        %v4997 = vadd.f32 0.0, %v4996
        %v4998 = vpop.f32.mrb[0].mxu0
        %4999 = vmatprep.mubr.f32.mxu0 0.0
        %5000 = vmatmul.mubr.f32.gmra.mrb[0].mxu0 %v4820
        %v5001 = vpop.f32.mrb[0].mxu0
        %v5002 = vadd.f32 0.0, %v5001
        %v5003 = vpop.f32.mrb[0].mxu0
        %5004 = vmatprep.mubr.f32.mxu0 0.0
        %5005 = vmatmul.mubr.f32.gmra.mrb[0].mxu0 %v4823
        %v5006 = vpop.f32.mrb[0].mxu0
        %v5007 = vadd.f32 0.0, %v5006
        %v5008 = vpop.f32.mrb[0].mxu0
        %5009 = vmatprep.mubr.f32.mxu0 0.0
        %5010 = vmatmul.mubr.f32.gmra.mrb[0].mxu0 %v4826
        %v5011 = vpop.f32.mrb[0].mxu0
        %v5012 = vadd.f32 0.0, %v5011
        %v5013 = vpop.f32.mrb[0].mxu0
        %5014 = vmatprep.mubr.f32.mxu0 0.0
        %5015 = vmatmul.mubr.f32.gmra.mrb[0].mxu0 %v4829
        %v5016 = vpop.f32.mrb[0].mxu0
        %v5017 = vadd.f32 0.0, %v5016
        %v5018 = vpop.f32.mrb[0].mxu0
        %5019 = vmatprep.mubr.f32.mxu0 0.0
        %5020 = vmatmul.mubr.f32.gmra.mrb[0].mxu0 %v4832
        %v5021 = vpop.f32.mrb[0].mxu0
        %v5022 = vadd.f32 0.0, %v5021
        %v5023 = vpop.f32.mrb[0].mxu0
        %5024 = vmatprep.mubr.f32.mxu0 0.0
        %5025 = vmatmul.mubr.f32.gmra.mrb[0].mxu0 %v4835
        %v5026 = vpop.f32.mrb[0].mxu0
        %v5027 = vadd.f32 0.0, %v5026
        %v5028 = vpop.f32.mrb[0].mxu0
        %5029 = vmatprep.mubr.f32.mxu0 0.0
        %5030 = vmatmul.mubr.f32.gmra.mrb[0].mxu0 %v4838
        %v5031 = vpop.f32.mrb[0].mxu0
        %v5032 = vadd.f32 0.0, %v5031
        %v5033 = vpop.f32.mrb[0].mxu0
        %5034 = vmatprep.mubr.f32.mxu0 0.0
        %5035 = vmatmul.mubr.f32.gmra.mrb[0].mxu0 %v4841
        %v5036 = vpop.f32.mrb[0].mxu0
        %v5037 = vadd.f32 0.0, %v5036
        %v5038 = vpop.f32.mrb[0].mxu0
        %5039 = vmatprep.mubr.f32.mxu0 0.0
        %5040 = vmatmul.mubr.f32.gmra.mrb[0].mxu0 %v4844
        %v5041 = vpop.f32.mrb[0].mxu0
        %v5042 = vadd.f32 0.0, %v5041
        %v5043 = vpop.f32.mrb[0].mxu0
        %5044 = vmatprep.mubr.f32.mxu0 0.0
        %5045 = vmatmul.mubr.f32.gmra.mrb[0].mxu0 %v4847
        %v5046 = vpop.f32.mrb[0].mxu0
        %v5047 = vadd.f32 0.0, %v5046
        %v5048 = vpop.f32.mrb[0].mxu0
        %5049 = vmatprep.mubr.f32.mxu0 0.0
        %5050 = vmatmul.mubr.f32.gmra.mrb[0].mxu0 %v4850
        %v5051 = vpop.f32.mrb[0].mxu0
        %v5052 = vadd.f32 0.0, %v5051
        %v5053 = vpop.f32.mrb[0].mxu0
        %5054 = vmatprep.mubr.f32.mxu0 0.0
        %5055 = vmatmul.mubr.f32.gmra.mrb[0].mxu0 %v4853
        %v5056 = vpop.f32.mrb[0].mxu0
        %v5057 = vadd.f32 0.0, %v5056
        %v5058 = vpop.f32.mrb[0].mxu0
        %5059 = vmatprep.mubr.f32.mxu0 0.0
        %5060 = vmatmul.mubr.f32.gmra.mrb[0].mxu0 %v4856
        %v5061 = vpop.f32.mrb[0].mxu0
        %v5062 = vadd.f32 0.0, %v5061
        %v5063 = vpop.f32.mrb[0].mxu0
        %5064 = vmatprep.mubr.f32.mxu0 0.0
        %5065 = vmatmul.mubr.f32.gmra.mrb[0].mxu0 %v4859
        %v5066 = vpop.f32.mrb[0].mxu0
        %v5067 = vadd.f32 0.0, %v5066
        %v5068 = vpop.f32.mrb[0].mxu0
        %5069 = vmatprep.mubr.f32.mxu0 0.0
        %5070 = vmatmul.mubr.f32.gmra.mrb[0].mxu0 %v4862
        %v5071 = vpop.f32.mrb[0].mxu0
        %v5072 = vadd.f32 0.0, %v5071
        %v5073 = vpop.f32.mrb[0].mxu0
        %5074 = vmatprep.mubr.f32.mxu0 0.0
        %5075 = vmatmul.mubr.f32.gmra.mrb[0].mxu0 %v4865
        %v5076 = vpop.f32.mrb[0].mxu0
        %v5077 = vadd.f32 0.0, %v5076
        %v5078 = vpop.f32.mrb[0].mxu0
        %5079 = vmatprep.mubr.f32.mxu0 0.0
        %5080 = vmatmul.mubr.f32.gmra.mrb[0].mxu0 %v4868
        %v5081 = vpop.f32.mrb[0].mxu0
        %v5082 = vadd.f32 0.0, %v5081
        %v5083 = vpop.f32.mrb[0].mxu0
        %5084 = vmatprep.mubr.f32.mxu0 0.0
        %5085 = vmatmul.mubr.f32.gmra.mrb[0].mxu0 %v4871
        %v5086 = vpop.f32.mrb[0].mxu0
        %v5087 = vadd.f32 0.0, %v5086
        %v5088 = vpop.f32.mrb[0].mxu0
        %5089 = vmatprep.mubr.f32.mxu0 0.0
        %5090 = vmatmul.mubr.f32.gmra.mrb[0].mxu0 %v4874
        %v5091 = vpop.f32.mrb[0].mxu0
        %v5092 = vadd.f32 0.0, %v5091
        %v5093 = vpop.f32.mrb[0].mxu0
        %5094 = vmatprep.mubr.f32.mxu0 0.0
        %5095 = vmatmul.mubr.f32.gmra.mrb[0].mxu0 %v4877
        %v5096 = vpop.f32.mrb[0].mxu0
        %v5097 = vadd.f32 0.0, %v5096
        %v5098 = vpop.f32.mrb[0].mxu0
        %5099 = vmatprep.mubr.f32.mxu0 0.0
        %5100 = vmatmul.mubr.f32.gmra.mrb[0].mxu0 %v4880
        %v5101 = vpop.f32.mrb[0].mxu0
        %v5102 = vadd.f32 0.0, %v5101
        %v5103 = vpop.f32.mrb[0].mxu0
        %5104 = vmatprep.mubr.f32.mxu0 0.0
        %5105 = vmatmul.mubr.f32.gmra.mrb[0].mxu0 %v4883
        %v5106 = vpop.f32.mrb[0].mxu0
        %v5107 = vadd.f32 0.0, %v5106
        %v5108 = vpop.f32.mrb[0].mxu0
        %5109 = vdwg.mxu0
        %v5110 = vadd.f32 %v4594, %v4952
        %v5111 = vadd.f32 %v4599, %v4957
        %v5112 = vadd.f32 %v4604, %v4962
        %v5113 = vadd.f32 %v4609, %v4967
        %v5114 = vadd.f32 %v4614, %v4972
        %v5115 = vadd.f32 %v4619, %v4977
        %v5116 = vadd.f32 %v4624, %v4982
        %v5117 = vadd.f32 %v4629, %v4987
        %v5118 = vadd.f32 %v4634, %v4992
        %v5119 = vadd.f32 %v4639, %v4997
        %v5120 = vadd.f32 %v4644, %v5002
        %v5121 = vadd.f32 %v4649, %v5007
        %v5122 = vadd.f32 %v4654, %v5012
        %v5123 = vadd.f32 %v4659, %v5017
        %v5124 = vadd.f32 %v4664, %v5022
        %v5125 = vadd.f32 %v4669, %v5027
        %v5126 = vadd.f32 %v4674, %v5032
        %v5127 = vadd.f32 %v4679, %v5037
        %v5128 = vadd.f32 %v4684, %v5042
        %v5129 = vadd.f32 %v4689, %v5047
        %v5130 = vadd.f32 %v4694, %v5052
        %v5131 = vadd.f32 %v4699, %v5057
        %v5132 = vadd.f32 %v4704, %v5062
        %v5133 = vadd.f32 %v4709, %v5067
        %v5134 = vadd.f32 %v4714, %v5072
        %v5135 = vadd.f32 %v4719, %v5077
        %v5136 = vadd.f32 %v4724, %v5082
        %v5137 = vadd.f32 %v4729, %v5087
        %v5138 = vadd.f32 %v4734, %v5092
        %v5139 = vadd.f32 %v4739, %v5097
        %v5140 = vadd.f32 %v4744, %v5102
        %v5141 = vadd.f32 %v4749, %v5107
        %v5142 = vld [vmem:[#allocation2 + $0x2] sm:$0xff]
        %v5143 = vld [vmem:[#allocation2 + $0xa] sm:$0xff]
        %v5144 = vld [vmem:[#allocation2 + $0x1a] sm:$0xff]
        %v5145 = vld [vmem:[#allocation2 + $0x22] sm:$0xff]
        %v5146 = vld [vmem:[#allocation2 + $0x32] sm:$0xff]
        %v5147 = vld [vmem:[#allocation2 + $0x3a] sm:$0xff]
        %v5148 = vld [vmem:[#allocation2 + $0x4a] sm:$0xff]
        %v5149 = vld [vmem:[#allocation2 + $0x52] sm:$0xff]
        %v5150 = vld [vmem:[#allocation2 + $0x62] sm:$0xff]
        %v5151 = vld [vmem:[#allocation2 + $0x6a] sm:$0xff]
        %v5152 = vld [vmem:[#allocation2 + $0x7a] sm:$0xff]
        %v5153 = vld [vmem:[#allocation2 + $0x82] sm:$0xff]
        %v5154 = vld [vmem:[#allocation2 + $0x92] sm:$0xff]
        %v5155 = vld [vmem:[#allocation2 + $0x9a] sm:$0xff]
        %v5156 = vld [vmem:[#allocation2 + $0xaa] sm:$0xff]
        %v5157 = vld [vmem:[#allocation2 + $0xb2] sm:$0xff]
        %v5158 = vld [vmem:[#allocation2 + $0xc2] sm:$0xff]
        %v5159 = vld [vmem:[#allocation2 + $0xca] sm:$0xff]
        %v5160 = vld [vmem:[#allocation2 + $0xda] sm:$0xff]
        %v5161 = vld [vmem:[#allocation2 + $0xe2] sm:$0xff]
        %v5162 = vld [vmem:[#allocation2 + $0xf2] sm:$0xff]
        %v5163 = vld [vmem:[#allocation2 + $0xfa] sm:$0xff]
        %v5164 = vld [vmem:[#allocation2 + $0x10a] sm:$0xff]
        %v5165 = vld [vmem:[#allocation2 + $0x112] sm:$0xff]
        %v5166 = vld [vmem:[#allocation2 + $0x122] sm:$0xff]
        %v5167 = vld [vmem:[#allocation2 + $0x12a] sm:$0xff]
        %v5168 = vld [vmem:[#allocation2 + $0x13a] sm:$0xff]
        %v5169 = vld [vmem:[#allocation2 + $0x142] sm:$0xff]
        %v5170 = vld [vmem:[#allocation2 + $0x152] sm:$0xff]
        %v5171 = vld [vmem:[#allocation2 + $0x15a] sm:$0xff]
        %v5172 = vld [vmem:[#allocation2 + $0x16a] sm:$0xff]
        %v5173 = vld [vmem:[#allocation2 + $0x172] sm:$0xff]
        %s5174 = scalar_lea.vmem %s3, 64
        %v5175 = vld [vmem:[%s5174] sm:$0xff]
        %v5176 = vld [vmem:[%s5174 + $0x8] sm:$0xff]
        %v5177 = vld [vmem:[%s5174 + $0x10] sm:$0xff]
        %v5178 = vld [vmem:[%s5174 + $0x18] sm:$0xff]
        %v5180 = vsel %vm297, %v5142, 0
        %v5183 = vsel %vm297, %v5143, 0
        %v5186 = vsel %vm297, %v5144, 0
        %v5189 = vsel %vm297, %v5145, 0
        %v5192 = vsel %vm297, %v5146, 0
        %v5195 = vsel %vm297, %v5147, 0
        %v5198 = vsel %vm297, %v5148, 0
        %v5201 = vsel %vm297, %v5149, 0
        %v5204 = vsel %vm297, %v5150, 0
        %v5207 = vsel %vm297, %v5151, 0
        %v5210 = vsel %vm297, %v5152, 0
        %v5213 = vsel %vm297, %v5153, 0
        %v5216 = vsel %vm297, %v5154, 0
        %v5219 = vsel %vm297, %v5155, 0
        %v5222 = vsel %vm297, %v5156, 0
        %v5225 = vsel %vm297, %v5157, 0
        %v5228 = vsel %vm297, %v5158, 0
        %v5231 = vsel %vm297, %v5159, 0
        %v5234 = vsel %vm297, %v5160, 0
        %v5237 = vsel %vm297, %v5161, 0
        %v5240 = vsel %vm297, %v5162, 0
        %v5243 = vsel %vm297, %v5163, 0
        %v5246 = vsel %vm297, %v5164, 0
        %v5249 = vsel %vm297, %v5165, 0
        %v5252 = vsel %vm297, %v5166, 0
        %v5255 = vsel %vm297, %v5167, 0
        %v5258 = vsel %vm297, %v5168, 0
        %v5261 = vsel %vm297, %v5169, 0
        %v5264 = vsel %vm297, %v5170, 0
        %v5267 = vsel %vm297, %v5171, 0
        %v5270 = vsel %vm297, %v5172, 0
        %v5273 = vsel %vm297, %v5173, 0
        %5275 = vmatprep.subr.mxu0 0.0
        %5276 = vmatpush1.msra.mxu0 %v5175
        %5277 = vmatprep.subr.mxu0 0.0
        %5278 = vmatpush1.msra.mxu0 %v5176
        %5279 = vmatprep.subr.mxu0 0.0
        %5280 = vmatpush1.msra.mxu0 %v5177
        %5281 = vmatprep.subr.mxu0 0.0
        %5282 = vmatpush1.msra.mxu0 %v5178
        %5283 = vmatprep.subr.mxu0 0.0
        %5284 = vmatpush1.msra.mxu0 0.0
        %5285 = vmatprep.subr.mxu0 0.0
        %5286 = vmatpush1.msra.mxu0 0.0
        %5287 = vmatprep.subr.mxu0 0.0
        %5288 = vmatpush1.msra.mxu0 0.0
        %5289 = vmatprep.subr.mxu0 0.0
        %5290 = vmatpush1.msra.mxu0 0.0
        %5291 = vmatprep.subr.mxu0 0.0
        %5292 = vmatpush1.msra.mxu0 0.0
        %5293 = vmatprep.subr.mxu0 0.0
        %5294 = vmatpush1.msra.mxu0 0.0
        %5295 = vmatprep.subr.mxu0 0.0
        %5296 = vmatpush1.msra.mxu0 0.0
        %5297 = vmatprep.subr.mxu0 0.0
        %5298 = vmatpush1.msra.mxu0 0.0
        %5299 = vmatprep.subr.mxu0 0.0
        %5300 = vmatpush1.msra.mxu0 0.0
        %5301 = vmatprep.subr.mxu0 0.0
        %5302 = vmatpush1.msra.mxu0 0.0
        %5303 = vmatprep.subr.mxu0 0.0
        %5304 = vmatpush1.msra.mxu0 0.0
        %5305 = vmatprep.subr.mxu0 0.0
        %5306 = vmatpush1.msra.mxu0 0.0
        %5307 = vmatprep.subr.mxu0 0.0
        %5308 = vmatpush1.msra.mxu0 0.0
        %5309 = vmatprep.subr.mxu0 0.0
        %5310 = vmatpush1.msra.mxu0 0.0
        %5311 = vmatprep.subr.mxu0 0.0
        %5312 = vmatpush1.msra.mxu0 0.0
        %5313 = vmatprep.subr.mxu0 0.0
        %5314 = vmatpush1.msra.mxu0 0.0
        %5315 = vmatprep.subr.mxu0 0.0
        %5316 = vmatpush1.msra.mxu0 0.0
        %5317 = vmatprep.subr.mxu0 0.0
        %5318 = vmatpush1.msra.mxu0 0.0
        %5319 = vmatprep.subr.mxu0 0.0
        %5320 = vmatpush1.msra.mxu0 0.0
        %5321 = vmatprep.subr.mxu0 0.0
        %5322 = vmatpush1.msra.mxu0 0.0
        %5323 = vmatprep.subr.mxu0 0.0
        %5324 = vmatpush1.msra.mxu0 0.0
        %5325 = vmatprep.subr.mxu0 0.0
        %5326 = vmatpush1.msra.mxu0 0.0
        %5327 = vmatprep.subr.mxu0 0.0
        %5328 = vmatpush1.msra.mxu0 0.0
        %5329 = vmatprep.subr.mxu0 0.0
        %5330 = vmatpush1.msra.mxu0 0.0
        %5331 = vmatprep.subr.mxu0 0.0
        %5332 = vmatpush1.msra.mxu0 0.0
        %5333 = vmatprep.subr.mxu0 0.0
        %5334 = vmatpush1.msra.mxu0 0.0
        %5335 = vmatprep.subr.mxu0 0.0
        %5336 = vmatpush1.msra.mxu0 0.0
        %5337 = vmatprep.subr.mxu0 0.0
        %5338 = vmatpush1.msra.mxu0 0.0
        %5339 = vmatprep.mubr.f32.mxu0 0.0
        %5340 = vmatmul.mubr.f32.gmra.mrb[0].mxu0 %v5180
        %v5341 = vpop.f32.mrb[0].mxu0
        %v5342 = vadd.f32 0.0, %v5341
        %v5343 = vpop.f32.mrb[0].mxu0
        %5344 = vmatprep.mubr.f32.mxu0 0.0
        %5345 = vmatmul.mubr.f32.gmra.mrb[0].mxu0 %v5183
        %v5346 = vpop.f32.mrb[0].mxu0
        %v5347 = vadd.f32 0.0, %v5346
        %v5348 = vpop.f32.mrb[0].mxu0
        %5349 = vmatprep.mubr.f32.mxu0 0.0
        %5350 = vmatmul.mubr.f32.gmra.mrb[0].mxu0 %v5186
        %v5351 = vpop.f32.mrb[0].mxu0
        %v5352 = vadd.f32 0.0, %v5351
        %v5353 = vpop.f32.mrb[0].mxu0
        %5354 = vmatprep.mubr.f32.mxu0 0.0
        %5355 = vmatmul.mubr.f32.gmra.mrb[0].mxu0 %v5189
        %v5356 = vpop.f32.mrb[0].mxu0
        %v5357 = vadd.f32 0.0, %v5356
        %v5358 = vpop.f32.mrb[0].mxu0
        %5359 = vmatprep.mubr.f32.mxu0 0.0
        %5360 = vmatmul.mubr.f32.gmra.mrb[0].mxu0 %v5192
        %v5361 = vpop.f32.mrb[0].mxu0
        %v5362 = vadd.f32 0.0, %v5361
        %v5363 = vpop.f32.mrb[0].mxu0
        %5364 = vmatprep.mubr.f32.mxu0 0.0
        %5365 = vmatmul.mubr.f32.gmra.mrb[0].mxu0 %v5195
        %v5366 = vpop.f32.mrb[0].mxu0
        %v5367 = vadd.f32 0.0, %v5366
        %v5368 = vpop.f32.mrb[0].mxu0
        %5369 = vmatprep.mubr.f32.mxu0 0.0
        %5370 = vmatmul.mubr.f32.gmra.mrb[0].mxu0 %v5198
        %v5371 = vpop.f32.mrb[0].mxu0
        %v5372 = vadd.f32 0.0, %v5371
        %v5373 = vpop.f32.mrb[0].mxu0
        %5374 = vmatprep.mubr.f32.mxu0 0.0
        %5375 = vmatmul.mubr.f32.gmra.mrb[0].mxu0 %v5201
        %v5376 = vpop.f32.mrb[0].mxu0
        %v5377 = vadd.f32 0.0, %v5376
        %v5378 = vpop.f32.mrb[0].mxu0
        %5379 = vmatprep.mubr.f32.mxu0 0.0
        %5380 = vmatmul.mubr.f32.gmra.mrb[0].mxu0 %v5204
        %v5381 = vpop.f32.mrb[0].mxu0
        %v5382 = vadd.f32 0.0, %v5381
        %v5383 = vpop.f32.mrb[0].mxu0
        %5384 = vmatprep.mubr.f32.mxu0 0.0
        %5385 = vmatmul.mubr.f32.gmra.mrb[0].mxu0 %v5207
        %v5386 = vpop.f32.mrb[0].mxu0
        %v5387 = vadd.f32 0.0, %v5386
        %v5388 = vpop.f32.mrb[0].mxu0
        %5389 = vmatprep.mubr.f32.mxu0 0.0
        %5390 = vmatmul.mubr.f32.gmra.mrb[0].mxu0 %v5210
        %v5391 = vpop.f32.mrb[0].mxu0
        %v5392 = vadd.f32 0.0, %v5391
        %v5393 = vpop.f32.mrb[0].mxu0
        %5394 = vmatprep.mubr.f32.mxu0 0.0
        %5395 = vmatmul.mubr.f32.gmra.mrb[0].mxu0 %v5213
        %v5396 = vpop.f32.mrb[0].mxu0
        %v5397 = vadd.f32 0.0, %v5396
        %v5398 = vpop.f32.mrb[0].mxu0
        %5399 = vmatprep.mubr.f32.mxu0 0.0
        %5400 = vmatmul.mubr.f32.gmra.mrb[0].mxu0 %v5216
        %v5401 = vpop.f32.mrb[0].mxu0
        %v5402 = vadd.f32 0.0, %v5401
        %v5403 = vpop.f32.mrb[0].mxu0
        %5404 = vmatprep.mubr.f32.mxu0 0.0
        %5405 = vmatmul.mubr.f32.gmra.mrb[0].mxu0 %v5219
        %v5406 = vpop.f32.mrb[0].mxu0
        %v5407 = vadd.f32 0.0, %v5406
        %v5408 = vpop.f32.mrb[0].mxu0
        %5409 = vmatprep.mubr.f32.mxu0 0.0
        %5410 = vmatmul.mubr.f32.gmra.mrb[0].mxu0 %v5222
        %v5411 = vpop.f32.mrb[0].mxu0
        %v5412 = vadd.f32 0.0, %v5411
        %v5413 = vpop.f32.mrb[0].mxu0
        %5414 = vmatprep.mubr.f32.mxu0 0.0
        %5415 = vmatmul.mubr.f32.gmra.mrb[0].mxu0 %v5225
        %v5416 = vpop.f32.mrb[0].mxu0
        %v5417 = vadd.f32 0.0, %v5416
        %v5418 = vpop.f32.mrb[0].mxu0
        %5419 = vmatprep.mubr.f32.mxu0 0.0
        %5420 = vmatmul.mubr.f32.gmra.mrb[0].mxu0 %v5228
        %v5421 = vpop.f32.mrb[0].mxu0
        %v5422 = vadd.f32 0.0, %v5421
        %v5423 = vpop.f32.mrb[0].mxu0
        %5424 = vmatprep.mubr.f32.mxu0 0.0
        %5425 = vmatmul.mubr.f32.gmra.mrb[0].mxu0 %v5231
        %v5426 = vpop.f32.mrb[0].mxu0
        %v5427 = vadd.f32 0.0, %v5426
        %v5428 = vpop.f32.mrb[0].mxu0
        %5429 = vmatprep.mubr.f32.mxu0 0.0
        %5430 = vmatmul.mubr.f32.gmra.mrb[0].mxu0 %v5234
        %v5431 = vpop.f32.mrb[0].mxu0
        %v5432 = vadd.f32 0.0, %v5431
        %v5433 = vpop.f32.mrb[0].mxu0
        %5434 = vmatprep.mubr.f32.mxu0 0.0
        %5435 = vmatmul.mubr.f32.gmra.mrb[0].mxu0 %v5237
        %v5436 = vpop.f32.mrb[0].mxu0
        %v5437 = vadd.f32 0.0, %v5436
        %v5438 = vpop.f32.mrb[0].mxu0
        %5439 = vmatprep.mubr.f32.mxu0 0.0
        %5440 = vmatmul.mubr.f32.gmra.mrb[0].mxu0 %v5240
        %v5441 = vpop.f32.mrb[0].mxu0
        %v5442 = vadd.f32 0.0, %v5441
        %v5443 = vpop.f32.mrb[0].mxu0
        %5444 = vmatprep.mubr.f32.mxu0 0.0
        %5445 = vmatmul.mubr.f32.gmra.mrb[0].mxu0 %v5243
        %v5446 = vpop.f32.mrb[0].mxu0
        %v5447 = vadd.f32 0.0, %v5446
        %v5448 = vpop.f32.mrb[0].mxu0
        %5449 = vmatprep.mubr.f32.mxu0 0.0
        %5450 = vmatmul.mubr.f32.gmra.mrb[0].mxu0 %v5246
        %v5451 = vpop.f32.mrb[0].mxu0
        %v5452 = vadd.f32 0.0, %v5451
        %v5453 = vpop.f32.mrb[0].mxu0
        %5454 = vmatprep.mubr.f32.mxu0 0.0
        %5455 = vmatmul.mubr.f32.gmra.mrb[0].mxu0 %v5249
        %v5456 = vpop.f32.mrb[0].mxu0
        %v5457 = vadd.f32 0.0, %v5456
        %v5458 = vpop.f32.mrb[0].mxu0
        %5459 = vmatprep.mubr.f32.mxu0 0.0
        %5460 = vmatmul.mubr.f32.gmra.mrb[0].mxu0 %v5252
        %v5461 = vpop.f32.mrb[0].mxu0
        %v5462 = vadd.f32 0.0, %v5461
        %v5463 = vpop.f32.mrb[0].mxu0
        %5464 = vmatprep.mubr.f32.mxu0 0.0
        %5465 = vmatmul.mubr.f32.gmra.mrb[0].mxu0 %v5255
        %v5466 = vpop.f32.mrb[0].mxu0
        %v5467 = vadd.f32 0.0, %v5466
        %v5468 = vpop.f32.mrb[0].mxu0
        %5469 = vmatprep.mubr.f32.mxu0 0.0
        %5470 = vmatmul.mubr.f32.gmra.mrb[0].mxu0 %v5258
        %v5471 = vpop.f32.mrb[0].mxu0
        %v5472 = vadd.f32 0.0, %v5471
        %v5473 = vpop.f32.mrb[0].mxu0
        %5474 = vmatprep.mubr.f32.mxu0 0.0
        %5475 = vmatmul.mubr.f32.gmra.mrb[0].mxu0 %v5261
        %v5476 = vpop.f32.mrb[0].mxu0
        %v5477 = vadd.f32 0.0, %v5476
        %v5478 = vpop.f32.mrb[0].mxu0
        %5479 = vmatprep.mubr.f32.mxu0 0.0
        %5480 = vmatmul.mubr.f32.gmra.mrb[0].mxu0 %v5264
        %v5481 = vpop.f32.mrb[0].mxu0
        %v5482 = vadd.f32 0.0, %v5481
        %v5483 = vpop.f32.mrb[0].mxu0
        %5484 = vmatprep.mubr.f32.mxu0 0.0
        %5485 = vmatmul.mubr.f32.gmra.mrb[0].mxu0 %v5267
        %v5486 = vpop.f32.mrb[0].mxu0
        %v5487 = vadd.f32 0.0, %v5486
        %v5488 = vpop.f32.mrb[0].mxu0
        %5489 = vmatprep.mubr.f32.mxu0 0.0
        %5490 = vmatmul.mubr.f32.gmra.mrb[0].mxu0 %v5270
        %v5491 = vpop.f32.mrb[0].mxu0
        %v5492 = vadd.f32 0.0, %v5491
        %v5493 = vpop.f32.mrb[0].mxu0
        %5494 = vmatprep.mubr.f32.mxu0 0.0
        %5495 = vmatmul.mubr.f32.gmra.mrb[0].mxu0 %v5273
        %v5496 = vpop.f32.mrb[0].mxu0
        %v5497 = vadd.f32 0.0, %v5496
        %v5498 = vpop.f32.mrb[0].mxu0
        %5499 = vdwg.mxu0
        %v5500 = vadd.f32 %v5110, %v5342
        %v5501 = vadd.f32 %v5111, %v5347
        %v5502 = vadd.f32 %v5112, %v5352
        %v5503 = vadd.f32 %v5113, %v5357
        %v5504 = vadd.f32 %v5114, %v5362
        %v5505 = vadd.f32 %v5115, %v5367
        %v5506 = vadd.f32 %v5116, %v5372
        %v5507 = vadd.f32 %v5117, %v5377
        %v5508 = vadd.f32 %v5118, %v5382
        %v5509 = vadd.f32 %v5119, %v5387
        %v5510 = vadd.f32 %v5120, %v5392
        %v5511 = vadd.f32 %v5121, %v5397
        %v5512 = vadd.f32 %v5122, %v5402
        %v5513 = vadd.f32 %v5123, %v5407
        %v5514 = vadd.f32 %v5124, %v5412
        %v5515 = vadd.f32 %v5125, %v5417
        %v5516 = vadd.f32 %v5126, %v5422
        %v5517 = vadd.f32 %v5127, %v5427
        %v5518 = vadd.f32 %v5128, %v5432
        %v5519 = vadd.f32 %v5129, %v5437
        %v5520 = vadd.f32 %v5130, %v5442
        %v5521 = vadd.f32 %v5131, %v5447
        %v5522 = vadd.f32 %v5132, %v5452
        %v5523 = vadd.f32 %v5133, %v5457
        %v5524 = vadd.f32 %v5134, %v5462
        %v5525 = vadd.f32 %v5135, %v5467
        %v5526 = vadd.f32 %v5136, %v5472
        %v5527 = vadd.f32 %v5137, %v5477
        %v5528 = vadd.f32 %v5138, %v5482
        %v5529 = vadd.f32 %v5139, %v5487
        %v5530 = vadd.f32 %v5140, %v5492
        %v5531 = vadd.f32 %v5141, %v5497
        %v5532 = vld [vmem:[%s4036] sm:$0xff]
        %v5533 = vld [vmem:[%s4036 + $0x8] sm:$0xff]
        %v5534 = vld [vmem:[%s4036 + $0x18] sm:$0xff]
        %v5535 = vld [vmem:[%s4036 + $0x20] sm:$0xff]
        %v5536 = vld [vmem:[%s4036 + $0x30] sm:$0xff]
        %v5537 = vld [vmem:[%s4036 + $0x38] sm:$0xff]
        %v5538 = vld [vmem:[%s4036 + $0x48] sm:$0xff]
        %v5539 = vld [vmem:[%s4036 + $0x50] sm:$0xff]
        %v5540 = vld [vmem:[%s4036 + $0x60] sm:$0xff]
        %v5541 = vld [vmem:[%s4036 + $0x68] sm:$0xff]
        %v5542 = vld [vmem:[%s4036 + $0x78] sm:$0xff]
        %v5543 = vld [vmem:[%s4036 + $0x80] sm:$0xff]
        %v5544 = vld [vmem:[%s4036 + $0x90] sm:$0xff]
        %v5545 = vld [vmem:[%s4036 + $0x98] sm:$0xff]
        %v5546 = vld [vmem:[%s4036 + $0xa8] sm:$0xff]
        %v5547 = vld [vmem:[%s4036 + $0xb0] sm:$0xff]
        %v5548 = vld [vmem:[%s4036 + $0xc0] sm:$0xff]
        %v5549 = vld [vmem:[%s4036 + $0xc8] sm:$0xff]
        %v5550 = vld [vmem:[%s4036 + $0xd8] sm:$0xff]
        %v5551 = vld [vmem:[%s4036 + $0xe0] sm:$0xff]
        %v5552 = vld [vmem:[%s4036 + $0xf0] sm:$0xff]
        %v5553 = vld [vmem:[%s4036 + $0xf8] sm:$0xff]
        %v5554 = vld [vmem:[%s4036 + $0x108] sm:$0xff]
        %v5555 = vld [vmem:[%s4036 + $0x110] sm:$0xff]
        %v5556 = vld [vmem:[%s4036 + $0x120] sm:$0xff]
        %v5557 = vld [vmem:[%s4036 + $0x128] sm:$0xff]
        %v5558 = vld [vmem:[%s4036 + $0x138] sm:$0xff]
        %v5559 = vld [vmem:[%s4036 + $0x140] sm:$0xff]
        %v5560 = vld [vmem:[%s4036 + $0x150] sm:$0xff]
        %v5561 = vld [vmem:[%s4036 + $0x158] sm:$0xff]
        %v5562 = vld [vmem:[%s4036 + $0x168] sm:$0xff]
        %v5563 = vld [vmem:[%s4036 + $0x170] sm:$0xff]
        %s5564 = scalar_lea.vmem %s3, 96
        %v5565 = vld [vmem:[%s5564] sm:$0xff]
        %v5566 = vld [vmem:[%s5564 + $0x8] sm:$0xff]
        %v5567 = vld [vmem:[%s5564 + $0x10] sm:$0xff]
        %v5568 = vld [vmem:[%s5564 + $0x18] sm:$0xff]
        %v5570 = vsel %vm297, %v5532, 0
        %v5573 = vsel %vm297, %v5533, 0
        %v5576 = vsel %vm297, %v5534, 0
        %v5579 = vsel %vm297, %v5535, 0
        %v5582 = vsel %vm297, %v5536, 0
        %v5585 = vsel %vm297, %v5537, 0
        %v5588 = vsel %vm297, %v5538, 0
        %v5591 = vsel %vm297, %v5539, 0
        %v5594 = vsel %vm297, %v5540, 0
        %v5597 = vsel %vm297, %v5541, 0
        %v5600 = vsel %vm297, %v5542, 0
        %v5603 = vsel %vm297, %v5543, 0
        %v5606 = vsel %vm297, %v5544, 0
        %v5609 = vsel %vm297, %v5545, 0
        %v5612 = vsel %vm297, %v5546, 0
        %v5615 = vsel %vm297, %v5547, 0
        %v5618 = vsel %vm297, %v5548, 0
        %v5621 = vsel %vm297, %v5549, 0
        %v5624 = vsel %vm297, %v5550, 0
        %v5627 = vsel %vm297, %v5551, 0
        %v5630 = vsel %vm297, %v5552, 0
        %v5633 = vsel %vm297, %v5553, 0
        %v5636 = vsel %vm297, %v5554, 0
        %v5639 = vsel %vm297, %v5555, 0
        %v5642 = vsel %vm297, %v5556, 0
        %v5645 = vsel %vm297, %v5557, 0
        %v5648 = vsel %vm297, %v5558, 0
        %v5651 = vsel %vm297, %v5559, 0
        %v5654 = vsel %vm297, %v5560, 0
        %v5657 = vsel %vm297, %v5561, 0
        %v5660 = vsel %vm297, %v5562, 0
        %v5663 = vsel %vm297, %v5563, 0
        %5665 = vmatprep.subr.mxu0 0.0
        %5666 = vmatpush1.msra.mxu0 %v5565
        %5667 = vmatprep.subr.mxu0 0.0
        %5668 = vmatpush1.msra.mxu0 %v5566
        %5669 = vmatprep.subr.mxu0 0.0
        %5670 = vmatpush1.msra.mxu0 %v5567
        %5671 = vmatprep.subr.mxu0 0.0
        %5672 = vmatpush1.msra.mxu0 %v5568
        %5673 = vmatprep.subr.mxu0 0.0
        %5674 = vmatpush1.msra.mxu0 0.0
        %5675 = vmatprep.subr.mxu0 0.0
        %5676 = vmatpush1.msra.mxu0 0.0
        %5677 = vmatprep.subr.mxu0 0.0
        %5678 = vmatpush1.msra.mxu0 0.0
        %5679 = vmatprep.subr.mxu0 0.0
        %5680 = vmatpush1.msra.mxu0 0.0
        %5681 = vmatprep.subr.mxu0 0.0
        %5682 = vmatpush1.msra.mxu0 0.0
        %5683 = vmatprep.subr.mxu0 0.0
        %5684 = vmatpush1.msra.mxu0 0.0
        %5685 = vmatprep.subr.mxu0 0.0
        %5686 = vmatpush1.msra.mxu0 0.0
        %5687 = vmatprep.subr.mxu0 0.0
        %5688 = vmatpush1.msra.mxu0 0.0
        %5689 = vmatprep.subr.mxu0 0.0
        %5690 = vmatpush1.msra.mxu0 0.0
        %5691 = vmatprep.subr.mxu0 0.0
        %5692 = vmatpush1.msra.mxu0 0.0
        %5693 = vmatprep.subr.mxu0 0.0
        %5694 = vmatpush1.msra.mxu0 0.0
        %5695 = vmatprep.subr.mxu0 0.0
        %5696 = vmatpush1.msra.mxu0 0.0
        %5697 = vmatprep.subr.mxu0 0.0
        %5698 = vmatpush1.msra.mxu0 0.0
        %5699 = vmatprep.subr.mxu0 0.0
        %5700 = vmatpush1.msra.mxu0 0.0
        %5701 = vmatprep.subr.mxu0 0.0
        %5702 = vmatpush1.msra.mxu0 0.0
        %5703 = vmatprep.subr.mxu0 0.0
        %5704 = vmatpush1.msra.mxu0 0.0
        %5705 = vmatprep.subr.mxu0 0.0
        %5706 = vmatpush1.msra.mxu0 0.0
        %5707 = vmatprep.subr.mxu0 0.0
        %5708 = vmatpush1.msra.mxu0 0.0
        %5709 = vmatprep.subr.mxu0 0.0
        %5710 = vmatpush1.msra.mxu0 0.0
        %5711 = vmatprep.subr.mxu0 0.0
        %5712 = vmatpush1.msra.mxu0 0.0
        %5713 = vmatprep.subr.mxu0 0.0
        %5714 = vmatpush1.msra.mxu0 0.0
        %5715 = vmatprep.subr.mxu0 0.0
        %5716 = vmatpush1.msra.mxu0 0.0
        %5717 = vmatprep.subr.mxu0 0.0
        %5718 = vmatpush1.msra.mxu0 0.0
        %5719 = vmatprep.subr.mxu0 0.0
        %5720 = vmatpush1.msra.mxu0 0.0
        %5721 = vmatprep.subr.mxu0 0.0
        %5722 = vmatpush1.msra.mxu0 0.0
        %5723 = vmatprep.subr.mxu0 0.0
        %5724 = vmatpush1.msra.mxu0 0.0
        %5725 = vmatprep.subr.mxu0 0.0
        %5726 = vmatpush1.msra.mxu0 0.0
        %5727 = vmatprep.subr.mxu0 0.0
        %5728 = vmatpush1.msra.mxu0 0.0
        %5729 = vmatprep.mubr.f32.mxu0 0.0
        %5730 = vmatmul.mubr.f32.gmra.mrb[0].mxu0 %v5570
        %v5731 = vpop.f32.mrb[0].mxu0
        %v5732 = vadd.f32 0.0, %v5731
        %v5733 = vpop.f32.mrb[0].mxu0
        %5734 = vmatprep.mubr.f32.mxu0 0.0
        %5735 = vmatmul.mubr.f32.gmra.mrb[0].mxu0 %v5573
        %v5736 = vpop.f32.mrb[0].mxu0
        %v5737 = vadd.f32 0.0, %v5736
        %v5738 = vpop.f32.mrb[0].mxu0
        %5739 = vmatprep.mubr.f32.mxu0 0.0
        %5740 = vmatmul.mubr.f32.gmra.mrb[0].mxu0 %v5576
        %v5741 = vpop.f32.mrb[0].mxu0
        %v5742 = vadd.f32 0.0, %v5741
        %v5743 = vpop.f32.mrb[0].mxu0
        %5744 = vmatprep.mubr.f32.mxu0 0.0
        %5745 = vmatmul.mubr.f32.gmra.mrb[0].mxu0 %v5579
        %v5746 = vpop.f32.mrb[0].mxu0
        %v5747 = vadd.f32 0.0, %v5746
        %v5748 = vpop.f32.mrb[0].mxu0
        %5749 = vmatprep.mubr.f32.mxu0 0.0
        %5750 = vmatmul.mubr.f32.gmra.mrb[0].mxu0 %v5582
        %v5751 = vpop.f32.mrb[0].mxu0
        %v5752 = vadd.f32 0.0, %v5751
        %v5753 = vpop.f32.mrb[0].mxu0
        %5754 = vmatprep.mubr.f32.mxu0 0.0
        %5755 = vmatmul.mubr.f32.gmra.mrb[0].mxu0 %v5585
        %v5756 = vpop.f32.mrb[0].mxu0
        %v5757 = vadd.f32 0.0, %v5756
        %v5758 = vpop.f32.mrb[0].mxu0
        %5759 = vmatprep.mubr.f32.mxu0 0.0
        %5760 = vmatmul.mubr.f32.gmra.mrb[0].mxu0 %v5588
        %v5761 = vpop.f32.mrb[0].mxu0
        %v5762 = vadd.f32 0.0, %v5761
        %v5763 = vpop.f32.mrb[0].mxu0
        %5764 = vmatprep.mubr.f32.mxu0 0.0
        %5765 = vmatmul.mubr.f32.gmra.mrb[0].mxu0 %v5591
        %v5766 = vpop.f32.mrb[0].mxu0
        %v5767 = vadd.f32 0.0, %v5766
        %v5768 = vpop.f32.mrb[0].mxu0
        %5769 = vmatprep.mubr.f32.mxu0 0.0
        %5770 = vmatmul.mubr.f32.gmra.mrb[0].mxu0 %v5594
        %v5771 = vpop.f32.mrb[0].mxu0
        %v5772 = vadd.f32 0.0, %v5771
        %v5773 = vpop.f32.mrb[0].mxu0
        %5774 = vmatprep.mubr.f32.mxu0 0.0
        %5775 = vmatmul.mubr.f32.gmra.mrb[0].mxu0 %v5597
        %v5776 = vpop.f32.mrb[0].mxu0
        %v5777 = vadd.f32 0.0, %v5776
        %v5778 = vpop.f32.mrb[0].mxu0
        %5779 = vmatprep.mubr.f32.mxu0 0.0
        %5780 = vmatmul.mubr.f32.gmra.mrb[0].mxu0 %v5600
        %v5781 = vpop.f32.mrb[0].mxu0
        %v5782 = vadd.f32 0.0, %v5781
        %v5783 = vpop.f32.mrb[0].mxu0
        %5784 = vmatprep.mubr.f32.mxu0 0.0
        %5785 = vmatmul.mubr.f32.gmra.mrb[0].mxu0 %v5603
        %v5786 = vpop.f32.mrb[0].mxu0
        %v5787 = vadd.f32 0.0, %v5786
        %v5788 = vpop.f32.mrb[0].mxu0
        %5789 = vmatprep.mubr.f32.mxu0 0.0
        %5790 = vmatmul.mubr.f32.gmra.mrb[0].mxu0 %v5606
        %v5791 = vpop.f32.mrb[0].mxu0
        %v5792 = vadd.f32 0.0, %v5791
        %v5793 = vpop.f32.mrb[0].mxu0
        %5794 = vmatprep.mubr.f32.mxu0 0.0
        %5795 = vmatmul.mubr.f32.gmra.mrb[0].mxu0 %v5609
        %v5796 = vpop.f32.mrb[0].mxu0
        %v5797 = vadd.f32 0.0, %v5796
        %v5798 = vpop.f32.mrb[0].mxu0
        %5799 = vmatprep.mubr.f32.mxu0 0.0
        %5800 = vmatmul.mubr.f32.gmra.mrb[0].mxu0 %v5612
        %v5801 = vpop.f32.mrb[0].mxu0
        %v5802 = vadd.f32 0.0, %v5801
        %v5803 = vpop.f32.mrb[0].mxu0
        %5804 = vmatprep.mubr.f32.mxu0 0.0
        %5805 = vmatmul.mubr.f32.gmra.mrb[0].mxu0 %v5615
        %v5806 = vpop.f32.mrb[0].mxu0
        %v5807 = vadd.f32 0.0, %v5806
        %v5808 = vpop.f32.mrb[0].mxu0
        %5809 = vmatprep.mubr.f32.mxu0 0.0
        %5810 = vmatmul.mubr.f32.gmra.mrb[0].mxu0 %v5618
        %v5811 = vpop.f32.mrb[0].mxu0
        %v5812 = vadd.f32 0.0, %v5811
        %v5813 = vpop.f32.mrb[0].mxu0
        %5814 = vmatprep.mubr.f32.mxu0 0.0
        %5815 = vmatmul.mubr.f32.gmra.mrb[0].mxu0 %v5621
        %v5816 = vpop.f32.mrb[0].mxu0
        %v5817 = vadd.f32 0.0, %v5816
        %v5818 = vpop.f32.mrb[0].mxu0
        %5819 = vmatprep.mubr.f32.mxu0 0.0
        %5820 = vmatmul.mubr.f32.gmra.mrb[0].mxu0 %v5624
        %v5821 = vpop.f32.mrb[0].mxu0
        %v5822 = vadd.f32 0.0, %v5821
        %v5823 = vpop.f32.mrb[0].mxu0
        %5824 = vmatprep.mubr.f32.mxu0 0.0
        %5825 = vmatmul.mubr.f32.gmra.mrb[0].mxu0 %v5627
        %v5826 = vpop.f32.mrb[0].mxu0
        %v5827 = vadd.f32 0.0, %v5826
        %v5828 = vpop.f32.mrb[0].mxu0
        %5829 = vmatprep.mubr.f32.mxu0 0.0
        %5830 = vmatmul.mubr.f32.gmra.mrb[0].mxu0 %v5630
        %v5831 = vpop.f32.mrb[0].mxu0
        %v5832 = vadd.f32 0.0, %v5831
        %v5833 = vpop.f32.mrb[0].mxu0
        %5834 = vmatprep.mubr.f32.mxu0 0.0
        %5835 = vmatmul.mubr.f32.gmra.mrb[0].mxu0 %v5633
        %v5836 = vpop.f32.mrb[0].mxu0
        %v5837 = vadd.f32 0.0, %v5836
        %v5838 = vpop.f32.mrb[0].mxu0
        %5839 = vmatprep.mubr.f32.mxu0 0.0
        %5840 = vmatmul.mubr.f32.gmra.mrb[0].mxu0 %v5636
        %v5841 = vpop.f32.mrb[0].mxu0
        %v5842 = vadd.f32 0.0, %v5841
        %v5843 = vpop.f32.mrb[0].mxu0
        %5844 = vmatprep.mubr.f32.mxu0 0.0
        %5845 = vmatmul.mubr.f32.gmra.mrb[0].mxu0 %v5639
        %v5846 = vpop.f32.mrb[0].mxu0
        %v5847 = vadd.f32 0.0, %v5846
        %v5848 = vpop.f32.mrb[0].mxu0
        %5849 = vmatprep.mubr.f32.mxu0 0.0
        %5850 = vmatmul.mubr.f32.gmra.mrb[0].mxu0 %v5642
        %v5851 = vpop.f32.mrb[0].mxu0
        %v5852 = vadd.f32 0.0, %v5851
        %v5853 = vpop.f32.mrb[0].mxu0
        %5854 = vmatprep.mubr.f32.mxu0 0.0
        %5855 = vmatmul.mubr.f32.gmra.mrb[0].mxu0 %v5645
        %v5856 = vpop.f32.mrb[0].mxu0
        %v5857 = vadd.f32 0.0, %v5856
        %v5858 = vpop.f32.mrb[0].mxu0
        %5859 = vmatprep.mubr.f32.mxu0 0.0
        %5860 = vmatmul.mubr.f32.gmra.mrb[0].mxu0 %v5648
        %v5861 = vpop.f32.mrb[0].mxu0
        %v5862 = vadd.f32 0.0, %v5861
        %v5863 = vpop.f32.mrb[0].mxu0
        %5864 = vmatprep.mubr.f32.mxu0 0.0
        %5865 = vmatmul.mubr.f32.gmra.mrb[0].mxu0 %v5651
        %v5866 = vpop.f32.mrb[0].mxu0
        %v5867 = vadd.f32 0.0, %v5866
        %v5868 = vpop.f32.mrb[0].mxu0
        %5869 = vmatprep.mubr.f32.mxu0 0.0
        %5870 = vmatmul.mubr.f32.gmra.mrb[0].mxu0 %v5654
        %v5871 = vpop.f32.mrb[0].mxu0
        %v5872 = vadd.f32 0.0, %v5871
        %v5873 = vpop.f32.mrb[0].mxu0
        %5874 = vmatprep.mubr.f32.mxu0 0.0
        %5875 = vmatmul.mubr.f32.gmra.mrb[0].mxu0 %v5657
        %v5876 = vpop.f32.mrb[0].mxu0
        %v5877 = vadd.f32 0.0, %v5876
        %v5878 = vpop.f32.mrb[0].mxu0
        %5879 = vmatprep.mubr.f32.mxu0 0.0
        %5880 = vmatmul.mubr.f32.gmra.mrb[0].mxu0 %v5660
        %v5881 = vpop.f32.mrb[0].mxu0
        %v5882 = vadd.f32 0.0, %v5881
        %v5883 = vpop.f32.mrb[0].mxu0
        %5884 = vmatprep.mubr.f32.mxu0 0.0
        %5885 = vmatmul.mubr.f32.gmra.mrb[0].mxu0 %v5663
        %v5886 = vpop.f32.mrb[0].mxu0
        %v5887 = vadd.f32 0.0, %v5886
        %v5888 = vpop.f32.mrb[0].mxu0
        %5889 = vdwg.mxu0
        %v5890 = vadd.f32 %v5500, %v5732
        %v5891 = vadd.f32 %v5501, %v5737
        %v5892 = vadd.f32 %v5502, %v5742
        %v5893 = vadd.f32 %v5503, %v5747
        %v5894 = vadd.f32 %v5504, %v5752
        %v5895 = vadd.f32 %v5505, %v5757
        %v5896 = vadd.f32 %v5506, %v5762
        %v5897 = vadd.f32 %v5507, %v5767
        %v5898 = vadd.f32 %v5508, %v5772
        %v5899 = vadd.f32 %v5509, %v5777
        %v5900 = vadd.f32 %v5510, %v5782
        %v5901 = vadd.f32 %v5511, %v5787
        %v5902 = vadd.f32 %v5512, %v5792
        %v5903 = vadd.f32 %v5513, %v5797
        %v5904 = vadd.f32 %v5514, %v5802
        %v5905 = vadd.f32 %v5515, %v5807
        %v5906 = vadd.f32 %v5516, %v5812
        %v5907 = vadd.f32 %v5517, %v5817
        %v5908 = vadd.f32 %v5518, %v5822
        %v5909 = vadd.f32 %v5519, %v5827
        %v5910 = vadd.f32 %v5520, %v5832
        %v5911 = vadd.f32 %v5521, %v5837
        %v5912 = vadd.f32 %v5522, %v5842
        %v5913 = vadd.f32 %v5523, %v5847
        %v5914 = vadd.f32 %v5524, %v5852
        %v5915 = vadd.f32 %v5525, %v5857
        %v5916 = vadd.f32 %v5526, %v5862
        %v5917 = vadd.f32 %v5527, %v5867
        %v5918 = vadd.f32 %v5528, %v5872
        %v5919 = vadd.f32 %v5529, %v5877
        %v5920 = vadd.f32 %v5530, %v5882
        %v5921 = vadd.f32 %v5531, %v5887
        %v5922 = vld [vmem:[%s4036 + $0x2] sm:$0xff]
        %v5923 = vld [vmem:[%s4036 + $0xa] sm:$0xff]
        %v5924 = vld [vmem:[%s4036 + $0x1a] sm:$0xff]
        %v5925 = vld [vmem:[%s4036 + $0x22] sm:$0xff]
        %v5926 = vld [vmem:[%s4036 + $0x32] sm:$0xff]
        %v5927 = vld [vmem:[%s4036 + $0x3a] sm:$0xff]
        %v5928 = vld [vmem:[%s4036 + $0x4a] sm:$0xff]
        %v5929 = vld [vmem:[%s4036 + $0x52] sm:$0xff]
        %v5930 = vld [vmem:[%s4036 + $0x62] sm:$0xff]
        %v5931 = vld [vmem:[%s4036 + $0x6a] sm:$0xff]
        %v5932 = vld [vmem:[%s4036 + $0x7a] sm:$0xff]
        %v5933 = vld [vmem:[%s4036 + $0x82] sm:$0xff]
        %v5934 = vld [vmem:[%s4036 + $0x92] sm:$0xff]
        %v5935 = vld [vmem:[%s4036 + $0x9a] sm:$0xff]
        %v5936 = vld [vmem:[%s4036 + $0xaa] sm:$0xff]
        %v5937 = vld [vmem:[%s4036 + $0xb2] sm:$0xff]
        %v5938 = vld [vmem:[%s4036 + $0xc2] sm:$0xff]
        %v5939 = vld [vmem:[%s4036 + $0xca] sm:$0xff]
        %v5940 = vld [vmem:[%s4036 + $0xda] sm:$0xff]
        %v5941 = vld [vmem:[%s4036 + $0xe2] sm:$0xff]
        %v5942 = vld [vmem:[%s4036 + $0xf2] sm:$0xff]
        %v5943 = vld [vmem:[%s4036 + $0xfa] sm:$0xff]
        %v5944 = vld [vmem:[%s4036 + $0x10a] sm:$0xff]
        %v5945 = vld [vmem:[%s4036 + $0x112] sm:$0xff]
        %v5946 = vld [vmem:[%s4036 + $0x122] sm:$0xff]
        %v5947 = vld [vmem:[%s4036 + $0x12a] sm:$0xff]
        %v5948 = vld [vmem:[%s4036 + $0x13a] sm:$0xff]
        %v5949 = vld [vmem:[%s4036 + $0x142] sm:$0xff]
        %v5950 = vld [vmem:[%s4036 + $0x152] sm:$0xff]
        %v5951 = vld [vmem:[%s4036 + $0x15a] sm:$0xff]
        %v5952 = vld [vmem:[%s4036 + $0x16a] sm:$0xff]
        %v5953 = vld [vmem:[%s4036 + $0x172] sm:$0xff]
        %s5954 = scalar_lea.vmem %s3, 160
        %v5955 = vld [vmem:[%s5954] sm:$0xff]
        %v5956 = vld [vmem:[%s5954 + $0x8] sm:$0xff]
        %v5957 = vld [vmem:[%s5954 + $0x10] sm:$0xff]
        %v5958 = vld [vmem:[%s5954 + $0x18] sm:$0xff]
        %v5960 = vsel %vm297, %v5922, 0
        %v5963 = vsel %vm297, %v5923, 0
        %v5966 = vsel %vm297, %v5924, 0
        %v5969 = vsel %vm297, %v5925, 0
        %v5972 = vsel %vm297, %v5926, 0
        %v5975 = vsel %vm297, %v5927, 0
        %v5978 = vsel %vm297, %v5928, 0
        %v5981 = vsel %vm297, %v5929, 0
        %v5984 = vsel %vm297, %v5930, 0
        %v5987 = vsel %vm297, %v5931, 0
        %v5990 = vsel %vm297, %v5932, 0
        %v5993 = vsel %vm297, %v5933, 0
        %v5996 = vsel %vm297, %v5934, 0
        %v5999 = vsel %vm297, %v5935, 0
        %v6002 = vsel %vm297, %v5936, 0
        %v6005 = vsel %vm297, %v5937, 0
        %v6008 = vsel %vm297, %v5938, 0
        %v6011 = vsel %vm297, %v5939, 0
        %v6014 = vsel %vm297, %v5940, 0
        %v6017 = vsel %vm297, %v5941, 0
        %v6020 = vsel %vm297, %v5942, 0
        %v6023 = vsel %vm297, %v5943, 0
        %v6026 = vsel %vm297, %v5944, 0
        %v6029 = vsel %vm297, %v5945, 0
        %v6032 = vsel %vm297, %v5946, 0
        %v6035 = vsel %vm297, %v5947, 0
        %v6038 = vsel %vm297, %v5948, 0
        %v6041 = vsel %vm297, %v5949, 0
        %v6044 = vsel %vm297, %v5950, 0
        %v6047 = vsel %vm297, %v5951, 0
        %v6050 = vsel %vm297, %v5952, 0
        %v6053 = vsel %vm297, %v5953, 0
        %6055 = vmatprep.subr.mxu0 0.0
        %6056 = vmatpush1.msra.mxu0 %v5955
        %6057 = vmatprep.subr.mxu0 0.0
        %6058 = vmatpush1.msra.mxu0 %v5956
        %6059 = vmatprep.subr.mxu0 0.0
        %6060 = vmatpush1.msra.mxu0 %v5957
        %6061 = vmatprep.subr.mxu0 0.0
        %6062 = vmatpush1.msra.mxu0 %v5958
        %6063 = vmatprep.subr.mxu0 0.0
        %6064 = vmatpush1.msra.mxu0 0.0
        %6065 = vmatprep.subr.mxu0 0.0
        %6066 = vmatpush1.msra.mxu0 0.0
        %6067 = vmatprep.subr.mxu0 0.0
        %6068 = vmatpush1.msra.mxu0 0.0
        %6069 = vmatprep.subr.mxu0 0.0
        %6070 = vmatpush1.msra.mxu0 0.0
        %6071 = vmatprep.subr.mxu0 0.0
        %6072 = vmatpush1.msra.mxu0 0.0
        %6073 = vmatprep.subr.mxu0 0.0
        %6074 = vmatpush1.msra.mxu0 0.0
        %6075 = vmatprep.subr.mxu0 0.0
        %6076 = vmatpush1.msra.mxu0 0.0
        %6077 = vmatprep.subr.mxu0 0.0
        %6078 = vmatpush1.msra.mxu0 0.0
        %6079 = vmatprep.subr.mxu0 0.0
        %6080 = vmatpush1.msra.mxu0 0.0
        %6081 = vmatprep.subr.mxu0 0.0
        %6082 = vmatpush1.msra.mxu0 0.0
        %6083 = vmatprep.subr.mxu0 0.0
        %6084 = vmatpush1.msra.mxu0 0.0
        %6085 = vmatprep.subr.mxu0 0.0
        %6086 = vmatpush1.msra.mxu0 0.0
        %6087 = vmatprep.subr.mxu0 0.0
        %6088 = vmatpush1.msra.mxu0 0.0
        %6089 = vmatprep.subr.mxu0 0.0
        %6090 = vmatpush1.msra.mxu0 0.0
        %6091 = vmatprep.subr.mxu0 0.0
        %6092 = vmatpush1.msra.mxu0 0.0
        %6093 = vmatprep.subr.mxu0 0.0
        %6094 = vmatpush1.msra.mxu0 0.0
        %6095 = vmatprep.subr.mxu0 0.0
        %6096 = vmatpush1.msra.mxu0 0.0
        %6097 = vmatprep.subr.mxu0 0.0
        %6098 = vmatpush1.msra.mxu0 0.0
        %6099 = vmatprep.subr.mxu0 0.0
        %6100 = vmatpush1.msra.mxu0 0.0
        %6101 = vmatprep.subr.mxu0 0.0
        %6102 = vmatpush1.msra.mxu0 0.0
        %6103 = vmatprep.subr.mxu0 0.0
        %6104 = vmatpush1.msra.mxu0 0.0
        %6105 = vmatprep.subr.mxu0 0.0
        %6106 = vmatpush1.msra.mxu0 0.0
        %6107 = vmatprep.subr.mxu0 0.0
        %6108 = vmatpush1.msra.mxu0 0.0
        %6109 = vmatprep.subr.mxu0 0.0
        %6110 = vmatpush1.msra.mxu0 0.0
        %6111 = vmatprep.subr.mxu0 0.0
        %6112 = vmatpush1.msra.mxu0 0.0
        %6113 = vmatprep.subr.mxu0 0.0
        %6114 = vmatpush1.msra.mxu0 0.0
        %6115 = vmatprep.subr.mxu0 0.0
        %6116 = vmatpush1.msra.mxu0 0.0
        %6117 = vmatprep.subr.mxu0 0.0
        %6118 = vmatpush1.msra.mxu0 0.0
        %6119 = vmatprep.mubr.f32.mxu0 0.0
        %6120 = vmatmul.mubr.f32.gmra.mrb[0].mxu0 %v5960
        %v6121 = vpop.f32.mrb[0].mxu0
        %v6122 = vadd.f32 0.0, %v6121
        %v6123 = vpop.f32.mrb[0].mxu0
        %6124 = vmatprep.mubr.f32.mxu0 0.0
        %6125 = vmatmul.mubr.f32.gmra.mrb[0].mxu0 %v5963
        %v6126 = vpop.f32.mrb[0].mxu0
        %v6127 = vadd.f32 0.0, %v6126
        %v6128 = vpop.f32.mrb[0].mxu0
        %6129 = vmatprep.mubr.f32.mxu0 0.0
        %6130 = vmatmul.mubr.f32.gmra.mrb[0].mxu0 %v5966
        %v6131 = vpop.f32.mrb[0].mxu0
        %v6132 = vadd.f32 0.0, %v6131
        %v6133 = vpop.f32.mrb[0].mxu0
        %6134 = vmatprep.mubr.f32.mxu0 0.0
        %6135 = vmatmul.mubr.f32.gmra.mrb[0].mxu0 %v5969
        %v6136 = vpop.f32.mrb[0].mxu0
        %v6137 = vadd.f32 0.0, %v6136
        %v6138 = vpop.f32.mrb[0].mxu0
        %6139 = vmatprep.mubr.f32.mxu0 0.0
        %6140 = vmatmul.mubr.f32.gmra.mrb[0].mxu0 %v5972
        %v6141 = vpop.f32.mrb[0].mxu0
        %v6142 = vadd.f32 0.0, %v6141
        %v6143 = vpop.f32.mrb[0].mxu0
        %6144 = vmatprep.mubr.f32.mxu0 0.0
        %6145 = vmatmul.mubr.f32.gmra.mrb[0].mxu0 %v5975
        %v6146 = vpop.f32.mrb[0].mxu0
        %v6147 = vadd.f32 0.0, %v6146
        %v6148 = vpop.f32.mrb[0].mxu0
        %6149 = vmatprep.mubr.f32.mxu0 0.0
        %6150 = vmatmul.mubr.f32.gmra.mrb[0].mxu0 %v5978
        %v6151 = vpop.f32.mrb[0].mxu0
        %v6152 = vadd.f32 0.0, %v6151
        %v6153 = vpop.f32.mrb[0].mxu0
        %6154 = vmatprep.mubr.f32.mxu0 0.0
        %6155 = vmatmul.mubr.f32.gmra.mrb[0].mxu0 %v5981
        %v6156 = vpop.f32.mrb[0].mxu0
        %v6157 = vadd.f32 0.0, %v6156
        %v6158 = vpop.f32.mrb[0].mxu0
        %6159 = vmatprep.mubr.f32.mxu0 0.0
        %6160 = vmatmul.mubr.f32.gmra.mrb[0].mxu0 %v5984
        %v6161 = vpop.f32.mrb[0].mxu0
        %v6162 = vadd.f32 0.0, %v6161
        %v6163 = vpop.f32.mrb[0].mxu0
        %6164 = vmatprep.mubr.f32.mxu0 0.0
        %6165 = vmatmul.mubr.f32.gmra.mrb[0].mxu0 %v5987
        %v6166 = vpop.f32.mrb[0].mxu0
        %v6167 = vadd.f32 0.0, %v6166
        %v6168 = vpop.f32.mrb[0].mxu0
        %6169 = vmatprep.mubr.f32.mxu0 0.0
        %6170 = vmatmul.mubr.f32.gmra.mrb[0].mxu0 %v5990
        %v6171 = vpop.f32.mrb[0].mxu0
        %v6172 = vadd.f32 0.0, %v6171
        %v6173 = vpop.f32.mrb[0].mxu0
        %6174 = vmatprep.mubr.f32.mxu0 0.0
        %6175 = vmatmul.mubr.f32.gmra.mrb[0].mxu0 %v5993
        %v6176 = vpop.f32.mrb[0].mxu0
        %v6177 = vadd.f32 0.0, %v6176
        %v6178 = vpop.f32.mrb[0].mxu0
        %6179 = vmatprep.mubr.f32.mxu0 0.0
        %6180 = vmatmul.mubr.f32.gmra.mrb[0].mxu0 %v5996
        %v6181 = vpop.f32.mrb[0].mxu0
        %v6182 = vadd.f32 0.0, %v6181
        %v6183 = vpop.f32.mrb[0].mxu0
        %6184 = vmatprep.mubr.f32.mxu0 0.0
        %6185 = vmatmul.mubr.f32.gmra.mrb[0].mxu0 %v5999
        %v6186 = vpop.f32.mrb[0].mxu0
        %v6187 = vadd.f32 0.0, %v6186
        %v6188 = vpop.f32.mrb[0].mxu0
        %6189 = vmatprep.mubr.f32.mxu0 0.0
        %6190 = vmatmul.mubr.f32.gmra.mrb[0].mxu0 %v6002
        %v6191 = vpop.f32.mrb[0].mxu0
        %v6192 = vadd.f32 0.0, %v6191
        %v6193 = vpop.f32.mrb[0].mxu0
        %6194 = vmatprep.mubr.f32.mxu0 0.0
        %6195 = vmatmul.mubr.f32.gmra.mrb[0].mxu0 %v6005
        %v6196 = vpop.f32.mrb[0].mxu0
        %v6197 = vadd.f32 0.0, %v6196
        %v6198 = vpop.f32.mrb[0].mxu0
        %6199 = vmatprep.mubr.f32.mxu0 0.0
        %6200 = vmatmul.mubr.f32.gmra.mrb[0].mxu0 %v6008
        %v6201 = vpop.f32.mrb[0].mxu0
        %v6202 = vadd.f32 0.0, %v6201
        %v6203 = vpop.f32.mrb[0].mxu0
        %6204 = vmatprep.mubr.f32.mxu0 0.0
        %6205 = vmatmul.mubr.f32.gmra.mrb[0].mxu0 %v6011
        %v6206 = vpop.f32.mrb[0].mxu0
        %v6207 = vadd.f32 0.0, %v6206
        %v6208 = vpop.f32.mrb[0].mxu0
        %6209 = vmatprep.mubr.f32.mxu0 0.0
        %6210 = vmatmul.mubr.f32.gmra.mrb[0].mxu0 %v6014
        %v6211 = vpop.f32.mrb[0].mxu0
        %v6212 = vadd.f32 0.0, %v6211
        %v6213 = vpop.f32.mrb[0].mxu0
        %6214 = vmatprep.mubr.f32.mxu0 0.0
        %6215 = vmatmul.mubr.f32.gmra.mrb[0].mxu0 %v6017
        %v6216 = vpop.f32.mrb[0].mxu0
        %v6217 = vadd.f32 0.0, %v6216
        %v6218 = vpop.f32.mrb[0].mxu0
        %6219 = vmatprep.mubr.f32.mxu0 0.0
        %6220 = vmatmul.mubr.f32.gmra.mrb[0].mxu0 %v6020
        %v6221 = vpop.f32.mrb[0].mxu0
        %v6222 = vadd.f32 0.0, %v6221
        %v6223 = vpop.f32.mrb[0].mxu0
        %6224 = vmatprep.mubr.f32.mxu0 0.0
        %6225 = vmatmul.mubr.f32.gmra.mrb[0].mxu0 %v6023
        %v6226 = vpop.f32.mrb[0].mxu0
        %v6227 = vadd.f32 0.0, %v6226
        %v6228 = vpop.f32.mrb[0].mxu0
        %6229 = vmatprep.mubr.f32.mxu0 0.0
        %6230 = vmatmul.mubr.f32.gmra.mrb[0].mxu0 %v6026
        %v6231 = vpop.f32.mrb[0].mxu0
        %v6232 = vadd.f32 0.0, %v6231
        %v6233 = vpop.f32.mrb[0].mxu0
        %6234 = vmatprep.mubr.f32.mxu0 0.0
        %6235 = vmatmul.mubr.f32.gmra.mrb[0].mxu0 %v6029
        %v6236 = vpop.f32.mrb[0].mxu0
        %v6237 = vadd.f32 0.0, %v6236
        %v6238 = vpop.f32.mrb[0].mxu0
        %6239 = vmatprep.mubr.f32.mxu0 0.0
        %6240 = vmatmul.mubr.f32.gmra.mrb[0].mxu0 %v6032
        %v6241 = vpop.f32.mrb[0].mxu0
        %v6242 = vadd.f32 0.0, %v6241
        %v6243 = vpop.f32.mrb[0].mxu0
        %6244 = vmatprep.mubr.f32.mxu0 0.0
        %6245 = vmatmul.mubr.f32.gmra.mrb[0].mxu0 %v6035
        %v6246 = vpop.f32.mrb[0].mxu0
        %v6247 = vadd.f32 0.0, %v6246
        %v6248 = vpop.f32.mrb[0].mxu0
        %6249 = vmatprep.mubr.f32.mxu0 0.0
        %6250 = vmatmul.mubr.f32.gmra.mrb[0].mxu0 %v6038
        %v6251 = vpop.f32.mrb[0].mxu0
        %v6252 = vadd.f32 0.0, %v6251
        %v6253 = vpop.f32.mrb[0].mxu0
        %6254 = vmatprep.mubr.f32.mxu0 0.0
        %6255 = vmatmul.mubr.f32.gmra.mrb[0].mxu0 %v6041
        %v6256 = vpop.f32.mrb[0].mxu0
        %v6257 = vadd.f32 0.0, %v6256
        %v6258 = vpop.f32.mrb[0].mxu0
        %6259 = vmatprep.mubr.f32.mxu0 0.0
        %6260 = vmatmul.mubr.f32.gmra.mrb[0].mxu0 %v6044
        %v6261 = vpop.f32.mrb[0].mxu0
        %v6262 = vadd.f32 0.0, %v6261
        %v6263 = vpop.f32.mrb[0].mxu0
        %6264 = vmatprep.mubr.f32.mxu0 0.0
        %6265 = vmatmul.mubr.f32.gmra.mrb[0].mxu0 %v6047
        %v6266 = vpop.f32.mrb[0].mxu0
        %v6267 = vadd.f32 0.0, %v6266
        %v6268 = vpop.f32.mrb[0].mxu0
        %6269 = vmatprep.mubr.f32.mxu0 0.0
        %6270 = vmatmul.mubr.f32.gmra.mrb[0].mxu0 %v6050
        %v6271 = vpop.f32.mrb[0].mxu0
        %v6272 = vadd.f32 0.0, %v6271
        %v6273 = vpop.f32.mrb[0].mxu0
        %6274 = vmatprep.mubr.f32.mxu0 0.0
        %6275 = vmatmul.mubr.f32.gmra.mrb[0].mxu0 %v6053
        %v6276 = vpop.f32.mrb[0].mxu0
        %v6277 = vadd.f32 0.0, %v6276
        %v6278 = vpop.f32.mrb[0].mxu0
        %6279 = vdwg.mxu0
        %v6280 = vadd.f32 %v5890, %v6122
        %v6281 = vadd.f32 %v5891, %v6127
        %v6282 = vadd.f32 %v5892, %v6132
        %v6283 = vadd.f32 %v5893, %v6137
        %v6284 = vadd.f32 %v5894, %v6142
        %v6285 = vadd.f32 %v5895, %v6147
        %v6286 = vadd.f32 %v5896, %v6152
        %v6287 = vadd.f32 %v5897, %v6157
        %v6288 = vadd.f32 %v5898, %v6162
        %v6289 = vadd.f32 %v5899, %v6167
        %v6290 = vadd.f32 %v5900, %v6172
        %v6291 = vadd.f32 %v5901, %v6177
        %v6292 = vadd.f32 %v5902, %v6182
        %v6293 = vadd.f32 %v5903, %v6187
        %v6294 = vadd.f32 %v5904, %v6192
        %v6295 = vadd.f32 %v5905, %v6197
        %v6296 = vadd.f32 %v5906, %v6202
        %v6297 = vadd.f32 %v5907, %v6207
        %v6298 = vadd.f32 %v5908, %v6212
        %v6299 = vadd.f32 %v5909, %v6217
        %v6300 = vadd.f32 %v5910, %v6222
        %v6301 = vadd.f32 %v5911, %v6227
        %v6302 = vadd.f32 %v5912, %v6232
        %v6303 = vadd.f32 %v5913, %v6237
        %v6304 = vadd.f32 %v5914, %v6242
        %v6305 = vadd.f32 %v5915, %v6247
        %v6306 = vadd.f32 %v5916, %v6252
        %v6307 = vadd.f32 %v5917, %v6257
        %v6308 = vadd.f32 %v5918, %v6262
        %v6309 = vadd.f32 %v5919, %v6267
        %v6310 = vadd.f32 %v5920, %v6272
        %v6311 = vadd.f32 %v5921, %v6277
        %s6312 = scalar_lea.vmem [#allocation2], 48
        %v6313 = vld [vmem:[%s6312] sm:$0xff]
        %v6314 = vld [vmem:[%s6312 + $0x8] sm:$0xff]
        %v6315 = vld [vmem:[%s6312 + $0x18] sm:$0xff]
        %v6316 = vld [vmem:[%s6312 + $0x20] sm:$0xff]
        %v6317 = vld [vmem:[%s6312 + $0x30] sm:$0xff]
        %v6318 = vld [vmem:[%s6312 + $0x38] sm:$0xff]
        %v6319 = vld [vmem:[%s6312 + $0x48] sm:$0xff]
        %v6320 = vld [vmem:[%s6312 + $0x50] sm:$0xff]
        %v6321 = vld [vmem:[%s6312 + $0x60] sm:$0xff]
        %v6322 = vld [vmem:[%s6312 + $0x68] sm:$0xff]
        %v6323 = vld [vmem:[%s6312 + $0x78] sm:$0xff]
        %v6324 = vld [vmem:[%s6312 + $0x80] sm:$0xff]
        %v6325 = vld [vmem:[%s6312 + $0x90] sm:$0xff]
        %v6326 = vld [vmem:[%s6312 + $0x98] sm:$0xff]
        %v6327 = vld [vmem:[%s6312 + $0xa8] sm:$0xff]
        %v6328 = vld [vmem:[%s6312 + $0xb0] sm:$0xff]
        %v6329 = vld [vmem:[%s6312 + $0xc0] sm:$0xff]
        %v6330 = vld [vmem:[%s6312 + $0xc8] sm:$0xff]
        %v6331 = vld [vmem:[%s6312 + $0xd8] sm:$0xff]
        %v6332 = vld [vmem:[%s6312 + $0xe0] sm:$0xff]
        %v6333 = vld [vmem:[%s6312 + $0xf0] sm:$0xff]
        %v6334 = vld [vmem:[%s6312 + $0xf8] sm:$0xff]
        %v6335 = vld [vmem:[%s6312 + $0x108] sm:$0xff]
        %v6336 = vld [vmem:[%s6312 + $0x110] sm:$0xff]
        %v6337 = vld [vmem:[%s6312 + $0x120] sm:$0xff]
        %v6338 = vld [vmem:[%s6312 + $0x128] sm:$0xff]
        %v6339 = vld [vmem:[%s6312 + $0x138] sm:$0xff]
        %v6340 = vld [vmem:[%s6312 + $0x140] sm:$0xff]
        %v6341 = vld [vmem:[%s6312 + $0x150] sm:$0xff]
        %v6342 = vld [vmem:[%s6312 + $0x158] sm:$0xff]
        %v6343 = vld [vmem:[%s6312 + $0x168] sm:$0xff]
        %v6344 = vld [vmem:[%s6312 + $0x170] sm:$0xff]
        %s6345 = scalar_lea.vmem %s3, 192
        %v6346 = vld [vmem:[%s6345] sm:$0xff]
        %v6347 = vld [vmem:[%s6345 + $0x8] sm:$0xff]
        %v6348 = vld [vmem:[%s6345 + $0x10] sm:$0xff]
        %v6349 = vld [vmem:[%s6345 + $0x18] sm:$0xff]
        %v6351 = vsel %vm297, %v6313, 0
        %v6354 = vsel %vm297, %v6314, 0
        %v6357 = vsel %vm297, %v6315, 0
        %v6360 = vsel %vm297, %v6316, 0
        %v6363 = vsel %vm297, %v6317, 0
        %v6366 = vsel %vm297, %v6318, 0
        %v6369 = vsel %vm297, %v6319, 0
        %v6372 = vsel %vm297, %v6320, 0
        %v6375 = vsel %vm297, %v6321, 0
        %v6378 = vsel %vm297, %v6322, 0
        %v6381 = vsel %vm297, %v6323, 0
        %v6384 = vsel %vm297, %v6324, 0
        %v6387 = vsel %vm297, %v6325, 0
        %v6390 = vsel %vm297, %v6326, 0
        %v6393 = vsel %vm297, %v6327, 0
        %v6396 = vsel %vm297, %v6328, 0
        %v6399 = vsel %vm297, %v6329, 0
        %v6402 = vsel %vm297, %v6330, 0
        %v6405 = vsel %vm297, %v6331, 0
        %v6408 = vsel %vm297, %v6332, 0
        %v6411 = vsel %vm297, %v6333, 0
        %v6414 = vsel %vm297, %v6334, 0
        %v6417 = vsel %vm297, %v6335, 0
        %v6420 = vsel %vm297, %v6336, 0
        %v6423 = vsel %vm297, %v6337, 0
        %v6426 = vsel %vm297, %v6338, 0
        %v6429 = vsel %vm297, %v6339, 0
        %v6432 = vsel %vm297, %v6340, 0
        %v6435 = vsel %vm297, %v6341, 0
        %v6438 = vsel %vm297, %v6342, 0
        %v6441 = vsel %vm297, %v6343, 0
        %v6444 = vsel %vm297, %v6344, 0
        %6446 = vmatprep.subr.mxu0 0.0
        %6447 = vmatpush1.msra.mxu0 %v6346
        %6448 = vmatprep.subr.mxu0 0.0
        %6449 = vmatpush1.msra.mxu0 %v6347
        %6450 = vmatprep.subr.mxu0 0.0
        %6451 = vmatpush1.msra.mxu0 %v6348
        %6452 = vmatprep.subr.mxu0 0.0
        %6453 = vmatpush1.msra.mxu0 %v6349
        %6454 = vmatprep.subr.mxu0 0.0
        %6455 = vmatpush1.msra.mxu0 0.0
        %6456 = vmatprep.subr.mxu0 0.0
        %6457 = vmatpush1.msra.mxu0 0.0
        %6458 = vmatprep.subr.mxu0 0.0
        %6459 = vmatpush1.msra.mxu0 0.0
        %6460 = vmatprep.subr.mxu0 0.0
        %6461 = vmatpush1.msra.mxu0 0.0
        %6462 = vmatprep.subr.mxu0 0.0
        %6463 = vmatpush1.msra.mxu0 0.0
        %6464 = vmatprep.subr.mxu0 0.0
        %6465 = vmatpush1.msra.mxu0 0.0
        %6466 = vmatprep.subr.mxu0 0.0
        %6467 = vmatpush1.msra.mxu0 0.0
        %6468 = vmatprep.subr.mxu0 0.0
        %6469 = vmatpush1.msra.mxu0 0.0
        %6470 = vmatprep.subr.mxu0 0.0
        %6471 = vmatpush1.msra.mxu0 0.0
        %6472 = vmatprep.subr.mxu0 0.0
        %6473 = vmatpush1.msra.mxu0 0.0
        %6474 = vmatprep.subr.mxu0 0.0
        %6475 = vmatpush1.msra.mxu0 0.0
        %6476 = vmatprep.subr.mxu0 0.0
        %6477 = vmatpush1.msra.mxu0 0.0
        %6478 = vmatprep.subr.mxu0 0.0
        %6479 = vmatpush1.msra.mxu0 0.0
        %6480 = vmatprep.subr.mxu0 0.0
        %6481 = vmatpush1.msra.mxu0 0.0
        %6482 = vmatprep.subr.mxu0 0.0
        %6483 = vmatpush1.msra.mxu0 0.0
        %6484 = vmatprep.subr.mxu0 0.0
        %6485 = vmatpush1.msra.mxu0 0.0
        %6486 = vmatprep.subr.mxu0 0.0
        %6487 = vmatpush1.msra.mxu0 0.0
        %6488 = vmatprep.subr.mxu0 0.0
        %6489 = vmatpush1.msra.mxu0 0.0
        %6490 = vmatprep.subr.mxu0 0.0
        %6491 = vmatpush1.msra.mxu0 0.0
        %6492 = vmatprep.subr.mxu0 0.0
        %6493 = vmatpush1.msra.mxu0 0.0
        %6494 = vmatprep.subr.mxu0 0.0
        %6495 = vmatpush1.msra.mxu0 0.0
        %6496 = vmatprep.subr.mxu0 0.0
        %6497 = vmatpush1.msra.mxu0 0.0
        %6498 = vmatprep.subr.mxu0 0.0
        %6499 = vmatpush1.msra.mxu0 0.0
        %6500 = vmatprep.subr.mxu0 0.0
        %6501 = vmatpush1.msra.mxu0 0.0
        %6502 = vmatprep.subr.mxu0 0.0
        %6503 = vmatpush1.msra.mxu0 0.0
        %6504 = vmatprep.subr.mxu0 0.0
        %6505 = vmatpush1.msra.mxu0 0.0
        %6506 = vmatprep.subr.mxu0 0.0
        %6507 = vmatpush1.msra.mxu0 0.0
        %6508 = vmatprep.subr.mxu0 0.0
        %6509 = vmatpush1.msra.mxu0 0.0
        %6510 = vmatprep.mubr.f32.mxu0 0.0
        %6511 = vmatmul.mubr.f32.gmra.mrb[0].mxu0 %v6351
        %v6512 = vpop.f32.mrb[0].mxu0
        %v6513 = vadd.f32 0.0, %v6512
        %v6514 = vpop.f32.mrb[0].mxu0
        %6515 = vmatprep.mubr.f32.mxu0 0.0
        %6516 = vmatmul.mubr.f32.gmra.mrb[0].mxu0 %v6354
        %v6517 = vpop.f32.mrb[0].mxu0
        %v6518 = vadd.f32 0.0, %v6517
        %v6519 = vpop.f32.mrb[0].mxu0
        %6520 = vmatprep.mubr.f32.mxu0 0.0
        %6521 = vmatmul.mubr.f32.gmra.mrb[0].mxu0 %v6357
        %v6522 = vpop.f32.mrb[0].mxu0
        %v6523 = vadd.f32 0.0, %v6522
        %v6524 = vpop.f32.mrb[0].mxu0
        %6525 = vmatprep.mubr.f32.mxu0 0.0
        %6526 = vmatmul.mubr.f32.gmra.mrb[0].mxu0 %v6360
        %v6527 = vpop.f32.mrb[0].mxu0
        %v6528 = vadd.f32 0.0, %v6527
        %v6529 = vpop.f32.mrb[0].mxu0
        %6530 = vmatprep.mubr.f32.mxu0 0.0
        %6531 = vmatmul.mubr.f32.gmra.mrb[0].mxu0 %v6363
        %v6532 = vpop.f32.mrb[0].mxu0
        %v6533 = vadd.f32 0.0, %v6532
        %v6534 = vpop.f32.mrb[0].mxu0
        %6535 = vmatprep.mubr.f32.mxu0 0.0
        %6536 = vmatmul.mubr.f32.gmra.mrb[0].mxu0 %v6366
        %v6537 = vpop.f32.mrb[0].mxu0
        %v6538 = vadd.f32 0.0, %v6537
        %v6539 = vpop.f32.mrb[0].mxu0
        %6540 = vmatprep.mubr.f32.mxu0 0.0
        %6541 = vmatmul.mubr.f32.gmra.mrb[0].mxu0 %v6369
        %v6542 = vpop.f32.mrb[0].mxu0
        %v6543 = vadd.f32 0.0, %v6542
        %v6544 = vpop.f32.mrb[0].mxu0
        %6545 = vmatprep.mubr.f32.mxu0 0.0
        %6546 = vmatmul.mubr.f32.gmra.mrb[0].mxu0 %v6372
        %v6547 = vpop.f32.mrb[0].mxu0
        %v6548 = vadd.f32 0.0, %v6547
        %v6549 = vpop.f32.mrb[0].mxu0
        %6550 = vmatprep.mubr.f32.mxu0 0.0
        %6551 = vmatmul.mubr.f32.gmra.mrb[0].mxu0 %v6375
        %v6552 = vpop.f32.mrb[0].mxu0
        %v6553 = vadd.f32 0.0, %v6552
        %v6554 = vpop.f32.mrb[0].mxu0
        %6555 = vmatprep.mubr.f32.mxu0 0.0
        %6556 = vmatmul.mubr.f32.gmra.mrb[0].mxu0 %v6378
        %v6557 = vpop.f32.mrb[0].mxu0
        %v6558 = vadd.f32 0.0, %v6557
        %v6559 = vpop.f32.mrb[0].mxu0
        %6560 = vmatprep.mubr.f32.mxu0 0.0
        %6561 = vmatmul.mubr.f32.gmra.mrb[0].mxu0 %v6381
        %v6562 = vpop.f32.mrb[0].mxu0
        %v6563 = vadd.f32 0.0, %v6562
        %v6564 = vpop.f32.mrb[0].mxu0
        %6565 = vmatprep.mubr.f32.mxu0 0.0
        %6566 = vmatmul.mubr.f32.gmra.mrb[0].mxu0 %v6384
        %v6567 = vpop.f32.mrb[0].mxu0
        %v6568 = vadd.f32 0.0, %v6567
        %v6569 = vpop.f32.mrb[0].mxu0
        %6570 = vmatprep.mubr.f32.mxu0 0.0
        %6571 = vmatmul.mubr.f32.gmra.mrb[0].mxu0 %v6387
        %v6572 = vpop.f32.mrb[0].mxu0
        %v6573 = vadd.f32 0.0, %v6572
        %v6574 = vpop.f32.mrb[0].mxu0
        %6575 = vmatprep.mubr.f32.mxu0 0.0
        %6576 = vmatmul.mubr.f32.gmra.mrb[0].mxu0 %v6390
        %v6577 = vpop.f32.mrb[0].mxu0
        %v6578 = vadd.f32 0.0, %v6577
        %v6579 = vpop.f32.mrb[0].mxu0
        %6580 = vmatprep.mubr.f32.mxu0 0.0
        %6581 = vmatmul.mubr.f32.gmra.mrb[0].mxu0 %v6393
        %v6582 = vpop.f32.mrb[0].mxu0
        %v6583 = vadd.f32 0.0, %v6582
        %v6584 = vpop.f32.mrb[0].mxu0
        %6585 = vmatprep.mubr.f32.mxu0 0.0
        %6586 = vmatmul.mubr.f32.gmra.mrb[0].mxu0 %v6396
        %v6587 = vpop.f32.mrb[0].mxu0
        %v6588 = vadd.f32 0.0, %v6587
        %v6589 = vpop.f32.mrb[0].mxu0
        %6590 = vmatprep.mubr.f32.mxu0 0.0
        %6591 = vmatmul.mubr.f32.gmra.mrb[0].mxu0 %v6399
        %v6592 = vpop.f32.mrb[0].mxu0
        %v6593 = vadd.f32 0.0, %v6592
        %v6594 = vpop.f32.mrb[0].mxu0
        %6595 = vmatprep.mubr.f32.mxu0 0.0
        %6596 = vmatmul.mubr.f32.gmra.mrb[0].mxu0 %v6402
        %v6597 = vpop.f32.mrb[0].mxu0
        %v6598 = vadd.f32 0.0, %v6597
        %v6599 = vpop.f32.mrb[0].mxu0
        %6600 = vmatprep.mubr.f32.mxu0 0.0
        %6601 = vmatmul.mubr.f32.gmra.mrb[0].mxu0 %v6405
        %v6602 = vpop.f32.mrb[0].mxu0
        %v6603 = vadd.f32 0.0, %v6602
        %v6604 = vpop.f32.mrb[0].mxu0
        %6605 = vmatprep.mubr.f32.mxu0 0.0
        %6606 = vmatmul.mubr.f32.gmra.mrb[0].mxu0 %v6408
        %v6607 = vpop.f32.mrb[0].mxu0
        %v6608 = vadd.f32 0.0, %v6607
        %v6609 = vpop.f32.mrb[0].mxu0
        %6610 = vmatprep.mubr.f32.mxu0 0.0
        %6611 = vmatmul.mubr.f32.gmra.mrb[0].mxu0 %v6411
        %v6612 = vpop.f32.mrb[0].mxu0
        %v6613 = vadd.f32 0.0, %v6612
        %v6614 = vpop.f32.mrb[0].mxu0
        %6615 = vmatprep.mubr.f32.mxu0 0.0
        %6616 = vmatmul.mubr.f32.gmra.mrb[0].mxu0 %v6414
        %v6617 = vpop.f32.mrb[0].mxu0
        %v6618 = vadd.f32 0.0, %v6617
        %v6619 = vpop.f32.mrb[0].mxu0
        %6620 = vmatprep.mubr.f32.mxu0 0.0
        %6621 = vmatmul.mubr.f32.gmra.mrb[0].mxu0 %v6417
        %v6622 = vpop.f32.mrb[0].mxu0
        %v6623 = vadd.f32 0.0, %v6622
        %v6624 = vpop.f32.mrb[0].mxu0
        %6625 = vmatprep.mubr.f32.mxu0 0.0
        %6626 = vmatmul.mubr.f32.gmra.mrb[0].mxu0 %v6420
        %v6627 = vpop.f32.mrb[0].mxu0
        %v6628 = vadd.f32 0.0, %v6627
        %v6629 = vpop.f32.mrb[0].mxu0
        %6630 = vmatprep.mubr.f32.mxu0 0.0
        %6631 = vmatmul.mubr.f32.gmra.mrb[0].mxu0 %v6423
        %v6632 = vpop.f32.mrb[0].mxu0
        %v6633 = vadd.f32 0.0, %v6632
        %v6634 = vpop.f32.mrb[0].mxu0
        %6635 = vmatprep.mubr.f32.mxu0 0.0
        %6636 = vmatmul.mubr.f32.gmra.mrb[0].mxu0 %v6426
        %v6637 = vpop.f32.mrb[0].mxu0
        %v6638 = vadd.f32 0.0, %v6637
        %v6639 = vpop.f32.mrb[0].mxu0
        %6640 = vmatprep.mubr.f32.mxu0 0.0
        %6641 = vmatmul.mubr.f32.gmra.mrb[0].mxu0 %v6429
        %v6642 = vpop.f32.mrb[0].mxu0
        %v6643 = vadd.f32 0.0, %v6642
        %v6644 = vpop.f32.mrb[0].mxu0
        %6645 = vmatprep.mubr.f32.mxu0 0.0
        %6646 = vmatmul.mubr.f32.gmra.mrb[0].mxu0 %v6432
        %v6647 = vpop.f32.mrb[0].mxu0
        %v6648 = vadd.f32 0.0, %v6647
        %v6649 = vpop.f32.mrb[0].mxu0
        %6650 = vmatprep.mubr.f32.mxu0 0.0
        %6651 = vmatmul.mubr.f32.gmra.mrb[0].mxu0 %v6435
        %v6652 = vpop.f32.mrb[0].mxu0
        %v6653 = vadd.f32 0.0, %v6652
        %v6654 = vpop.f32.mrb[0].mxu0
        %6655 = vmatprep.mubr.f32.mxu0 0.0
        %6656 = vmatmul.mubr.f32.gmra.mrb[0].mxu0 %v6438
        %v6657 = vpop.f32.mrb[0].mxu0
        %v6658 = vadd.f32 0.0, %v6657
        %v6659 = vpop.f32.mrb[0].mxu0
        %6660 = vmatprep.mubr.f32.mxu0 0.0
        %6661 = vmatmul.mubr.f32.gmra.mrb[0].mxu0 %v6441
        %v6662 = vpop.f32.mrb[0].mxu0
        %v6663 = vadd.f32 0.0, %v6662
        %v6664 = vpop.f32.mrb[0].mxu0
        %6665 = vmatprep.mubr.f32.mxu0 0.0
        %6666 = vmatmul.mubr.f32.gmra.mrb[0].mxu0 %v6444
        %v6667 = vpop.f32.mrb[0].mxu0
        %v6668 = vadd.f32 0.0, %v6667
        %v6669 = vpop.f32.mrb[0].mxu0
        %6670 = vdwg.mxu0
        %v6671 = vadd.f32 %v6280, %v6513
        %v6672 = vadd.f32 %v6281, %v6518
        %v6673 = vadd.f32 %v6282, %v6523
        %v6674 = vadd.f32 %v6283, %v6528
        %v6675 = vadd.f32 %v6284, %v6533
        %v6676 = vadd.f32 %v6285, %v6538
        %v6677 = vadd.f32 %v6286, %v6543
        %v6678 = vadd.f32 %v6287, %v6548
        %v6679 = vadd.f32 %v6288, %v6553
        %v6680 = vadd.f32 %v6289, %v6558
        %v6681 = vadd.f32 %v6290, %v6563
        %v6682 = vadd.f32 %v6291, %v6568
        %v6683 = vadd.f32 %v6292, %v6573
        %v6684 = vadd.f32 %v6293, %v6578
        %v6685 = vadd.f32 %v6294, %v6583
        %v6686 = vadd.f32 %v6295, %v6588
        %v6687 = vadd.f32 %v6296, %v6593
        %v6688 = vadd.f32 %v6297, %v6598
        %v6689 = vadd.f32 %v6298, %v6603
        %v6690 = vadd.f32 %v6299, %v6608
        %v6691 = vadd.f32 %v6300, %v6613
        %v6692 = vadd.f32 %v6301, %v6618
        %v6693 = vadd.f32 %v6302, %v6623
        %v6694 = vadd.f32 %v6303, %v6628
        %v6695 = vadd.f32 %v6304, %v6633
        %v6696 = vadd.f32 %v6305, %v6638
        %v6697 = vadd.f32 %v6306, %v6643
        %v6698 = vadd.f32 %v6307, %v6648
        %v6699 = vadd.f32 %v6308, %v6653
        %v6700 = vadd.f32 %v6309, %v6658
        %v6701 = vadd.f32 %v6310, %v6663
        %v6702 = vadd.f32 %v6311, %v6668
        %v6703 = vld [vmem:[%s6312 + $0x1] sm:$0xff]
        %v6704 = vld [vmem:[%s6312 + $0x9] sm:$0xff]
        %v6705 = vld [vmem:[%s6312 + $0x19] sm:$0xff]
        %v6706 = vld [vmem:[%s6312 + $0x21] sm:$0xff]
        %v6707 = vld [vmem:[%s6312 + $0x31] sm:$0xff]
        %v6708 = vld [vmem:[%s6312 + $0x39] sm:$0xff]
        %v6709 = vld [vmem:[%s6312 + $0x49] sm:$0xff]
        %v6710 = vld [vmem:[%s6312 + $0x51] sm:$0xff]
        %v6711 = vld [vmem:[%s6312 + $0x61] sm:$0xff]
        %v6712 = vld [vmem:[%s6312 + $0x69] sm:$0xff]
        %v6713 = vld [vmem:[%s6312 + $0x79] sm:$0xff]
        %v6714 = vld [vmem:[%s6312 + $0x81] sm:$0xff]
        %v6715 = vld [vmem:[%s6312 + $0x91] sm:$0xff]
        %v6716 = vld [vmem:[%s6312 + $0x99] sm:$0xff]
        %v6717 = vld [vmem:[%s6312 + $0xa9] sm:$0xff]
        %v6718 = vld [vmem:[%s6312 + $0xb1] sm:$0xff]
        %v6719 = vld [vmem:[%s6312 + $0xc1] sm:$0xff]
        %v6720 = vld [vmem:[%s6312 + $0xc9] sm:$0xff]
        %v6721 = vld [vmem:[%s6312 + $0xd9] sm:$0xff]
        %v6722 = vld [vmem:[%s6312 + $0xe1] sm:$0xff]
        %v6723 = vld [vmem:[%s6312 + $0xf1] sm:$0xff]
        %v6724 = vld [vmem:[%s6312 + $0xf9] sm:$0xff]
        %v6725 = vld [vmem:[%s6312 + $0x109] sm:$0xff]
        %v6726 = vld [vmem:[%s6312 + $0x111] sm:$0xff]
        %v6727 = vld [vmem:[%s6312 + $0x121] sm:$0xff]
        %v6728 = vld [vmem:[%s6312 + $0x129] sm:$0xff]
        %v6729 = vld [vmem:[%s6312 + $0x139] sm:$0xff]
        %v6730 = vld [vmem:[%s6312 + $0x141] sm:$0xff]
        %v6731 = vld [vmem:[%s6312 + $0x151] sm:$0xff]
        %v6732 = vld [vmem:[%s6312 + $0x159] sm:$0xff]
        %v6733 = vld [vmem:[%s6312 + $0x169] sm:$0xff]
        %v6734 = vld [vmem:[%s6312 + $0x171] sm:$0xff]
        %s6735 = scalar_lea.vmem %s3, 224
        %v6736 = vld [vmem:[%s6735] sm:$0xff]
        %v6737 = vld [vmem:[%s6735 + $0x8] sm:$0xff]
        %v6738 = vld [vmem:[%s6735 + $0x10] sm:$0xff]
        %v6739 = vld [vmem:[%s6735 + $0x18] sm:$0xff]
        %v6741 = vsel %vm297, %v6703, 0
        %v6744 = vsel %vm297, %v6704, 0
        %v6747 = vsel %vm297, %v6705, 0
        %v6750 = vsel %vm297, %v6706, 0
        %v6753 = vsel %vm297, %v6707, 0
        %v6756 = vsel %vm297, %v6708, 0
        %v6759 = vsel %vm297, %v6709, 0
        %v6762 = vsel %vm297, %v6710, 0
        %v6765 = vsel %vm297, %v6711, 0
        %v6768 = vsel %vm297, %v6712, 0
        %v6771 = vsel %vm297, %v6713, 0
        %v6774 = vsel %vm297, %v6714, 0
        %v6777 = vsel %vm297, %v6715, 0
        %v6780 = vsel %vm297, %v6716, 0
        %v6783 = vsel %vm297, %v6717, 0
        %v6786 = vsel %vm297, %v6718, 0
        %v6789 = vsel %vm297, %v6719, 0
        %v6792 = vsel %vm297, %v6720, 0
        %v6795 = vsel %vm297, %v6721, 0
        %v6798 = vsel %vm297, %v6722, 0
        %v6801 = vsel %vm297, %v6723, 0
        %v6804 = vsel %vm297, %v6724, 0
        %v6807 = vsel %vm297, %v6725, 0
        %v6810 = vsel %vm297, %v6726, 0
        %v6813 = vsel %vm297, %v6727, 0
        %v6816 = vsel %vm297, %v6728, 0
        %v6819 = vsel %vm297, %v6729, 0
        %v6822 = vsel %vm297, %v6730, 0
        %v6825 = vsel %vm297, %v6731, 0
        %v6828 = vsel %vm297, %v6732, 0
        %v6831 = vsel %vm297, %v6733, 0
        %v6834 = vsel %vm297, %v6734, 0
        %6836 = vmatprep.subr.mxu0 0.0
        %6837 = vmatpush1.msra.mxu0 %v6736
        %6838 = vmatprep.subr.mxu0 0.0
        %6839 = vmatpush1.msra.mxu0 %v6737
        %6840 = vmatprep.subr.mxu0 0.0
        %6841 = vmatpush1.msra.mxu0 %v6738
        %6842 = vmatprep.subr.mxu0 0.0
        %6843 = vmatpush1.msra.mxu0 %v6739
        %6844 = vmatprep.subr.mxu0 0.0
        %6845 = vmatpush1.msra.mxu0 0.0
        %6846 = vmatprep.subr.mxu0 0.0
        %6847 = vmatpush1.msra.mxu0 0.0
        %6848 = vmatprep.subr.mxu0 0.0
        %6849 = vmatpush1.msra.mxu0 0.0
        %6850 = vmatprep.subr.mxu0 0.0
        %6851 = vmatpush1.msra.mxu0 0.0
        %6852 = vmatprep.subr.mxu0 0.0
        %6853 = vmatpush1.msra.mxu0 0.0
        %6854 = vmatprep.subr.mxu0 0.0
        %6855 = vmatpush1.msra.mxu0 0.0
        %6856 = vmatprep.subr.mxu0 0.0
        %6857 = vmatpush1.msra.mxu0 0.0
        %6858 = vmatprep.subr.mxu0 0.0
        %6859 = vmatpush1.msra.mxu0 0.0
        %6860 = vmatprep.subr.mxu0 0.0
        %6861 = vmatpush1.msra.mxu0 0.0
        %6862 = vmatprep.subr.mxu0 0.0
        %6863 = vmatpush1.msra.mxu0 0.0
        %6864 = vmatprep.subr.mxu0 0.0
        %6865 = vmatpush1.msra.mxu0 0.0
        %6866 = vmatprep.subr.mxu0 0.0
        %6867 = vmatpush1.msra.mxu0 0.0
        %6868 = vmatprep.subr.mxu0 0.0
        %6869 = vmatpush1.msra.mxu0 0.0
        %6870 = vmatprep.subr.mxu0 0.0
        %6871 = vmatpush1.msra.mxu0 0.0
        %6872 = vmatprep.subr.mxu0 0.0
        %6873 = vmatpush1.msra.mxu0 0.0
        %6874 = vmatprep.subr.mxu0 0.0
        %6875 = vmatpush1.msra.mxu0 0.0
        %6876 = vmatprep.subr.mxu0 0.0
        %6877 = vmatpush1.msra.mxu0 0.0
        %6878 = vmatprep.subr.mxu0 0.0
        %6879 = vmatpush1.msra.mxu0 0.0
        %6880 = vmatprep.subr.mxu0 0.0
        %6881 = vmatpush1.msra.mxu0 0.0
        %6882 = vmatprep.subr.mxu0 0.0
        %6883 = vmatpush1.msra.mxu0 0.0
        %6884 = vmatprep.subr.mxu0 0.0
        %6885 = vmatpush1.msra.mxu0 0.0
        %6886 = vmatprep.subr.mxu0 0.0
        %6887 = vmatpush1.msra.mxu0 0.0
        %6888 = vmatprep.subr.mxu0 0.0
        %6889 = vmatpush1.msra.mxu0 0.0
        %6890 = vmatprep.subr.mxu0 0.0
        %6891 = vmatpush1.msra.mxu0 0.0
        %6892 = vmatprep.subr.mxu0 0.0
        %6893 = vmatpush1.msra.mxu0 0.0
        %6894 = vmatprep.subr.mxu0 0.0
        %6895 = vmatpush1.msra.mxu0 0.0
        %6896 = vmatprep.subr.mxu0 0.0
        %6897 = vmatpush1.msra.mxu0 0.0
        %6898 = vmatprep.subr.mxu0 0.0
        %6899 = vmatpush1.msra.mxu0 0.0
        %6900 = vmatprep.mubr.f32.mxu0 0.0
        %6901 = vmatmul.mubr.f32.gmra.mrb[0].mxu0 %v6741
        %v6902 = vpop.f32.mrb[0].mxu0
        %v6903 = vadd.f32 0.0, %v6902
        %v6904 = vpop.f32.mrb[0].mxu0
        %6905 = vmatprep.mubr.f32.mxu0 0.0
        %6906 = vmatmul.mubr.f32.gmra.mrb[0].mxu0 %v6744
        %v6907 = vpop.f32.mrb[0].mxu0
        %v6908 = vadd.f32 0.0, %v6907
        %v6909 = vpop.f32.mrb[0].mxu0
        %6910 = vmatprep.mubr.f32.mxu0 0.0
        %6911 = vmatmul.mubr.f32.gmra.mrb[0].mxu0 %v6747
        %v6912 = vpop.f32.mrb[0].mxu0
        %v6913 = vadd.f32 0.0, %v6912
        %v6914 = vpop.f32.mrb[0].mxu0
        %6915 = vmatprep.mubr.f32.mxu0 0.0
        %6916 = vmatmul.mubr.f32.gmra.mrb[0].mxu0 %v6750
        %v6917 = vpop.f32.mrb[0].mxu0
        %v6918 = vadd.f32 0.0, %v6917
        %v6919 = vpop.f32.mrb[0].mxu0
        %6920 = vmatprep.mubr.f32.mxu0 0.0
        %6921 = vmatmul.mubr.f32.gmra.mrb[0].mxu0 %v6753
        %v6922 = vpop.f32.mrb[0].mxu0
        %v6923 = vadd.f32 0.0, %v6922
        %v6924 = vpop.f32.mrb[0].mxu0
        %6925 = vmatprep.mubr.f32.mxu0 0.0
        %6926 = vmatmul.mubr.f32.gmra.mrb[0].mxu0 %v6756
        %v6927 = vpop.f32.mrb[0].mxu0
        %v6928 = vadd.f32 0.0, %v6927
        %v6929 = vpop.f32.mrb[0].mxu0
        %6930 = vmatprep.mubr.f32.mxu0 0.0
        %6931 = vmatmul.mubr.f32.gmra.mrb[0].mxu0 %v6759
        %v6932 = vpop.f32.mrb[0].mxu0
        %v6933 = vadd.f32 0.0, %v6932
        %v6934 = vpop.f32.mrb[0].mxu0
        %6935 = vmatprep.mubr.f32.mxu0 0.0
        %6936 = vmatmul.mubr.f32.gmra.mrb[0].mxu0 %v6762
        %v6937 = vpop.f32.mrb[0].mxu0
        %v6938 = vadd.f32 0.0, %v6937
        %v6939 = vpop.f32.mrb[0].mxu0
        %6940 = vmatprep.mubr.f32.mxu0 0.0
        %6941 = vmatmul.mubr.f32.gmra.mrb[0].mxu0 %v6765
        %v6942 = vpop.f32.mrb[0].mxu0
        %v6943 = vadd.f32 0.0, %v6942
        %v6944 = vpop.f32.mrb[0].mxu0
        %6945 = vmatprep.mubr.f32.mxu0 0.0
        %6946 = vmatmul.mubr.f32.gmra.mrb[0].mxu0 %v6768
        %v6947 = vpop.f32.mrb[0].mxu0
        %v6948 = vadd.f32 0.0, %v6947
        %v6949 = vpop.f32.mrb[0].mxu0
        %6950 = vmatprep.mubr.f32.mxu0 0.0
        %6951 = vmatmul.mubr.f32.gmra.mrb[0].mxu0 %v6771
        %v6952 = vpop.f32.mrb[0].mxu0
        %v6953 = vadd.f32 0.0, %v6952
        %v6954 = vpop.f32.mrb[0].mxu0
        %6955 = vmatprep.mubr.f32.mxu0 0.0
        %6956 = vmatmul.mubr.f32.gmra.mrb[0].mxu0 %v6774
        %v6957 = vpop.f32.mrb[0].mxu0
        %v6958 = vadd.f32 0.0, %v6957
        %v6959 = vpop.f32.mrb[0].mxu0
        %6960 = vmatprep.mubr.f32.mxu0 0.0
        %6961 = vmatmul.mubr.f32.gmra.mrb[0].mxu0 %v6777
        %v6962 = vpop.f32.mrb[0].mxu0
        %v6963 = vadd.f32 0.0, %v6962
        %v6964 = vpop.f32.mrb[0].mxu0
        %6965 = vmatprep.mubr.f32.mxu0 0.0
        %6966 = vmatmul.mubr.f32.gmra.mrb[0].mxu0 %v6780
        %v6967 = vpop.f32.mrb[0].mxu0
        %v6968 = vadd.f32 0.0, %v6967
        %v6969 = vpop.f32.mrb[0].mxu0
        %6970 = vmatprep.mubr.f32.mxu0 0.0
        %6971 = vmatmul.mubr.f32.gmra.mrb[0].mxu0 %v6783
        %v6972 = vpop.f32.mrb[0].mxu0
        %v6973 = vadd.f32 0.0, %v6972
        %v6974 = vpop.f32.mrb[0].mxu0
        %6975 = vmatprep.mubr.f32.mxu0 0.0
        %6976 = vmatmul.mubr.f32.gmra.mrb[0].mxu0 %v6786
        %v6977 = vpop.f32.mrb[0].mxu0
        %v6978 = vadd.f32 0.0, %v6977
        %v6979 = vpop.f32.mrb[0].mxu0
        %6980 = vmatprep.mubr.f32.mxu0 0.0
        %6981 = vmatmul.mubr.f32.gmra.mrb[0].mxu0 %v6789
        %v6982 = vpop.f32.mrb[0].mxu0
        %v6983 = vadd.f32 0.0, %v6982
        %v6984 = vpop.f32.mrb[0].mxu0
        %6985 = vmatprep.mubr.f32.mxu0 0.0
        %6986 = vmatmul.mubr.f32.gmra.mrb[0].mxu0 %v6792
        %v6987 = vpop.f32.mrb[0].mxu0
        %v6988 = vadd.f32 0.0, %v6987
        %v6989 = vpop.f32.mrb[0].mxu0
        %6990 = vmatprep.mubr.f32.mxu0 0.0
        %6991 = vmatmul.mubr.f32.gmra.mrb[0].mxu0 %v6795
        %v6992 = vpop.f32.mrb[0].mxu0
        %v6993 = vadd.f32 0.0, %v6992
        %v6994 = vpop.f32.mrb[0].mxu0
        %6995 = vmatprep.mubr.f32.mxu0 0.0
        %6996 = vmatmul.mubr.f32.gmra.mrb[0].mxu0 %v6798
        %v6997 = vpop.f32.mrb[0].mxu0
        %v6998 = vadd.f32 0.0, %v6997
        %v6999 = vpop.f32.mrb[0].mxu0
        %7000 = vmatprep.mubr.f32.mxu0 0.0
        %7001 = vmatmul.mubr.f32.gmra.mrb[0].mxu0 %v6801
        %v7002 = vpop.f32.mrb[0].mxu0
        %v7003 = vadd.f32 0.0, %v7002
        %v7004 = vpop.f32.mrb[0].mxu0
        %7005 = vmatprep.mubr.f32.mxu0 0.0
        %7006 = vmatmul.mubr.f32.gmra.mrb[0].mxu0 %v6804
        %v7007 = vpop.f32.mrb[0].mxu0
        %v7008 = vadd.f32 0.0, %v7007
        %v7009 = vpop.f32.mrb[0].mxu0
        %7010 = vmatprep.mubr.f32.mxu0 0.0
        %7011 = vmatmul.mubr.f32.gmra.mrb[0].mxu0 %v6807
        %v7012 = vpop.f32.mrb[0].mxu0
        %v7013 = vadd.f32 0.0, %v7012
        %v7014 = vpop.f32.mrb[0].mxu0
        %7015 = vmatprep.mubr.f32.mxu0 0.0
        %7016 = vmatmul.mubr.f32.gmra.mrb[0].mxu0 %v6810
        %v7017 = vpop.f32.mrb[0].mxu0
        %v7018 = vadd.f32 0.0, %v7017
        %v7019 = vpop.f32.mrb[0].mxu0
        %7020 = vmatprep.mubr.f32.mxu0 0.0
        %7021 = vmatmul.mubr.f32.gmra.mrb[0].mxu0 %v6813
        %v7022 = vpop.f32.mrb[0].mxu0
        %v7023 = vadd.f32 0.0, %v7022
        %v7024 = vpop.f32.mrb[0].mxu0
        %7025 = vmatprep.mubr.f32.mxu0 0.0
        %7026 = vmatmul.mubr.f32.gmra.mrb[0].mxu0 %v6816
        %v7027 = vpop.f32.mrb[0].mxu0
        %v7028 = vadd.f32 0.0, %v7027
        %v7029 = vpop.f32.mrb[0].mxu0
        %7030 = vmatprep.mubr.f32.mxu0 0.0
        %7031 = vmatmul.mubr.f32.gmra.mrb[0].mxu0 %v6819
        %v7032 = vpop.f32.mrb[0].mxu0
        %v7033 = vadd.f32 0.0, %v7032
        %v7034 = vpop.f32.mrb[0].mxu0
        %7035 = vmatprep.mubr.f32.mxu0 0.0
        %7036 = vmatmul.mubr.f32.gmra.mrb[0].mxu0 %v6822
        %v7037 = vpop.f32.mrb[0].mxu0
        %v7038 = vadd.f32 0.0, %v7037
        %v7039 = vpop.f32.mrb[0].mxu0
        %7040 = vmatprep.mubr.f32.mxu0 0.0
        %7041 = vmatmul.mubr.f32.gmra.mrb[0].mxu0 %v6825
        %v7042 = vpop.f32.mrb[0].mxu0
        %v7043 = vadd.f32 0.0, %v7042
        %v7044 = vpop.f32.mrb[0].mxu0
        %7045 = vmatprep.mubr.f32.mxu0 0.0
        %7046 = vmatmul.mubr.f32.gmra.mrb[0].mxu0 %v6828
        %v7047 = vpop.f32.mrb[0].mxu0
        %v7048 = vadd.f32 0.0, %v7047
        %v7049 = vpop.f32.mrb[0].mxu0
        %7050 = vmatprep.mubr.f32.mxu0 0.0
        %7051 = vmatmul.mubr.f32.gmra.mrb[0].mxu0 %v6831
        %v7052 = vpop.f32.mrb[0].mxu0
        %v7053 = vadd.f32 0.0, %v7052
        %v7054 = vpop.f32.mrb[0].mxu0
        %7055 = vmatprep.mubr.f32.mxu0 0.0
        %7056 = vmatmul.mubr.f32.gmra.mrb[0].mxu0 %v6834
        %v7057 = vpop.f32.mrb[0].mxu0
        %v7058 = vadd.f32 0.0, %v7057
        %v7059 = vpop.f32.mrb[0].mxu0
        %7060 = vdwg.mxu0
        %v7061 = vadd.f32 %v6671, %v6903
        %v7062 = vadd.f32 %v6672, %v6908
        %v7063 = vadd.f32 %v6673, %v6913
        %v7064 = vadd.f32 %v6674, %v6918
        %v7065 = vadd.f32 %v6675, %v6923
        %v7066 = vadd.f32 %v6676, %v6928
        %v7067 = vadd.f32 %v6677, %v6933
        %v7068 = vadd.f32 %v6678, %v6938
        %v7069 = vadd.f32 %v6679, %v6943
        %v7070 = vadd.f32 %v6680, %v6948
        %v7071 = vadd.f32 %v6681, %v6953
        %v7072 = vadd.f32 %v6682, %v6958
        %v7073 = vadd.f32 %v6683, %v6963
        %v7074 = vadd.f32 %v6684, %v6968
        %v7075 = vadd.f32 %v6685, %v6973
        %v7076 = vadd.f32 %v6686, %v6978
        %v7077 = vadd.f32 %v6687, %v6983
        %v7078 = vadd.f32 %v6688, %v6988
        %v7079 = vadd.f32 %v6689, %v6993
        %v7080 = vadd.f32 %v6690, %v6998
        %v7081 = vadd.f32 %v6691, %v7003
        %v7082 = vadd.f32 %v6692, %v7008
        %v7083 = vadd.f32 %v6693, %v7013
        %v7084 = vadd.f32 %v6694, %v7018
        %v7085 = vadd.f32 %v6695, %v7023
        %v7086 = vadd.f32 %v6696, %v7028
        %v7087 = vadd.f32 %v6697, %v7033
        %v7088 = vadd.f32 %v6698, %v7038
        %v7089 = vadd.f32 %v6699, %v7043
        %v7090 = vadd.f32 %v6700, %v7048
        %v7091 = vadd.f32 %v6701, %v7053
        %v7092 = vadd.f32 %v6702, %v7058
        %v7093 = vld [vmem:[%s6312 + $0x2] sm:$0xff]
        %v7094 = vld [vmem:[%s6312 + $0xa] sm:$0xff]
        %v7095 = vld [vmem:[%s6312 + $0x1a] sm:$0xff]
        %v7096 = vld [vmem:[%s6312 + $0x22] sm:$0xff]
        %v7097 = vld [vmem:[%s6312 + $0x32] sm:$0xff]
        %v7098 = vld [vmem:[%s6312 + $0x3a] sm:$0xff]
        %v7099 = vld [vmem:[%s6312 + $0x4a] sm:$0xff]
        %v7100 = vld [vmem:[%s6312 + $0x52] sm:$0xff]
        %v7101 = vld [vmem:[%s6312 + $0x62] sm:$0xff]
        %v7102 = vld [vmem:[%s6312 + $0x6a] sm:$0xff]
        %v7103 = vld [vmem:[%s6312 + $0x7a] sm:$0xff]
        %v7104 = vld [vmem:[%s6312 + $0x82] sm:$0xff]
        %v7105 = vld [vmem:[%s6312 + $0x92] sm:$0xff]
        %v7106 = vld [vmem:[%s6312 + $0x9a] sm:$0xff]
        %v7107 = vld [vmem:[%s6312 + $0xaa] sm:$0xff]
        %v7108 = vld [vmem:[%s6312 + $0xb2] sm:$0xff]
        %v7109 = vld [vmem:[%s6312 + $0xc2] sm:$0xff]
        %v7110 = vld [vmem:[%s6312 + $0xca] sm:$0xff]
        %v7111 = vld [vmem:[%s6312 + $0xda] sm:$0xff]
        %v7112 = vld [vmem:[%s6312 + $0xe2] sm:$0xff]
        %v7113 = vld [vmem:[%s6312 + $0xf2] sm:$0xff]
        %v7114 = vld [vmem:[%s6312 + $0xfa] sm:$0xff]
        %v7115 = vld [vmem:[%s6312 + $0x10a] sm:$0xff]
        %v7116 = vld [vmem:[%s6312 + $0x112] sm:$0xff]
        %v7117 = vld [vmem:[%s6312 + $0x122] sm:$0xff]
        %v7118 = vld [vmem:[%s6312 + $0x12a] sm:$0xff]
        %v7119 = vld [vmem:[%s6312 + $0x13a] sm:$0xff]
        %v7120 = vld [vmem:[%s6312 + $0x142] sm:$0xff]
        %v7121 = vld [vmem:[%s6312 + $0x152] sm:$0xff]
        %v7122 = vld [vmem:[%s6312 + $0x15a] sm:$0xff]
        %v7123 = vld [vmem:[%s6312 + $0x16a] sm:$0xff]
        %v7124 = vld [vmem:[%s6312 + $0x172] sm:$0xff]
        %s7125 = scalar_lea.vmem %s3, 256
        %v7126 = vld [vmem:[%s7125] sm:$0xff]
        %v7127 = vld [vmem:[%s7125 + $0x8] sm:$0xff]
        %v7128 = vld [vmem:[%s7125 + $0x10] sm:$0xff]
        %v7129 = vld [vmem:[%s7125 + $0x18] sm:$0xff]
        %v7131 = vsel %vm297, %v7093, 0
        %v7134 = vsel %vm297, %v7094, 0
        %v7137 = vsel %vm297, %v7095, 0
        %v7140 = vsel %vm297, %v7096, 0
        %v7143 = vsel %vm297, %v7097, 0
        %v7146 = vsel %vm297, %v7098, 0
        %v7149 = vsel %vm297, %v7099, 0
        %v7152 = vsel %vm297, %v7100, 0
        %v7155 = vsel %vm297, %v7101, 0
        %v7158 = vsel %vm297, %v7102, 0
        %v7161 = vsel %vm297, %v7103, 0
        %v7164 = vsel %vm297, %v7104, 0
        %v7167 = vsel %vm297, %v7105, 0
        %v7170 = vsel %vm297, %v7106, 0
        %v7173 = vsel %vm297, %v7107, 0
        %v7176 = vsel %vm297, %v7108, 0
        %v7179 = vsel %vm297, %v7109, 0
        %v7182 = vsel %vm297, %v7110, 0
        %v7185 = vsel %vm297, %v7111, 0
        %v7188 = vsel %vm297, %v7112, 0
        %v7191 = vsel %vm297, %v7113, 0
        %v7194 = vsel %vm297, %v7114, 0
        %v7197 = vsel %vm297, %v7115, 0
        %v7200 = vsel %vm297, %v7116, 0
        %v7203 = vsel %vm297, %v7117, 0
        %v7206 = vsel %vm297, %v7118, 0
        %v7209 = vsel %vm297, %v7119, 0
        %v7212 = vsel %vm297, %v7120, 0
        %v7215 = vsel %vm297, %v7121, 0
        %v7218 = vsel %vm297, %v7122, 0
        %v7221 = vsel %vm297, %v7123, 0
        %v7224 = vsel %vm297, %v7124, 0
        %7226 = vmatprep.subr.mxu0 0.0
        %7227 = vmatpush1.msra.mxu0 %v7126
        %7228 = vmatprep.subr.mxu0 0.0
        %7229 = vmatpush1.msra.mxu0 %v7127
        %7230 = vmatprep.subr.mxu0 0.0
        %7231 = vmatpush1.msra.mxu0 %v7128
        %7232 = vmatprep.subr.mxu0 0.0
        %7233 = vmatpush1.msra.mxu0 %v7129
        %7234 = vmatprep.subr.mxu0 0.0
        %7235 = vmatpush1.msra.mxu0 0.0
        %7236 = vmatprep.subr.mxu0 0.0
        %7237 = vmatpush1.msra.mxu0 0.0
        %7238 = vmatprep.subr.mxu0 0.0
        %7239 = vmatpush1.msra.mxu0 0.0
        %7240 = vmatprep.subr.mxu0 0.0
        %7241 = vmatpush1.msra.mxu0 0.0
        %7242 = vmatprep.subr.mxu0 0.0
        %7243 = vmatpush1.msra.mxu0 0.0
        %7244 = vmatprep.subr.mxu0 0.0
        %7245 = vmatpush1.msra.mxu0 0.0
        %7246 = vmatprep.subr.mxu0 0.0
        %7247 = vmatpush1.msra.mxu0 0.0
        %7248 = vmatprep.subr.mxu0 0.0
        %7249 = vmatpush1.msra.mxu0 0.0
        %7250 = vmatprep.subr.mxu0 0.0
        %7251 = vmatpush1.msra.mxu0 0.0
        %7252 = vmatprep.subr.mxu0 0.0
        %7253 = vmatpush1.msra.mxu0 0.0
        %7254 = vmatprep.subr.mxu0 0.0
        %7255 = vmatpush1.msra.mxu0 0.0
        %7256 = vmatprep.subr.mxu0 0.0
        %7257 = vmatpush1.msra.mxu0 0.0
        %7258 = vmatprep.subr.mxu0 0.0
        %7259 = vmatpush1.msra.mxu0 0.0
        %7260 = vmatprep.subr.mxu0 0.0
        %7261 = vmatpush1.msra.mxu0 0.0
        %7262 = vmatprep.subr.mxu0 0.0
        %7263 = vmatpush1.msra.mxu0 0.0
        %7264 = vmatprep.subr.mxu0 0.0
        %7265 = vmatpush1.msra.mxu0 0.0
        %7266 = vmatprep.subr.mxu0 0.0
        %7267 = vmatpush1.msra.mxu0 0.0
        %7268 = vmatprep.subr.mxu0 0.0
        %7269 = vmatpush1.msra.mxu0 0.0
        %7270 = vmatprep.subr.mxu0 0.0
        %7271 = vmatpush1.msra.mxu0 0.0
        %7272 = vmatprep.subr.mxu0 0.0
        %7273 = vmatpush1.msra.mxu0 0.0
        %7274 = vmatprep.subr.mxu0 0.0
        %7275 = vmatpush1.msra.mxu0 0.0
        %7276 = vmatprep.subr.mxu0 0.0
        %7277 = vmatpush1.msra.mxu0 0.0
        %7278 = vmatprep.subr.mxu0 0.0
        %7279 = vmatpush1.msra.mxu0 0.0
        %7280 = vmatprep.subr.mxu0 0.0
        %7281 = vmatpush1.msra.mxu0 0.0
        %7282 = vmatprep.subr.mxu0 0.0
        %7283 = vmatpush1.msra.mxu0 0.0
        %7284 = vmatprep.subr.mxu0 0.0
        %7285 = vmatpush1.msra.mxu0 0.0
        %7286 = vmatprep.subr.mxu0 0.0
        %7287 = vmatpush1.msra.mxu0 0.0
        %7288 = vmatprep.subr.mxu0 0.0
        %7289 = vmatpush1.msra.mxu0 0.0
        %7290 = vmatprep.mubr.f32.mxu0 0.0
        %7291 = vmatmul.mubr.f32.gmra.mrb[0].mxu0 %v7131
        %v7292 = vpop.f32.mrb[0].mxu0
        %v7293 = vadd.f32 0.0, %v7292
        %v7294 = vpop.f32.mrb[0].mxu0
        %7295 = vmatprep.mubr.f32.mxu0 0.0
        %7296 = vmatmul.mubr.f32.gmra.mrb[0].mxu0 %v7134
        %v7297 = vpop.f32.mrb[0].mxu0
        %v7298 = vadd.f32 0.0, %v7297
        %v7299 = vpop.f32.mrb[0].mxu0
        %7300 = vmatprep.mubr.f32.mxu0 0.0
        %7301 = vmatmul.mubr.f32.gmra.mrb[0].mxu0 %v7137
        %v7302 = vpop.f32.mrb[0].mxu0
        %v7303 = vadd.f32 0.0, %v7302
        %v7304 = vpop.f32.mrb[0].mxu0
        %7305 = vmatprep.mubr.f32.mxu0 0.0
        %7306 = vmatmul.mubr.f32.gmra.mrb[0].mxu0 %v7140
        %v7307 = vpop.f32.mrb[0].mxu0
        %v7308 = vadd.f32 0.0, %v7307
        %v7309 = vpop.f32.mrb[0].mxu0
        %7310 = vmatprep.mubr.f32.mxu0 0.0
        %7311 = vmatmul.mubr.f32.gmra.mrb[0].mxu0 %v7143
        %v7312 = vpop.f32.mrb[0].mxu0
        %v7313 = vadd.f32 0.0, %v7312
        %v7314 = vpop.f32.mrb[0].mxu0
        %7315 = vmatprep.mubr.f32.mxu0 0.0
        %7316 = vmatmul.mubr.f32.gmra.mrb[0].mxu0 %v7146
        %v7317 = vpop.f32.mrb[0].mxu0
        %v7318 = vadd.f32 0.0, %v7317
        %v7319 = vpop.f32.mrb[0].mxu0
        %7320 = vmatprep.mubr.f32.mxu0 0.0
        %7321 = vmatmul.mubr.f32.gmra.mrb[0].mxu0 %v7149
        %v7322 = vpop.f32.mrb[0].mxu0
        %v7323 = vadd.f32 0.0, %v7322
        %v7324 = vpop.f32.mrb[0].mxu0
        %7325 = vmatprep.mubr.f32.mxu0 0.0
        %7326 = vmatmul.mubr.f32.gmra.mrb[0].mxu0 %v7152
        %v7327 = vpop.f32.mrb[0].mxu0
        %v7328 = vadd.f32 0.0, %v7327
        %v7329 = vpop.f32.mrb[0].mxu0
        %7330 = vmatprep.mubr.f32.mxu0 0.0
        %7331 = vmatmul.mubr.f32.gmra.mrb[0].mxu0 %v7155
        %v7332 = vpop.f32.mrb[0].mxu0
        %v7333 = vadd.f32 0.0, %v7332
        %v7334 = vpop.f32.mrb[0].mxu0
        %7335 = vmatprep.mubr.f32.mxu0 0.0
        %7336 = vmatmul.mubr.f32.gmra.mrb[0].mxu0 %v7158
        %v7337 = vpop.f32.mrb[0].mxu0
        %v7338 = vadd.f32 0.0, %v7337
        %v7339 = vpop.f32.mrb[0].mxu0
        %7340 = vmatprep.mubr.f32.mxu0 0.0
        %7341 = vmatmul.mubr.f32.gmra.mrb[0].mxu0 %v7161
        %v7342 = vpop.f32.mrb[0].mxu0
        %v7343 = vadd.f32 0.0, %v7342
        %v7344 = vpop.f32.mrb[0].mxu0
        %7345 = vmatprep.mubr.f32.mxu0 0.0
        %7346 = vmatmul.mubr.f32.gmra.mrb[0].mxu0 %v7164
        %v7347 = vpop.f32.mrb[0].mxu0
        %v7348 = vadd.f32 0.0, %v7347
        %v7349 = vpop.f32.mrb[0].mxu0
        %7350 = vmatprep.mubr.f32.mxu0 0.0
        %7351 = vmatmul.mubr.f32.gmra.mrb[0].mxu0 %v7167
        %v7352 = vpop.f32.mrb[0].mxu0
        %v7353 = vadd.f32 0.0, %v7352
        %v7354 = vpop.f32.mrb[0].mxu0
        %7355 = vmatprep.mubr.f32.mxu0 0.0
        %7356 = vmatmul.mubr.f32.gmra.mrb[0].mxu0 %v7170
        %v7357 = vpop.f32.mrb[0].mxu0
        %v7358 = vadd.f32 0.0, %v7357
        %v7359 = vpop.f32.mrb[0].mxu0
        %7360 = vmatprep.mubr.f32.mxu0 0.0
        %7361 = vmatmul.mubr.f32.gmra.mrb[0].mxu0 %v7173
        %v7362 = vpop.f32.mrb[0].mxu0
        %v7363 = vadd.f32 0.0, %v7362
        %v7364 = vpop.f32.mrb[0].mxu0
        %7365 = vmatprep.mubr.f32.mxu0 0.0
        %7366 = vmatmul.mubr.f32.gmra.mrb[0].mxu0 %v7176
        %v7367 = vpop.f32.mrb[0].mxu0
        %v7368 = vadd.f32 0.0, %v7367
        %v7369 = vpop.f32.mrb[0].mxu0
        %7370 = vmatprep.mubr.f32.mxu0 0.0
        %7371 = vmatmul.mubr.f32.gmra.mrb[0].mxu0 %v7179
        %v7372 = vpop.f32.mrb[0].mxu0
        %v7373 = vadd.f32 0.0, %v7372
        %v7374 = vpop.f32.mrb[0].mxu0
        %7375 = vmatprep.mubr.f32.mxu0 0.0
        %7376 = vmatmul.mubr.f32.gmra.mrb[0].mxu0 %v7182
        %v7377 = vpop.f32.mrb[0].mxu0
        %v7378 = vadd.f32 0.0, %v7377
        %v7379 = vpop.f32.mrb[0].mxu0
        %7380 = vmatprep.mubr.f32.mxu0 0.0
        %7381 = vmatmul.mubr.f32.gmra.mrb[0].mxu0 %v7185
        %v7382 = vpop.f32.mrb[0].mxu0
        %v7383 = vadd.f32 0.0, %v7382
        %v7384 = vpop.f32.mrb[0].mxu0
        %7385 = vmatprep.mubr.f32.mxu0 0.0
        %7386 = vmatmul.mubr.f32.gmra.mrb[0].mxu0 %v7188
        %v7387 = vpop.f32.mrb[0].mxu0
        %v7388 = vadd.f32 0.0, %v7387
        %v7389 = vpop.f32.mrb[0].mxu0
        %7390 = vmatprep.mubr.f32.mxu0 0.0
        %7391 = vmatmul.mubr.f32.gmra.mrb[0].mxu0 %v7191
        %v7392 = vpop.f32.mrb[0].mxu0
        %v7393 = vadd.f32 0.0, %v7392
        %v7394 = vpop.f32.mrb[0].mxu0
        %7395 = vmatprep.mubr.f32.mxu0 0.0
        %7396 = vmatmul.mubr.f32.gmra.mrb[0].mxu0 %v7194
        %v7397 = vpop.f32.mrb[0].mxu0
        %v7398 = vadd.f32 0.0, %v7397
        %v7399 = vpop.f32.mrb[0].mxu0
        %7400 = vmatprep.mubr.f32.mxu0 0.0
        %7401 = vmatmul.mubr.f32.gmra.mrb[0].mxu0 %v7197
        %v7402 = vpop.f32.mrb[0].mxu0
        %v7403 = vadd.f32 0.0, %v7402
        %v7404 = vpop.f32.mrb[0].mxu0
        %7405 = vmatprep.mubr.f32.mxu0 0.0
        %7406 = vmatmul.mubr.f32.gmra.mrb[0].mxu0 %v7200
        %v7407 = vpop.f32.mrb[0].mxu0
        %v7408 = vadd.f32 0.0, %v7407
        %v7409 = vpop.f32.mrb[0].mxu0
        %7410 = vmatprep.mubr.f32.mxu0 0.0
        %7411 = vmatmul.mubr.f32.gmra.mrb[0].mxu0 %v7203
        %v7412 = vpop.f32.mrb[0].mxu0
        %v7413 = vadd.f32 0.0, %v7412
        %v7414 = vpop.f32.mrb[0].mxu0
        %7415 = vmatprep.mubr.f32.mxu0 0.0
        %7416 = vmatmul.mubr.f32.gmra.mrb[0].mxu0 %v7206
        %v7417 = vpop.f32.mrb[0].mxu0
        %v7418 = vadd.f32 0.0, %v7417
        %v7419 = vpop.f32.mrb[0].mxu0
        %7420 = vmatprep.mubr.f32.mxu0 0.0
        %7421 = vmatmul.mubr.f32.gmra.mrb[0].mxu0 %v7209
        %v7422 = vpop.f32.mrb[0].mxu0
        %v7423 = vadd.f32 0.0, %v7422
        %v7424 = vpop.f32.mrb[0].mxu0
        %7425 = vmatprep.mubr.f32.mxu0 0.0
        %7426 = vmatmul.mubr.f32.gmra.mrb[0].mxu0 %v7212
        %v7427 = vpop.f32.mrb[0].mxu0
        %v7428 = vadd.f32 0.0, %v7427
        %v7429 = vpop.f32.mrb[0].mxu0
        %7430 = vmatprep.mubr.f32.mxu0 0.0
        %7431 = vmatmul.mubr.f32.gmra.mrb[0].mxu0 %v7215
        %v7432 = vpop.f32.mrb[0].mxu0
        %v7433 = vadd.f32 0.0, %v7432
        %v7434 = vpop.f32.mrb[0].mxu0
        %7435 = vmatprep.mubr.f32.mxu0 0.0
        %7436 = vmatmul.mubr.f32.gmra.mrb[0].mxu0 %v7218
        %v7437 = vpop.f32.mrb[0].mxu0
        %v7438 = vadd.f32 0.0, %v7437
        %v7439 = vpop.f32.mrb[0].mxu0
        %7440 = vmatprep.mubr.f32.mxu0 0.0
        %7441 = vmatmul.mubr.f32.gmra.mrb[0].mxu0 %v7221
        %v7442 = vpop.f32.mrb[0].mxu0
        %v7443 = vadd.f32 0.0, %v7442
        %v7444 = vpop.f32.mrb[0].mxu0
        %7445 = vmatprep.mubr.f32.mxu0 0.0
        %7446 = vmatmul.mubr.f32.gmra.mrb[0].mxu0 %v7224
        %v7447 = vpop.f32.mrb[0].mxu0
        %v7448 = vadd.f32 0.0, %v7447
        %v7449 = vpop.f32.mrb[0].mxu0
        %7450 = vdwg.mxu0
        %v7451 = vadd.f32 %v7061, %v7293
        %v7452 = vadd.f32 %v7062, %v7298
        %v7453 = vadd.f32 %v7063, %v7303
        %v7454 = vadd.f32 %v7064, %v7308
        %v7455 = vadd.f32 %v7065, %v7313
        %v7456 = vadd.f32 %v7066, %v7318
        %v7457 = vadd.f32 %v7067, %v7323
        %v7458 = vadd.f32 %v7068, %v7328
        %v7459 = vadd.f32 %v7069, %v7333
        %v7460 = vadd.f32 %v7070, %v7338
        %v7461 = vadd.f32 %v7071, %v7343
        %v7462 = vadd.f32 %v7072, %v7348
        %v7463 = vadd.f32 %v7073, %v7353
        %v7464 = vadd.f32 %v7074, %v7358
        %v7465 = vadd.f32 %v7075, %v7363
        %v7466 = vadd.f32 %v7076, %v7368
        %v7467 = vadd.f32 %v7077, %v7373
        %v7468 = vadd.f32 %v7078, %v7378
        %v7469 = vadd.f32 %v7079, %v7383
        %v7470 = vadd.f32 %v7080, %v7388
        %v7471 = vadd.f32 %v7081, %v7393
        %v7472 = vadd.f32 %v7082, %v7398
        %v7473 = vadd.f32 %v7083, %v7403
        %v7474 = vadd.f32 %v7084, %v7408
        %v7475 = vadd.f32 %v7085, %v7413
        %v7476 = vadd.f32 %v7086, %v7418
        %v7477 = vadd.f32 %v7087, %v7423
        %v7478 = vadd.f32 %v7088, %v7428
        %v7479 = vadd.f32 %v7089, %v7433
        %v7480 = vadd.f32 %v7090, %v7438
        %v7481 = vadd.f32 %v7091, %v7443
        %v7482 = vadd.f32 %v7092, %v7448
        %v7483 = vld [vmem:[%s4] sm:$0x1]
        %v7485 = vlaneseq
        %v7486 = vshrl.u32 %v7485, 7
        %v7487 = vsub.s32 0, %v7486
        %v7488 = vrot.slane %v7483, %v7487
        %v7490 = vadd.f32 %v7451, %v7488
        %v7491 = vadd.f32 %v7452, %v7488
        %v7492 = vadd.f32 %v7453, %v7488
        %v7493 = vadd.f32 %v7454, %v7488
        %v7494 = vadd.f32 %v7455, %v7488
        %v7495 = vadd.f32 %v7456, %v7488
        %v7496 = vadd.f32 %v7457, %v7488
        %v7497 = vadd.f32 %v7458, %v7488
        %v7498 = vadd.f32 %v7459, %v7488
        %v7499 = vadd.f32 %v7460, %v7488
        %v7500 = vadd.f32 %v7461, %v7488
        %v7501 = vadd.f32 %v7462, %v7488
        %v7502 = vadd.f32 %v7463, %v7488
        %v7503 = vadd.f32 %v7464, %v7488
        %v7504 = vadd.f32 %v7465, %v7488
        %v7505 = vadd.f32 %v7466, %v7488
        %v7506 = vadd.f32 %v7467, %v7488
        %v7507 = vadd.f32 %v7468, %v7488
        %v7508 = vadd.f32 %v7469, %v7488
        %v7509 = vadd.f32 %v7470, %v7488
        %v7510 = vadd.f32 %v7471, %v7488
        %v7511 = vadd.f32 %v7472, %v7488
        %v7512 = vadd.f32 %v7473, %v7488
        %v7513 = vadd.f32 %v7474, %v7488
        %v7514 = vadd.f32 %v7475, %v7488
        %v7515 = vadd.f32 %v7476, %v7488
        %v7516 = vadd.f32 %v7477, %v7488
        %v7517 = vadd.f32 %v7478, %v7488
        %v7518 = vadd.f32 %v7479, %v7488
        %v7519 = vadd.f32 %v7480, %v7488
        %v7520 = vadd.f32 %v7481, %v7488
        %v7521 = vadd.f32 %v7482, %v7488
        %v7522 = vsel %vm297, %v7490, 0.0
        %v7523 = vsel %vm297, %v7491, 0.0
        %v7524 = vadd.f32 %v7522, %v7523
        %v7525 = vsel %vm297, %v7492, 0.0
        %v7526 = vadd.f32 %v7524, %v7525
        %v7527 = vsel %vm297, %v7493, 0.0
        %v7528 = vadd.f32 %v7526, %v7527
        %v7529 = vsel %vm297, %v7494, 0.0
        %v7530 = vadd.f32 %v7528, %v7529
        %v7531 = vsel %vm297, %v7495, 0.0
        %v7532 = vadd.f32 %v7530, %v7531
        %v7533 = vsel %vm297, %v7496, 0.0
        %v7534 = vadd.f32 %v7532, %v7533
        %v7535 = vsel %vm297, %v7497, 0.0
        %v7536 = vadd.f32 %v7534, %v7535
        %v7537 = vsel %vm297, %v7498, 0.0
        %v7538 = vadd.f32 %v7536, %v7537
        %v7539 = vsel %vm297, %v7499, 0.0
        %v7540 = vadd.f32 %v7538, %v7539
        %v7541 = vsel %vm297, %v7500, 0.0
        %v7542 = vadd.f32 %v7540, %v7541
        %v7543 = vsel %vm297, %v7501, 0.0
        %v7544 = vadd.f32 %v7542, %v7543
        %v7545 = vsel %vm297, %v7502, 0.0
        %v7546 = vadd.f32 %v7544, %v7545
        %v7547 = vsel %vm297, %v7503, 0.0
        %v7548 = vadd.f32 %v7546, %v7547
        %v7549 = vsel %vm297, %v7504, 0.0
        %v7550 = vadd.f32 %v7548, %v7549
        %v7551 = vsel %vm297, %v7505, 0.0
        %v7552 = vadd.f32 %v7550, %v7551
        %v7553 = vsel %vm297, %v7506, 0.0
        %v7554 = vadd.f32 %v7552, %v7553
        %v7555 = vsel %vm297, %v7507, 0.0
        %v7556 = vadd.f32 %v7554, %v7555
        %v7557 = vsel %vm297, %v7508, 0.0
        %v7558 = vadd.f32 %v7556, %v7557
        %v7559 = vsel %vm297, %v7509, 0.0
        %v7560 = vadd.f32 %v7558, %v7559
        %v7561 = vsel %vm297, %v7510, 0.0
        %v7562 = vadd.f32 %v7560, %v7561
        %v7563 = vsel %vm297, %v7511, 0.0
        %v7564 = vadd.f32 %v7562, %v7563
        %v7565 = vsel %vm297, %v7512, 0.0
        %v7566 = vadd.f32 %v7564, %v7565
        %v7567 = vsel %vm297, %v7513, 0.0
        %v7568 = vadd.f32 %v7566, %v7567
        %v7569 = vsel %vm297, %v7514, 0.0
        %v7570 = vadd.f32 %v7568, %v7569
        %v7571 = vsel %vm297, %v7515, 0.0
        %v7572 = vadd.f32 %v7570, %v7571
        %v7573 = vsel %vm297, %v7516, 0.0
        %v7574 = vadd.f32 %v7572, %v7573
        %v7575 = vsel %vm297, %v7517, 0.0
        %v7576 = vadd.f32 %v7574, %v7575
        %v7577 = vsel %vm297, %v7518, 0.0
        %v7578 = vadd.f32 %v7576, %v7577
        %v7579 = vsel %vm297, %v7519, 0.0
        %v7580 = vadd.f32 %v7578, %v7579
        %v7581 = vsel %vm297, %v7520, 0.0
        %v7582 = vadd.f32 %v7580, %v7581
        %v7583 = vsel %vm297, %v7521, 0.0
        %v7584 = vadd.f32 %v7582, %v7583
        %v7585 = vrot.slane %v7584, 4
        %v7586 = vadd.f32 %v7584, %v7585
        %v7587 = vrot.slane %v7586, 2
        %v7588 = vadd.f32 %v7586, %v7587
        %v7589 = vrot.slane %v7588, 1
        %v7590 = vadd.f32 %v7588, %v7589
        %v7591 = vmul.f32 %v7590, %v3779
        %v7592 = vsub.f32 %v7490, %v7591
        %v7593 = vsub.f32 %v7491, %v7591
        %v7594 = vsub.f32 %v7492, %v7591
        %v7595 = vsub.f32 %v7493, %v7591
        %v7596 = vsub.f32 %v7494, %v7591
        %v7597 = vsub.f32 %v7495, %v7591
        %v7598 = vsub.f32 %v7496, %v7591
        %v7599 = vsub.f32 %v7497, %v7591
        %v7600 = vsub.f32 %v7498, %v7591
        %v7601 = vsub.f32 %v7499, %v7591
        %v7602 = vsub.f32 %v7500, %v7591
        %v7603 = vsub.f32 %v7501, %v7591
        %v7604 = vsub.f32 %v7502, %v7591
        %v7605 = vsub.f32 %v7503, %v7591
        %v7606 = vsub.f32 %v7504, %v7591
        %v7607 = vsub.f32 %v7505, %v7591
        %v7608 = vsub.f32 %v7506, %v7591
        %v7609 = vsub.f32 %v7507, %v7591
        %v7610 = vsub.f32 %v7508, %v7591
        %v7611 = vsub.f32 %v7509, %v7591
        %v7612 = vsub.f32 %v7510, %v7591
        %v7613 = vsub.f32 %v7511, %v7591
        %v7614 = vsub.f32 %v7512, %v7591
        %v7615 = vsub.f32 %v7513, %v7591
        %v7616 = vsub.f32 %v7514, %v7591
        %v7617 = vsub.f32 %v7515, %v7591
        %v7618 = vsub.f32 %v7516, %v7591
        %v7619 = vsub.f32 %v7517, %v7591
        %v7620 = vsub.f32 %v7518, %v7591
        %v7621 = vsub.f32 %v7519, %v7591
        %v7622 = vsub.f32 %v7520, %v7591
        %v7623 = vsub.f32 %v7521, %v7591
        %v7624 = vmul.f32 %v7592, %v7592
        %v7625 = vmul.f32 %v7593, %v7593
        %v7626 = vmul.f32 %v7594, %v7594
        %v7627 = vmul.f32 %v7595, %v7595
        %v7628 = vmul.f32 %v7596, %v7596
        %v7629 = vmul.f32 %v7597, %v7597
        %v7630 = vmul.f32 %v7598, %v7598
        %v7631 = vmul.f32 %v7599, %v7599
        %v7632 = vmul.f32 %v7600, %v7600
        %v7633 = vmul.f32 %v7601, %v7601
        %v7634 = vmul.f32 %v7602, %v7602
        %v7635 = vmul.f32 %v7603, %v7603
        %v7636 = vmul.f32 %v7604, %v7604
        %v7637 = vmul.f32 %v7605, %v7605
        %v7638 = vmul.f32 %v7606, %v7606
        %v7639 = vmul.f32 %v7607, %v7607
        %v7640 = vmul.f32 %v7608, %v7608
        %v7641 = vmul.f32 %v7609, %v7609
        %v7642 = vmul.f32 %v7610, %v7610
        %v7643 = vmul.f32 %v7611, %v7611
        %v7644 = vmul.f32 %v7612, %v7612
        %v7645 = vmul.f32 %v7613, %v7613
        %v7646 = vmul.f32 %v7614, %v7614
        %v7647 = vmul.f32 %v7615, %v7615
        %v7648 = vmul.f32 %v7616, %v7616
        %v7649 = vmul.f32 %v7617, %v7617
        %v7650 = vmul.f32 %v7618, %v7618
        %v7651 = vmul.f32 %v7619, %v7619
        %v7652 = vmul.f32 %v7620, %v7620
        %v7653 = vmul.f32 %v7621, %v7621
        %v7654 = vmul.f32 %v7622, %v7622
        %v7655 = vmul.f32 %v7623, %v7623
        %v7656 = vsel %vm297, %v7624, 0.0
        %v7657 = vsel %vm297, %v7625, 0.0
        %v7658 = vadd.f32 %v7656, %v7657
        %v7659 = vsel %vm297, %v7626, 0.0
        %v7660 = vadd.f32 %v7658, %v7659
        %v7661 = vsel %vm297, %v7627, 0.0
        %v7662 = vadd.f32 %v7660, %v7661
        %v7663 = vsel %vm297, %v7628, 0.0
        %v7664 = vadd.f32 %v7662, %v7663
        %v7665 = vsel %vm297, %v7629, 0.0
        %v7666 = vadd.f32 %v7664, %v7665
        %v7667 = vsel %vm297, %v7630, 0.0
        %v7668 = vadd.f32 %v7666, %v7667
        %v7669 = vsel %vm297, %v7631, 0.0
        %v7670 = vadd.f32 %v7668, %v7669
        %v7671 = vsel %vm297, %v7632, 0.0
        %v7672 = vadd.f32 %v7670, %v7671
        %v7673 = vsel %vm297, %v7633, 0.0
        %v7674 = vadd.f32 %v7672, %v7673
        %v7675 = vsel %vm297, %v7634, 0.0
        %v7676 = vadd.f32 %v7674, %v7675
        %v7677 = vsel %vm297, %v7635, 0.0
        %v7678 = vadd.f32 %v7676, %v7677
        %v7679 = vsel %vm297, %v7636, 0.0
        %v7680 = vadd.f32 %v7678, %v7679
        %v7681 = vsel %vm297, %v7637, 0.0
        %v7682 = vadd.f32 %v7680, %v7681
        %v7683 = vsel %vm297, %v7638, 0.0
        %v7684 = vadd.f32 %v7682, %v7683
        %v7685 = vsel %vm297, %v7639, 0.0
        %v7686 = vadd.f32 %v7684, %v7685
        %v7687 = vsel %vm297, %v7640, 0.0
        %v7688 = vadd.f32 %v7686, %v7687
        %v7689 = vsel %vm297, %v7641, 0.0
        %v7690 = vadd.f32 %v7688, %v7689
        %v7691 = vsel %vm297, %v7642, 0.0
        %v7692 = vadd.f32 %v7690, %v7691
        %v7693 = vsel %vm297, %v7643, 0.0
        %v7694 = vadd.f32 %v7692, %v7693
        %v7695 = vsel %vm297, %v7644, 0.0
        %v7696 = vadd.f32 %v7694, %v7695
        %v7697 = vsel %vm297, %v7645, 0.0
        %v7698 = vadd.f32 %v7696, %v7697
        %v7699 = vsel %vm297, %v7646, 0.0
        %v7700 = vadd.f32 %v7698, %v7699
        %v7701 = vsel %vm297, %v7647, 0.0
        %v7702 = vadd.f32 %v7700, %v7701
        %v7703 = vsel %vm297, %v7648, 0.0
        %v7704 = vadd.f32 %v7702, %v7703
        %v7705 = vsel %vm297, %v7649, 0.0
        %v7706 = vadd.f32 %v7704, %v7705
        %v7707 = vsel %vm297, %v7650, 0.0
        %v7708 = vadd.f32 %v7706, %v7707
        %v7709 = vsel %vm297, %v7651, 0.0
        %v7710 = vadd.f32 %v7708, %v7709
        %v7711 = vsel %vm297, %v7652, 0.0
        %v7712 = vadd.f32 %v7710, %v7711
        %v7713 = vsel %vm297, %v7653, 0.0
        %v7714 = vadd.f32 %v7712, %v7713
        %v7715 = vsel %vm297, %v7654, 0.0
        %v7716 = vadd.f32 %v7714, %v7715
        %v7717 = vsel %vm297, %v7655, 0.0
        %v7718 = vadd.f32 %v7716, %v7717
        %v7719 = vrot.slane %v7718, 4
        %v7720 = vadd.f32 %v7718, %v7719
        %v7721 = vrot.slane %v7720, 2
        %v7722 = vadd.f32 %v7720, %v7721
        %v7723 = vrot.slane %v7722, 1
        %v7724 = vadd.f32 %v7722, %v7723
        %v7725 = vmul.f32 %v7724, %v3779
        %v7726 = vadd.f32 %v7725, 1e-05
        %v7727 = vrsqrt.pop %v7726
        %v7728 = vmul.f32 %v7592, %v7727
        %v7729 = vmul.f32 %v7593, %v7727
        %v7730 = vmul.f32 %v7594, %v7727
        %v7731 = vmul.f32 %v7595, %v7727
        %v7732 = vmul.f32 %v7596, %v7727
        %v7733 = vmul.f32 %v7597, %v7727
        %v7734 = vmul.f32 %v7598, %v7727
        %v7735 = vmul.f32 %v7599, %v7727
        %v7736 = vmul.f32 %v7600, %v7727
        %v7737 = vmul.f32 %v7601, %v7727
        %v7738 = vmul.f32 %v7602, %v7727
        %v7739 = vmul.f32 %v7603, %v7727
        %v7740 = vmul.f32 %v7604, %v7727
        %v7741 = vmul.f32 %v7605, %v7727
        %v7742 = vmul.f32 %v7606, %v7727
        %v7743 = vmul.f32 %v7607, %v7727
        %v7744 = vmul.f32 %v7608, %v7727
        %v7745 = vmul.f32 %v7609, %v7727
        %v7746 = vmul.f32 %v7610, %v7727
        %v7747 = vmul.f32 %v7611, %v7727
        %v7748 = vmul.f32 %v7612, %v7727
        %v7749 = vmul.f32 %v7613, %v7727
        %v7750 = vmul.f32 %v7614, %v7727
        %v7751 = vmul.f32 %v7615, %v7727
        %v7752 = vmul.f32 %v7616, %v7727
        %v7753 = vmul.f32 %v7617, %v7727
        %v7754 = vmul.f32 %v7618, %v7727
        %v7755 = vmul.f32 %v7619, %v7727
        %v7756 = vmul.f32 %v7620, %v7727
        %v7757 = vmul.f32 %v7621, %v7727
        %v7758 = vmul.f32 %v7622, %v7727
        %v7759 = vmul.f32 %v7623, %v7727
        %v7760 = vadd.f32 %v224, %v7728
        %v7761 = vadd.f32 %v225, %v7729
        %v7762 = vadd.f32 %v226, %v7730
        %v7763 = vadd.f32 %v227, %v7731
        %v7764 = vadd.f32 %v228, %v7732
        %v7765 = vadd.f32 %v229, %v7733
        %v7766 = vadd.f32 %v230, %v7734
        %v7767 = vadd.f32 %v231, %v7735
        %v7768 = vadd.f32 %v232, %v7736
        %v7769 = vadd.f32 %v233, %v7737
        %v7770 = vadd.f32 %v234, %v7738
        %v7771 = vadd.f32 %v235, %v7739
        %v7772 = vadd.f32 %v236, %v7740
        %v7773 = vadd.f32 %v237, %v7741
        %v7774 = vadd.f32 %v238, %v7742
        %v7775 = vadd.f32 %v239, %v7743
        %v7776 = vadd.f32 %v240, %v7744
        %v7777 = vadd.f32 %v241, %v7745
        %v7778 = vadd.f32 %v242, %v7746
        %v7779 = vadd.f32 %v243, %v7747
        %v7780 = vadd.f32 %v244, %v7748
        %v7781 = vadd.f32 %v245, %v7749
        %v7782 = vadd.f32 %v246, %v7750
        %v7783 = vadd.f32 %v247, %v7751
        %v7784 = vadd.f32 %v248, %v7752
        %v7785 = vadd.f32 %v249, %v7753
        %v7786 = vadd.f32 %v250, %v7754
        %v7787 = vadd.f32 %v251, %v7755
        %v7788 = vadd.f32 %v252, %v7756
        %v7789 = vadd.f32 %v253, %v7757
        %v7790 = vadd.f32 %v254, %v7758
        %v7791 = vadd.f32 %v255, %v7759
        %7792 = vst.msk [vmem:[%s217] sm:$0xff] %vm297, %v7760
        %7793 = vst.msk [vmem:[%s217 + $0x8] sm:$0xff] %vm297, %v7761
        %7794 = vst.msk [vmem:[%s217 + $0x10] sm:$0xff] %vm297, %v7762
        %7795 = vst.msk [vmem:[%s217 + $0x18] sm:$0xff] %vm297, %v7763
        %7796 = vst.msk [vmem:[%s217 + $0x20] sm:$0xff] %vm297, %v7764
        %7797 = vst.msk [vmem:[%s217 + $0x28] sm:$0xff] %vm297, %v7765
        %7798 = vst.msk [vmem:[%s217 + $0x30] sm:$0xff] %vm297, %v7766
        %7799 = vst.msk [vmem:[%s217 + $0x38] sm:$0xff] %vm297, %v7767
        %7800 = vst.msk [vmem:[%s217 + $0x40] sm:$0xff] %vm297, %v7768
        %7801 = vst.msk [vmem:[%s217 + $0x48] sm:$0xff] %vm297, %v7769
        %7802 = vst.msk [vmem:[%s217 + $0x50] sm:$0xff] %vm297, %v7770
        %7803 = vst.msk [vmem:[%s217 + $0x58] sm:$0xff] %vm297, %v7771
        %7804 = vst.msk [vmem:[%s217 + $0x60] sm:$0xff] %vm297, %v7772
        %7805 = vst.msk [vmem:[%s217 + $0x68] sm:$0xff] %vm297, %v7773
        %7806 = vst.msk [vmem:[%s217 + $0x70] sm:$0xff] %vm297, %v7774
        %7807 = vst.msk [vmem:[%s217 + $0x78] sm:$0xff] %vm297, %v7775
        %7808 = vst.msk [vmem:[%s217 + $0x80] sm:$0xff] %vm297, %v7776
        %7809 = vst.msk [vmem:[%s217 + $0x88] sm:$0xff] %vm297, %v7777
        %7810 = vst.msk [vmem:[%s217 + $0x90] sm:$0xff] %vm297, %v7778
        %7811 = vst.msk [vmem:[%s217 + $0x98] sm:$0xff] %vm297, %v7779
        %7812 = vst.msk [vmem:[%s217 + $0xa0] sm:$0xff] %vm297, %v7780
        %7813 = vst.msk [vmem:[%s217 + $0xa8] sm:$0xff] %vm297, %v7781
        %7814 = vst.msk [vmem:[%s217 + $0xb0] sm:$0xff] %vm297, %v7782
        %7815 = vst.msk [vmem:[%s217 + $0xb8] sm:$0xff] %vm297, %v7783
        %7816 = vst.msk [vmem:[%s217 + $0xc0] sm:$0xff] %vm297, %v7784
        %7817 = vst.msk [vmem:[%s217 + $0xc8] sm:$0xff] %vm297, %v7785
        %7818 = vst.msk [vmem:[%s217 + $0xd0] sm:$0xff] %vm297, %v7786
        %7819 = vst.msk [vmem:[%s217 + $0xd8] sm:$0xff] %vm297, %v7787
        %7820 = vst.msk [vmem:[%s217 + $0xe0] sm:$0xff] %vm297, %v7788
        %7821 = vst.msk [vmem:[%s217 + $0xe8] sm:$0xff] %vm297, %v7789
        %7822 = vst.msk [vmem:[%s217 + $0xf0] sm:$0xff] %vm297, %v7790
        %7823 = vst.msk [vmem:[%s217 + $0xf8] sm:$0xff] %vm297, %v7791
        %s7824 = sand.u32 %s137, 1
        %s7825 = scalar_lea.sflag [#allocation4], %s7824
        %s7826 = sand.u32 %s137, 1
        %s7827 = smul.addr %s7826, 256
        %s7828 = scalar_lea.vmem [#allocation3], %s7827
        // Predicated region
        $region41: #{tpu_custom_call.1} parent=39 // pred_check
          %p7829 = pneg %p147
        $region42: #{tpu_custom_call.1} parent=39 // pred_check_branch
          %7831 = sbr.rel (%p7829) target = $region44
        $region43: #{tpu_custom_call.1} parent=39 // pred_region
          %s7833 = ssub.s32 4096, 4096
          %7834 = vsyncadd %s7825, %s7833
          %s7835 = smul.addr %s19, 32
          %s7836 = smul.addr %s7835, 128
          %s7837 = scalar_lea.hbm %s5, %s7836
          %s7838 = sshll.u32 %s7828, 4
          %s7839 = int_to_ptr.vmem [resolvable:$true] %s7838
          %7844 = dma.vmem_to_hbm [thread:$0]  %s7839, 4096, %s7837, %s7825, 128, 128, 8
        $region44: #{tpu_custom_call.1} parent=39 // pred_fallthru
          _
      $region40: #{tpu_custom_call.1} parent=5 // pred_fallthru
        _
      %p7845 = scmp.le.s32.totalorder 2, %s14
      // Predicated region
      $region45: #{tpu_custom_call.1} parent=5 // pred_check
        %p7846 = pneg %p7845
      $region46: #{tpu_custom_call.1} parent=5 // pred_check_branch
        %7848 = sbr.rel (%p7846) target = $region48
      $region47: #{tpu_custom_call.1} parent=5 // pred_region
        %s7849 = ssub.s32 %s14, 2
        // Predicated region
        $region49: #{tpu_custom_call.1} parent=47 // pred_check
          %p7850 = pneg %p153
        $region50: #{tpu_custom_call.1} parent=47 // pred_check_branch
          %7852 = sbr.rel (%p7850) target = $region52
        $region51: #{tpu_custom_call.1} parent=47 // pred_region
          %s7853 = sand.u32 %s138, 1
          %s7854 = scalar_lea.sflag [#allocation4], %s7853
          %s7855 = sand.u32 %s138, 1
          %s7856 = smul.addr %s7855, 256
          %s7857 = scalar_lea.vmem [#allocation3], %s7856
          %7858 = dma.done %s7854, 4096
        $region52: #{tpu_custom_call.1} parent=47 // pred_fallthru
          _
      $region48: #{tpu_custom_call.1} parent=5 // pred_fallthru
        _
    $region6: #{tpu_custom_call.1} parent=1 // loop_footer
      %s18 = sadd.s32 1, %s14
    $region7: #{tpu_custom_call.1} parent=1 // loop_footer_branch
      %13 = sbr.rel target = $region3
    $region8: #{tpu_custom_call.1} parent=1 // loop_exit
      _
    %7859 = vsyncpa [#allocation4], 1
    %s7860 = scalar_lea.sflag [#allocation4], 1
    %7861 = vsyncpa %s7860, 1

</llo_original>
